<compile_context>
chip_gen: v7x
topology: tpu7x:2x2x1
jax: 0.10.0
libtpu: 0.0.40
codegen_flags: <defaults>
</compile_context>

<pallas_src>
import functools

import jax
import jax.numpy as jnp
from jax.experimental import pallas as pl
from jax.experimental.pallas import tpu as pltpu


# ----------------------------------------------------------------------------
# Fused conv kernel: 4 row-tap MXU matmuls + bias + (InstanceNorm) + LeakyReLU
# ----------------------------------------------------------------------------
def _conv_fused_kernel(x_ref, w_ref, b_ref, o_ref, *, wo, tm, normalize,
                       n_row_tiles):
    """x_ref: (1, 2, (Ho+1)*Wo, 4*Cin) bf16  (row-phase split, col-im2col'd)
       w_ref: (4, 4*Cin, Cout)         bf16  (one weight matrix per row tap)
       b_ref: (1, Cout)                f32
       o_ref: (1, tm, Cout)            f32   (tm rows of the flat Ho*Wo dim)"""
    cout = w_ref.shape[-1]
    if n_row_tiles > 1:
        m0 = pl.multiple_of(pl.program_id(1) * tm, tm)
    else:
        m0 = 0  # static slices when the whole sample is one tile

    acc = jnp.zeros((tm, cout), jnp.float32)
    for kh in range(4):                       # unrolled: 4 MXU matmuls
        pr, dr = kh % 2, kh // 2              # row parity / row shift
        a = x_ref[0, pr, pl.ds(m0 + dr * wo, tm), :]
        acc = acc + jnp.dot(a, w_ref[kh], preferred_element_type=jnp.float32)
    acc = acc + b_ref[...]

    if normalize:
        # InstanceNorm2d(affine=False, eps=1e-5): per-sample per-channel stats
        # over the full spatial extent (tm == Ho*Wo for normalized layers).
        mean = jnp.mean(acc, axis=0, keepdims=True)
        var = jnp.mean((acc - mean) ** 2, axis=0, keepdims=True)  # biased
        acc = (acc - mean) * jax.lax.rsqrt(var + 1e-5)

    o_ref[0] = jnp.where(acc > 0, acc, 0.2 * acc)     # LeakyReLU(0.2)


def _prep_conv_input(x):
    """NHWC (B,H,W,C) f32 -> (B, 2, (Ho+1)*Wo, 4*C) bf16.

    pad-1, column im2col (stride 2 -> the only ~2x expansion) and a row
    even/odd phase split, so the kernel expresses the 4x4/s2 conv as 4
    shifted matmuls of K=4*C without a 16*C patch matrix ever hitting HBM."""
    b, h, w, c = x.shape
    ho, wo = h // 2, w // 2
    xp = jnp.pad(x, ((0, 0), (1, 1), (1, 1), (0, 0)))
    cols = [xp[:, :, kw:kw + 2 * wo:2, :] for kw in range(4)]
    xc = jnp.concatenate(cols, axis=-1)                    # (B, H+2, Wo, 4C)
    xr = xc.reshape(b, ho + 1, 2, wo, 4 * c).transpose(0, 2, 1, 3, 4)
    return xr.reshape(b, 2, (ho + 1) * wo, 4 * c).astype(jnp.bfloat16)


def conv4x4_s2_p1(x, w, b, *, normalize):
    """x: (B,H,W,Cin) NHWC; w: (4,4,Cin,Cout); b: (Cout,) -> (B,H/2,W/2,Cout)."""
    bsz, h, wd, cin = x.shape
    ho, wo = h // 2, wd // 2
    cout = w.shape[-1]
    m = ho * wo

    xf = _prep_conv_input(x)
    w2 = w.reshape(4, 4 * cin, cout).astype(jnp.bfloat16)  # (kw,cin) flatten
    b2 = b.reshape(1, cout).astype(jnp.float32)

    if normalize:
        tm = m                       # fused InstanceNorm needs the whole sample
    else:
        tm = min(m, 256)             # M-tile conv1 so acc stays small
        if m % tm:
            tm = m
    n_tiles = m // tm

    out = pl.pallas_call(
        functools.partial(_conv_fused_kernel, wo=wo, tm=tm,
                          normalize=normalize, n_row_tiles=n_tiles),
        out_shape=jax.ShapeDtypeStruct((bsz, m, cout), jnp.float32),
        grid=(bsz, n_tiles),
        in_specs=[
            # full sample block: stays VMEM-resident across its row tiles
            pl.BlockSpec((1, 2, (ho + 1) * wo, 4 * cin),
                         lambda bi, ti: (bi, 0, 0, 0)),
            pl.BlockSpec((4, 4 * cin, cout), lambda bi, ti: (0, 0, 0)),
            pl.BlockSpec((1, cout), lambda bi, ti: (0, 0)),
        ],
        out_specs=pl.BlockSpec((1, tm, cout), lambda bi, ti: (bi, ti, 0)),
        compiler_params=pltpu.CompilerParams(
            dimension_semantics=("parallel",
                                 "arbitrary" if normalize else "parallel")),
    )(xf, w2, b2)
    return out.reshape(bsz, ho, wo, cout)


# ----------------------------------------------------------------------------
# Tail kernel: text Linear + collapsed 4x4 output conv + Sigmoid (one launch)
# ----------------------------------------------------------------------------
def _tail_kernel(xo_ref, t_ref, wl_ref, bl_ref, wx_ref, we_ref, o_ref):
    """xo_ref: (B, 16*256) f32   flattened conv4 output (h,w,c order)
       t_ref : (B, E)      bf16  text
       wl_ref: (E, Eout)   bf16, bl_ref: (1, Eout) f32   Linear params
       wx_ref: (1, 16*256) f32   out-conv weights for the x_out channels
       we_ref: (1, Eout)   f32   out-conv weights for emb channels, summed kh,kw
       o_ref : (B, 1)      f32"""
    emb = jnp.dot(t_ref[...], wl_ref[...],
                  preferred_element_type=jnp.float32) + bl_ref[...]
    logit = jnp.sum(xo_ref[...] * wx_ref[...], axis=-1, keepdims=True)
    logit = logit + jnp.sum(emb * we_ref[...], axis=-1, keepdims=True)
    o_ref[...] = jax.nn.sigmoid(logit)


# ----------------------------------------------------------------------------
# Parameters (deterministic synthetic init)
# ----------------------------------------------------------------------------
def init_params(key, channels, embed_dim=256, embed_out_dim=128):
    ks = jax.random.split(key, 12)

    def nrm(k, shape, scale=0.05):
        return jax.random.normal(k, shape, jnp.float32) * scale

    # NOTE: conv weights stored as (kh, kw, cin, cout); real PyTorch Conv2d
    # weights (out,in,kh,kw) would need a permute before use.
    return {
        "c1_w": nrm(ks[0], (4, 4, channels, 64)), "c1_b": nrm(ks[1], (64,), 0.01),
        "c2_w": nrm(ks[2], (4, 4, 64, 128)),      "c2_b": nrm(ks[3], (128,), 0.01),
        "c3_w": nrm(ks[4], (4, 4, 128, 256)),     "c3_b": nrm(ks[5], (256,), 0.01),
        "c4_w": nrm(ks[6], (4, 4, 256, 256)),     "c4_b": nrm(ks[7], (256,), 0.01),
        "lin_w": nrm(ks[8], (embed_dim, embed_out_dim)),
        "lin_b": nrm(ks[9], (embed_out_dim,), 0.01),
        # output conv: Conv2d(256+embed_out_dim, 1, 4, 1, 0, bias=False)
        "out_w": nrm(ks[10], (4, 4, 256 + embed_out_dim, 1)),
    }


# ----------------------------------------------------------------------------
# Forward pass (mirrors Discriminator.forward)
# ----------------------------------------------------------------------------
def discriminator_forward(params, x_nchw, text):
    bsz = x_nchw.shape[0]
    x = jnp.transpose(x_nchw, (0, 2, 3, 1)).astype(jnp.float32)  # NCHW -> NHWC

    # conv1: zero-pad 64 -> 128 output channels (lane-dense stores), slice back.
    c1_w = jnp.pad(params["c1_w"], ((0, 0), (0, 0), (0, 0), (0, 64)))
    c1_b = jnp.pad(params["c1_b"], ((0, 64),))
    x = conv4x4_s2_p1(x, c1_w, c1_b, normalize=False)[..., :64]
    x = conv4x4_s2_p1(x, params["c2_w"], params["c2_b"], normalize=True)
    x = conv4x4_s2_p1(x, params["c3_w"], params["c3_b"], normalize=True)
    x_out = conv4x4_s2_p1(x, params["c4_w"], params["c4_b"], normalize=True)
    _, h, w, c_feat = x_out.shape
    assert h == 4 and w == 4, "final 4x4 valid conv assumes 64x64 input images"

    embed_out_dim = params["lin_w"].shape[1]
    out_w = params["out_w"]                                  # (4,4,256+Eout,1)
    wx = out_w[:, :, :c_feat, 0].reshape(1, h * w * c_feat)
    we = out_w[:, :, c_feat:, 0].sum(axis=(0, 1)).reshape(1, embed_out_dim)

    xo_flat = x_out.reshape(bsz, h * w * c_feat)             # (h,w,c) order
    t = text.reshape(bsz, -1).astype(jnp.bfloat16)
    wl = params["lin_w"].astype(jnp.bfloat16)
    bl = params["lin_b"].reshape(1, embed_out_dim)

    out = pl.pallas_call(
        _tail_kernel,
        out_shape=jax.ShapeDtypeStruct((bsz, 1), jnp.float32),
        grid=(1,),
        in_specs=[
            pl.BlockSpec(xo_flat.shape, lambda i: (0, 0)),
            pl.BlockSpec(t.shape, lambda i: (0, 0)),
            pl.BlockSpec(wl.shape, lambda i: (0, 0)),
            pl.BlockSpec(bl.shape, lambda i: (0, 0)),
            pl.BlockSpec(wx.shape, lambda i: (0, 0)),
            pl.BlockSpec(we.shape, lambda i: (0, 0)),
        ],
        out_specs=pl.BlockSpec((bsz, 1), lambda i: (0, 0)),
        compiler_params=pltpu.CompilerParams(
            dimension_semantics=("arbitrary",)),
    )(xo_flat, t, wl, bl, wx, we)

    out = jnp.squeeze(out)                                   # torch .squeeze()
    x_out_nchw = jnp.transpose(x_out, (0, 3, 1, 2))          # back to NCHW
    return out, x_out_nchw


# ----------------------------------------------------------------------------
if __name__ == "__main__":
    key = jax.random.PRNGKey(0)
    k_params, k_x, k_t = jax.random.split(key, 3)

    batch, channels, img = 2, 3, 64       # smallest spatial size the net supports
    embed_dim = 256

    params = init_params(k_params, channels, embed_dim=embed_dim)
    x = jax.random.normal(k_x, (batch, channels, img, img), jnp.float32)
    text = jax.random.normal(k_t, (batch, embed_dim), jnp.float32)

    fwd = jax.jit(discriminator_forward)
    out, x_out = fwd(params, x, text)
    jax.block_until_ready((out, x_out))

    assert out.shape == (batch,), out.shape
    assert x_out.shape == (batch, 256, 4, 4), x_out.shape
    assert bool(jnp.all((out >= 0.0) & (out <= 1.0)))
    print("KERNEL_OK")
</pallas_src>

<mosaic_0001>
module attributes {stable_mosaic.version = 11 : i64} {
  func.func @_conv_fused_kernel(%arg0: i32, %arg1: i32, %arg2: memref<1x2x1056x12xbf16, #tpu.memory_space<vmem>>, %arg3: memref<4x12x128xbf16, #tpu.memory_space<vmem>>, %arg4: memref<1x128xf32, #tpu.memory_space<vmem>>, %arg5: memref<1x256x128xf32, #tpu.memory_space<vmem>>) attributes {dimension_semantics = [#tpu.dimension_semantics<parallel>, #tpu.dimension_semantics<parallel>], iteration_bounds = array<i64: 2, 4>, scalar_prefetch = 0 : i64, scratch_operands = 0 : i64, tpu.core_type = #tpu.core_type<tc>, window_params = [{transform_indices = @transform_0, window_bounds = array<i64: 1, 2, 1056, 12>}, {pipeline_mode = #tpu.pipeline_mode<synchronous>, transform_indices = @transform_1, window_bounds = array<i64: 4, 12, 128>}, {pipeline_mode = #tpu.pipeline_mode<synchronous>, transform_indices = @transform_2, window_bounds = array<i64: 1, 128>}, {transform_indices = @transform_3, window_bounds = array<i64: 1, 256, 128>}]} {
    %c256_i32 = arith.constant 256 : i32
    %0 = arith.muli %arg1, %c256_i32 : i32
    %1 = tpu.assume_multiple %0, 256 : i32
    %cst = arith.constant 0.000000e+00 : f32
    %2 = vector.broadcast %cst : f32 to vector<256x128xf32>
    %c0_i32 = arith.constant 0 : i32
    %3 = arith.addi %1, %c0_i32 : i32
    %c0 = arith.constant 0 : index
    %c0_0 = arith.constant 0 : index
    %4 = arith.index_cast %3 : i32 to index
    %c0_1 = arith.constant 0 : index
    %5 = vector.load %arg2[%c0, %c0_0, %4, %c0_1] : memref<1x2x1056x12xbf16, #tpu.memory_space<vmem>>, vector<1x1x256x12xbf16>
    %6 = vector.shape_cast %5 : vector<1x1x256x12xbf16> to vector<256x12xbf16>
    %c0_2 = arith.constant 0 : index
    %c0_3 = arith.constant 0 : index
    %c0_4 = arith.constant 0 : index
    %7 = vector.load %arg3[%c0_2, %c0_3, %c0_4] : memref<4x12x128xbf16, #tpu.memory_space<vmem>>, vector<1x12x128xbf16>
    %8 = vector.shape_cast %7 : vector<1x12x128xbf16> to vector<12x128xbf16>
    %cst_5 = arith.constant dense<0.000000e+00> : vector<256x128xf32>
    %9 = tpu.matmul %6, %8, %cst_5 {dimension_numbers = #tpu.dot_dimension_numbers<[1], [0], [0], [1], [0, 0, 1, 1], [], []>} : vector<256x12xbf16>, vector<12x128xbf16>, vector<256x128xf32> -> vector<256x128xf32>
    %10 = arith.addf %2, %9 : vector<256x128xf32>
    %c0_i32_6 = arith.constant 0 : i32
    %11 = arith.addi %1, %c0_i32_6 : i32
    %c0_7 = arith.constant 0 : index
    %c1 = arith.constant 1 : index
    %12 = arith.index_cast %11 : i32 to index
    %c0_8 = arith.constant 0 : index
    %13 = vector.load %arg2[%c0_7, %c1, %12, %c0_8] : memref<1x2x1056x12xbf16, #tpu.memory_space<vmem>>, vector<1x1x256x12xbf16>
    %14 = vector.shape_cast %13 : vector<1x1x256x12xbf16> to vector<256x12xbf16>
    %c1_9 = arith.constant 1 : index
    %c0_10 = arith.constant 0 : index
    %c0_11 = arith.constant 0 : index
    %15 = vector.load %arg3[%c1_9, %c0_10, %c0_11] : memref<4x12x128xbf16, #tpu.memory_space<vmem>>, vector<1x12x128xbf16>
    %16 = vector.shape_cast %15 : vector<1x12x128xbf16> to vector<12x128xbf16>
    %cst_12 = arith.constant dense<0.000000e+00> : vector<256x128xf32>
    %17 = tpu.matmul %14, %16, %cst_12 {dimension_numbers = #tpu.dot_dimension_numbers<[1], [0], [0], [1], [0, 0, 1, 1], [], []>} : vector<256x12xbf16>, vector<12x128xbf16>, vector<256x128xf32> -> vector<256x128xf32>
    %18 = arith.addf %10, %17 : vector<256x128xf32>
    %c32_i32 = arith.constant 32 : i32
    %19 = arith.addi %1, %c32_i32 : i32
    %c0_13 = arith.constant 0 : index
    %c0_14 = arith.constant 0 : index
    %20 = arith.index_cast %19 : i32 to index
    %c0_15 = arith.constant 0 : index
    %21 = vector.load %arg2[%c0_13, %c0_14, %20, %c0_15] : memref<1x2x1056x12xbf16, #tpu.memory_space<vmem>>, vector<1x1x256x12xbf16>
    %22 = vector.shape_cast %21 : vector<1x1x256x12xbf16> to vector<256x12xbf16>
    %c2 = arith.constant 2 : index
    %c0_16 = arith.constant 0 : index
    %c0_17 = arith.constant 0 : index
    %23 = vector.load %arg3[%c2, %c0_16, %c0_17] : memref<4x12x128xbf16, #tpu.memory_space<vmem>>, vector<1x12x128xbf16>
    %24 = vector.shape_cast %23 : vector<1x12x128xbf16> to vector<12x128xbf16>
    %cst_18 = arith.constant dense<0.000000e+00> : vector<256x128xf32>
    %25 = tpu.matmul %22, %24, %cst_18 {dimension_numbers = #tpu.dot_dimension_numbers<[1], [0], [0], [1], [0, 0, 1, 1], [], []>} : vector<256x12xbf16>, vector<12x128xbf16>, vector<256x128xf32> -> vector<256x128xf32>
    %26 = arith.addf %18, %25 : vector<256x128xf32>
    %c32_i32_19 = arith.constant 32 : i32
    %27 = arith.addi %1, %c32_i32_19 : i32
    %c0_20 = arith.constant 0 : index
    %c1_21 = arith.constant 1 : index
    %28 = arith.index_cast %27 : i32 to index
    %c0_22 = arith.constant 0 : index
    %29 = vector.load %arg2[%c0_20, %c1_21, %28, %c0_22] : memref<1x2x1056x12xbf16, #tpu.memory_space<vmem>>, vector<1x1x256x12xbf16>
    %30 = vector.shape_cast %29 : vector<1x1x256x12xbf16> to vector<256x12xbf16>
    %c3 = arith.constant 3 : index
    %c0_23 = arith.constant 0 : index
    %c0_24 = arith.constant 0 : index
    %31 = vector.load %arg3[%c3, %c0_23, %c0_24] : memref<4x12x128xbf16, #tpu.memory_space<vmem>>, vector<1x12x128xbf16>
    %32 = vector.shape_cast %31 : vector<1x12x128xbf16> to vector<12x128xbf16>
    %cst_25 = arith.constant dense<0.000000e+00> : vector<256x128xf32>
    %33 = tpu.matmul %30, %32, %cst_25 {dimension_numbers = #tpu.dot_dimension_numbers<[1], [0], [0], [1], [0, 0, 1, 1], [], []>} : vector<256x12xbf16>, vector<12x128xbf16>, vector<256x128xf32> -> vector<256x128xf32>
    %34 = arith.addf %26, %33 : vector<256x128xf32>
    %c0_26 = arith.constant 0 : index
    %c0_27 = arith.constant 0 : index
    %35 = vector.load %arg4[%c0_26, %c0_27] : memref<1x128xf32, #tpu.memory_space<vmem>>, vector<1x128xf32>
    %36 = vector.broadcast %35 : vector<1x128xf32> to vector<256x128xf32>
    %37 = arith.addf %34, %36 : vector<256x128xf32>
    %cst_28 = arith.constant 0.000000e+00 : f32
    %38 = vector.broadcast %cst_28 : f32 to vector<256x128xf32>
    %39 = arith.cmpf ogt, %37, %38 : vector<256x128xf32>
    %cst_29 = arith.constant 2.000000e-01 : f32
    %40 = vector.broadcast %cst_29 : f32 to vector<256x128xf32>
    %41 = arith.mulf %40, %37 : vector<256x128xf32>
    %42 = arith.select %39, %37, %41 : vector<256x128xi1>, vector<256x128xf32>
    %c0_30 = arith.constant 0 : index
    %c0_31 = arith.constant 0 : index
    %c0_32 = arith.constant 0 : index
    %43 = vector.load %arg5[%c0_30, %c0_31, %c0_32] : memref<1x256x128xf32, #tpu.memory_space<vmem>>, vector<1x256x128xf32>
    %44 = vector.shape_cast %43 : vector<1x256x128xf32> to vector<256x128xf32>
    %45 = vector.shape_cast %42 : vector<256x128xf32> to vector<1x256x128xf32>
    tpu.vector_store %arg5[%c0_30, %c0_31, %c0_32], %45 {strides = array<i32>} : memref<1x256x128xf32, #tpu.memory_space<vmem>>, vector<1x256x128xf32>,
    return
  }
  func.func @transform_0(%arg0: i32, %arg1: i32) -> (i32, i32, i32, i32) {
    %c0_i32 = arith.constant 0 : i32
    %c0_i32_0 = arith.constant 0 : i32
    %c0_i32_1 = arith.constant 0 : i32
    %c0_i32_2 = arith.constant 0 : i32
    return %arg0, %c0_i32, %c0_i32_0, %c0_i32_1 : i32, i32, i32, i32
  }
  func.func @transform_1(%arg0: i32, %arg1: i32) -> (i32, i32, i32) {
    %c0_i32 = arith.constant 0 : i32
    %c0_i32_0 = arith.constant 0 : i32
    %c0_i32_1 = arith.constant 0 : i32
    %c0_i32_2 = arith.constant 0 : i32
    return %c0_i32, %c0_i32_0, %c0_i32_1 : i32, i32, i32
  }
  func.func @transform_2(%arg0: i32, %arg1: i32) -> (i32, i32) {
    %c0_i32 = arith.constant 0 : i32
    %c0_i32_0 = arith.constant 0 : i32
    %c0_i32_1 = arith.constant 0 : i32
    return %c0_i32, %c0_i32_0 : i32, i32
  }
  func.func @transform_3(%arg0: i32, %arg1: i32) -> (i32, i32, i32) {
    %c0_i32 = arith.constant 0 : i32
    %c0_i32_0 = arith.constant 0 : i32
    return %arg0, %arg1, %c0_i32 : i32, i32, i32
  }
}

module attributes {stable_mosaic.version = 11 : i64} {
  func.func @_conv_fused_kernel(%arg0: i32, %arg1: i32, %arg2: memref<1x2x272x256xbf16, #tpu.memory_space<vmem>>, %arg3: memref<4x256x128xbf16, #tpu.memory_space<vmem>>, %arg4: memref<1x128xf32, #tpu.memory_space<vmem>>, %arg5: memref<1x256x128xf32, #tpu.memory_space<vmem>>) attributes {dimension_semantics = [#tpu.dimension_semantics<parallel>, #tpu.dimension_semantics<arbitrary>], iteration_bounds = array<i64: 2, 1>, scalar_prefetch = 0 : i64, scratch_operands = 0 : i64, tpu.core_type = #tpu.core_type<tc>, window_params = [{transform_indices = @transform_0, window_bounds = array<i64: 1, 2, 272, 256>}, {pipeline_mode = #tpu.pipeline_mode<synchronous>, transform_indices = @transform_1, window_bounds = array<i64: 4, 256, 128>}, {pipeline_mode = #tpu.pipeline_mode<synchronous>, transform_indices = @transform_2, window_bounds = array<i64: 1, 128>}, {transform_indices = @transform_3, window_bounds = array<i64: 1, 256, 128>}]} {
    %cst = arith.constant 0.000000e+00 : f32
    %0 = vector.broadcast %cst : f32 to vector<256x128xf32>
    %c0 = arith.constant 0 : index
    %c0_0 = arith.constant 0 : index
    %c0_1 = arith.constant 0 : index
    %c0_2 = arith.constant 0 : index
    %1 = vector.load %arg2[%c0, %c0_0, %c0_1, %c0_2] : memref<1x2x272x256xbf16, #tpu.memory_space<vmem>>, vector<1x1x256x256xbf16>
    %2 = vector.shape_cast %1 : vector<1x1x256x256xbf16> to vector<256x256xbf16>
    %c0_3 = arith.constant 0 : index
    %c0_4 = arith.constant 0 : index
    %c0_5 = arith.constant 0 : index
    %3 = vector.load %arg3[%c0_3, %c0_4, %c0_5] : memref<4x256x128xbf16, #tpu.memory_space<vmem>>, vector<1x256x128xbf16>
    %4 = vector.shape_cast %3 : vector<1x256x128xbf16> to vector<256x128xbf16>
    %cst_6 = arith.constant dense<0.000000e+00> : vector<256x128xf32>
    %5 = tpu.matmul %2, %4, %cst_6 {dimension_numbers = #tpu.dot_dimension_numbers<[1], [0], [0], [1], [0, 0, 1, 1], [], []>} : vector<256x256xbf16>, vector<256x128xbf16>, vector<256x128xf32> -> vector<256x128xf32>
    %6 = arith.addf %0, %5 : vector<256x128xf32>
    %c0_7 = arith.constant 0 : index
    %c1 = arith.constant 1 : index
    %c0_8 = arith.constant 0 : index
    %c0_9 = arith.constant 0 : index
    %7 = vector.load %arg2[%c0_7, %c1, %c0_8, %c0_9] : memref<1x2x272x256xbf16, #tpu.memory_space<vmem>>, vector<1x1x256x256xbf16>
    %8 = vector.shape_cast %7 : vector<1x1x256x256xbf16> to vector<256x256xbf16>
    %c1_10 = arith.constant 1 : index
    %c0_11 = arith.constant 0 : index
    %c0_12 = arith.constant 0 : index
    %9 = vector.load %arg3[%c1_10, %c0_11, %c0_12] : memref<4x256x128xbf16, #tpu.memory_space<vmem>>, vector<1x256x128xbf16>
    %10 = vector.shape_cast %9 : vector<1x256x128xbf16> to vector<256x128xbf16>
    %cst_13 = arith.constant dense<0.000000e+00> : vector<256x128xf32>
    %11 = tpu.matmul %8, %10, %cst_13 {dimension_numbers = #tpu.dot_dimension_numbers<[1], [0], [0], [1], [0, 0, 1, 1], [], []>} : vector<256x256xbf16>, vector<256x128xbf16>, vector<256x128xf32> -> vector<256x128xf32>
    %12 = arith.addf %6, %11 : vector<256x128xf32>
    %c0_14 = arith.constant 0 : index
    %c0_15 = arith.constant 0 : index
    %c16 = arith.constant 16 : index
    %c0_16 = arith.constant 0 : index
    %13 = vector.load %arg2[%c0_14, %c0_15, %c16, %c0_16] : memref<1x2x272x256xbf16, #tpu.memory_space<vmem>>, vector<1x1x256x256xbf16>
    %14 = vector.shape_cast %13 : vector<1x1x256x256xbf16> to vector<256x256xbf16>
    %c2 = arith.constant 2 : index
    %c0_17 = arith.constant 0 : index
    %c0_18 = arith.constant 0 : index
    %15 = vector.load %arg3[%c2, %c0_17, %c0_18] : memref<4x256x128xbf16, #tpu.memory_space<vmem>>, vector<1x256x128xbf16>
    %16 = vector.shape_cast %15 : vector<1x256x128xbf16> to vector<256x128xbf16>
    %cst_19 = arith.constant dense<0.000000e+00> : vector<256x128xf32>
    %17 = tpu.matmul %14, %16, %cst_19 {dimension_numbers = #tpu.dot_dimension_numbers<[1], [0], [0], [1], [0, 0, 1, 1], [], []>} : vector<256x256xbf16>, vector<256x128xbf16>, vector<256x128xf32> -> vector<256x128xf32>
    %18 = arith.addf %12, %17 : vector<256x128xf32>
    %c0_20 = arith.constant 0 : index
    %c1_21 = arith.constant 1 : index
    %c16_22 = arith.constant 16 : index
    %c0_23 = arith.constant 0 : index
    %19 = vector.load %arg2[%c0_20, %c1_21, %c16_22, %c0_23] : memref<1x2x272x256xbf16, #tpu.memory_space<vmem>>, vector<1x1x256x256xbf16>
    %20 = vector.shape_cast %19 : vector<1x1x256x256xbf16> to vector<256x256xbf16>
    %c3 = arith.constant 3 : index
    %c0_24 = arith.constant 0 : index
    %c0_25 = arith.constant 0 : index
    %21 = vector.load %arg3[%c3, %c0_24, %c0_25] : memref<4x256x128xbf16, #tpu.memory_space<vmem>>, vector<1x256x128xbf16>
    %22 = vector.shape_cast %21 : vector<1x256x128xbf16> to vector<256x128xbf16>
    %cst_26 = arith.constant dense<0.000000e+00> : vector<256x128xf32>
    %23 = tpu.matmul %20, %22, %cst_26 {dimension_numbers = #tpu.dot_dimension_numbers<[1], [0], [0], [1], [0, 0, 1, 1], [], []>} : vector<256x256xbf16>, vector<256x128xbf16>, vector<256x128xf32> -> vector<256x128xf32>
    %24 = arith.addf %18, %23 : vector<256x128xf32>
    %c0_27 = arith.constant 0 : index
    %c0_28 = arith.constant 0 : index
    %25 = vector.load %arg4[%c0_27, %c0_28] : memref<1x128xf32, #tpu.memory_space<vmem>>, vector<1x128xf32>
    %26 = vector.broadcast %25 : vector<1x128xf32> to vector<256x128xf32>
    %27 = arith.addf %24, %26 : vector<256x128xf32>
    %cst_29 = arith.constant dense<0.000000e+00> : vector<128xf32>
    %28 = vector.multi_reduction <add>, %27, %cst_29 [0] : vector<256x128xf32> to vector<128xf32>
    %29 = vector.shape_cast %28 : vector<128xf32> to vector<1x128xf32>
    %cst_30 = arith.constant 2.560000e+02 : f32
    %30 = vector.broadcast %cst_30 : f32 to vector<1x128xf32>
    %31 = arith.divf %29, %30 : vector<1x128xf32>
    %32 = vector.broadcast %31 : vector<1x128xf32> to vector<256x128xf32>
    %33 = arith.subf %27, %32 : vector<256x128xf32>
    %34 = arith.mulf %33, %33 : vector<256x128xf32>
    %cst_31 = arith.constant dense<0.000000e+00> : vector<128xf32>
    %35 = vector.multi_reduction <add>, %34, %cst_31 [0] : vector<256x128xf32> to vector<128xf32>
    %36 = vector.shape_cast %35 : vector<128xf32> to vector<1x128xf32>
    %cst_32 = arith.constant 2.560000e+02 : f32
    %37 = vector.broadcast %cst_32 : f32 to vector<1x128xf32>
    %38 = arith.divf %36, %37 : vector<1x128xf32>
    %39 = vector.broadcast %31 : vector<1x128xf32> to vector<256x128xf32>
    %40 = arith.subf %27, %39 : vector<256x128xf32>
    %cst_33 = arith.constant 9.99999974E-6 : f32
    %41 = vector.broadcast %cst_33 : f32 to vector<1x128xf32>
    %42 = arith.addf %38, %41 : vector<1x128xf32>
    %43 = math.rsqrt %42 : vector<1x128xf32>
    %44 = vector.broadcast %43 : vector<1x128xf32> to vector<256x128xf32>
    %45 = arith.mulf %40, %44 : vector<256x128xf32>
    %cst_34 = arith.constant 0.000000e+00 : f32
    %46 = vector.broadcast %cst_34 : f32 to vector<256x128xf32>
    %47 = arith.cmpf ogt, %45, %46 : vector<256x128xf32>
    %cst_35 = arith.constant 2.000000e-01 : f32
    %48 = vector.broadcast %cst_35 : f32 to vector<256x128xf32>
    %49 = arith.mulf %48, %45 : vector<256x128xf32>
    %50 = arith.select %47, %45, %49 : vector<256x128xi1>, vector<256x128xf32>
    %c0_36 = arith.constant 0 : index
    %c0_37 = arith.constant 0 : index
    %c0_38 = arith.constant 0 : index
    %51 = vector.load %arg5[%c0_36, %c0_37, %c0_38] : memref<1x256x128xf32, #tpu.memory_space<vmem>>, vector<1x256x128xf32>
    %52 = vector.shape_cast %51 : vector<1x256x128xf32> to vector<256x128xf32>
    %53 = vector.shape_cast %50 : vector<256x128xf32> to vector<1x256x128xf32>
    tpu.vector_store %arg5[%c0_36, %c0_37, %c0_38], %53 {strides = array<i32>} : memref<1x256x128xf32, #tpu.memory_space<vmem>>, vector<1x256x128xf32>,
    return
  }
  func.func @transform_0(%arg0: i32, %arg1: i32) -> (i32, i32, i32, i32) {
    %c0_i32 = arith.constant 0 : i32
    %c0_i32_0 = arith.constant 0 : i32
    %c0_i32_1 = arith.constant 0 : i32
    %c0_i32_2 = arith.constant 0 : i32
    return %arg0, %c0_i32, %c0_i32_0, %c0_i32_1 : i32, i32, i32, i32
  }
  func.func @transform_1(%arg0: i32, %arg1: i32) -> (i32, i32, i32) {
    %c0_i32 = arith.constant 0 : i32
    %c0_i32_0 = arith.constant 0 : i32
    %c0_i32_1 = arith.constant 0 : i32
    %c0_i32_2 = arith.constant 0 : i32
    return %c0_i32, %c0_i32_0, %c0_i32_1 : i32, i32, i32
  }
  func.func @transform_2(%arg0: i32, %arg1: i32) -> (i32, i32) {
    %c0_i32 = arith.constant 0 : i32
    %c0_i32_0 = arith.constant 0 : i32
    %c0_i32_1 = arith.constant 0 : i32
    return %c0_i32, %c0_i32_0 : i32, i32
  }
  func.func @transform_3(%arg0: i32, %arg1: i32) -> (i32, i32, i32) {
    %c0_i32 = arith.constant 0 : i32
    %c0_i32_0 = arith.constant 0 : i32
    return %arg0, %arg1, %c0_i32 : i32, i32, i32
  }
}

module attributes {stable_mosaic.version = 11 : i64} {
  func.func @_conv_fused_kernel(%arg0: i32, %arg1: i32, %arg2: memref<1x2x72x512xbf16, #tpu.memory_space<vmem>>, %arg3: memref<4x512x256xbf16, #tpu.memory_space<vmem>>, %arg4: memref<1x256xf32, #tpu.memory_space<vmem>>, %arg5: memref<1x64x256xf32, #tpu.memory_space<vmem>>) attributes {dimension_semantics = [#tpu.dimension_semantics<parallel>, #tpu.dimension_semantics<arbitrary>], iteration_bounds = array<i64: 2, 1>, scalar_prefetch = 0 : i64, scratch_operands = 0 : i64, tpu.core_type = #tpu.core_type<tc>, window_params = [{transform_indices = @transform_0, window_bounds = array<i64: 1, 2, 72, 512>}, {pipeline_mode = #tpu.pipeline_mode<synchronous>, transform_indices = @transform_1, window_bounds = array<i64: 4, 512, 256>}, {pipeline_mode = #tpu.pipeline_mode<synchronous>, transform_indices = @transform_2, window_bounds = array<i64: 1, 256>}, {transform_indices = @transform_3, window_bounds = array<i64: 1, 64, 256>}]} {
    %cst = arith.constant 0.000000e+00 : f32
    %0 = vector.broadcast %cst : f32 to vector<64x256xf32>
    %c0 = arith.constant 0 : index
    %c0_0 = arith.constant 0 : index
    %c0_1 = arith.constant 0 : index
    %c0_2 = arith.constant 0 : index
    %1 = vector.load %arg2[%c0, %c0_0, %c0_1, %c0_2] : memref<1x2x72x512xbf16, #tpu.memory_space<vmem>>, vector<1x1x64x512xbf16>
    %2 = vector.shape_cast %1 : vector<1x1x64x512xbf16> to vector<64x512xbf16>
    %c0_3 = arith.constant 0 : index
    %c0_4 = arith.constant 0 : index
    %c0_5 = arith.constant 0 : index
    %3 = vector.load %arg3[%c0_3, %c0_4, %c0_5] : memref<4x512x256xbf16, #tpu.memory_space<vmem>>, vector<1x512x256xbf16>
    %4 = vector.shape_cast %3 : vector<1x512x256xbf16> to vector<512x256xbf16>
    %cst_6 = arith.constant dense<0.000000e+00> : vector<64x256xf32>
    %5 = tpu.matmul %2, %4, %cst_6 {dimension_numbers = #tpu.dot_dimension_numbers<[1], [0], [0], [1], [0, 0, 1, 1], [], []>} : vector<64x512xbf16>, vector<512x256xbf16>, vector<64x256xf32> -> vector<64x256xf32>
    %6 = arith.addf %0, %5 : vector<64x256xf32>
    %c0_7 = arith.constant 0 : index
    %c1 = arith.constant 1 : index
    %c0_8 = arith.constant 0 : index
    %c0_9 = arith.constant 0 : index
    %7 = vector.load %arg2[%c0_7, %c1, %c0_8, %c0_9] : memref<1x2x72x512xbf16, #tpu.memory_space<vmem>>, vector<1x1x64x512xbf16>
    %8 = vector.shape_cast %7 : vector<1x1x64x512xbf16> to vector<64x512xbf16>
    %c1_10 = arith.constant 1 : index
    %c0_11 = arith.constant 0 : index
    %c0_12 = arith.constant 0 : index
    %9 = vector.load %arg3[%c1_10, %c0_11, %c0_12] : memref<4x512x256xbf16, #tpu.memory_space<vmem>>, vector<1x512x256xbf16>
    %10 = vector.shape_cast %9 : vector<1x512x256xbf16> to vector<512x256xbf16>
    %cst_13 = arith.constant dense<0.000000e+00> : vector<64x256xf32>
    %11 = tpu.matmul %8, %10, %cst_13 {dimension_numbers = #tpu.dot_dimension_numbers<[1], [0], [0], [1], [0, 0, 1, 1], [], []>} : vector<64x512xbf16>, vector<512x256xbf16>, vector<64x256xf32> -> vector<64x256xf32>
    %12 = arith.addf %6, %11 : vector<64x256xf32>
    %c0_14 = arith.constant 0 : index
    %c0_15 = arith.constant 0 : index
    %c8 = arith.constant 8 : index
    %c0_16 = arith.constant 0 : index
    %13 = vector.load %arg2[%c0_14, %c0_15, %c8, %c0_16] : memref<1x2x72x512xbf16, #tpu.memory_space<vmem>>, vector<1x1x64x512xbf16>
    %14 = vector.shape_cast %13 : vector<1x1x64x512xbf16> to vector<64x512xbf16>
    %c2 = arith.constant 2 : index
    %c0_17 = arith.constant 0 : index
    %c0_18 = arith.constant 0 : index
    %15 = vector.load %arg3[%c2, %c0_17, %c0_18] : memref<4x512x256xbf16, #tpu.memory_space<vmem>>, vector<1x512x256xbf16>
    %16 = vector.shape_cast %15 : vector<1x512x256xbf16> to vector<512x256xbf16>
    %cst_19 = arith.constant dense<0.000000e+00> : vector<64x256xf32>
    %17 = tpu.matmul %14, %16, %cst_19 {dimension_numbers = #tpu.dot_dimension_numbers<[1], [0], [0], [1], [0, 0, 1, 1], [], []>} : vector<64x512xbf16>, vector<512x256xbf16>, vector<64x256xf32> -> vector<64x256xf32>
    %18 = arith.addf %12, %17 : vector<64x256xf32>
    %c0_20 = arith.constant 0 : index
    %c1_21 = arith.constant 1 : index
    %c8_22 = arith.constant 8 : index
    %c0_23 = arith.constant 0 : index
    %19 = vector.load %arg2[%c0_20, %c1_21, %c8_22, %c0_23] : memref<1x2x72x512xbf16, #tpu.memory_space<vmem>>, vector<1x1x64x512xbf16>
    %20 = vector.shape_cast %19 : vector<1x1x64x512xbf16> to vector<64x512xbf16>
    %c3 = arith.constant 3 : index
    %c0_24 = arith.constant 0 : index
    %c0_25 = arith.constant 0 : index
    %21 = vector.load %arg3[%c3, %c0_24, %c0_25] : memref<4x512x256xbf16, #tpu.memory_space<vmem>>, vector<1x512x256xbf16>
    %22 = vector.shape_cast %21 : vector<1x512x256xbf16> to vector<512x256xbf16>
    %cst_26 = arith.constant dense<0.000000e+00> : vector<64x256xf32>
    %23 = tpu.matmul %20, %22, %cst_26 {dimension_numbers = #tpu.dot_dimension_numbers<[1], [0], [0], [1], [0, 0, 1, 1], [], []>} : vector<64x512xbf16>, vector<512x256xbf16>, vector<64x256xf32> -> vector<64x256xf32>
    %24 = arith.addf %18, %23 : vector<64x256xf32>
    %c0_27 = arith.constant 0 : index
    %c0_28 = arith.constant 0 : index
    %25 = vector.load %arg4[%c0_27, %c0_28] : memref<1x256xf32, #tpu.memory_space<vmem>>, vector<1x256xf32>
    %26 = vector.broadcast %25 : vector<1x256xf32> to vector<64x256xf32>
    %27 = arith.addf %24, %26 : vector<64x256xf32>
    %cst_29 = arith.constant dense<0.000000e+00> : vector<256xf32>
    %28 = vector.multi_reduction <add>, %27, %cst_29 [0] : vector<64x256xf32> to vector<256xf32>
    %29 = vector.shape_cast %28 : vector<256xf32> to vector<1x256xf32>
    %cst_30 = arith.constant 6.400000e+01 : f32
    %30 = vector.broadcast %cst_30 : f32 to vector<1x256xf32>
    %31 = arith.divf %29, %30 : vector<1x256xf32>
    %32 = vector.broadcast %31 : vector<1x256xf32> to vector<64x256xf32>
    %33 = arith.subf %27, %32 : vector<64x256xf32>
    %34 = arith.mulf %33, %33 : vector<64x256xf32>
    %cst_31 = arith.constant dense<0.000000e+00> : vector<256xf32>
    %35 = vector.multi_reduction <add>, %34, %cst_31 [0] : vector<64x256xf32> to vector<256xf32>
    %36 = vector.shape_cast %35 : vector<256xf32> to vector<1x256xf32>
    %cst_32 = arith.constant 6.400000e+01 : f32
    %37 = vector.broadcast %cst_32 : f32 to vector<1x256xf32>
    %38 = arith.divf %36, %37 : vector<1x256xf32>
    %39 = vector.broadcast %31 : vector<1x256xf32> to vector<64x256xf32>
    %40 = arith.subf %27, %39 : vector<64x256xf32>
    %cst_33 = arith.constant 9.99999974E-6 : f32
    %41 = vector.broadcast %cst_33 : f32 to vector<1x256xf32>
    %42 = arith.addf %38, %41 : vector<1x256xf32>
    %43 = math.rsqrt %42 : vector<1x256xf32>
    %44 = vector.broadcast %43 : vector<1x256xf32> to vector<64x256xf32>
    %45 = arith.mulf %40, %44 : vector<64x256xf32>
    %cst_34 = arith.constant 0.000000e+00 : f32
    %46 = vector.broadcast %cst_34 : f32 to vector<64x256xf32>
    %47 = arith.cmpf ogt, %45, %46 : vector<64x256xf32>
    %cst_35 = arith.constant 2.000000e-01 : f32
    %48 = vector.broadcast %cst_35 : f32 to vector<64x256xf32>
    %49 = arith.mulf %48, %45 : vector<64x256xf32>
    %50 = arith.select %47, %45, %49 : vector<64x256xi1>, vector<64x256xf32>
    %c0_36 = arith.constant 0 : index
    %c0_37 = arith.constant 0 : index
    %c0_38 = arith.constant 0 : index
    %51 = vector.load %arg5[%c0_36, %c0_37, %c0_38] : memref<1x64x256xf32, #tpu.memory_space<vmem>>, vector<1x64x256xf32>
    %52 = vector.shape_cast %51 : vector<1x64x256xf32> to vector<64x256xf32>
    %53 = vector.shape_cast %50 : vector<64x256xf32> to vector<1x64x256xf32>
    tpu.vector_store %arg5[%c0_36, %c0_37, %c0_38], %53 {strides = array<i32>} : memref<1x64x256xf32, #tpu.memory_space<vmem>>, vector<1x64x256xf32>,
    return
  }
  func.func @transform_0(%arg0: i32, %arg1: i32) -> (i32, i32, i32, i32) {
    %c0_i32 = arith.constant 0 : i32
    %c0_i32_0 = arith.constant 0 : i32
    %c0_i32_1 = arith.constant 0 : i32
    %c0_i32_2 = arith.constant 0 : i32
    return %arg0, %c0_i32, %c0_i32_0, %c0_i32_1 : i32, i32, i32, i32
  }
  func.func @transform_1(%arg0: i32, %arg1: i32) -> (i32, i32, i32) {
    %c0_i32 = arith.constant 0 : i32
    %c0_i32_0 = arith.constant 0 : i32
    %c0_i32_1 = arith.constant 0 : i32
    %c0_i32_2 = arith.constant 0 : i32
    return %c0_i32, %c0_i32_0, %c0_i32_1 : i32, i32, i32
  }
  func.func @transform_2(%arg0: i32, %arg1: i32) -> (i32, i32) {
    %c0_i32 = arith.constant 0 : i32
    %c0_i32_0 = arith.constant 0 : i32
    %c0_i32_1 = arith.constant 0 : i32
    return %c0_i32, %c0_i32_0 : i32, i32
  }
  func.func @transform_3(%arg0: i32, %arg1: i32) -> (i32, i32, i32) {
    %c0_i32 = arith.constant 0 : i32
    %c0_i32_0 = arith.constant 0 : i32
    return %arg0, %arg1, %c0_i32 : i32, i32, i32
  }
}

module attributes {stable_mosaic.version = 11 : i64} {
  func.func @_conv_fused_kernel(%arg0: i32, %arg1: i32, %arg2: memref<1x2x20x1024xbf16, #tpu.memory_space<vmem>>, %arg3: memref<4x1024x256xbf16, #tpu.memory_space<vmem>>, %arg4: memref<1x256xf32, #tpu.memory_space<vmem>>, %arg5: memref<1x16x256xf32, #tpu.memory_space<vmem>>) attributes {dimension_semantics = [#tpu.dimension_semantics<parallel>, #tpu.dimension_semantics<arbitrary>], iteration_bounds = array<i64: 2, 1>, scalar_prefetch = 0 : i64, scratch_operands = 0 : i64, tpu.core_type = #tpu.core_type<tc>, window_params = [{transform_indices = @transform_0, window_bounds = array<i64: 1, 2, 20, 1024>}, {pipeline_mode = #tpu.pipeline_mode<synchronous>, transform_indices = @transform_1, window_bounds = array<i64: 4, 1024, 256>}, {pipeline_mode = #tpu.pipeline_mode<synchronous>, transform_indices = @transform_2, window_bounds = array<i64: 1, 256>}, {transform_indices = @transform_3, window_bounds = array<i64: 1, 16, 256>}]} {
    %cst = arith.constant 0.000000e+00 : f32
    %0 = vector.broadcast %cst : f32 to vector<16x256xf32>
    %c0 = arith.constant 0 : index
    %c0_0 = arith.constant 0 : index
    %c0_1 = arith.constant 0 : index
    %c0_2 = arith.constant 0 : index
    %1 = vector.load %arg2[%c0, %c0_0, %c0_1, %c0_2] : memref<1x2x20x1024xbf16, #tpu.memory_space<vmem>>, vector<1x1x16x1024xbf16>
    %2 = vector.shape_cast %1 : vector<1x1x16x1024xbf16> to vector<16x1024xbf16>
    %c0_3 = arith.constant 0 : index
    %c0_4 = arith.constant 0 : index
    %c0_5 = arith.constant 0 : index
    %3 = vector.load %arg3[%c0_3, %c0_4, %c0_5] : memref<4x1024x256xbf16, #tpu.memory_space<vmem>>, vector<1x1024x256xbf16>
    %4 = vector.shape_cast %3 : vector<1x1024x256xbf16> to vector<1024x256xbf16>
    %cst_6 = arith.constant dense<0.000000e+00> : vector<16x256xf32>
    %5 = tpu.matmul %2, %4, %cst_6 {dimension_numbers = #tpu.dot_dimension_numbers<[1], [0], [0], [1], [0, 0, 1, 1], [], []>} : vector<16x1024xbf16>, vector<1024x256xbf16>, vector<16x256xf32> -> vector<16x256xf32>
    %6 = arith.addf %0, %5 : vector<16x256xf32>
    %c0_7 = arith.constant 0 : index
    %c1 = arith.constant 1 : index
    %c0_8 = arith.constant 0 : index
    %c0_9 = arith.constant 0 : index
    %7 = vector.load %arg2[%c0_7, %c1, %c0_8, %c0_9] : memref<1x2x20x1024xbf16, #tpu.memory_space<vmem>>, vector<1x1x16x1024xbf16>
    %8 = vector.shape_cast %7 : vector<1x1x16x1024xbf16> to vector<16x1024xbf16>
    %c1_10 = arith.constant 1 : index
    %c0_11 = arith.constant 0 : index
    %c0_12 = arith.constant 0 : index
    %9 = vector.load %arg3[%c1_10, %c0_11, %c0_12] : memref<4x1024x256xbf16, #tpu.memory_space<vmem>>, vector<1x1024x256xbf16>
    %10 = vector.shape_cast %9 : vector<1x1024x256xbf16> to vector<1024x256xbf16>
    %cst_13 = arith.constant dense<0.000000e+00> : vector<16x256xf32>
    %11 = tpu.matmul %8, %10, %cst_13 {dimension_numbers = #tpu.dot_dimension_numbers<[1], [0], [0], [1], [0, 0, 1, 1], [], []>} : vector<16x1024xbf16>, vector<1024x256xbf16>, vector<16x256xf32> -> vector<16x256xf32>
    %12 = arith.addf %6, %11 : vector<16x256xf32>
    %c0_14 = arith.constant 0 : index
    %c0_15 = arith.constant 0 : index
    %c4 = arith.constant 4 : index
    %c0_16 = arith.constant 0 : index
    %13 = vector.load %arg2[%c0_14, %c0_15, %c4, %c0_16] : memref<1x2x20x1024xbf16, #tpu.memory_space<vmem>>, vector<1x1x16x1024xbf16>
    %14 = vector.shape_cast %13 : vector<1x1x16x1024xbf16> to vector<16x1024xbf16>
    %c2 = arith.constant 2 : index
    %c0_17 = arith.constant 0 : index
    %c0_18 = arith.constant 0 : index
    %15 = vector.load %arg3[%c2, %c0_17, %c0_18] : memref<4x1024x256xbf16, #tpu.memory_space<vmem>>, vector<1x1024x256xbf16>
    %16 = vector.shape_cast %15 : vector<1x1024x256xbf16> to vector<1024x256xbf16>
    %cst_19 = arith.constant dense<0.000000e+00> : vector<16x256xf32>
    %17 = tpu.matmul %14, %16, %cst_19 {dimension_numbers = #tpu.dot_dimension_numbers<[1], [0], [0], [1], [0, 0, 1, 1], [], []>} : vector<16x1024xbf16>, vector<1024x256xbf16>, vector<16x256xf32> -> vector<16x256xf32>
    %18 = arith.addf %12, %17 : vector<16x256xf32>
    %c0_20 = arith.constant 0 : index
    %c1_21 = arith.constant 1 : index
    %c4_22 = arith.constant 4 : index
    %c0_23 = arith.constant 0 : index
    %19 = vector.load %arg2[%c0_20, %c1_21, %c4_22, %c0_23] : memref<1x2x20x1024xbf16, #tpu.memory_space<vmem>>, vector<1x1x16x1024xbf16>
    %20 = vector.shape_cast %19 : vector<1x1x16x1024xbf16> to vector<16x1024xbf16>
    %c3 = arith.constant 3 : index
    %c0_24 = arith.constant 0 : index
    %c0_25 = arith.constant 0 : index
    %21 = vector.load %arg3[%c3, %c0_24, %c0_25] : memref<4x1024x256xbf16, #tpu.memory_space<vmem>>, vector<1x1024x256xbf16>
    %22 = vector.shape_cast %21 : vector<1x1024x256xbf16> to vector<1024x256xbf16>
    %cst_26 = arith.constant dense<0.000000e+00> : vector<16x256xf32>
    %23 = tpu.matmul %20, %22, %cst_26 {dimension_numbers = #tpu.dot_dimension_numbers<[1], [0], [0], [1], [0, 0, 1, 1], [], []>} : vector<16x1024xbf16>, vector<1024x256xbf16>, vector<16x256xf32> -> vector<16x256xf32>
    %24 = arith.addf %18, %23 : vector<16x256xf32>
    %c0_27 = arith.constant 0 : index
    %c0_28 = arith.constant 0 : index
    %25 = vector.load %arg4[%c0_27, %c0_28] : memref<1x256xf32, #tpu.memory_space<vmem>>, vector<1x256xf32>
    %26 = vector.broadcast %25 : vector<1x256xf32> to vector<16x256xf32>
    %27 = arith.addf %24, %26 : vector<16x256xf32>
    %cst_29 = arith.constant dense<0.000000e+00> : vector<256xf32>
    %28 = vector.multi_reduction <add>, %27, %cst_29 [0] : vector<16x256xf32> to vector<256xf32>
    %29 = vector.shape_cast %28 : vector<256xf32> to vector<1x256xf32>
    %cst_30 = arith.constant 1.600000e+01 : f32
    %30 = vector.broadcast %cst_30 : f32 to vector<1x256xf32>
    %31 = arith.divf %29, %30 : vector<1x256xf32>
    %32 = vector.broadcast %31 : vector<1x256xf32> to vector<16x256xf32>
    %33 = arith.subf %27, %32 : vector<16x256xf32>
    %34 = arith.mulf %33, %33 : vector<16x256xf32>
    %cst_31 = arith.constant dense<0.000000e+00> : vector<256xf32>
    %35 = vector.multi_reduction <add>, %34, %cst_31 [0] : vector<16x256xf32> to vector<256xf32>
    %36 = vector.shape_cast %35 : vector<256xf32> to vector<1x256xf32>
    %cst_32 = arith.constant 1.600000e+01 : f32
    %37 = vector.broadcast %cst_32 : f32 to vector<1x256xf32>
    %38 = arith.divf %36, %37 : vector<1x256xf32>
    %39 = vector.broadcast %31 : vector<1x256xf32> to vector<16x256xf32>
    %40 = arith.subf %27, %39 : vector<16x256xf32>
    %cst_33 = arith.constant 9.99999974E-6 : f32
    %41 = vector.broadcast %cst_33 : f32 to vector<1x256xf32>
    %42 = arith.addf %38, %41 : vector<1x256xf32>
    %43 = math.rsqrt %42 : vector<1x256xf32>
    %44 = vector.broadcast %43 : vector<1x256xf32> to vector<16x256xf32>
    %45 = arith.mulf %40, %44 : vector<16x256xf32>
    %cst_34 = arith.constant 0.000000e+00 : f32
    %46 = vector.broadcast %cst_34 : f32 to vector<16x256xf32>
    %47 = arith.cmpf ogt, %45, %46 : vector<16x256xf32>
    %cst_35 = arith.constant 2.000000e-01 : f32
    %48 = vector.broadcast %cst_35 : f32 to vector<16x256xf32>
    %49 = arith.mulf %48, %45 : vector<16x256xf32>
    %50 = arith.select %47, %45, %49 : vector<16x256xi1>, vector<16x256xf32>
    %c0_36 = arith.constant 0 : index
    %c0_37 = arith.constant 0 : index
    %c0_38 = arith.constant 0 : index
    %51 = vector.load %arg5[%c0_36, %c0_37, %c0_38] : memref<1x16x256xf32, #tpu.memory_space<vmem>>, vector<1x16x256xf32>
    %52 = vector.shape_cast %51 : vector<1x16x256xf32> to vector<16x256xf32>
    %53 = vector.shape_cast %50 : vector<16x256xf32> to vector<1x16x256xf32>
    tpu.vector_store %arg5[%c0_36, %c0_37, %c0_38], %53 {strides = array<i32>} : memref<1x16x256xf32, #tpu.memory_space<vmem>>, vector<1x16x256xf32>,
    return
  }
  func.func @transform_0(%arg0: i32, %arg1: i32) -> (i32, i32, i32, i32) {
    %c0_i32 = arith.constant 0 : i32
    %c0_i32_0 = arith.constant 0 : i32
    %c0_i32_1 = arith.constant 0 : i32
    %c0_i32_2 = arith.constant 0 : i32
    return %arg0, %c0_i32, %c0_i32_0, %c0_i32_1 : i32, i32, i32, i32
  }
  func.func @transform_1(%arg0: i32, %arg1: i32) -> (i32, i32, i32) {
    %c0_i32 = arith.constant 0 : i32
    %c0_i32_0 = arith.constant 0 : i32
    %c0_i32_1 = arith.constant 0 : i32
    %c0_i32_2 = arith.constant 0 : i32
    return %c0_i32, %c0_i32_0, %c0_i32_1 : i32, i32, i32
  }
  func.func @transform_2(%arg0: i32, %arg1: i32) -> (i32, i32) {
    %c0_i32 = arith.constant 0 : i32
    %c0_i32_0 = arith.constant 0 : i32
    %c0_i32_1 = arith.constant 0 : i32
    return %c0_i32, %c0_i32_0 : i32, i32
  }
  func.func @transform_3(%arg0: i32, %arg1: i32) -> (i32, i32, i32) {
    %c0_i32 = arith.constant 0 : i32
    %c0_i32_0 = arith.constant 0 : i32
    return %arg0, %arg1, %c0_i32 : i32, i32, i32
  }
}

module attributes {stable_mosaic.version = 11 : i64} {
  func.func @_tail_kernel(%arg0: i32, %arg1: memref<2x4096xf32, #tpu.memory_space<vmem>>, %arg2: memref<2x256xbf16, #tpu.memory_space<vmem>>, %arg3: memref<256x128xbf16, #tpu.memory_space<vmem>>, %arg4: memref<1x128xf32, #tpu.memory_space<vmem>>, %arg5: memref<1x4096xf32, #tpu.memory_space<vmem>>, %arg6: memref<1x128xf32, #tpu.memory_space<vmem>>, %arg7: memref<2x1xf32, #tpu.memory_space<vmem>>) attributes {dimension_semantics = [#tpu.dimension_semantics<arbitrary>], iteration_bounds = array<i64: 1>, scalar_prefetch = 0 : i64, scratch_operands = 0 : i64, tpu.core_type = #tpu.core_type<tc>, window_params = [{pipeline_mode = #tpu.pipeline_mode<synchronous>, transform_indices = @transform_0, window_bounds = array<i64: 2, 4096>}, {pipeline_mode = #tpu.pipeline_mode<synchronous>, transform_indices = @transform_1, window_bounds = array<i64: 2, 256>}, {pipeline_mode = #tpu.pipeline_mode<synchronous>, transform_indices = @transform_2, window_bounds = array<i64: 256, 128>}, {pipeline_mode = #tpu.pipeline_mode<synchronous>, transform_indices = @transform_3, window_bounds = array<i64: 1, 128>}, {pipeline_mode = #tpu.pipeline_mode<synchronous>, transform_indices = @transform_4, window_bounds = array<i64: 1, 4096>}, {pipeline_mode = #tpu.pipeline_mode<synchronous>, transform_indices = @transform_5, window_bounds = array<i64: 1, 128>}, {pipeline_mode = #tpu.pipeline_mode<synchronous>, transform_indices = @transform_6, window_bounds = array<i64: 2, 1>}]} {
    %c0 = arith.constant 0 : index
    %c0_0 = arith.constant 0 : index
    %0 = vector.load %arg2[%c0, %c0_0] : memref<2x256xbf16, #tpu.memory_space<vmem>>, vector<2x256xbf16>
    %c0_1 = arith.constant 0 : index
    %c0_2 = arith.constant 0 : index
    %1 = vector.load %arg3[%c0_1, %c0_2] : memref<256x128xbf16, #tpu.memory_space<vmem>>, vector<256x128xbf16>
    %cst = arith.constant dense<0.000000e+00> : vector<2x128xf32>
    %2 = tpu.matmul %0, %1, %cst {dimension_numbers = #tpu.dot_dimension_numbers<[1], [0], [0], [1], [0, 0, 1, 1], [], []>} : vector<2x256xbf16>, vector<256x128xbf16>, vector<2x128xf32> -> vector<2x128xf32>
    %c0_3 = arith.constant 0 : index
    %c0_4 = arith.constant 0 : index
    %3 = vector.load %arg4[%c0_3, %c0_4] : memref<1x128xf32, #tpu.memory_space<vmem>>, vector<1x128xf32>
    %4 = vector.broadcast %3 : vector<1x128xf32> to vector<2x128xf32>
    %5 = arith.addf %2, %4 : vector<2x128xf32>
    %c0_5 = arith.constant 0 : index
    %c0_6 = arith.constant 0 : index
    %6 = vector.load %arg1[%c0_5, %c0_6] : memref<2x4096xf32, #tpu.memory_space<vmem>>, vector<2x4096xf32>
    %c0_7 = arith.constant 0 : index
    %c0_8 = arith.constant 0 : index
    %7 = vector.load %arg5[%c0_7, %c0_8] : memref<1x4096xf32, #tpu.memory_space<vmem>>, vector<1x4096xf32>
    %8 = vector.broadcast %7 : vector<1x4096xf32> to vector<2x4096xf32>
    %9 = arith.mulf %6, %8 : vector<2x4096xf32>
    %cst_9 = arith.constant dense<0.000000e+00> : vector<2xf32>
    %10 = vector.multi_reduction <add>, %9, %cst_9 [1] : vector<2x4096xf32> to vector<2xf32>
    %11 = vector.shape_cast %10 : vector<2xf32> to vector<2x1xf32>
    %c0_10 = arith.constant 0 : index
    %c0_11 = arith.constant 0 : index
    %12 = vector.load %arg6[%c0_10, %c0_11] : memref<1x128xf32, #tpu.memory_space<vmem>>, vector<1x128xf32>
    %13 = vector.broadcast %12 : vector<1x128xf32> to vector<2x128xf32>
    %14 = arith.mulf %5, %13 : vector<2x128xf32>
    %cst_12 = arith.constant dense<0.000000e+00> : vector<2xf32>
    %15 = vector.multi_reduction <add>, %14, %cst_12 [1] : vector<2x128xf32> to vector<2xf32>
    %16 = vector.shape_cast %15 : vector<2xf32> to vector<2x1xf32>
    %17 = arith.addf %11, %16 : vector<2x1xf32>
    %18 = arith.negf %17 : vector<2x1xf32>
    %19 = math.exp %18 : vector<2x1xf32>
    %cst_13 = arith.constant 1.000000e+00 : f32
    %20 = vector.broadcast %cst_13 : f32 to vector<2x1xf32>
    %21 = arith.addf %20, %19 : vector<2x1xf32>
    %22 = arith.divf %20, %21 : vector<2x1xf32>
    %c0_14 = arith.constant 0 : index
    %c0_15 = arith.constant 0 : index
    %23 = vector.load %arg7[%c0_14, %c0_15] : memref<2x1xf32, #tpu.memory_space<vmem>>, vector<2x1xf32>
    tpu.vector_store %arg7[%c0_14, %c0_15], %22 {strides = array<i32>} : memref<2x1xf32, #tpu.memory_space<vmem>>, vector<2x1xf32>,
    return
  }
  func.func @transform_0(%arg0: i32) -> (i32, i32) {
    %c0_i32 = arith.constant 0 : i32
    %c0_i32_0 = arith.constant 0 : i32
    %c0_i32_1 = arith.constant 0 : i32
    return %c0_i32, %c0_i32_0 : i32, i32
  }
  func.func @transform_1(%arg0: i32) -> (i32, i32) {
    %c0_i32 = arith.constant 0 : i32
    %c0_i32_0 = arith.constant 0 : i32
    %c0_i32_1 = arith.constant 0 : i32
    return %c0_i32, %c0_i32_0 : i32, i32
  }
  func.func @transform_2(%arg0: i32) -> (i32, i32) {
    %c0_i32 = arith.constant 0 : i32
    %c0_i32_0 = arith.constant 0 : i32
    %c0_i32_1 = arith.constant 0 : i32
    return %c0_i32, %c0_i32_0 : i32, i32
  }
  func.func @transform_3(%arg0: i32) -> (i32, i32) {
    %c0_i32 = arith.constant 0 : i32
    %c0_i32_0 = arith.constant 0 : i32
    %c0_i32_1 = arith.constant 0 : i32
    return %c0_i32, %c0_i32_0 : i32, i32
  }
  func.func @transform_4(%arg0: i32) -> (i32, i32) {
    %c0_i32 = arith.constant 0 : i32
    %c0_i32_0 = arith.constant 0 : i32
    %c0_i32_1 = arith.constant 0 : i32
    return %c0_i32, %c0_i32_0 : i32, i32
  }
  func.func @transform_5(%arg0: i32) -> (i32, i32) {
    %c0_i32 = arith.constant 0 : i32
    %c0_i32_0 = arith.constant 0 : i32
    %c0_i32_1 = arith.constant 0 : i32
    return %c0_i32, %c0_i32_0 : i32, i32
  }
  func.func @transform_6(%arg0: i32) -> (i32, i32) {
    %c0_i32 = arith.constant 0 : i32
    %c0_i32_0 = arith.constant 0 : i32
    %c0_i32_1 = arith.constant 0 : i32
    return %c0_i32, %c0_i32_0 : i32, i32
  }
}

</mosaic_0001>

<llo_original>
// kernel: discriminator_forward.5
$region0: #{discriminator_forward.5}
  #allocation0 [shape = 'u32[]', space=smem, size = 0x4, offset = 0x4, fixed_abs, tag = 'smem constant byte address 0x4 - core index']
  #allocation1 [shape = 'u32[144,128]{1,0:T(1,128)}', space=vmem, size = 0x12000, scoped, tag = 'internal scratch']
  %s0 = inlined_call_operand.vmem [shape: bf16[2,2,1056,12], index: 0, kind: input, shape index: {}]
  %s1 = inlined_call_operand.vmem [shape: bf16[4,12,128], index: 1, kind: input, shape index: {}]
  %s2 = inlined_call_operand.vmem [shape: f32[1,128], index: 2, kind: input, shape index: {}]
  %s3 = inlined_call_operand.vmem [shape: f32[2,1024,128], index: 3, kind: output, shape index: {}]
  %s4 = sld [smem:[#allocation0]]
  $region45: #{discriminator_forward.5} parent=0
    _
  %s6 = ssub.s32 1, %s4
  %s7 = scalar_select 0, %s6, %s4
  loop: start=0, step=1, limit=10
  $region2: #{discriminator_forward.5} parent=0 // loop_pre_header
    _
  $region3: #{discriminator_forward.5} parent=0 // loop_header
    %s9 = sphi 0, %s13
    %p10 = scmp.ge.s32.totalorder %s9, 10
    %s16 = sphi 0, %s28
    %s17 = sphi 0, %s24
    %s18 = sphi 0, %s16
    %s19 = sphi 0, %s17
    %s20 = sphi 0, %s18
    %s21 = sphi 0, %s19
    %s31 = sphi 0, %s33
    %s34 = sphi 0, %s31
    %s35 = sphi 0, %s34
    %s51 = sphi 0, %s35
    %s55 = sphi 0, %s55
    %s57 = sphi 0, %s55
    %s58 = sphi 0, %s57
    %s72 = sphi 0, %s58
    %s76 = sphi 0, %s76
    %s78 = sphi 0, %s76
    %s79 = sphi 0, %s78
    %s93 = sphi 0, %s79
    %s101 = sphi 0, %s103
    %s104 = sphi 0, %s101
    %s105 = sphi 0, %s104
    %s121 = sphi 0, %s105
  $region4: #{discriminator_forward.5} parent=0 // loop_header_branch
    %12 = sbr.rel (%p10) target = $region8
  $region5: #{discriminator_forward.5} parent=0 // loop_body
    %s14 = ssub.s32 %s9, 1
    %s15 = ssub.s32 %s9, 2
    %s22 = sadd.s32 1, %s17
    %p23 = scmp.ge.s32.totalorder %s22, 4
    %s24 = scalar_select %p23, 0, %s22
    %s25 = sadd.s32 1, %s16
    %s26 = scalar_select %p23, %s25, %s16
    %p27 = scmp.ge.s32.totalorder %s26, 2
    %s28 = scalar_select %p27, 0, %s26
    %s29 = ssub.s32 %s16, %s28
    %p30 = scmp.eq.s32.totalorder %s29, 0
    %s32 = sadd.s32 %s31, 1
    %s33 = scalar_select %p30, %s31, %s32
    %p36 = pneg %p30
    %p37 = scmp.eq.s32.totalorder %s9, 7
    %p38 = por %p36, %p37
    %p39 = scmp.ne.s32.totalorder %s31, %s34
    %p40 = scmp.eq.s32.totalorder %s9, 0
    %p41 = por %p39, %p40
    %p42 = scmp.ne.s32.totalorder %s31, %s34
    %p43 = scmp.eq.s32.totalorder %s14, 7
    %p44 = por %p42, %p43
    %p45 = scmp.ne.s32.totalorder %s34, %s35
    %p46 = scmp.eq.s32.totalorder %s14, 0
    %p47 = por %p45, %p46
    %p48 = scmp.ne.s32.totalorder %s34, %s35
    %p49 = scmp.eq.s32.totalorder %s15, 7
    %p50 = por %p48, %p49
    %p52 = scmp.ne.s32.totalorder %s35, %s51
    %p53 = scmp.eq.s32.totalorder %s15, 0
    %p54 = por %p52, %p53
    %s56 = sadd.s32 %s55, 1
    %p59 = scmp.eq.s32.totalorder %s9, 7
    %p60 = scmp.ne.s32.totalorder %s55, %s57
    %p61 = scmp.eq.s32.totalorder %s9, 0
    %p62 = por %p60, %p61
    %p63 = scmp.ne.s32.totalorder %s55, %s57
    %p64 = scmp.eq.s32.totalorder %s14, 7
    %p65 = por %p63, %p64
    %p66 = scmp.ne.s32.totalorder %s57, %s58
    %p67 = scmp.eq.s32.totalorder %s14, 0
    %p68 = por %p66, %p67
    %p69 = scmp.ne.s32.totalorder %s57, %s58
    %p70 = scmp.eq.s32.totalorder %s15, 7
    %p71 = por %p69, %p70
    %p73 = scmp.ne.s32.totalorder %s58, %s72
    %p74 = scmp.eq.s32.totalorder %s15, 0
    %p75 = por %p73, %p74
    %s77 = sadd.s32 %s76, 1
    %p80 = scmp.eq.s32.totalorder %s9, 7
    %p81 = scmp.ne.s32.totalorder %s76, %s78
    %p82 = scmp.eq.s32.totalorder %s9, 0
    %p83 = por %p81, %p82
    %p84 = scmp.ne.s32.totalorder %s76, %s78
    %p85 = scmp.eq.s32.totalorder %s14, 7
    %p86 = por %p84, %p85
    %p87 = scmp.ne.s32.totalorder %s78, %s79
    %p88 = scmp.eq.s32.totalorder %s14, 0
    %p89 = por %p87, %p88
    %p90 = scmp.ne.s32.totalorder %s78, %s79
    %p91 = scmp.eq.s32.totalorder %s15, 7
    %p92 = por %p90, %p91
    %p94 = scmp.ne.s32.totalorder %s79, %s93
    %p95 = scmp.eq.s32.totalorder %s15, 0
    %p96 = por %p94, %p95
    %s97 = ssub.s32 %s16, %s28
    %s98 = ssub.s32 %s17, %s24
    %s99 = sor.u32 %s97, %s98
    %p100 = scmp.eq.s32.totalorder %s99, 0
    %s102 = sadd.s32 %s101, 1
    %s103 = scalar_select %p100, %s101, %s102
    %p106 = pneg %p100
    %p107 = scmp.eq.s32.totalorder %s9, 7
    %p108 = por %p106, %p107
    %p109 = scmp.ne.s32.totalorder %s101, %s104
    %p110 = scmp.eq.s32.totalorder %s9, 0
    %p111 = por %p109, %p110
    %p112 = scmp.ne.s32.totalorder %s101, %s104
    %p113 = scmp.eq.s32.totalorder %s14, 7
    %p114 = por %p112, %p113
    %p115 = scmp.ne.s32.totalorder %s104, %s105
    %p116 = scmp.eq.s32.totalorder %s14, 0
    %p117 = por %p115, %p116
    %p118 = scmp.ne.s32.totalorder %s104, %s105
    %p119 = scmp.eq.s32.totalorder %s15, 7
    %p120 = por %p118, %p119
    %p122 = scmp.ne.s32.totalorder %s105, %s121
    %p123 = scmp.eq.s32.totalorder %s15, 0
    %p124 = por %p122, %p123
    %p125 = scmp.le.s32.totalorder 1, %s9
    %p126 = scmp.lt.s32.totalorder %s9, 9
    %p127 = pnand %p125, %p126
    %p128 = pneg %p127
    // Predicated region
    $region9: #{discriminator_forward.5} parent=5 // pred_check
      _
    $region10: #{discriminator_forward.5} parent=5 // pred_check_branch
      %130 = sbr.rel (%p127) target = $region12
    $region11: #{discriminator_forward.5} parent=5 // pred_region
      %s131 = ssub.s32 %s9, 1
      // Predicated region
      $region13: #{discriminator_forward.5} parent=11 // pred_check
        %p132 = pneg %p68
      $region14: #{discriminator_forward.5} parent=11 // pred_check_branch
        %134 = sbr.rel (%p132) target = $region16
      $region15: #{discriminator_forward.5} parent=11 // pred_region
        _
      $region16: #{discriminator_forward.5} parent=11 // pred_fallthru
        _
      // Predicated region
      $region17: #{discriminator_forward.5} parent=11 // pred_check
        %p135 = pneg %p89
      $region18: #{discriminator_forward.5} parent=11 // pred_check_branch
        %137 = sbr.rel (%p135) target = $region20
      $region19: #{discriminator_forward.5} parent=11 // pred_region
        _
      $region20: #{discriminator_forward.5} parent=11 // pred_fallthru
        _
    $region12: #{discriminator_forward.5} parent=5 // pred_fallthru
      _
    %p138 = scmp.lt.s32.totalorder %s9, 8
    // Predicated region
    $region21: #{discriminator_forward.5} parent=5 // pred_check
      %p139 = pneg %p138
    $region22: #{discriminator_forward.5} parent=5 // pred_check_branch
      %141 = sbr.rel (%p139) target = $region24
    $region23: #{discriminator_forward.5} parent=5 // pred_region
      // Predicated region
      $region25: #{discriminator_forward.5} parent=23 // pred_check
        %p142 = pneg %p41
      $region26: #{discriminator_forward.5} parent=23 // pred_check_branch
        %144 = sbr.rel (%p142) target = $region28
      $region27: #{discriminator_forward.5} parent=23 // pred_region
        %p145 = scmp.lt.s32.totalorder %s16, 1
        %s146 = scalar_select %p145, %s16, 1
        %s147 = smul.addr %s146, 264
        %s148 = smul.addr %s147, 4
        %s149 = scalar_lea.vmem %s0, %s148
      $region28: #{discriminator_forward.5} parent=23 // pred_fallthru
        _
    $region24: #{discriminator_forward.5} parent=5 // pred_fallthru
      _
    %p150 = scmp.le.s32.totalorder 1, %s9
    %p151 = scmp.lt.s32.totalorder %s9, 9
    %p152 = pnand %p150, %p151
    %p153 = pneg %p152
    // Predicated region
    $region29: #{discriminator_forward.5} parent=5 // pred_check
      _
    $region30: #{discriminator_forward.5} parent=5 // pred_check_branch
      %155 = sbr.rel (%p152) target = $region32
    $region31: #{discriminator_forward.5} parent=5 // pred_region
      %s156 = ssub.s32 %s9, 1
      %p157 = scmp.lt.s32.totalorder %s18, 1
      %s158 = scalar_select %p157, %s18, 1
      %s159 = smul.addr %s158, 264
      %s160 = smul.addr %s159, 4
      %s161 = scalar_lea.vmem %s0, %s160
      %p162 = pneg %p47
      %p163 = pneg %p44
      %p164 = pneg %p68
      %p165 = pneg %p65
      %p166 = pneg %p89
      %p167 = pneg %p86
      %p168 = pneg %p117
      %p169 = pneg %p114
      %s170 = smul.u32 32, %s19
      %p171 = scmp.lt.s32.totalorder %s18, 1
      %s172 = scalar_select %p171, %s18, 1
      %p173 = scmp.lt.s32.totalorder %s170, 127
      %s174 = scalar_select %p173, %s170, 127
      %s175 = smul.addr %s172, 128
      %s176 = sadd.s32 %s174, %s175
      %s177 = smul.addr %s176, 8
      %s178 = scalar_lea.vmem %s3, %s177
      %p179 = scmp.lt.s32.totalorder %s18, 1
      %s180 = scalar_select %p179, %s18, 1
      %s181 = smul.addr %s180, 264
      %s182 = smul.addr %s181, 4
      %s183 = scalar_lea.vmem %s0, %s182
      %s184 = smul.u32 32, %s19
      %p185 = scmp.lt.s32.totalorder %s18, 1
      %s186 = scalar_select %p185, %s18, 1
      %p187 = scmp.lt.s32.totalorder %s184, 127
      %s188 = scalar_select %p187, %s184, 127
      %s189 = smul.addr %s186, 128
      %s190 = sadd.s32 %s188, %s189
      %s191 = smul.addr %s190, 8
      %s192 = scalar_lea.vmem %s3, %s191
      %s193 = smul.u32 32, %s19
      %s195 = smul.u32 %s19, 256
      %s196 = sshra.s32 %s195, 3
      %s197 = sand.u32 %s195, 7
      %s198 = smul.addr %s196, 4
      %s199 = scalar_lea.vmem %s183, %s198
      %v200 = vld [vmem:[%s199] sm:$0xf]
      %v201 = vld [vmem:[%s199 + $0x4] sm:$0xf]
      %v202 = vld [vmem:[%s199 + $0x8] sm:$0xf]
      %v203 = vld [vmem:[%s199 + $0xc] sm:$0xf]
      %v204 = vld [vmem:[%s199 + $0x10] sm:$0xf]
      %v205 = vld [vmem:[%s199 + $0x14] sm:$0xf]
      %v206 = vld [vmem:[%s199 + $0x18] sm:$0xf]
      %v207 = vld [vmem:[%s199 + $0x1c] sm:$0xf]
      %v208 = vld [vmem:[%s199 + $0x20] sm:$0xf]
      %v209 = vld [vmem:[%s199 + $0x24] sm:$0xf]
      %v210 = vld [vmem:[%s199 + $0x28] sm:$0xf]
      %v211 = vld [vmem:[%s199 + $0x2c] sm:$0xf]
      %v212 = vld [vmem:[%s199 + $0x30] sm:$0xf]
      %v213 = vld [vmem:[%s199 + $0x34] sm:$0xf]
      %v214 = vld [vmem:[%s199 + $0x38] sm:$0xf]
      %v215 = vld [vmem:[%s199 + $0x3c] sm:$0xf]
      %v216 = vld [vmem:[%s199 + $0x40] sm:$0xf]
      %v217 = vld [vmem:[%s199 + $0x44] sm:$0xf]
      %v218 = vld [vmem:[%s199 + $0x48] sm:$0xf]
      %v219 = vld [vmem:[%s199 + $0x4c] sm:$0xf]
      %v220 = vld [vmem:[%s199 + $0x50] sm:$0xf]
      %v221 = vld [vmem:[%s199 + $0x54] sm:$0xf]
      %v222 = vld [vmem:[%s199 + $0x58] sm:$0xf]
      %v223 = vld [vmem:[%s199 + $0x5c] sm:$0xf]
      %v224 = vld [vmem:[%s199 + $0x60] sm:$0xf]
      %v225 = vld [vmem:[%s199 + $0x64] sm:$0xf]
      %v226 = vld [vmem:[%s199 + $0x68] sm:$0xf]
      %v227 = vld [vmem:[%s199 + $0x6c] sm:$0xf]
      %v228 = vld [vmem:[%s199 + $0x70] sm:$0xf]
      %v229 = vld [vmem:[%s199 + $0x74] sm:$0xf]
      %v230 = vld [vmem:[%s199 + $0x78] sm:$0xf]
      %v231 = vld [vmem:[%s199 + $0x7c] sm:$0xf]
      %v232 = vld [vmem:[%s1] sm:$0xf]
      %v233 = vld [vmem:[%s1 + $0x4] sm:$0x3]
      %s234 = sadd.s32 %s196, 132
      %s235 = smul.addr %s234, 4
      %s236 = scalar_lea.vmem %s183, %s235
      %v237 = vld [vmem:[%s236] sm:$0xf]
      %v238 = vld [vmem:[%s236 + $0x4] sm:$0xf]
      %v239 = vld [vmem:[%s236 + $0x8] sm:$0xf]
      %v240 = vld [vmem:[%s236 + $0xc] sm:$0xf]
      %v241 = vld [vmem:[%s236 + $0x10] sm:$0xf]
      %v242 = vld [vmem:[%s236 + $0x14] sm:$0xf]
      %v243 = vld [vmem:[%s236 + $0x18] sm:$0xf]
      %v244 = vld [vmem:[%s236 + $0x1c] sm:$0xf]
      %v245 = vld [vmem:[%s236 + $0x20] sm:$0xf]
      %v246 = vld [vmem:[%s236 + $0x24] sm:$0xf]
      %v247 = vld [vmem:[%s236 + $0x28] sm:$0xf]
      %v248 = vld [vmem:[%s236 + $0x2c] sm:$0xf]
      %v249 = vld [vmem:[%s236 + $0x30] sm:$0xf]
      %v250 = vld [vmem:[%s236 + $0x34] sm:$0xf]
      %v251 = vld [vmem:[%s236 + $0x38] sm:$0xf]
      %v252 = vld [vmem:[%s236 + $0x3c] sm:$0xf]
      %v253 = vld [vmem:[%s236 + $0x40] sm:$0xf]
      %v254 = vld [vmem:[%s236 + $0x44] sm:$0xf]
      %v255 = vld [vmem:[%s236 + $0x48] sm:$0xf]
      %v256 = vld [vmem:[%s236 + $0x4c] sm:$0xf]
      %v257 = vld [vmem:[%s236 + $0x50] sm:$0xf]
      %v258 = vld [vmem:[%s236 + $0x54] sm:$0xf]
      %v259 = vld [vmem:[%s236 + $0x58] sm:$0xf]
      %v260 = vld [vmem:[%s236 + $0x5c] sm:$0xf]
      %v261 = vld [vmem:[%s236 + $0x60] sm:$0xf]
      %v262 = vld [vmem:[%s236 + $0x64] sm:$0xf]
      %v263 = vld [vmem:[%s236 + $0x68] sm:$0xf]
      %v264 = vld [vmem:[%s236 + $0x6c] sm:$0xf]
      %v265 = vld [vmem:[%s236 + $0x70] sm:$0xf]
      %v266 = vld [vmem:[%s236 + $0x74] sm:$0xf]
      %v267 = vld [vmem:[%s236 + $0x78] sm:$0xf]
      %v268 = vld [vmem:[%s236 + $0x7c] sm:$0xf]
      %s269 = scalar_lea.vmem %s1, 8
      %v270 = vld [vmem:[%s269] sm:$0xf]
      %v271 = vld [vmem:[%s269 + $0x4] sm:$0x3]
      %v304 = vunpack.c.l.b16 %v237
      %v305 = vunpack.c.l.b16 %v238
      %v306 = vunpack.c.l.b16 %v239
      %v307 = vunpack.c.l.b16 %v240
      %v308 = vunpack.c.l.b16 %v241
      %v309 = vunpack.c.l.b16 %v242
      %v310 = vunpack.c.l.b16 %v243
      %v311 = vunpack.c.l.b16 %v244
      %v312 = vunpack.c.l.b16 %v245
      %v313 = vunpack.c.l.b16 %v246
      %v314 = vunpack.c.l.b16 %v247
      %v315 = vunpack.c.l.b16 %v248
      %v316 = vunpack.c.l.b16 %v249
      %v317 = vunpack.c.l.b16 %v250
      %v318 = vunpack.c.l.b16 %v251
      %v319 = vunpack.c.l.b16 %v252
      %v320 = vunpack.c.l.b16 %v253
      %v321 = vunpack.c.l.b16 %v254
      %v322 = vunpack.c.l.b16 %v255
      %v323 = vunpack.c.l.b16 %v256
      %v324 = vunpack.c.l.b16 %v257
      %v325 = vunpack.c.l.b16 %v258
      %v326 = vunpack.c.l.b16 %v259
      %v327 = vunpack.c.l.b16 %v260
      %v328 = vunpack.c.l.b16 %v261
      %v329 = vunpack.c.l.b16 %v262
      %v330 = vunpack.c.l.b16 %v263
      %v331 = vunpack.c.l.b16 %v264
      %v332 = vunpack.c.l.b16 %v265
      %v333 = vunpack.c.l.b16 %v266
      %v334 = vunpack.c.l.b16 %v267
      %v335 = vunpack.c.l.b16 %v268
      %v336 = vpack.c.b16 %v305, %v304
      %v337 = vpack.c.b16 %v307, %v306
      %v338 = vpack.c.b16 %v309, %v308
      %v339 = vpack.c.b16 %v311, %v310
      %v340 = vpack.c.b16 %v313, %v312
      %v341 = vpack.c.b16 %v315, %v314
      %v342 = vpack.c.b16 %v317, %v316
      %v343 = vpack.c.b16 %v319, %v318
      %v344 = vpack.c.b16 %v321, %v320
      %v345 = vpack.c.b16 %v323, %v322
      %v346 = vpack.c.b16 %v325, %v324
      %v347 = vpack.c.b16 %v327, %v326
      %v348 = vpack.c.b16 %v329, %v328
      %v349 = vpack.c.b16 %v331, %v330
      %v350 = vpack.c.b16 %v333, %v332
      %v351 = vpack.c.b16 %v335, %v334
      %v354 = vunpack.c.l.b16 %v270
      %v355 = vunpack.c.l.b16 %v271
      %v356 = vpack.c.b16 %v355, %v354
      %vm357 = vcmask 97280
      %v359 = vsel %vm357, %v336, 0
      %v362 = vsel %vm357, %v337, 0
      %v365 = vsel %vm357, %v338, 0
      %v368 = vsel %vm357, %v339, 0
      %v371 = vsel %vm357, %v340, 0
      %v374 = vsel %vm357, %v341, 0
      %v377 = vsel %vm357, %v342, 0
      %v380 = vsel %vm357, %v343, 0
      %v383 = vsel %vm357, %v344, 0
      %v386 = vsel %vm357, %v345, 0
      %v389 = vsel %vm357, %v346, 0
      %v392 = vsel %vm357, %v347, 0
      %v395 = vsel %vm357, %v348, 0
      %v398 = vsel %vm357, %v349, 0
      %v401 = vsel %vm357, %v350, 0
      %v404 = vsel %vm357, %v351, 0
      %vm406 = vcmask 1045504
      %v408 = vsel %vm406, %v356, 0
      %410 = vmatprep.subr.bf16.mxu0 0
      %411 = vmatpush1.bf16.msra.mxu0 %v408
      %412 = vmatprep.subr.bf16.mxu0 0
      %413 = vmatpush1.bf16.msra.mxu0 0
      %414 = vmatprep.subr.bf16.mxu0 0
      %415 = vmatpush1.bf16.msra.mxu0 0
      %416 = vmatprep.subr.bf16.mxu0 0
      %417 = vmatpush1.bf16.msra.mxu0 0
      %418 = vmatprep.subr.bf16.mxu0 0
      %419 = vmatpush1.bf16.msra.mxu0 0
      %420 = vmatprep.subr.bf16.mxu0 0
      %421 = vmatpush1.bf16.msra.mxu0 0
      %422 = vmatprep.subr.bf16.mxu0 0
      %423 = vmatpush1.bf16.msra.mxu0 0
      %424 = vmatprep.subr.bf16.mxu0 0
      %425 = vmatpush1.bf16.msra.mxu0 0
      %426 = vmatprep.subr.bf16.mxu0 0
      %427 = vmatpush1.bf16.msra.mxu0 0
      %428 = vmatprep.subr.bf16.mxu0 0
      %429 = vmatpush1.bf16.msra.mxu0 0
      %430 = vmatprep.subr.bf16.mxu0 0
      %431 = vmatpush1.bf16.msra.mxu0 0
      %432 = vmatprep.subr.bf16.mxu0 0
      %433 = vmatpush1.bf16.msra.mxu0 0
      %434 = vmatprep.subr.bf16.mxu0 0
      %435 = vmatpush1.bf16.msra.mxu0 0
      %436 = vmatprep.subr.bf16.mxu0 0
      %437 = vmatpush1.bf16.msra.mxu0 0
      %438 = vmatprep.subr.bf16.mxu0 0
      %439 = vmatpush1.bf16.msra.mxu0 0
      %440 = vmatprep.subr.bf16.mxu0 0
      %441 = vmatpush1.bf16.msra.mxu0 0
      %442 = vmatprep.mubr.bf16.mxu0 0
      %443 = vmatmul.mubr.bf16.gmra.mrb[0].mxu0 %v359
      %v444 = vpop.f32.mrb[0].mxu0
      %v445 = vadd.f32 0.0, %v444
      %v446 = vpop.f32.mrb[0].mxu0
      %v447 = vpop.f32.mrb[0].mxu0
      %v448 = vadd.f32 0.0, %v447
      %v449 = vpop.f32.mrb[0].mxu0
      %450 = vmatprep.mubr.bf16.mxu0 0
      %451 = vmatmul.mubr.bf16.gmra.mrb[0].mxu0 %v362
      %v452 = vpop.f32.mrb[0].mxu0
      %v453 = vadd.f32 0.0, %v452
      %v454 = vpop.f32.mrb[0].mxu0
      %v455 = vpop.f32.mrb[0].mxu0
      %v456 = vadd.f32 0.0, %v455
      %v457 = vpop.f32.mrb[0].mxu0
      %458 = vmatprep.mubr.bf16.mxu0 0
      %459 = vmatmul.mubr.bf16.gmra.mrb[0].mxu0 %v365
      %v460 = vpop.f32.mrb[0].mxu0
      %v461 = vadd.f32 0.0, %v460
      %v462 = vpop.f32.mrb[0].mxu0
      %v463 = vpop.f32.mrb[0].mxu0
      %v464 = vadd.f32 0.0, %v463
      %v465 = vpop.f32.mrb[0].mxu0
      %466 = vmatprep.mubr.bf16.mxu0 0
      %467 = vmatmul.mubr.bf16.gmra.mrb[0].mxu0 %v368
      %v468 = vpop.f32.mrb[0].mxu0
      %v469 = vadd.f32 0.0, %v468
      %v470 = vpop.f32.mrb[0].mxu0
      %v471 = vpop.f32.mrb[0].mxu0
      %v472 = vadd.f32 0.0, %v471
      %v473 = vpop.f32.mrb[0].mxu0
      %474 = vmatprep.mubr.bf16.mxu0 0
      %475 = vmatmul.mubr.bf16.gmra.mrb[0].mxu0 %v371
      %v476 = vpop.f32.mrb[0].mxu0
      %v477 = vadd.f32 0.0, %v476
      %v478 = vpop.f32.mrb[0].mxu0
      %v479 = vpop.f32.mrb[0].mxu0
      %v480 = vadd.f32 0.0, %v479
      %v481 = vpop.f32.mrb[0].mxu0
      %482 = vmatprep.mubr.bf16.mxu0 0
      %483 = vmatmul.mubr.bf16.gmra.mrb[0].mxu0 %v374
      %v484 = vpop.f32.mrb[0].mxu0
      %v485 = vadd.f32 0.0, %v484
      %v486 = vpop.f32.mrb[0].mxu0
      %v487 = vpop.f32.mrb[0].mxu0
      %v488 = vadd.f32 0.0, %v487
      %v489 = vpop.f32.mrb[0].mxu0
      %490 = vmatprep.mubr.bf16.mxu0 0
      %491 = vmatmul.mubr.bf16.gmra.mrb[0].mxu0 %v377
      %v492 = vpop.f32.mrb[0].mxu0
      %v493 = vadd.f32 0.0, %v492
      %v494 = vpop.f32.mrb[0].mxu0
      %v495 = vpop.f32.mrb[0].mxu0
      %v496 = vadd.f32 0.0, %v495
      %v497 = vpop.f32.mrb[0].mxu0
      %498 = vmatprep.mubr.bf16.mxu0 0
      %499 = vmatmul.mubr.bf16.gmra.mrb[0].mxu0 %v380
      %v500 = vpop.f32.mrb[0].mxu0
      %v501 = vadd.f32 0.0, %v500
      %v502 = vpop.f32.mrb[0].mxu0
      %v503 = vpop.f32.mrb[0].mxu0
      %v504 = vadd.f32 0.0, %v503
      %v505 = vpop.f32.mrb[0].mxu0
      %506 = vmatprep.mubr.bf16.mxu0 0
      %507 = vmatmul.mubr.bf16.gmra.mrb[0].mxu0 %v383
      %v508 = vpop.f32.mrb[0].mxu0
      %v509 = vadd.f32 0.0, %v508
      %v510 = vpop.f32.mrb[0].mxu0
      %v511 = vpop.f32.mrb[0].mxu0
      %v512 = vadd.f32 0.0, %v511
      %v513 = vpop.f32.mrb[0].mxu0
      %514 = vmatprep.mubr.bf16.mxu0 0
      %515 = vmatmul.mubr.bf16.gmra.mrb[0].mxu0 %v386
      %v516 = vpop.f32.mrb[0].mxu0
      %v517 = vadd.f32 0.0, %v516
      %v518 = vpop.f32.mrb[0].mxu0
      %v519 = vpop.f32.mrb[0].mxu0
      %v520 = vadd.f32 0.0, %v519
      %v521 = vpop.f32.mrb[0].mxu0
      %522 = vmatprep.mubr.bf16.mxu0 0
      %523 = vmatmul.mubr.bf16.gmra.mrb[0].mxu0 %v389
      %v524 = vpop.f32.mrb[0].mxu0
      %v525 = vadd.f32 0.0, %v524
      %v526 = vpop.f32.mrb[0].mxu0
      %v527 = vpop.f32.mrb[0].mxu0
      %v528 = vadd.f32 0.0, %v527
      %v529 = vpop.f32.mrb[0].mxu0
      %530 = vmatprep.mubr.bf16.mxu0 0
      %531 = vmatmul.mubr.bf16.gmra.mrb[0].mxu0 %v392
      %v532 = vpop.f32.mrb[0].mxu0
      %v533 = vadd.f32 0.0, %v532
      %v534 = vpop.f32.mrb[0].mxu0
      %v535 = vpop.f32.mrb[0].mxu0
      %v536 = vadd.f32 0.0, %v535
      %v537 = vpop.f32.mrb[0].mxu0
      %538 = vmatprep.mubr.bf16.mxu0 0
      %539 = vmatmul.mubr.bf16.gmra.mrb[0].mxu0 %v395
      %v540 = vpop.f32.mrb[0].mxu0
      %v541 = vadd.f32 0.0, %v540
      %v542 = vpop.f32.mrb[0].mxu0
      %v543 = vpop.f32.mrb[0].mxu0
      %v544 = vadd.f32 0.0, %v543
      %v545 = vpop.f32.mrb[0].mxu0
      %546 = vmatprep.mubr.bf16.mxu0 0
      %547 = vmatmul.mubr.bf16.gmra.mrb[0].mxu0 %v398
      %v548 = vpop.f32.mrb[0].mxu0
      %v549 = vadd.f32 0.0, %v548
      %v550 = vpop.f32.mrb[0].mxu0
      %v551 = vpop.f32.mrb[0].mxu0
      %v552 = vadd.f32 0.0, %v551
      %v553 = vpop.f32.mrb[0].mxu0
      %554 = vmatprep.mubr.bf16.mxu0 0
      %555 = vmatmul.mubr.bf16.gmra.mrb[0].mxu0 %v401
      %v556 = vpop.f32.mrb[0].mxu0
      %v557 = vadd.f32 0.0, %v556
      %v558 = vpop.f32.mrb[0].mxu0
      %v559 = vpop.f32.mrb[0].mxu0
      %v560 = vadd.f32 0.0, %v559
      %v561 = vpop.f32.mrb[0].mxu0
      %562 = vmatprep.mubr.bf16.mxu0 0
      %563 = vmatmul.mubr.bf16.gmra.mrb[0].mxu0 %v404
      %v564 = vpop.f32.mrb[0].mxu0
      %v565 = vadd.f32 0.0, %v564
      %v566 = vpop.f32.mrb[0].mxu0
      %v567 = vpop.f32.mrb[0].mxu0
      %v568 = vadd.f32 0.0, %v567
      %v569 = vpop.f32.mrb[0].mxu0
      %570 = vdwg.mxu0
      %v603 = vunpack.c.l.b16 %v200
      %v604 = vunpack.c.l.b16 %v201
      %v605 = vunpack.c.l.b16 %v202
      %v606 = vunpack.c.l.b16 %v203
      %v607 = vunpack.c.l.b16 %v204
      %v608 = vunpack.c.l.b16 %v205
      %v609 = vunpack.c.l.b16 %v206
      %v610 = vunpack.c.l.b16 %v207
      %v611 = vunpack.c.l.b16 %v208
      %v612 = vunpack.c.l.b16 %v209
      %v613 = vunpack.c.l.b16 %v210
      %v614 = vunpack.c.l.b16 %v211
      %v615 = vunpack.c.l.b16 %v212
      %v616 = vunpack.c.l.b16 %v213
      %v617 = vunpack.c.l.b16 %v214
      %v618 = vunpack.c.l.b16 %v215
      %v619 = vunpack.c.l.b16 %v216
      %v620 = vunpack.c.l.b16 %v217
      %v621 = vunpack.c.l.b16 %v218
      %v622 = vunpack.c.l.b16 %v219
      %v623 = vunpack.c.l.b16 %v220
      %v624 = vunpack.c.l.b16 %v221
      %v625 = vunpack.c.l.b16 %v222
      %v626 = vunpack.c.l.b16 %v223
      %v627 = vunpack.c.l.b16 %v224
      %v628 = vunpack.c.l.b16 %v225
      %v629 = vunpack.c.l.b16 %v226
      %v630 = vunpack.c.l.b16 %v227
      %v631 = vunpack.c.l.b16 %v228
      %v632 = vunpack.c.l.b16 %v229
      %v633 = vunpack.c.l.b16 %v230
      %v634 = vunpack.c.l.b16 %v231
      %v635 = vpack.c.b16 %v604, %v603
      %v636 = vpack.c.b16 %v606, %v605
      %v637 = vpack.c.b16 %v608, %v607
      %v638 = vpack.c.b16 %v610, %v609
      %v639 = vpack.c.b16 %v612, %v611
      %v640 = vpack.c.b16 %v614, %v613
      %v641 = vpack.c.b16 %v616, %v615
      %v642 = vpack.c.b16 %v618, %v617
      %v643 = vpack.c.b16 %v620, %v619
      %v644 = vpack.c.b16 %v622, %v621
      %v645 = vpack.c.b16 %v624, %v623
      %v646 = vpack.c.b16 %v626, %v625
      %v647 = vpack.c.b16 %v628, %v627
      %v648 = vpack.c.b16 %v630, %v629
      %v649 = vpack.c.b16 %v632, %v631
      %v650 = vpack.c.b16 %v634, %v633
      %v653 = vunpack.c.l.b16 %v232
      %v654 = vunpack.c.l.b16 %v233
      %v655 = vpack.c.b16 %v654, %v653
      %v657 = vsel %vm357, %v635, 0
      %v660 = vsel %vm357, %v636, 0
      %v663 = vsel %vm357, %v637, 0
      %v666 = vsel %vm357, %v638, 0
      %v669 = vsel %vm357, %v639, 0
      %v672 = vsel %vm357, %v640, 0
      %v675 = vsel %vm357, %v641, 0
      %v678 = vsel %vm357, %v642, 0
      %v681 = vsel %vm357, %v643, 0
      %v684 = vsel %vm357, %v644, 0
      %v687 = vsel %vm357, %v645, 0
      %v690 = vsel %vm357, %v646, 0
      %v693 = vsel %vm357, %v647, 0
      %v696 = vsel %vm357, %v648, 0
      %v699 = vsel %vm357, %v649, 0
      %v702 = vsel %vm357, %v650, 0
      %v705 = vsel %vm406, %v655, 0
      %707 = vmatprep.subr.bf16.mxu0 0
      %708 = vmatpush1.bf16.msra.mxu0 %v705
      %709 = vmatprep.subr.bf16.mxu0 0
      %710 = vmatpush1.bf16.msra.mxu0 0
      %711 = vmatprep.subr.bf16.mxu0 0
      %712 = vmatpush1.bf16.msra.mxu0 0
      %713 = vmatprep.subr.bf16.mxu0 0
      %714 = vmatpush1.bf16.msra.mxu0 0
      %715 = vmatprep.subr.bf16.mxu0 0
      %716 = vmatpush1.bf16.msra.mxu0 0
      %717 = vmatprep.subr.bf16.mxu0 0
      %718 = vmatpush1.bf16.msra.mxu0 0
      %719 = vmatprep.subr.bf16.mxu0 0
      %720 = vmatpush1.bf16.msra.mxu0 0
      %721 = vmatprep.subr.bf16.mxu0 0
      %722 = vmatpush1.bf16.msra.mxu0 0
      %723 = vmatprep.subr.bf16.mxu0 0
      %724 = vmatpush1.bf16.msra.mxu0 0
      %725 = vmatprep.subr.bf16.mxu0 0
      %726 = vmatpush1.bf16.msra.mxu0 0
      %727 = vmatprep.subr.bf16.mxu0 0
      %728 = vmatpush1.bf16.msra.mxu0 0
      %729 = vmatprep.subr.bf16.mxu0 0
      %730 = vmatpush1.bf16.msra.mxu0 0
      %731 = vmatprep.subr.bf16.mxu0 0
      %732 = vmatpush1.bf16.msra.mxu0 0
      %733 = vmatprep.subr.bf16.mxu0 0
      %734 = vmatpush1.bf16.msra.mxu0 0
      %735 = vmatprep.subr.bf16.mxu0 0
      %736 = vmatpush1.bf16.msra.mxu0 0
      %737 = vmatprep.subr.bf16.mxu0 0
      %738 = vmatpush1.bf16.msra.mxu0 0
      %739 = vmatprep.mubr.bf16.mxu0 0
      %740 = vmatmul.mubr.bf16.gmra.mrb[0].mxu0 %v657
      %v741 = vpop.f32.mrb[0].mxu0
      %v742 = vadd.f32 %v445, %v741
      %v743 = vpop.f32.mrb[0].mxu0
      %v744 = vpop.f32.mrb[0].mxu0
      %v745 = vadd.f32 %v448, %v744
      %v746 = vpop.f32.mrb[0].mxu0
      %747 = vmatprep.mubr.bf16.mxu0 0
      %748 = vmatmul.mubr.bf16.gmra.mrb[0].mxu0 %v660
      %v749 = vpop.f32.mrb[0].mxu0
      %v750 = vadd.f32 %v453, %v749
      %v751 = vpop.f32.mrb[0].mxu0
      %v752 = vpop.f32.mrb[0].mxu0
      %v753 = vadd.f32 %v456, %v752
      %v754 = vpop.f32.mrb[0].mxu0
      %755 = vmatprep.mubr.bf16.mxu0 0
      %756 = vmatmul.mubr.bf16.gmra.mrb[0].mxu0 %v663
      %v757 = vpop.f32.mrb[0].mxu0
      %v758 = vadd.f32 %v461, %v757
      %v759 = vpop.f32.mrb[0].mxu0
      %v760 = vpop.f32.mrb[0].mxu0
      %v761 = vadd.f32 %v464, %v760
      %v762 = vpop.f32.mrb[0].mxu0
      %763 = vmatprep.mubr.bf16.mxu0 0
      %764 = vmatmul.mubr.bf16.gmra.mrb[0].mxu0 %v666
      %v765 = vpop.f32.mrb[0].mxu0
      %v766 = vadd.f32 %v469, %v765
      %v767 = vpop.f32.mrb[0].mxu0
      %v768 = vpop.f32.mrb[0].mxu0
      %v769 = vadd.f32 %v472, %v768
      %v770 = vpop.f32.mrb[0].mxu0
      %771 = vmatprep.mubr.bf16.mxu0 0
      %772 = vmatmul.mubr.bf16.gmra.mrb[0].mxu0 %v669
      %v773 = vpop.f32.mrb[0].mxu0
      %v774 = vadd.f32 %v477, %v773
      %v775 = vpop.f32.mrb[0].mxu0
      %v776 = vpop.f32.mrb[0].mxu0
      %v777 = vadd.f32 %v480, %v776
      %v778 = vpop.f32.mrb[0].mxu0
      %779 = vmatprep.mubr.bf16.mxu0 0
      %780 = vmatmul.mubr.bf16.gmra.mrb[0].mxu0 %v672
      %v781 = vpop.f32.mrb[0].mxu0
      %v782 = vadd.f32 %v485, %v781
      %v783 = vpop.f32.mrb[0].mxu0
      %v784 = vpop.f32.mrb[0].mxu0
      %v785 = vadd.f32 %v488, %v784
      %v786 = vpop.f32.mrb[0].mxu0
      %787 = vmatprep.mubr.bf16.mxu0 0
      %788 = vmatmul.mubr.bf16.gmra.mrb[0].mxu0 %v675
      %v789 = vpop.f32.mrb[0].mxu0
      %v790 = vadd.f32 %v493, %v789
      %v791 = vpop.f32.mrb[0].mxu0
      %v792 = vpop.f32.mrb[0].mxu0
      %v793 = vadd.f32 %v496, %v792
      %v794 = vpop.f32.mrb[0].mxu0
      %795 = vmatprep.mubr.bf16.mxu0 0
      %796 = vmatmul.mubr.bf16.gmra.mrb[0].mxu0 %v678
      %v797 = vpop.f32.mrb[0].mxu0
      %v798 = vadd.f32 %v501, %v797
      %v799 = vpop.f32.mrb[0].mxu0
      %v800 = vpop.f32.mrb[0].mxu0
      %v801 = vadd.f32 %v504, %v800
      %v802 = vpop.f32.mrb[0].mxu0
      %803 = vmatprep.mubr.bf16.mxu0 0
      %804 = vmatmul.mubr.bf16.gmra.mrb[0].mxu0 %v681
      %v805 = vpop.f32.mrb[0].mxu0
      %v806 = vadd.f32 %v509, %v805
      %v807 = vpop.f32.mrb[0].mxu0
      %v808 = vpop.f32.mrb[0].mxu0
      %v809 = vadd.f32 %v512, %v808
      %v810 = vpop.f32.mrb[0].mxu0
      %811 = vmatprep.mubr.bf16.mxu0 0
      %812 = vmatmul.mubr.bf16.gmra.mrb[0].mxu0 %v684
      %v813 = vpop.f32.mrb[0].mxu0
      %v814 = vadd.f32 %v517, %v813
      %v815 = vpop.f32.mrb[0].mxu0
      %v816 = vpop.f32.mrb[0].mxu0
      %v817 = vadd.f32 %v520, %v816
      %v818 = vpop.f32.mrb[0].mxu0
      %819 = vmatprep.mubr.bf16.mxu0 0
      %820 = vmatmul.mubr.bf16.gmra.mrb[0].mxu0 %v687
      %v821 = vpop.f32.mrb[0].mxu0
      %v822 = vadd.f32 %v525, %v821
      %v823 = vpop.f32.mrb[0].mxu0
      %v824 = vpop.f32.mrb[0].mxu0
      %v825 = vadd.f32 %v528, %v824
      %v826 = vpop.f32.mrb[0].mxu0
      %827 = vmatprep.mubr.bf16.mxu0 0
      %828 = vmatmul.mubr.bf16.gmra.mrb[0].mxu0 %v690
      %v829 = vpop.f32.mrb[0].mxu0
      %v830 = vadd.f32 %v533, %v829
      %v831 = vpop.f32.mrb[0].mxu0
      %v832 = vpop.f32.mrb[0].mxu0
      %v833 = vadd.f32 %v536, %v832
      %v834 = vpop.f32.mrb[0].mxu0
      %835 = vmatprep.mubr.bf16.mxu0 0
      %836 = vmatmul.mubr.bf16.gmra.mrb[0].mxu0 %v693
      %v837 = vpop.f32.mrb[0].mxu0
      %v838 = vadd.f32 %v541, %v837
      %v839 = vpop.f32.mrb[0].mxu0
      %v840 = vpop.f32.mrb[0].mxu0
      %v841 = vadd.f32 %v544, %v840
      %v842 = vpop.f32.mrb[0].mxu0
      %843 = vmatprep.mubr.bf16.mxu0 0
      %844 = vmatmul.mubr.bf16.gmra.mrb[0].mxu0 %v696
      %v845 = vpop.f32.mrb[0].mxu0
      %v846 = vadd.f32 %v549, %v845
      %v847 = vpop.f32.mrb[0].mxu0
      %v848 = vpop.f32.mrb[0].mxu0
      %v849 = vadd.f32 %v552, %v848
      %v850 = vpop.f32.mrb[0].mxu0
      %851 = vmatprep.mubr.bf16.mxu0 0
      %852 = vmatmul.mubr.bf16.gmra.mrb[0].mxu0 %v699
      %v853 = vpop.f32.mrb[0].mxu0
      %v854 = vadd.f32 %v557, %v853
      %v855 = vpop.f32.mrb[0].mxu0
      %v856 = vpop.f32.mrb[0].mxu0
      %v857 = vadd.f32 %v560, %v856
      %v858 = vpop.f32.mrb[0].mxu0
      %859 = vmatprep.mubr.bf16.mxu0 0
      %860 = vmatmul.mubr.bf16.gmra.mrb[0].mxu0 %v702
      %v861 = vpop.f32.mrb[0].mxu0
      %v862 = vadd.f32 %v565, %v861
      %v863 = vpop.f32.mrb[0].mxu0
      %v864 = vpop.f32.mrb[0].mxu0
      %v865 = vadd.f32 %v568, %v864
      %v866 = vpop.f32.mrb[0].mxu0
      %867 = vdwg.mxu0
      %s868 = sadd.s32 %s195, 32
      %s869 = sshra.s32 %s868, 3
      %s870 = sand.u32 %s868, 7
      %s871 = smul.addr %s869, 4
      %s872 = scalar_lea.vmem %s183, %s871
      %v873 = vld [vmem:[%s872] sm:$0xf]
      %v874 = vld [vmem:[%s872 + $0x4] sm:$0xf]
      %v875 = vld [vmem:[%s872 + $0x8] sm:$0xf]
      %v876 = vld [vmem:[%s872 + $0xc] sm:$0xf]
      %v877 = vld [vmem:[%s872 + $0x10] sm:$0xf]
      %v878 = vld [vmem:[%s872 + $0x14] sm:$0xf]
      %v879 = vld [vmem:[%s872 + $0x18] sm:$0xf]
      %v880 = vld [vmem:[%s872 + $0x1c] sm:$0xf]
      %v881 = vld [vmem:[%s872 + $0x20] sm:$0xf]
      %v882 = vld [vmem:[%s872 + $0x24] sm:$0xf]
      %v883 = vld [vmem:[%s872 + $0x28] sm:$0xf]
      %v884 = vld [vmem:[%s872 + $0x2c] sm:$0xf]
      %v885 = vld [vmem:[%s872 + $0x30] sm:$0xf]
      %v886 = vld [vmem:[%s872 + $0x34] sm:$0xf]
      %v887 = vld [vmem:[%s872 + $0x38] sm:$0xf]
      %v888 = vld [vmem:[%s872 + $0x3c] sm:$0xf]
      %v889 = vld [vmem:[%s872 + $0x40] sm:$0xf]
      %v890 = vld [vmem:[%s872 + $0x44] sm:$0xf]
      %v891 = vld [vmem:[%s872 + $0x48] sm:$0xf]
      %v892 = vld [vmem:[%s872 + $0x4c] sm:$0xf]
      %v893 = vld [vmem:[%s872 + $0x50] sm:$0xf]
      %v894 = vld [vmem:[%s872 + $0x54] sm:$0xf]
      %v895 = vld [vmem:[%s872 + $0x58] sm:$0xf]
      %v896 = vld [vmem:[%s872 + $0x5c] sm:$0xf]
      %v897 = vld [vmem:[%s872 + $0x60] sm:$0xf]
      %v898 = vld [vmem:[%s872 + $0x64] sm:$0xf]
      %v899 = vld [vmem:[%s872 + $0x68] sm:$0xf]
      %v900 = vld [vmem:[%s872 + $0x6c] sm:$0xf]
      %v901 = vld [vmem:[%s872 + $0x70] sm:$0xf]
      %v902 = vld [vmem:[%s872 + $0x74] sm:$0xf]
      %v903 = vld [vmem:[%s872 + $0x78] sm:$0xf]
      %v904 = vld [vmem:[%s872 + $0x7c] sm:$0xf]
      %s905 = scalar_lea.vmem %s1, 16
      %v906 = vld [vmem:[%s905] sm:$0xf]
      %v907 = vld [vmem:[%s905 + $0x4] sm:$0x3]
      %v940 = vunpack.c.l.b16 %v873
      %v941 = vunpack.c.l.b16 %v874
      %v942 = vunpack.c.l.b16 %v875
      %v943 = vunpack.c.l.b16 %v876
      %v944 = vunpack.c.l.b16 %v877
      %v945 = vunpack.c.l.b16 %v878
      %v946 = vunpack.c.l.b16 %v879
      %v947 = vunpack.c.l.b16 %v880
      %v948 = vunpack.c.l.b16 %v881
      %v949 = vunpack.c.l.b16 %v882
      %v950 = vunpack.c.l.b16 %v883
      %v951 = vunpack.c.l.b16 %v884
      %v952 = vunpack.c.l.b16 %v885
      %v953 = vunpack.c.l.b16 %v886
      %v954 = vunpack.c.l.b16 %v887
      %v955 = vunpack.c.l.b16 %v888
      %v956 = vunpack.c.l.b16 %v889
      %v957 = vunpack.c.l.b16 %v890
      %v958 = vunpack.c.l.b16 %v891
      %v959 = vunpack.c.l.b16 %v892
      %v960 = vunpack.c.l.b16 %v893
      %v961 = vunpack.c.l.b16 %v894
      %v962 = vunpack.c.l.b16 %v895
      %v963 = vunpack.c.l.b16 %v896
      %v964 = vunpack.c.l.b16 %v897
      %v965 = vunpack.c.l.b16 %v898
      %v966 = vunpack.c.l.b16 %v899
      %v967 = vunpack.c.l.b16 %v900
      %v968 = vunpack.c.l.b16 %v901
      %v969 = vunpack.c.l.b16 %v902
      %v970 = vunpack.c.l.b16 %v903
      %v971 = vunpack.c.l.b16 %v904
      %v972 = vpack.c.b16 %v941, %v940
      %v973 = vpack.c.b16 %v943, %v942
      %v974 = vpack.c.b16 %v945, %v944
      %v975 = vpack.c.b16 %v947, %v946
      %v976 = vpack.c.b16 %v949, %v948
      %v977 = vpack.c.b16 %v951, %v950
      %v978 = vpack.c.b16 %v953, %v952
      %v979 = vpack.c.b16 %v955, %v954
      %v980 = vpack.c.b16 %v957, %v956
      %v981 = vpack.c.b16 %v959, %v958
      %v982 = vpack.c.b16 %v961, %v960
      %v983 = vpack.c.b16 %v963, %v962
      %v984 = vpack.c.b16 %v965, %v964
      %v985 = vpack.c.b16 %v967, %v966
      %v986 = vpack.c.b16 %v969, %v968
      %v987 = vpack.c.b16 %v971, %v970
      %v990 = vunpack.c.l.b16 %v906
      %v991 = vunpack.c.l.b16 %v907
      %v992 = vpack.c.b16 %v991, %v990
      %v994 = vsel %vm357, %v972, 0
      %v997 = vsel %vm357, %v973, 0
      %v1000 = vsel %vm357, %v974, 0
      %v1003 = vsel %vm357, %v975, 0
      %v1006 = vsel %vm357, %v976, 0
      %v1009 = vsel %vm357, %v977, 0
      %v1012 = vsel %vm357, %v978, 0
      %v1015 = vsel %vm357, %v979, 0
      %v1018 = vsel %vm357, %v980, 0
      %v1021 = vsel %vm357, %v981, 0
      %v1024 = vsel %vm357, %v982, 0
      %v1027 = vsel %vm357, %v983, 0
      %v1030 = vsel %vm357, %v984, 0
      %v1033 = vsel %vm357, %v985, 0
      %v1036 = vsel %vm357, %v986, 0
      %v1039 = vsel %vm357, %v987, 0
      %v1042 = vsel %vm406, %v992, 0
      %1044 = vmatprep.subr.bf16.mxu0 0
      %1045 = vmatpush1.bf16.msra.mxu0 %v1042
      %1046 = vmatprep.subr.bf16.mxu0 0
      %1047 = vmatpush1.bf16.msra.mxu0 0
      %1048 = vmatprep.subr.bf16.mxu0 0
      %1049 = vmatpush1.bf16.msra.mxu0 0
      %1050 = vmatprep.subr.bf16.mxu0 0
      %1051 = vmatpush1.bf16.msra.mxu0 0
      %1052 = vmatprep.subr.bf16.mxu0 0
      %1053 = vmatpush1.bf16.msra.mxu0 0
      %1054 = vmatprep.subr.bf16.mxu0 0
      %1055 = vmatpush1.bf16.msra.mxu0 0
      %1056 = vmatprep.subr.bf16.mxu0 0
      %1057 = vmatpush1.bf16.msra.mxu0 0
      %1058 = vmatprep.subr.bf16.mxu0 0
      %1059 = vmatpush1.bf16.msra.mxu0 0
      %1060 = vmatprep.subr.bf16.mxu0 0
      %1061 = vmatpush1.bf16.msra.mxu0 0
      %1062 = vmatprep.subr.bf16.mxu0 0
      %1063 = vmatpush1.bf16.msra.mxu0 0
      %1064 = vmatprep.subr.bf16.mxu0 0
      %1065 = vmatpush1.bf16.msra.mxu0 0
      %1066 = vmatprep.subr.bf16.mxu0 0
      %1067 = vmatpush1.bf16.msra.mxu0 0
      %1068 = vmatprep.subr.bf16.mxu0 0
      %1069 = vmatpush1.bf16.msra.mxu0 0
      %1070 = vmatprep.subr.bf16.mxu0 0
      %1071 = vmatpush1.bf16.msra.mxu0 0
      %1072 = vmatprep.subr.bf16.mxu0 0
      %1073 = vmatpush1.bf16.msra.mxu0 0
      %1074 = vmatprep.subr.bf16.mxu0 0
      %1075 = vmatpush1.bf16.msra.mxu0 0
      %1076 = vmatprep.mubr.bf16.mxu0 0
      %1077 = vmatmul.mubr.bf16.gmra.mrb[0].mxu0 %v994
      %v1078 = vpop.f32.mrb[0].mxu0
      %v1079 = vadd.f32 0.0, %v1078
      %v1080 = vpop.f32.mrb[0].mxu0
      %v1081 = vpop.f32.mrb[0].mxu0
      %v1082 = vadd.f32 0.0, %v1081
      %v1083 = vpop.f32.mrb[0].mxu0
      %1084 = vmatprep.mubr.bf16.mxu0 0
      %1085 = vmatmul.mubr.bf16.gmra.mrb[0].mxu0 %v997
      %v1086 = vpop.f32.mrb[0].mxu0
      %v1087 = vadd.f32 0.0, %v1086
      %v1088 = vpop.f32.mrb[0].mxu0
      %v1089 = vpop.f32.mrb[0].mxu0
      %v1090 = vadd.f32 0.0, %v1089
      %v1091 = vpop.f32.mrb[0].mxu0
      %1092 = vmatprep.mubr.bf16.mxu0 0
      %1093 = vmatmul.mubr.bf16.gmra.mrb[0].mxu0 %v1000
      %v1094 = vpop.f32.mrb[0].mxu0
      %v1095 = vadd.f32 0.0, %v1094
      %v1096 = vpop.f32.mrb[0].mxu0
      %v1097 = vpop.f32.mrb[0].mxu0
      %v1098 = vadd.f32 0.0, %v1097
      %v1099 = vpop.f32.mrb[0].mxu0
      %1100 = vmatprep.mubr.bf16.mxu0 0
      %1101 = vmatmul.mubr.bf16.gmra.mrb[0].mxu0 %v1003
      %v1102 = vpop.f32.mrb[0].mxu0
      %v1103 = vadd.f32 0.0, %v1102
      %v1104 = vpop.f32.mrb[0].mxu0
      %v1105 = vpop.f32.mrb[0].mxu0
      %v1106 = vadd.f32 0.0, %v1105
      %v1107 = vpop.f32.mrb[0].mxu0
      %1108 = vmatprep.mubr.bf16.mxu0 0
      %1109 = vmatmul.mubr.bf16.gmra.mrb[0].mxu0 %v1006
      %v1110 = vpop.f32.mrb[0].mxu0
      %v1111 = vadd.f32 0.0, %v1110
      %v1112 = vpop.f32.mrb[0].mxu0
      %v1113 = vpop.f32.mrb[0].mxu0
      %v1114 = vadd.f32 0.0, %v1113
      %v1115 = vpop.f32.mrb[0].mxu0
      %1116 = vmatprep.mubr.bf16.mxu0 0
      %1117 = vmatmul.mubr.bf16.gmra.mrb[0].mxu0 %v1009
      %v1118 = vpop.f32.mrb[0].mxu0
      %v1119 = vadd.f32 0.0, %v1118
      %v1120 = vpop.f32.mrb[0].mxu0
      %v1121 = vpop.f32.mrb[0].mxu0
      %v1122 = vadd.f32 0.0, %v1121
      %v1123 = vpop.f32.mrb[0].mxu0
      %1124 = vmatprep.mubr.bf16.mxu0 0
      %1125 = vmatmul.mubr.bf16.gmra.mrb[0].mxu0 %v1012
      %v1126 = vpop.f32.mrb[0].mxu0
      %v1127 = vadd.f32 0.0, %v1126
      %v1128 = vpop.f32.mrb[0].mxu0
      %v1129 = vpop.f32.mrb[0].mxu0
      %v1130 = vadd.f32 0.0, %v1129
      %v1131 = vpop.f32.mrb[0].mxu0
      %1132 = vmatprep.mubr.bf16.mxu0 0
      %1133 = vmatmul.mubr.bf16.gmra.mrb[0].mxu0 %v1015
      %v1134 = vpop.f32.mrb[0].mxu0
      %v1135 = vadd.f32 0.0, %v1134
      %v1136 = vpop.f32.mrb[0].mxu0
      %v1137 = vpop.f32.mrb[0].mxu0
      %v1138 = vadd.f32 0.0, %v1137
      %v1139 = vpop.f32.mrb[0].mxu0
      %1140 = vmatprep.mubr.bf16.mxu0 0
      %1141 = vmatmul.mubr.bf16.gmra.mrb[0].mxu0 %v1018
      %v1142 = vpop.f32.mrb[0].mxu0
      %v1143 = vadd.f32 0.0, %v1142
      %v1144 = vpop.f32.mrb[0].mxu0
      %v1145 = vpop.f32.mrb[0].mxu0
      %v1146 = vadd.f32 0.0, %v1145
      %v1147 = vpop.f32.mrb[0].mxu0
      %1148 = vmatprep.mubr.bf16.mxu0 0
      %1149 = vmatmul.mubr.bf16.gmra.mrb[0].mxu0 %v1021
      %v1150 = vpop.f32.mrb[0].mxu0
      %v1151 = vadd.f32 0.0, %v1150
      %v1152 = vpop.f32.mrb[0].mxu0
      %v1153 = vpop.f32.mrb[0].mxu0
      %v1154 = vadd.f32 0.0, %v1153
      %v1155 = vpop.f32.mrb[0].mxu0
      %1156 = vmatprep.mubr.bf16.mxu0 0
      %1157 = vmatmul.mubr.bf16.gmra.mrb[0].mxu0 %v1024
      %v1158 = vpop.f32.mrb[0].mxu0
      %v1159 = vadd.f32 0.0, %v1158
      %v1160 = vpop.f32.mrb[0].mxu0
      %v1161 = vpop.f32.mrb[0].mxu0
      %v1162 = vadd.f32 0.0, %v1161
      %v1163 = vpop.f32.mrb[0].mxu0
      %1164 = vmatprep.mubr.bf16.mxu0 0
      %1165 = vmatmul.mubr.bf16.gmra.mrb[0].mxu0 %v1027
      %v1166 = vpop.f32.mrb[0].mxu0
      %v1167 = vadd.f32 0.0, %v1166
      %v1168 = vpop.f32.mrb[0].mxu0
      %v1169 = vpop.f32.mrb[0].mxu0
      %v1170 = vadd.f32 0.0, %v1169
      %v1171 = vpop.f32.mrb[0].mxu0
      %1172 = vmatprep.mubr.bf16.mxu0 0
      %1173 = vmatmul.mubr.bf16.gmra.mrb[0].mxu0 %v1030
      %v1174 = vpop.f32.mrb[0].mxu0
      %v1175 = vadd.f32 0.0, %v1174
      %v1176 = vpop.f32.mrb[0].mxu0
      %v1177 = vpop.f32.mrb[0].mxu0
      %v1178 = vadd.f32 0.0, %v1177
      %v1179 = vpop.f32.mrb[0].mxu0
      %1180 = vmatprep.mubr.bf16.mxu0 0
      %1181 = vmatmul.mubr.bf16.gmra.mrb[0].mxu0 %v1033
      %v1182 = vpop.f32.mrb[0].mxu0
      %v1183 = vadd.f32 0.0, %v1182
      %v1184 = vpop.f32.mrb[0].mxu0
      %v1185 = vpop.f32.mrb[0].mxu0
      %v1186 = vadd.f32 0.0, %v1185
      %v1187 = vpop.f32.mrb[0].mxu0
      %1188 = vmatprep.mubr.bf16.mxu0 0
      %1189 = vmatmul.mubr.bf16.gmra.mrb[0].mxu0 %v1036
      %v1190 = vpop.f32.mrb[0].mxu0
      %v1191 = vadd.f32 0.0, %v1190
      %v1192 = vpop.f32.mrb[0].mxu0
      %v1193 = vpop.f32.mrb[0].mxu0
      %v1194 = vadd.f32 0.0, %v1193
      %v1195 = vpop.f32.mrb[0].mxu0
      %1196 = vmatprep.mubr.bf16.mxu0 0
      %1197 = vmatmul.mubr.bf16.gmra.mrb[0].mxu0 %v1039
      %v1198 = vpop.f32.mrb[0].mxu0
      %v1199 = vadd.f32 0.0, %v1198
      %v1200 = vpop.f32.mrb[0].mxu0
      %v1201 = vpop.f32.mrb[0].mxu0
      %v1202 = vadd.f32 0.0, %v1201
      %v1203 = vpop.f32.mrb[0].mxu0
      %1204 = vdwg.mxu0
      %v1205 = vadd.f32 %v742, %v1079
      %v1206 = vadd.f32 %v745, %v1082
      %v1207 = vadd.f32 %v750, %v1087
      %v1208 = vadd.f32 %v753, %v1090
      %v1209 = vadd.f32 %v758, %v1095
      %v1210 = vadd.f32 %v761, %v1098
      %v1211 = vadd.f32 %v766, %v1103
      %v1212 = vadd.f32 %v769, %v1106
      %v1213 = vadd.f32 %v774, %v1111
      %v1214 = vadd.f32 %v777, %v1114
      %v1215 = vadd.f32 %v782, %v1119
      %v1216 = vadd.f32 %v785, %v1122
      %v1217 = vadd.f32 %v790, %v1127
      %v1218 = vadd.f32 %v793, %v1130
      %v1219 = vadd.f32 %v798, %v1135
      %v1220 = vadd.f32 %v801, %v1138
      %v1221 = vadd.f32 %v806, %v1143
      %v1222 = vadd.f32 %v809, %v1146
      %v1223 = vadd.f32 %v814, %v1151
      %v1224 = vadd.f32 %v817, %v1154
      %v1225 = vadd.f32 %v822, %v1159
      %v1226 = vadd.f32 %v825, %v1162
      %v1227 = vadd.f32 %v830, %v1167
      %v1228 = vadd.f32 %v833, %v1170
      %v1229 = vadd.f32 %v838, %v1175
      %v1230 = vadd.f32 %v841, %v1178
      %v1231 = vadd.f32 %v846, %v1183
      %v1232 = vadd.f32 %v849, %v1186
      %v1233 = vadd.f32 %v854, %v1191
      %v1234 = vadd.f32 %v857, %v1194
      %v1235 = vadd.f32 %v862, %v1199
      %v1236 = vadd.f32 %v865, %v1202
      %s1237 = sadd.s32 %s869, 132
      %s1238 = smul.addr %s1237, 4
      %s1239 = scalar_lea.vmem %s183, %s1238
      %v1240 = vld [vmem:[%s1239] sm:$0xf]
      %v1241 = vld [vmem:[%s1239 + $0x4] sm:$0xf]
      %v1242 = vld [vmem:[%s1239 + $0x8] sm:$0xf]
      %v1243 = vld [vmem:[%s1239 + $0xc] sm:$0xf]
      %v1244 = vld [vmem:[%s1239 + $0x10] sm:$0xf]
      %v1245 = vld [vmem:[%s1239 + $0x14] sm:$0xf]
      %v1246 = vld [vmem:[%s1239 + $0x18] sm:$0xf]
      %v1247 = vld [vmem:[%s1239 + $0x1c] sm:$0xf]
      %v1248 = vld [vmem:[%s1239 + $0x20] sm:$0xf]
      %v1249 = vld [vmem:[%s1239 + $0x24] sm:$0xf]
      %v1250 = vld [vmem:[%s1239 + $0x28] sm:$0xf]
      %v1251 = vld [vmem:[%s1239 + $0x2c] sm:$0xf]
      %v1252 = vld [vmem:[%s1239 + $0x30] sm:$0xf]
      %v1253 = vld [vmem:[%s1239 + $0x34] sm:$0xf]
      %v1254 = vld [vmem:[%s1239 + $0x38] sm:$0xf]
      %v1255 = vld [vmem:[%s1239 + $0x3c] sm:$0xf]
      %v1256 = vld [vmem:[%s1239 + $0x40] sm:$0xf]
      %v1257 = vld [vmem:[%s1239 + $0x44] sm:$0xf]
      %v1258 = vld [vmem:[%s1239 + $0x48] sm:$0xf]
      %v1259 = vld [vmem:[%s1239 + $0x4c] sm:$0xf]
      %v1260 = vld [vmem:[%s1239 + $0x50] sm:$0xf]
      %v1261 = vld [vmem:[%s1239 + $0x54] sm:$0xf]
      %v1262 = vld [vmem:[%s1239 + $0x58] sm:$0xf]
      %v1263 = vld [vmem:[%s1239 + $0x5c] sm:$0xf]
      %v1264 = vld [vmem:[%s1239 + $0x60] sm:$0xf]
      %v1265 = vld [vmem:[%s1239 + $0x64] sm:$0xf]
      %v1266 = vld [vmem:[%s1239 + $0x68] sm:$0xf]
      %v1267 = vld [vmem:[%s1239 + $0x6c] sm:$0xf]
      %v1268 = vld [vmem:[%s1239 + $0x70] sm:$0xf]
      %v1269 = vld [vmem:[%s1239 + $0x74] sm:$0xf]
      %v1270 = vld [vmem:[%s1239 + $0x78] sm:$0xf]
      %v1271 = vld [vmem:[%s1239 + $0x7c] sm:$0xf]
      %s1272 = scalar_lea.vmem %s1, 24
      %v1273 = vld [vmem:[%s1272] sm:$0xf]
      %v1274 = vld [vmem:[%s1272 + $0x4] sm:$0x3]
      %v1307 = vunpack.c.l.b16 %v1240
      %v1308 = vunpack.c.l.b16 %v1241
      %v1309 = vunpack.c.l.b16 %v1242
      %v1310 = vunpack.c.l.b16 %v1243
      %v1311 = vunpack.c.l.b16 %v1244
      %v1312 = vunpack.c.l.b16 %v1245
      %v1313 = vunpack.c.l.b16 %v1246
      %v1314 = vunpack.c.l.b16 %v1247
      %v1315 = vunpack.c.l.b16 %v1248
      %v1316 = vunpack.c.l.b16 %v1249
      %v1317 = vunpack.c.l.b16 %v1250
      %v1318 = vunpack.c.l.b16 %v1251
      %v1319 = vunpack.c.l.b16 %v1252
      %v1320 = vunpack.c.l.b16 %v1253
      %v1321 = vunpack.c.l.b16 %v1254
      %v1322 = vunpack.c.l.b16 %v1255
      %v1323 = vunpack.c.l.b16 %v1256
      %v1324 = vunpack.c.l.b16 %v1257
      %v1325 = vunpack.c.l.b16 %v1258
      %v1326 = vunpack.c.l.b16 %v1259
      %v1327 = vunpack.c.l.b16 %v1260
      %v1328 = vunpack.c.l.b16 %v1261
      %v1329 = vunpack.c.l.b16 %v1262
      %v1330 = vunpack.c.l.b16 %v1263
      %v1331 = vunpack.c.l.b16 %v1264
      %v1332 = vunpack.c.l.b16 %v1265
      %v1333 = vunpack.c.l.b16 %v1266
      %v1334 = vunpack.c.l.b16 %v1267
      %v1335 = vunpack.c.l.b16 %v1268
      %v1336 = vunpack.c.l.b16 %v1269
      %v1337 = vunpack.c.l.b16 %v1270
      %v1338 = vunpack.c.l.b16 %v1271
      %v1339 = vpack.c.b16 %v1308, %v1307
      %v1340 = vpack.c.b16 %v1310, %v1309
      %v1341 = vpack.c.b16 %v1312, %v1311
      %v1342 = vpack.c.b16 %v1314, %v1313
      %v1343 = vpack.c.b16 %v1316, %v1315
      %v1344 = vpack.c.b16 %v1318, %v1317
      %v1345 = vpack.c.b16 %v1320, %v1319
      %v1346 = vpack.c.b16 %v1322, %v1321
      %v1347 = vpack.c.b16 %v1324, %v1323
      %v1348 = vpack.c.b16 %v1326, %v1325
      %v1349 = vpack.c.b16 %v1328, %v1327
      %v1350 = vpack.c.b16 %v1330, %v1329
      %v1351 = vpack.c.b16 %v1332, %v1331
      %v1352 = vpack.c.b16 %v1334, %v1333
      %v1353 = vpack.c.b16 %v1336, %v1335
      %v1354 = vpack.c.b16 %v1338, %v1337
      %v1357 = vunpack.c.l.b16 %v1273
      %v1358 = vunpack.c.l.b16 %v1274
      %v1359 = vpack.c.b16 %v1358, %v1357
      %v1361 = vsel %vm357, %v1339, 0
      %v1364 = vsel %vm357, %v1340, 0
      %v1367 = vsel %vm357, %v1341, 0
      %v1370 = vsel %vm357, %v1342, 0
      %v1373 = vsel %vm357, %v1343, 0
      %v1376 = vsel %vm357, %v1344, 0
      %v1379 = vsel %vm357, %v1345, 0
      %v1382 = vsel %vm357, %v1346, 0
      %v1385 = vsel %vm357, %v1347, 0
      %v1388 = vsel %vm357, %v1348, 0
      %v1391 = vsel %vm357, %v1349, 0
      %v1394 = vsel %vm357, %v1350, 0
      %v1397 = vsel %vm357, %v1351, 0
      %v1400 = vsel %vm357, %v1352, 0
      %v1403 = vsel %vm357, %v1353, 0
      %v1406 = vsel %vm357, %v1354, 0
      %v1409 = vsel %vm406, %v1359, 0
      %1411 = vmatprep.subr.bf16.mxu0 0
      %1412 = vmatpush1.bf16.msra.mxu0 %v1409
      %1413 = vmatprep.subr.bf16.mxu0 0
      %1414 = vmatpush1.bf16.msra.mxu0 0
      %1415 = vmatprep.subr.bf16.mxu0 0
      %1416 = vmatpush1.bf16.msra.mxu0 0
      %1417 = vmatprep.subr.bf16.mxu0 0
      %1418 = vmatpush1.bf16.msra.mxu0 0
      %1419 = vmatprep.subr.bf16.mxu0 0
      %1420 = vmatpush1.bf16.msra.mxu0 0
      %1421 = vmatprep.subr.bf16.mxu0 0
      %1422 = vmatpush1.bf16.msra.mxu0 0
      %1423 = vmatprep.subr.bf16.mxu0 0
      %1424 = vmatpush1.bf16.msra.mxu0 0
      %1425 = vmatprep.subr.bf16.mxu0 0
      %1426 = vmatpush1.bf16.msra.mxu0 0
      %1427 = vmatprep.subr.bf16.mxu0 0
      %1428 = vmatpush1.bf16.msra.mxu0 0
      %1429 = vmatprep.subr.bf16.mxu0 0
      %1430 = vmatpush1.bf16.msra.mxu0 0
      %1431 = vmatprep.subr.bf16.mxu0 0
      %1432 = vmatpush1.bf16.msra.mxu0 0
      %1433 = vmatprep.subr.bf16.mxu0 0
      %1434 = vmatpush1.bf16.msra.mxu0 0
      %1435 = vmatprep.subr.bf16.mxu0 0
      %1436 = vmatpush1.bf16.msra.mxu0 0
      %1437 = vmatprep.subr.bf16.mxu0 0
      %1438 = vmatpush1.bf16.msra.mxu0 0
      %1439 = vmatprep.subr.bf16.mxu0 0
      %1440 = vmatpush1.bf16.msra.mxu0 0
      %1441 = vmatprep.subr.bf16.mxu0 0
      %1442 = vmatpush1.bf16.msra.mxu0 0
      %1443 = vmatprep.mubr.bf16.mxu0 0
      %1444 = vmatmul.mubr.bf16.gmra.mrb[0].mxu0 %v1361
      %v1445 = vpop.f32.mrb[0].mxu0
      %v1446 = vadd.f32 0.0, %v1445
      %v1447 = vpop.f32.mrb[0].mxu0
      %v1448 = vpop.f32.mrb[0].mxu0
      %v1449 = vadd.f32 0.0, %v1448
      %v1450 = vpop.f32.mrb[0].mxu0
      %1451 = vmatprep.mubr.bf16.mxu0 0
      %1452 = vmatmul.mubr.bf16.gmra.mrb[0].mxu0 %v1364
      %v1453 = vpop.f32.mrb[0].mxu0
      %v1454 = vadd.f32 0.0, %v1453
      %v1455 = vpop.f32.mrb[0].mxu0
      %v1456 = vpop.f32.mrb[0].mxu0
      %v1457 = vadd.f32 0.0, %v1456
      %v1458 = vpop.f32.mrb[0].mxu0
      %1459 = vmatprep.mubr.bf16.mxu0 0
      %1460 = vmatmul.mubr.bf16.gmra.mrb[0].mxu0 %v1367
      %v1461 = vpop.f32.mrb[0].mxu0
      %v1462 = vadd.f32 0.0, %v1461
      %v1463 = vpop.f32.mrb[0].mxu0
      %v1464 = vpop.f32.mrb[0].mxu0
      %v1465 = vadd.f32 0.0, %v1464
      %v1466 = vpop.f32.mrb[0].mxu0
      %1467 = vmatprep.mubr.bf16.mxu0 0
      %1468 = vmatmul.mubr.bf16.gmra.mrb[0].mxu0 %v1370
      %v1469 = vpop.f32.mrb[0].mxu0
      %v1470 = vadd.f32 0.0, %v1469
      %v1471 = vpop.f32.mrb[0].mxu0
      %v1472 = vpop.f32.mrb[0].mxu0
      %v1473 = vadd.f32 0.0, %v1472
      %v1474 = vpop.f32.mrb[0].mxu0
      %1475 = vmatprep.mubr.bf16.mxu0 0
      %1476 = vmatmul.mubr.bf16.gmra.mrb[0].mxu0 %v1373
      %v1477 = vpop.f32.mrb[0].mxu0
      %v1478 = vadd.f32 0.0, %v1477
      %v1479 = vpop.f32.mrb[0].mxu0
      %v1480 = vpop.f32.mrb[0].mxu0
      %v1481 = vadd.f32 0.0, %v1480
      %v1482 = vpop.f32.mrb[0].mxu0
      %1483 = vmatprep.mubr.bf16.mxu0 0
      %1484 = vmatmul.mubr.bf16.gmra.mrb[0].mxu0 %v1376
      %v1485 = vpop.f32.mrb[0].mxu0
      %v1486 = vadd.f32 0.0, %v1485
      %v1487 = vpop.f32.mrb[0].mxu0
      %v1488 = vpop.f32.mrb[0].mxu0
      %v1489 = vadd.f32 0.0, %v1488
      %v1490 = vpop.f32.mrb[0].mxu0
      %1491 = vmatprep.mubr.bf16.mxu0 0
      %1492 = vmatmul.mubr.bf16.gmra.mrb[0].mxu0 %v1379
      %v1493 = vpop.f32.mrb[0].mxu0
      %v1494 = vadd.f32 0.0, %v1493
      %v1495 = vpop.f32.mrb[0].mxu0
      %v1496 = vpop.f32.mrb[0].mxu0
      %v1497 = vadd.f32 0.0, %v1496
      %v1498 = vpop.f32.mrb[0].mxu0
      %1499 = vmatprep.mubr.bf16.mxu0 0
      %1500 = vmatmul.mubr.bf16.gmra.mrb[0].mxu0 %v1382
      %v1501 = vpop.f32.mrb[0].mxu0
      %v1502 = vadd.f32 0.0, %v1501
      %v1503 = vpop.f32.mrb[0].mxu0
      %v1504 = vpop.f32.mrb[0].mxu0
      %v1505 = vadd.f32 0.0, %v1504
      %v1506 = vpop.f32.mrb[0].mxu0
      %1507 = vmatprep.mubr.bf16.mxu0 0
      %1508 = vmatmul.mubr.bf16.gmra.mrb[0].mxu0 %v1385
      %v1509 = vpop.f32.mrb[0].mxu0
      %v1510 = vadd.f32 0.0, %v1509
      %v1511 = vpop.f32.mrb[0].mxu0
      %v1512 = vpop.f32.mrb[0].mxu0
      %v1513 = vadd.f32 0.0, %v1512
      %v1514 = vpop.f32.mrb[0].mxu0
      %1515 = vmatprep.mubr.bf16.mxu0 0
      %1516 = vmatmul.mubr.bf16.gmra.mrb[0].mxu0 %v1388
      %v1517 = vpop.f32.mrb[0].mxu0
      %v1518 = vadd.f32 0.0, %v1517
      %v1519 = vpop.f32.mrb[0].mxu0
      %v1520 = vpop.f32.mrb[0].mxu0
      %v1521 = vadd.f32 0.0, %v1520
      %v1522 = vpop.f32.mrb[0].mxu0
      %1523 = vmatprep.mubr.bf16.mxu0 0
      %1524 = vmatmul.mubr.bf16.gmra.mrb[0].mxu0 %v1391
      %v1525 = vpop.f32.mrb[0].mxu0
      %v1526 = vadd.f32 0.0, %v1525
      %v1527 = vpop.f32.mrb[0].mxu0
      %v1528 = vpop.f32.mrb[0].mxu0
      %v1529 = vadd.f32 0.0, %v1528
      %v1530 = vpop.f32.mrb[0].mxu0
      %1531 = vmatprep.mubr.bf16.mxu0 0
      %1532 = vmatmul.mubr.bf16.gmra.mrb[0].mxu0 %v1394
      %v1533 = vpop.f32.mrb[0].mxu0
      %v1534 = vadd.f32 0.0, %v1533
      %v1535 = vpop.f32.mrb[0].mxu0
      %v1536 = vpop.f32.mrb[0].mxu0
      %v1537 = vadd.f32 0.0, %v1536
      %v1538 = vpop.f32.mrb[0].mxu0
      %1539 = vmatprep.mubr.bf16.mxu0 0
      %1540 = vmatmul.mubr.bf16.gmra.mrb[0].mxu0 %v1397
      %v1541 = vpop.f32.mrb[0].mxu0
      %v1542 = vadd.f32 0.0, %v1541
      %v1543 = vpop.f32.mrb[0].mxu0
      %v1544 = vpop.f32.mrb[0].mxu0
      %v1545 = vadd.f32 0.0, %v1544
      %v1546 = vpop.f32.mrb[0].mxu0
      %1547 = vmatprep.mubr.bf16.mxu0 0
      %1548 = vmatmul.mubr.bf16.gmra.mrb[0].mxu0 %v1400
      %v1549 = vpop.f32.mrb[0].mxu0
      %v1550 = vadd.f32 0.0, %v1549
      %v1551 = vpop.f32.mrb[0].mxu0
      %v1552 = vpop.f32.mrb[0].mxu0
      %v1553 = vadd.f32 0.0, %v1552
      %v1554 = vpop.f32.mrb[0].mxu0
      %1555 = vmatprep.mubr.bf16.mxu0 0
      %1556 = vmatmul.mubr.bf16.gmra.mrb[0].mxu0 %v1403
      %v1557 = vpop.f32.mrb[0].mxu0
      %v1558 = vadd.f32 0.0, %v1557
      %v1559 = vpop.f32.mrb[0].mxu0
      %v1560 = vpop.f32.mrb[0].mxu0
      %v1561 = vadd.f32 0.0, %v1560
      %v1562 = vpop.f32.mrb[0].mxu0
      %1563 = vmatprep.mubr.bf16.mxu0 0
      %1564 = vmatmul.mubr.bf16.gmra.mrb[0].mxu0 %v1406
      %v1565 = vpop.f32.mrb[0].mxu0
      %v1566 = vadd.f32 0.0, %v1565
      %v1567 = vpop.f32.mrb[0].mxu0
      %v1568 = vpop.f32.mrb[0].mxu0
      %v1569 = vadd.f32 0.0, %v1568
      %v1570 = vpop.f32.mrb[0].mxu0
      %1571 = vdwg.mxu0
      %v1572 = vadd.f32 %v1205, %v1446
      %v1573 = vadd.f32 %v1206, %v1449
      %v1574 = vadd.f32 %v1207, %v1454
      %v1575 = vadd.f32 %v1208, %v1457
      %v1576 = vadd.f32 %v1209, %v1462
      %v1577 = vadd.f32 %v1210, %v1465
      %v1578 = vadd.f32 %v1211, %v1470
      %v1579 = vadd.f32 %v1212, %v1473
      %v1580 = vadd.f32 %v1213, %v1478
      %v1581 = vadd.f32 %v1214, %v1481
      %v1582 = vadd.f32 %v1215, %v1486
      %v1583 = vadd.f32 %v1216, %v1489
      %v1584 = vadd.f32 %v1217, %v1494
      %v1585 = vadd.f32 %v1218, %v1497
      %v1586 = vadd.f32 %v1219, %v1502
      %v1587 = vadd.f32 %v1220, %v1505
      %v1588 = vadd.f32 %v1221, %v1510
      %v1589 = vadd.f32 %v1222, %v1513
      %v1590 = vadd.f32 %v1223, %v1518
      %v1591 = vadd.f32 %v1224, %v1521
      %v1592 = vadd.f32 %v1225, %v1526
      %v1593 = vadd.f32 %v1226, %v1529
      %v1594 = vadd.f32 %v1227, %v1534
      %v1595 = vadd.f32 %v1228, %v1537
      %v1596 = vadd.f32 %v1229, %v1542
      %v1597 = vadd.f32 %v1230, %v1545
      %v1598 = vadd.f32 %v1231, %v1550
      %v1599 = vadd.f32 %v1232, %v1553
      %v1600 = vadd.f32 %v1233, %v1558
      %v1601 = vadd.f32 %v1234, %v1561
      %v1602 = vadd.f32 %v1235, %v1566
      %v1603 = vadd.f32 %v1236, %v1569
      %v1604 = vld [vmem:[%s2] sm:$0x1]
      %v1606 = vlaneseq
      %v1607 = vshrl.u32 %v1606, 7
      %v1608 = vsub.s32 0, %v1607
      %v1609 = vrot.slane %v1604, %v1608
      %v1611 = vadd.f32 %v1572, %v1609
      %v1612 = vadd.f32 %v1573, %v1609
      %v1613 = vadd.f32 %v1574, %v1609
      %v1614 = vadd.f32 %v1575, %v1609
      %v1615 = vadd.f32 %v1576, %v1609
      %v1616 = vadd.f32 %v1577, %v1609
      %v1617 = vadd.f32 %v1578, %v1609
      %v1618 = vadd.f32 %v1579, %v1609
      %v1619 = vadd.f32 %v1580, %v1609
      %v1620 = vadd.f32 %v1581, %v1609
      %v1621 = vadd.f32 %v1582, %v1609
      %v1622 = vadd.f32 %v1583, %v1609
      %v1623 = vadd.f32 %v1584, %v1609
      %v1624 = vadd.f32 %v1585, %v1609
      %v1625 = vadd.f32 %v1586, %v1609
      %v1626 = vadd.f32 %v1587, %v1609
      %v1627 = vadd.f32 %v1588, %v1609
      %v1628 = vadd.f32 %v1589, %v1609
      %v1629 = vadd.f32 %v1590, %v1609
      %v1630 = vadd.f32 %v1591, %v1609
      %v1631 = vadd.f32 %v1592, %v1609
      %v1632 = vadd.f32 %v1593, %v1609
      %v1633 = vadd.f32 %v1594, %v1609
      %v1634 = vadd.f32 %v1595, %v1609
      %v1635 = vadd.f32 %v1596, %v1609
      %v1636 = vadd.f32 %v1597, %v1609
      %v1637 = vadd.f32 %v1598, %v1609
      %v1638 = vadd.f32 %v1599, %v1609
      %v1639 = vadd.f32 %v1600, %v1609
      %v1640 = vadd.f32 %v1601, %v1609
      %v1641 = vadd.f32 %v1602, %v1609
      %v1642 = vadd.f32 %v1603, %v1609
      %vm1643 = vcmp.gt.f32.partialorder %v1611, 0.0
      %vm1644 = vcmp.gt.f32.partialorder %v1612, 0.0
      %vm1645 = vcmp.gt.f32.partialorder %v1613, 0.0
      %vm1646 = vcmp.gt.f32.partialorder %v1614, 0.0
      %vm1647 = vcmp.gt.f32.partialorder %v1615, 0.0
      %vm1648 = vcmp.gt.f32.partialorder %v1616, 0.0
      %vm1649 = vcmp.gt.f32.partialorder %v1617, 0.0
      %vm1650 = vcmp.gt.f32.partialorder %v1618, 0.0
      %vm1651 = vcmp.gt.f32.partialorder %v1619, 0.0
      %vm1652 = vcmp.gt.f32.partialorder %v1620, 0.0
      %vm1653 = vcmp.gt.f32.partialorder %v1621, 0.0
      %vm1654 = vcmp.gt.f32.partialorder %v1622, 0.0
      %vm1655 = vcmp.gt.f32.partialorder %v1623, 0.0
      %vm1656 = vcmp.gt.f32.partialorder %v1624, 0.0
      %vm1657 = vcmp.gt.f32.partialorder %v1625, 0.0
      %vm1658 = vcmp.gt.f32.partialorder %v1626, 0.0
      %vm1659 = vcmp.gt.f32.partialorder %v1627, 0.0
      %vm1660 = vcmp.gt.f32.partialorder %v1628, 0.0
      %vm1661 = vcmp.gt.f32.partialorder %v1629, 0.0
      %vm1662 = vcmp.gt.f32.partialorder %v1630, 0.0
      %vm1663 = vcmp.gt.f32.partialorder %v1631, 0.0
      %vm1664 = vcmp.gt.f32.partialorder %v1632, 0.0
      %vm1665 = vcmp.gt.f32.partialorder %v1633, 0.0
      %vm1666 = vcmp.gt.f32.partialorder %v1634, 0.0
      %vm1667 = vcmp.gt.f32.partialorder %v1635, 0.0
      %vm1668 = vcmp.gt.f32.partialorder %v1636, 0.0
      %vm1669 = vcmp.gt.f32.partialorder %v1637, 0.0
      %vm1670 = vcmp.gt.f32.partialorder %v1638, 0.0
      %vm1671 = vcmp.gt.f32.partialorder %v1639, 0.0
      %vm1672 = vcmp.gt.f32.partialorder %v1640, 0.0
      %vm1673 = vcmp.gt.f32.partialorder %v1641, 0.0
      %vm1674 = vcmp.gt.f32.partialorder %v1642, 0.0
      %v1675 = vmul.f32 %v1611, 0.2
      %v1676 = vmul.f32 %v1612, 0.2
      %v1677 = vmul.f32 %v1613, 0.2
      %v1678 = vmul.f32 %v1614, 0.2
      %v1679 = vmul.f32 %v1615, 0.2
      %v1680 = vmul.f32 %v1616, 0.2
      %v1681 = vmul.f32 %v1617, 0.2
      %v1682 = vmul.f32 %v1618, 0.2
      %v1683 = vmul.f32 %v1619, 0.2
      %v1684 = vmul.f32 %v1620, 0.2
      %v1685 = vmul.f32 %v1621, 0.2
      %v1686 = vmul.f32 %v1622, 0.2
      %v1687 = vmul.f32 %v1623, 0.2
      %v1688 = vmul.f32 %v1624, 0.2
      %v1689 = vmul.f32 %v1625, 0.2
      %v1690 = vmul.f32 %v1626, 0.2
      %v1691 = vmul.f32 %v1627, 0.2
      %v1692 = vmul.f32 %v1628, 0.2
      %v1693 = vmul.f32 %v1629, 0.2
      %v1694 = vmul.f32 %v1630, 0.2
      %v1695 = vmul.f32 %v1631, 0.2
      %v1696 = vmul.f32 %v1632, 0.2
      %v1697 = vmul.f32 %v1633, 0.2
      %v1698 = vmul.f32 %v1634, 0.2
      %v1699 = vmul.f32 %v1635, 0.2
      %v1700 = vmul.f32 %v1636, 0.2
      %v1701 = vmul.f32 %v1637, 0.2
      %v1702 = vmul.f32 %v1638, 0.2
      %v1703 = vmul.f32 %v1639, 0.2
      %v1704 = vmul.f32 %v1640, 0.2
      %v1705 = vmul.f32 %v1641, 0.2
      %v1706 = vmul.f32 %v1642, 0.2
      %v1707 = vsel %vm1643, %v1611, %v1675
      %v1708 = vsel %vm1644, %v1612, %v1676
      %v1709 = vsel %vm1645, %v1613, %v1677
      %v1710 = vsel %vm1646, %v1614, %v1678
      %v1711 = vsel %vm1647, %v1615, %v1679
      %v1712 = vsel %vm1648, %v1616, %v1680
      %v1713 = vsel %vm1649, %v1617, %v1681
      %v1714 = vsel %vm1650, %v1618, %v1682
      %v1715 = vsel %vm1651, %v1619, %v1683
      %v1716 = vsel %vm1652, %v1620, %v1684
      %v1717 = vsel %vm1653, %v1621, %v1685
      %v1718 = vsel %vm1654, %v1622, %v1686
      %v1719 = vsel %vm1655, %v1623, %v1687
      %v1720 = vsel %vm1656, %v1624, %v1688
      %v1721 = vsel %vm1657, %v1625, %v1689
      %v1722 = vsel %vm1658, %v1626, %v1690
      %v1723 = vsel %vm1659, %v1627, %v1691
      %v1724 = vsel %vm1660, %v1628, %v1692
      %v1725 = vsel %vm1661, %v1629, %v1693
      %v1726 = vsel %vm1662, %v1630, %v1694
      %v1727 = vsel %vm1663, %v1631, %v1695
      %v1728 = vsel %vm1664, %v1632, %v1696
      %v1729 = vsel %vm1665, %v1633, %v1697
      %v1730 = vsel %vm1666, %v1634, %v1698
      %v1731 = vsel %vm1667, %v1635, %v1699
      %v1732 = vsel %vm1668, %v1636, %v1700
      %v1733 = vsel %vm1669, %v1637, %v1701
      %v1734 = vsel %vm1670, %v1638, %v1702
      %v1735 = vsel %vm1671, %v1639, %v1703
      %v1736 = vsel %vm1672, %v1640, %v1704
      %v1737 = vsel %vm1673, %v1641, %v1705
      %v1738 = vsel %vm1674, %v1642, %v1706
      %1739 = vst [vmem:[%s192] sm:$0xff] %v1707
      %1740 = vst [vmem:[%s192 + $0x8] sm:$0xff] %v1708
      %1741 = vst [vmem:[%s192 + $0x10] sm:$0xff] %v1709
      %1742 = vst [vmem:[%s192 + $0x18] sm:$0xff] %v1710
      %1743 = vst [vmem:[%s192 + $0x20] sm:$0xff] %v1711
      %1744 = vst [vmem:[%s192 + $0x28] sm:$0xff] %v1712
      %1745 = vst [vmem:[%s192 + $0x30] sm:$0xff] %v1713
      %1746 = vst [vmem:[%s192 + $0x38] sm:$0xff] %v1714
      %1747 = vst [vmem:[%s192 + $0x40] sm:$0xff] %v1715
      %1748 = vst [vmem:[%s192 + $0x48] sm:$0xff] %v1716
      %1749 = vst [vmem:[%s192 + $0x50] sm:$0xff] %v1717
      %1750 = vst [vmem:[%s192 + $0x58] sm:$0xff] %v1718
      %1751 = vst [vmem:[%s192 + $0x60] sm:$0xff] %v1719
      %1752 = vst [vmem:[%s192 + $0x68] sm:$0xff] %v1720
      %1753 = vst [vmem:[%s192 + $0x70] sm:$0xff] %v1721
      %1754 = vst [vmem:[%s192 + $0x78] sm:$0xff] %v1722
      %1755 = vst [vmem:[%s192 + $0x80] sm:$0xff] %v1723
      %1756 = vst [vmem:[%s192 + $0x88] sm:$0xff] %v1724
      %1757 = vst [vmem:[%s192 + $0x90] sm:$0xff] %v1725
      %1758 = vst [vmem:[%s192 + $0x98] sm:$0xff] %v1726
      %1759 = vst [vmem:[%s192 + $0xa0] sm:$0xff] %v1727
      %1760 = vst [vmem:[%s192 + $0xa8] sm:$0xff] %v1728
      %1761 = vst [vmem:[%s192 + $0xb0] sm:$0xff] %v1729
      %1762 = vst [vmem:[%s192 + $0xb8] sm:$0xff] %v1730
      %1763 = vst [vmem:[%s192 + $0xc0] sm:$0xff] %v1731
      %1764 = vst [vmem:[%s192 + $0xc8] sm:$0xff] %v1732
      %1765 = vst [vmem:[%s192 + $0xd0] sm:$0xff] %v1733
      %1766 = vst [vmem:[%s192 + $0xd8] sm:$0xff] %v1734
      %1767 = vst [vmem:[%s192 + $0xe0] sm:$0xff] %v1735
      %1768 = vst [vmem:[%s192 + $0xe8] sm:$0xff] %v1736
      %1769 = vst [vmem:[%s192 + $0xf0] sm:$0xff] %v1737
      %1770 = vst [vmem:[%s192 + $0xf8] sm:$0xff] %v1738
      %s1771 = smul.u32 32, %s19
      %p1772 = scmp.lt.s32.totalorder %s18, 1
      %s1773 = scalar_select %p1772, %s18, 1
      %p1774 = scmp.lt.s32.totalorder %s1771, 127
      %s1775 = scalar_select %p1774, %s1771, 127
      %s1776 = smul.addr %s1773, 128
      %s1777 = sadd.s32 %s1775, %s1776
      %s1778 = smul.addr %s1777, 8
      %s1779 = scalar_lea.vmem %s3, %s1778
      // Predicated region
      $region33: #{discriminator_forward.5} parent=31 // pred_check
        %p1780 = pneg %p114
      $region34: #{discriminator_forward.5} parent=31 // pred_check_branch
        %1782 = sbr.rel (%p1780) target = $region36
      $region35: #{discriminator_forward.5} parent=31 // pred_region
        %s1783 = smul.u32 32, %s19
      $region36: #{discriminator_forward.5} parent=31 // pred_fallthru
        _
    $region32: #{discriminator_forward.5} parent=5 // pred_fallthru
      _
    %p1784 = scmp.le.s32.totalorder 2, %s9
    // Predicated region
    $region37: #{discriminator_forward.5} parent=5 // pred_check
      %p1785 = pneg %p1784
    $region38: #{discriminator_forward.5} parent=5 // pred_check_branch
      %1787 = sbr.rel (%p1785) target = $region40
    $region39: #{discriminator_forward.5} parent=5 // pred_region
      %s1788 = ssub.s32 %s9, 2
      // Predicated region
      $region41: #{discriminator_forward.5} parent=39 // pred_check
        %p1789 = pneg %p120
      $region42: #{discriminator_forward.5} parent=39 // pred_check_branch
        %1791 = sbr.rel (%p1789) target = $region44
      $region43: #{discriminator_forward.5} parent=39 // pred_region
        %s1792 = smul.u32 32, %s21
        %p1793 = scmp.lt.s32.totalorder %s20, 1
        %s1794 = scalar_select %p1793, %s20, 1
        %p1795 = scmp.lt.s32.totalorder %s1792, 127
        %s1796 = scalar_select %p1795, %s1792, 127
        %s1797 = smul.addr %s1794, 128
        %s1798 = sadd.s32 %s1796, %s1797
        %s1799 = smul.addr %s1798, 8
        %s1800 = scalar_lea.vmem %s3, %s1799
      $region44: #{discriminator_forward.5} parent=39 // pred_fallthru
        _
    $region40: #{discriminator_forward.5} parent=5 // pred_fallthru
      _
  $region6: #{discriminator_forward.5} parent=0 // loop_footer
    %s13 = sadd.s32 1, %s9
  $region7: #{discriminator_forward.5} parent=0 // loop_footer_branch
    %8 = sbr.rel target = $region3
  $region8: #{discriminator_forward.5} parent=0 // loop_exit
    _

// kernel: discriminator_forward.6
$region0: #{discriminator_forward.6}
  #allocation0 [shape = 'u32[]', space=smem, size = 0x4, offset = 0x4, fixed_abs, tag = 'smem constant byte address 0x4 - core index']
  #allocation1 [shape = 'u32[144,128]{1,0:T(1,128)}', space=vmem, size = 0x12000, scoped, tag = 'internal scratch']
  %s0 = inlined_call_operand.vmem [shape: bf16[2,2,272,256], index: 0, kind: input, shape index: {}]
  %s1 = inlined_call_operand.vmem [shape: bf16[4,256,128], index: 1, kind: input, shape index: {}]
  %s2 = inlined_call_operand.vmem [shape: f32[1,128], index: 2, kind: input, shape index: {}]
  %s3 = inlined_call_operand.vmem [shape: f32[2,256,128], index: 3, kind: output, shape index: {}]
  %s4 = sld [smem:[#allocation0]]
  $region45: #{discriminator_forward.6} parent=0
    _
  %s6 = ssub.s32 1, %s4
  %s7 = scalar_select 0, %s6, %s4
  loop: start=0, step=1, limit=4
  $region2: #{discriminator_forward.6} parent=0 // loop_pre_header
    _
  $region3: #{discriminator_forward.6} parent=0 // loop_header
    %s9 = sphi 0, %s13
    %p10 = scmp.ge.s32.totalorder %s9, 4
    %s16 = sphi 0, %s28
    %s17 = sphi 0, %s24
    %s18 = sphi 0, %s16
    %s19 = sphi 0, %s17
    %s20 = sphi 0, %s18
    %s21 = sphi 0, %s19
    %s31 = sphi 0, %s33
    %s34 = sphi 0, %s31
    %s35 = sphi 0, %s34
    %s51 = sphi 0, %s35
    %s55 = sphi 0, %s55
    %s57 = sphi 0, %s55
    %s58 = sphi 0, %s57
    %s72 = sphi 0, %s58
    %s76 = sphi 0, %s76
    %s78 = sphi 0, %s76
    %s79 = sphi 0, %s78
    %s93 = sphi 0, %s79
    %s101 = sphi 0, %s103
    %s104 = sphi 0, %s101
    %s105 = sphi 0, %s104
    %s121 = sphi 0, %s105
  $region4: #{discriminator_forward.6} parent=0 // loop_header_branch
    %12 = sbr.rel (%p10) target = $region8
  $region5: #{discriminator_forward.6} parent=0 // loop_body
    %s14 = ssub.s32 %s9, 1
    %s15 = ssub.s32 %s9, 2
    %s22 = sadd.s32 1, %s17
    %p23 = scmp.ge.s32.totalorder %s22, 1
    %s24 = scalar_select %p23, 0, %s22
    %s25 = sadd.s32 1, %s16
    %s26 = scalar_select %p23, %s25, %s16
    %p27 = scmp.ge.s32.totalorder %s26, 2
    %s28 = scalar_select %p27, 0, %s26
    %s29 = ssub.s32 %s16, %s28
    %p30 = scmp.eq.s32.totalorder %s29, 0
    %s32 = sadd.s32 %s31, 1
    %s33 = scalar_select %p30, %s31, %s32
    %p36 = pneg %p30
    %p37 = scmp.eq.s32.totalorder %s9, 1
    %p38 = por %p36, %p37
    %p39 = scmp.ne.s32.totalorder %s31, %s34
    %p40 = scmp.eq.s32.totalorder %s9, 0
    %p41 = por %p39, %p40
    %p42 = scmp.ne.s32.totalorder %s31, %s34
    %p43 = scmp.eq.s32.totalorder %s14, 1
    %p44 = por %p42, %p43
    %p45 = scmp.ne.s32.totalorder %s34, %s35
    %p46 = scmp.eq.s32.totalorder %s14, 0
    %p47 = por %p45, %p46
    %p48 = scmp.ne.s32.totalorder %s34, %s35
    %p49 = scmp.eq.s32.totalorder %s15, 1
    %p50 = por %p48, %p49
    %p52 = scmp.ne.s32.totalorder %s35, %s51
    %p53 = scmp.eq.s32.totalorder %s15, 0
    %p54 = por %p52, %p53
    %s56 = sadd.s32 %s55, 1
    %p59 = scmp.eq.s32.totalorder %s9, 1
    %p60 = scmp.ne.s32.totalorder %s55, %s57
    %p61 = scmp.eq.s32.totalorder %s9, 0
    %p62 = por %p60, %p61
    %p63 = scmp.ne.s32.totalorder %s55, %s57
    %p64 = scmp.eq.s32.totalorder %s14, 1
    %p65 = por %p63, %p64
    %p66 = scmp.ne.s32.totalorder %s57, %s58
    %p67 = scmp.eq.s32.totalorder %s14, 0
    %p68 = por %p66, %p67
    %p69 = scmp.ne.s32.totalorder %s57, %s58
    %p70 = scmp.eq.s32.totalorder %s15, 1
    %p71 = por %p69, %p70
    %p73 = scmp.ne.s32.totalorder %s58, %s72
    %p74 = scmp.eq.s32.totalorder %s15, 0
    %p75 = por %p73, %p74
    %s77 = sadd.s32 %s76, 1
    %p80 = scmp.eq.s32.totalorder %s9, 1
    %p81 = scmp.ne.s32.totalorder %s76, %s78
    %p82 = scmp.eq.s32.totalorder %s9, 0
    %p83 = por %p81, %p82
    %p84 = scmp.ne.s32.totalorder %s76, %s78
    %p85 = scmp.eq.s32.totalorder %s14, 1
    %p86 = por %p84, %p85
    %p87 = scmp.ne.s32.totalorder %s78, %s79
    %p88 = scmp.eq.s32.totalorder %s14, 0
    %p89 = por %p87, %p88
    %p90 = scmp.ne.s32.totalorder %s78, %s79
    %p91 = scmp.eq.s32.totalorder %s15, 1
    %p92 = por %p90, %p91
    %p94 = scmp.ne.s32.totalorder %s79, %s93
    %p95 = scmp.eq.s32.totalorder %s15, 0
    %p96 = por %p94, %p95
    %s97 = ssub.s32 %s16, %s28
    %s98 = ssub.s32 %s17, %s24
    %s99 = sor.u32 %s97, %s98
    %p100 = scmp.eq.s32.totalorder %s99, 0
    %s102 = sadd.s32 %s101, 1
    %s103 = scalar_select %p100, %s101, %s102
    %p106 = pneg %p100
    %p107 = scmp.eq.s32.totalorder %s9, 1
    %p108 = por %p106, %p107
    %p109 = scmp.ne.s32.totalorder %s101, %s104
    %p110 = scmp.eq.s32.totalorder %s9, 0
    %p111 = por %p109, %p110
    %p112 = scmp.ne.s32.totalorder %s101, %s104
    %p113 = scmp.eq.s32.totalorder %s14, 1
    %p114 = por %p112, %p113
    %p115 = scmp.ne.s32.totalorder %s104, %s105
    %p116 = scmp.eq.s32.totalorder %s14, 0
    %p117 = por %p115, %p116
    %p118 = scmp.ne.s32.totalorder %s104, %s105
    %p119 = scmp.eq.s32.totalorder %s15, 1
    %p120 = por %p118, %p119
    %p122 = scmp.ne.s32.totalorder %s105, %s121
    %p123 = scmp.eq.s32.totalorder %s15, 0
    %p124 = por %p122, %p123
    %p125 = scmp.le.s32.totalorder 1, %s9
    %p126 = scmp.lt.s32.totalorder %s9, 3
    %p127 = pnand %p125, %p126
    %p128 = pneg %p127
    // Predicated region
    $region9: #{discriminator_forward.6} parent=5 // pred_check
      _
    $region10: #{discriminator_forward.6} parent=5 // pred_check_branch
      %130 = sbr.rel (%p127) target = $region12
    $region11: #{discriminator_forward.6} parent=5 // pred_region
      %s131 = ssub.s32 %s9, 1
      // Predicated region
      $region13: #{discriminator_forward.6} parent=11 // pred_check
        %p132 = pneg %p68
      $region14: #{discriminator_forward.6} parent=11 // pred_check_branch
        %134 = sbr.rel (%p132) target = $region16
      $region15: #{discriminator_forward.6} parent=11 // pred_region
        _
      $region16: #{discriminator_forward.6} parent=11 // pred_fallthru
        _
      // Predicated region
      $region17: #{discriminator_forward.6} parent=11 // pred_check
        %p135 = pneg %p89
      $region18: #{discriminator_forward.6} parent=11 // pred_check_branch
        %137 = sbr.rel (%p135) target = $region20
      $region19: #{discriminator_forward.6} parent=11 // pred_region
        _
      $region20: #{discriminator_forward.6} parent=11 // pred_fallthru
        _
    $region12: #{discriminator_forward.6} parent=5 // pred_fallthru
      _
    %p138 = scmp.lt.s32.totalorder %s9, 2
    // Predicated region
    $region21: #{discriminator_forward.6} parent=5 // pred_check
      %p139 = pneg %p138
    $region22: #{discriminator_forward.6} parent=5 // pred_check_branch
      %141 = sbr.rel (%p139) target = $region24
    $region23: #{discriminator_forward.6} parent=5 // pred_region
      // Predicated region
      $region25: #{discriminator_forward.6} parent=23 // pred_check
        %p142 = pneg %p41
      $region26: #{discriminator_forward.6} parent=23 // pred_check_branch
        %144 = sbr.rel (%p142) target = $region28
      $region27: #{discriminator_forward.6} parent=23 // pred_region
        %p145 = scmp.lt.s32.totalorder %s16, 1
        %s146 = scalar_select %p145, %s16, 1
        %s147 = smul.addr %s146, 136
        %s148 = smul.addr %s147, 4
        %s149 = scalar_lea.vmem %s0, %s148
      $region28: #{discriminator_forward.6} parent=23 // pred_fallthru
        _
    $region24: #{discriminator_forward.6} parent=5 // pred_fallthru
      _
    %p150 = scmp.le.s32.totalorder 1, %s9
    %p151 = scmp.lt.s32.totalorder %s9, 3
    %p152 = pnand %p150, %p151
    %p153 = pneg %p152
    // Predicated region
    $region29: #{discriminator_forward.6} parent=5 // pred_check
      _
    $region30: #{discriminator_forward.6} parent=5 // pred_check_branch
      %155 = sbr.rel (%p152) target = $region32
    $region31: #{discriminator_forward.6} parent=5 // pred_region
      %s156 = ssub.s32 %s9, 1
      %p157 = scmp.lt.s32.totalorder %s18, 1
      %s158 = scalar_select %p157, %s18, 1
      %s159 = smul.addr %s158, 136
      %s160 = smul.addr %s159, 4
      %s161 = scalar_lea.vmem %s0, %s160
      %p162 = pneg %p47
      %p163 = pneg %p44
      %p164 = pneg %p68
      %p165 = pneg %p65
      %p166 = pneg %p89
      %p167 = pneg %p86
      %p168 = pneg %p117
      %p169 = pneg %p114
      %s170 = smul.u32 32, %s19
      %p171 = scmp.lt.s32.totalorder %s18, 1
      %s172 = scalar_select %p171, %s18, 1
      %p173 = scmp.lt.s32.totalorder %s170, 31
      %s174 = scalar_select %p173, %s170, 31
      %s175 = smul.addr %s172, 32
      %s176 = sadd.s32 %s174, %s175
      %s177 = smul.addr %s176, 8
      %s178 = scalar_lea.vmem %s3, %s177
      %p179 = scmp.lt.s32.totalorder %s18, 1
      %s180 = scalar_select %p179, %s18, 1
      %s181 = smul.addr %s180, 136
      %s182 = smul.addr %s181, 4
      %s183 = scalar_lea.vmem %s0, %s182
      %s184 = smul.u32 32, %s19
      %p185 = scmp.lt.s32.totalorder %s18, 1
      %s186 = scalar_select %p185, %s18, 1
      %p187 = scmp.lt.s32.totalorder %s184, 31
      %s188 = scalar_select %p187, %s184, 31
      %s189 = smul.addr %s186, 32
      %s190 = sadd.s32 %s188, %s189
      %s191 = smul.addr %s190, 8
      %s192 = scalar_lea.vmem %s3, %s191
      %s193 = smul.u32 32, %s19
      %v195 = vld [vmem:[%s183] sm:$0xff]
      %v196 = vld [vmem:[%s183 + $0x8] sm:$0xff]
      %v197 = vld [vmem:[%s183 + $0x10] sm:$0xff]
      %v198 = vld [vmem:[%s183 + $0x18] sm:$0xff]
      %v199 = vld [vmem:[%s183 + $0x20] sm:$0xff]
      %v200 = vld [vmem:[%s183 + $0x28] sm:$0xff]
      %v201 = vld [vmem:[%s183 + $0x30] sm:$0xff]
      %v202 = vld [vmem:[%s183 + $0x38] sm:$0xff]
      %v203 = vld [vmem:[%s183 + $0x40] sm:$0xff]
      %v204 = vld [vmem:[%s183 + $0x48] sm:$0xff]
      %v205 = vld [vmem:[%s183 + $0x50] sm:$0xff]
      %v206 = vld [vmem:[%s183 + $0x58] sm:$0xff]
      %v207 = vld [vmem:[%s183 + $0x60] sm:$0xff]
      %v208 = vld [vmem:[%s183 + $0x68] sm:$0xff]
      %v209 = vld [vmem:[%s183 + $0x70] sm:$0xff]
      %v210 = vld [vmem:[%s183 + $0x78] sm:$0xff]
      %v211 = vld [vmem:[%s183 + $0x80] sm:$0xff]
      %v212 = vld [vmem:[%s183 + $0x88] sm:$0xff]
      %v213 = vld [vmem:[%s183 + $0x90] sm:$0xff]
      %v214 = vld [vmem:[%s183 + $0x98] sm:$0xff]
      %v215 = vld [vmem:[%s183 + $0xa0] sm:$0xff]
      %v216 = vld [vmem:[%s183 + $0xa8] sm:$0xff]
      %v217 = vld [vmem:[%s183 + $0xb0] sm:$0xff]
      %v218 = vld [vmem:[%s183 + $0xb8] sm:$0xff]
      %v219 = vld [vmem:[%s183 + $0xc0] sm:$0xff]
      %v220 = vld [vmem:[%s183 + $0xc8] sm:$0xff]
      %v221 = vld [vmem:[%s183 + $0xd0] sm:$0xff]
      %v222 = vld [vmem:[%s183 + $0xd8] sm:$0xff]
      %v223 = vld [vmem:[%s183 + $0xe0] sm:$0xff]
      %v224 = vld [vmem:[%s183 + $0xe8] sm:$0xff]
      %v225 = vld [vmem:[%s183 + $0xf0] sm:$0xff]
      %v226 = vld [vmem:[%s183 + $0xf8] sm:$0xff]
      %v227 = vld [vmem:[%s1] sm:$0xf]
      %v228 = vld [vmem:[%s1 + $0x4] sm:$0xf]
      %v229 = vld [vmem:[%s1 + $0x8] sm:$0xf]
      %v230 = vld [vmem:[%s1 + $0xc] sm:$0xf]
      %v231 = vld [vmem:[%s1 + $0x10] sm:$0xf]
      %v232 = vld [vmem:[%s1 + $0x14] sm:$0xf]
      %v233 = vld [vmem:[%s1 + $0x18] sm:$0xf]
      %v234 = vld [vmem:[%s1 + $0x1c] sm:$0xf]
      %v235 = vld [vmem:[%s1 + $0x20] sm:$0xf]
      %v236 = vld [vmem:[%s1 + $0x24] sm:$0xf]
      %v237 = vld [vmem:[%s1 + $0x28] sm:$0xf]
      %v238 = vld [vmem:[%s1 + $0x2c] sm:$0xf]
      %v239 = vld [vmem:[%s1 + $0x30] sm:$0xf]
      %v240 = vld [vmem:[%s1 + $0x34] sm:$0xf]
      %v241 = vld [vmem:[%s1 + $0x38] sm:$0xf]
      %v242 = vld [vmem:[%s1 + $0x3c] sm:$0xf]
      %v243 = vld [vmem:[%s1 + $0x40] sm:$0xf]
      %v244 = vld [vmem:[%s1 + $0x44] sm:$0xf]
      %v245 = vld [vmem:[%s1 + $0x48] sm:$0xf]
      %v246 = vld [vmem:[%s1 + $0x4c] sm:$0xf]
      %v247 = vld [vmem:[%s1 + $0x50] sm:$0xf]
      %v248 = vld [vmem:[%s1 + $0x54] sm:$0xf]
      %v249 = vld [vmem:[%s1 + $0x58] sm:$0xf]
      %v250 = vld [vmem:[%s1 + $0x5c] sm:$0xf]
      %v251 = vld [vmem:[%s1 + $0x60] sm:$0xf]
      %v252 = vld [vmem:[%s1 + $0x64] sm:$0xf]
      %v253 = vld [vmem:[%s1 + $0x68] sm:$0xf]
      %v254 = vld [vmem:[%s1 + $0x6c] sm:$0xf]
      %v255 = vld [vmem:[%s1 + $0x70] sm:$0xf]
      %v256 = vld [vmem:[%s1 + $0x74] sm:$0xf]
      %v257 = vld [vmem:[%s1 + $0x78] sm:$0xf]
      %v258 = vld [vmem:[%s1 + $0x7c] sm:$0xf]
      %s259 = scalar_lea.vmem %s183, 272
      %v260 = vld [vmem:[%s259] sm:$0xff]
      %v261 = vld [vmem:[%s259 + $0x8] sm:$0xff]
      %v262 = vld [vmem:[%s259 + $0x10] sm:$0xff]
      %v263 = vld [vmem:[%s259 + $0x18] sm:$0xff]
      %v264 = vld [vmem:[%s259 + $0x20] sm:$0xff]
      %v265 = vld [vmem:[%s259 + $0x28] sm:$0xff]
      %v266 = vld [vmem:[%s259 + $0x30] sm:$0xff]
      %v267 = vld [vmem:[%s259 + $0x38] sm:$0xff]
      %v268 = vld [vmem:[%s259 + $0x40] sm:$0xff]
      %v269 = vld [vmem:[%s259 + $0x48] sm:$0xff]
      %v270 = vld [vmem:[%s259 + $0x50] sm:$0xff]
      %v271 = vld [vmem:[%s259 + $0x58] sm:$0xff]
      %v272 = vld [vmem:[%s259 + $0x60] sm:$0xff]
      %v273 = vld [vmem:[%s259 + $0x68] sm:$0xff]
      %v274 = vld [vmem:[%s259 + $0x70] sm:$0xff]
      %v275 = vld [vmem:[%s259 + $0x78] sm:$0xff]
      %v276 = vld [vmem:[%s259 + $0x80] sm:$0xff]
      %v277 = vld [vmem:[%s259 + $0x88] sm:$0xff]
      %v278 = vld [vmem:[%s259 + $0x90] sm:$0xff]
      %v279 = vld [vmem:[%s259 + $0x98] sm:$0xff]
      %v280 = vld [vmem:[%s259 + $0xa0] sm:$0xff]
      %v281 = vld [vmem:[%s259 + $0xa8] sm:$0xff]
      %v282 = vld [vmem:[%s259 + $0xb0] sm:$0xff]
      %v283 = vld [vmem:[%s259 + $0xb8] sm:$0xff]
      %v284 = vld [vmem:[%s259 + $0xc0] sm:$0xff]
      %v285 = vld [vmem:[%s259 + $0xc8] sm:$0xff]
      %v286 = vld [vmem:[%s259 + $0xd0] sm:$0xff]
      %v287 = vld [vmem:[%s259 + $0xd8] sm:$0xff]
      %v288 = vld [vmem:[%s259 + $0xe0] sm:$0xff]
      %v289 = vld [vmem:[%s259 + $0xe8] sm:$0xff]
      %v290 = vld [vmem:[%s259 + $0xf0] sm:$0xff]
      %v291 = vld [vmem:[%s259 + $0xf8] sm:$0xff]
      %s292 = scalar_lea.vmem %s1, 128
      %v293 = vld [vmem:[%s292] sm:$0xf]
      %v294 = vld [vmem:[%s292 + $0x4] sm:$0xf]
      %v295 = vld [vmem:[%s292 + $0x8] sm:$0xf]
      %v296 = vld [vmem:[%s292 + $0xc] sm:$0xf]
      %v297 = vld [vmem:[%s292 + $0x10] sm:$0xf]
      %v298 = vld [vmem:[%s292 + $0x14] sm:$0xf]
      %v299 = vld [vmem:[%s292 + $0x18] sm:$0xf]
      %v300 = vld [vmem:[%s292 + $0x1c] sm:$0xf]
      %v301 = vld [vmem:[%s292 + $0x20] sm:$0xf]
      %v302 = vld [vmem:[%s292 + $0x24] sm:$0xf]
      %v303 = vld [vmem:[%s292 + $0x28] sm:$0xf]
      %v304 = vld [vmem:[%s292 + $0x2c] sm:$0xf]
      %v305 = vld [vmem:[%s292 + $0x30] sm:$0xf]
      %v306 = vld [vmem:[%s292 + $0x34] sm:$0xf]
      %v307 = vld [vmem:[%s292 + $0x38] sm:$0xf]
      %v308 = vld [vmem:[%s292 + $0x3c] sm:$0xf]
      %v309 = vld [vmem:[%s292 + $0x40] sm:$0xf]
      %v310 = vld [vmem:[%s292 + $0x44] sm:$0xf]
      %v311 = vld [vmem:[%s292 + $0x48] sm:$0xf]
      %v312 = vld [vmem:[%s292 + $0x4c] sm:$0xf]
      %v313 = vld [vmem:[%s292 + $0x50] sm:$0xf]
      %v314 = vld [vmem:[%s292 + $0x54] sm:$0xf]
      %v315 = vld [vmem:[%s292 + $0x58] sm:$0xf]
      %v316 = vld [vmem:[%s292 + $0x5c] sm:$0xf]
      %v317 = vld [vmem:[%s292 + $0x60] sm:$0xf]
      %v318 = vld [vmem:[%s292 + $0x64] sm:$0xf]
      %v319 = vld [vmem:[%s292 + $0x68] sm:$0xf]
      %v320 = vld [vmem:[%s292 + $0x6c] sm:$0xf]
      %v321 = vld [vmem:[%s292 + $0x70] sm:$0xf]
      %v322 = vld [vmem:[%s292 + $0x74] sm:$0xf]
      %v323 = vld [vmem:[%s292 + $0x78] sm:$0xf]
      %v324 = vld [vmem:[%s292 + $0x7c] sm:$0xf]
      %v357 = vunpack.c.l.b16 %v260
      %v358 = vunpack.c.h.b16 %v260
      %v359 = vunpack.c.l.b16 %v261
      %v360 = vunpack.c.h.b16 %v261
      %v361 = vunpack.c.l.b16 %v262
      %v362 = vunpack.c.h.b16 %v262
      %v363 = vunpack.c.l.b16 %v263
      %v364 = vunpack.c.h.b16 %v263
      %v365 = vunpack.c.l.b16 %v264
      %v366 = vunpack.c.h.b16 %v264
      %v367 = vunpack.c.l.b16 %v265
      %v368 = vunpack.c.h.b16 %v265
      %v369 = vunpack.c.l.b16 %v266
      %v370 = vunpack.c.h.b16 %v266
      %v371 = vunpack.c.l.b16 %v267
      %v372 = vunpack.c.h.b16 %v267
      %v373 = vunpack.c.l.b16 %v268
      %v374 = vunpack.c.h.b16 %v268
      %v375 = vunpack.c.l.b16 %v269
      %v376 = vunpack.c.h.b16 %v269
      %v377 = vunpack.c.l.b16 %v270
      %v378 = vunpack.c.h.b16 %v270
      %v379 = vunpack.c.l.b16 %v271
      %v380 = vunpack.c.h.b16 %v271
      %v381 = vunpack.c.l.b16 %v272
      %v382 = vunpack.c.h.b16 %v272
      %v383 = vunpack.c.l.b16 %v273
      %v384 = vunpack.c.h.b16 %v273
      %v385 = vunpack.c.l.b16 %v274
      %v386 = vunpack.c.h.b16 %v274
      %v387 = vunpack.c.l.b16 %v275
      %v388 = vunpack.c.h.b16 %v275
      %v389 = vunpack.c.l.b16 %v276
      %v390 = vunpack.c.h.b16 %v276
      %v391 = vunpack.c.l.b16 %v277
      %v392 = vunpack.c.h.b16 %v277
      %v393 = vunpack.c.l.b16 %v278
      %v394 = vunpack.c.h.b16 %v278
      %v395 = vunpack.c.l.b16 %v279
      %v396 = vunpack.c.h.b16 %v279
      %v397 = vunpack.c.l.b16 %v280
      %v398 = vunpack.c.h.b16 %v280
      %v399 = vunpack.c.l.b16 %v281
      %v400 = vunpack.c.h.b16 %v281
      %v401 = vunpack.c.l.b16 %v282
      %v402 = vunpack.c.h.b16 %v282
      %v403 = vunpack.c.l.b16 %v283
      %v404 = vunpack.c.h.b16 %v283
      %v405 = vunpack.c.l.b16 %v284
      %v406 = vunpack.c.h.b16 %v284
      %v407 = vunpack.c.l.b16 %v285
      %v408 = vunpack.c.h.b16 %v285
      %v409 = vunpack.c.l.b16 %v286
      %v410 = vunpack.c.h.b16 %v286
      %v411 = vunpack.c.l.b16 %v287
      %v412 = vunpack.c.h.b16 %v287
      %v413 = vunpack.c.l.b16 %v288
      %v414 = vunpack.c.h.b16 %v288
      %v415 = vunpack.c.l.b16 %v289
      %v416 = vunpack.c.h.b16 %v289
      %v417 = vunpack.c.l.b16 %v290
      %v418 = vunpack.c.h.b16 %v290
      %v419 = vunpack.c.l.b16 %v291
      %v420 = vunpack.c.h.b16 %v291
      %v421 = vpack.c.b16 %v359, %v357
      %v422 = vpack.c.b16 %v360, %v358
      %v423 = vpack.c.b16 %v363, %v361
      %v424 = vpack.c.b16 %v364, %v362
      %v425 = vpack.c.b16 %v367, %v365
      %v426 = vpack.c.b16 %v368, %v366
      %v427 = vpack.c.b16 %v371, %v369
      %v428 = vpack.c.b16 %v372, %v370
      %v429 = vpack.c.b16 %v375, %v373
      %v430 = vpack.c.b16 %v376, %v374
      %v431 = vpack.c.b16 %v379, %v377
      %v432 = vpack.c.b16 %v380, %v378
      %v433 = vpack.c.b16 %v383, %v381
      %v434 = vpack.c.b16 %v384, %v382
      %v435 = vpack.c.b16 %v387, %v385
      %v436 = vpack.c.b16 %v388, %v386
      %v437 = vpack.c.b16 %v391, %v389
      %v438 = vpack.c.b16 %v392, %v390
      %v439 = vpack.c.b16 %v395, %v393
      %v440 = vpack.c.b16 %v396, %v394
      %v441 = vpack.c.b16 %v399, %v397
      %v442 = vpack.c.b16 %v400, %v398
      %v443 = vpack.c.b16 %v403, %v401
      %v444 = vpack.c.b16 %v404, %v402
      %v445 = vpack.c.b16 %v407, %v405
      %v446 = vpack.c.b16 %v408, %v406
      %v447 = vpack.c.b16 %v411, %v409
      %v448 = vpack.c.b16 %v412, %v410
      %v449 = vpack.c.b16 %v415, %v413
      %v450 = vpack.c.b16 %v416, %v414
      %v451 = vpack.c.b16 %v419, %v417
      %v452 = vpack.c.b16 %v420, %v418
      %v517 = vunpack.c.l.b16 %v293
      %v518 = vunpack.c.l.b16 %v294
      %v519 = vunpack.c.l.b16 %v295
      %v520 = vunpack.c.l.b16 %v296
      %v521 = vunpack.c.l.b16 %v297
      %v522 = vunpack.c.l.b16 %v298
      %v523 = vunpack.c.l.b16 %v299
      %v524 = vunpack.c.l.b16 %v300
      %v525 = vunpack.c.l.b16 %v301
      %v526 = vunpack.c.l.b16 %v302
      %v527 = vunpack.c.l.b16 %v303
      %v528 = vunpack.c.l.b16 %v304
      %v529 = vunpack.c.l.b16 %v305
      %v530 = vunpack.c.l.b16 %v306
      %v531 = vunpack.c.l.b16 %v307
      %v532 = vunpack.c.l.b16 %v308
      %v533 = vunpack.c.l.b16 %v309
      %v534 = vunpack.c.l.b16 %v310
      %v535 = vunpack.c.l.b16 %v311
      %v536 = vunpack.c.l.b16 %v312
      %v537 = vunpack.c.l.b16 %v313
      %v538 = vunpack.c.l.b16 %v314
      %v539 = vunpack.c.l.b16 %v315
      %v540 = vunpack.c.l.b16 %v316
      %v541 = vunpack.c.l.b16 %v317
      %v542 = vunpack.c.l.b16 %v318
      %v543 = vunpack.c.l.b16 %v319
      %v544 = vunpack.c.l.b16 %v320
      %v545 = vunpack.c.l.b16 %v321
      %v546 = vunpack.c.l.b16 %v322
      %v547 = vunpack.c.l.b16 %v323
      %v548 = vunpack.c.l.b16 %v324
      %v549 = vpack.c.b16 %v518, %v517
      %v550 = vpack.c.b16 %v520, %v519
      %v551 = vpack.c.b16 %v522, %v521
      %v552 = vpack.c.b16 %v524, %v523
      %v553 = vpack.c.b16 %v526, %v525
      %v554 = vpack.c.b16 %v528, %v527
      %v555 = vpack.c.b16 %v530, %v529
      %v556 = vpack.c.b16 %v532, %v531
      %v557 = vpack.c.b16 %v534, %v533
      %v558 = vpack.c.b16 %v536, %v535
      %v559 = vpack.c.b16 %v538, %v537
      %v560 = vpack.c.b16 %v540, %v539
      %v561 = vpack.c.b16 %v542, %v541
      %v562 = vpack.c.b16 %v544, %v543
      %v563 = vpack.c.b16 %v546, %v545
      %v564 = vpack.c.b16 %v548, %v547
      %581 = vmatprep.subr.bf16.mxu0 0
      %582 = vmatpush1.bf16.msra.mxu0 %v549
      %583 = vmatprep.subr.bf16.mxu0 0
      %584 = vmatpush1.bf16.msra.mxu0 %v550
      %585 = vmatprep.subr.bf16.mxu0 0
      %586 = vmatpush1.bf16.msra.mxu0 %v551
      %587 = vmatprep.subr.bf16.mxu0 0
      %588 = vmatpush1.bf16.msra.mxu0 %v552
      %589 = vmatprep.subr.bf16.mxu0 0
      %590 = vmatpush1.bf16.msra.mxu0 %v553
      %591 = vmatprep.subr.bf16.mxu0 0
      %592 = vmatpush1.bf16.msra.mxu0 %v554
      %593 = vmatprep.subr.bf16.mxu0 0
      %594 = vmatpush1.bf16.msra.mxu0 %v555
      %595 = vmatprep.subr.bf16.mxu0 0
      %596 = vmatpush1.bf16.msra.mxu0 %v556
      %597 = vmatprep.subr.bf16.mxu0 0
      %598 = vmatpush1.bf16.msra.mxu0 %v557
      %599 = vmatprep.subr.bf16.mxu0 0
      %600 = vmatpush1.bf16.msra.mxu0 %v558
      %601 = vmatprep.subr.bf16.mxu0 0
      %602 = vmatpush1.bf16.msra.mxu0 %v559
      %603 = vmatprep.subr.bf16.mxu0 0
      %604 = vmatpush1.bf16.msra.mxu0 %v560
      %605 = vmatprep.subr.bf16.mxu0 0
      %606 = vmatpush1.bf16.msra.mxu0 %v561
      %607 = vmatprep.subr.bf16.mxu0 0
      %608 = vmatpush1.bf16.msra.mxu0 %v562
      %609 = vmatprep.subr.bf16.mxu0 0
      %610 = vmatpush1.bf16.msra.mxu0 %v563
      %611 = vmatprep.subr.bf16.mxu0 0
      %612 = vmatpush1.bf16.msra.mxu0 %v564
      %613 = vmatprep.mubr.bf16.mxu0 %v422
      %614 = vmatmul.mubr.bf16.gmra.mrb[0].mxu0 %v421
      %v615 = vpop.f32.mrb[0].mxu0
      %v616 = vadd.f32 0.0, %v615
      %v617 = vpop.f32.mrb[0].mxu0
      %v618 = vpop.f32.mrb[0].mxu0
      %v619 = vadd.f32 0.0, %v618
      %v620 = vpop.f32.mrb[0].mxu0
      %621 = vmatprep.mubr.bf16.mxu0 %v424
      %622 = vmatmul.mubr.bf16.gmra.mrb[0].mxu0 %v423
      %v623 = vpop.f32.mrb[0].mxu0
      %v624 = vadd.f32 0.0, %v623
      %v625 = vpop.f32.mrb[0].mxu0
      %v626 = vpop.f32.mrb[0].mxu0
      %v627 = vadd.f32 0.0, %v626
      %v628 = vpop.f32.mrb[0].mxu0
      %629 = vmatprep.mubr.bf16.mxu0 %v426
      %630 = vmatmul.mubr.bf16.gmra.mrb[0].mxu0 %v425
      %v631 = vpop.f32.mrb[0].mxu0
      %v632 = vadd.f32 0.0, %v631
      %v633 = vpop.f32.mrb[0].mxu0
      %v634 = vpop.f32.mrb[0].mxu0
      %v635 = vadd.f32 0.0, %v634
      %v636 = vpop.f32.mrb[0].mxu0
      %637 = vmatprep.mubr.bf16.mxu0 %v428
      %638 = vmatmul.mubr.bf16.gmra.mrb[0].mxu0 %v427
      %v639 = vpop.f32.mrb[0].mxu0
      %v640 = vadd.f32 0.0, %v639
      %v641 = vpop.f32.mrb[0].mxu0
      %v642 = vpop.f32.mrb[0].mxu0
      %v643 = vadd.f32 0.0, %v642
      %v644 = vpop.f32.mrb[0].mxu0
      %645 = vmatprep.mubr.bf16.mxu0 %v430
      %646 = vmatmul.mubr.bf16.gmra.mrb[0].mxu0 %v429
      %v647 = vpop.f32.mrb[0].mxu0
      %v648 = vadd.f32 0.0, %v647
      %v649 = vpop.f32.mrb[0].mxu0
      %v650 = vpop.f32.mrb[0].mxu0
      %v651 = vadd.f32 0.0, %v650
      %v652 = vpop.f32.mrb[0].mxu0
      %653 = vmatprep.mubr.bf16.mxu0 %v432
      %654 = vmatmul.mubr.bf16.gmra.mrb[0].mxu0 %v431
      %v655 = vpop.f32.mrb[0].mxu0
      %v656 = vadd.f32 0.0, %v655
      %v657 = vpop.f32.mrb[0].mxu0
      %v658 = vpop.f32.mrb[0].mxu0
      %v659 = vadd.f32 0.0, %v658
      %v660 = vpop.f32.mrb[0].mxu0
      %661 = vmatprep.mubr.bf16.mxu0 %v434
      %662 = vmatmul.mubr.bf16.gmra.mrb[0].mxu0 %v433
      %v663 = vpop.f32.mrb[0].mxu0
      %v664 = vadd.f32 0.0, %v663
      %v665 = vpop.f32.mrb[0].mxu0
      %v666 = vpop.f32.mrb[0].mxu0
      %v667 = vadd.f32 0.0, %v666
      %v668 = vpop.f32.mrb[0].mxu0
      %669 = vmatprep.mubr.bf16.mxu0 %v436
      %670 = vmatmul.mubr.bf16.gmra.mrb[0].mxu0 %v435
      %v671 = vpop.f32.mrb[0].mxu0
      %v672 = vadd.f32 0.0, %v671
      %v673 = vpop.f32.mrb[0].mxu0
      %v674 = vpop.f32.mrb[0].mxu0
      %v675 = vadd.f32 0.0, %v674
      %v676 = vpop.f32.mrb[0].mxu0
      %677 = vmatprep.mubr.bf16.mxu0 %v438
      %678 = vmatmul.mubr.bf16.gmra.mrb[0].mxu0 %v437
      %v679 = vpop.f32.mrb[0].mxu0
      %v680 = vadd.f32 0.0, %v679
      %v681 = vpop.f32.mrb[0].mxu0
      %v682 = vpop.f32.mrb[0].mxu0
      %v683 = vadd.f32 0.0, %v682
      %v684 = vpop.f32.mrb[0].mxu0
      %685 = vmatprep.mubr.bf16.mxu0 %v440
      %686 = vmatmul.mubr.bf16.gmra.mrb[0].mxu0 %v439
      %v687 = vpop.f32.mrb[0].mxu0
      %v688 = vadd.f32 0.0, %v687
      %v689 = vpop.f32.mrb[0].mxu0
      %v690 = vpop.f32.mrb[0].mxu0
      %v691 = vadd.f32 0.0, %v690
      %v692 = vpop.f32.mrb[0].mxu0
      %693 = vmatprep.mubr.bf16.mxu0 %v442
      %694 = vmatmul.mubr.bf16.gmra.mrb[0].mxu0 %v441
      %v695 = vpop.f32.mrb[0].mxu0
      %v696 = vadd.f32 0.0, %v695
      %v697 = vpop.f32.mrb[0].mxu0
      %v698 = vpop.f32.mrb[0].mxu0
      %v699 = vadd.f32 0.0, %v698
      %v700 = vpop.f32.mrb[0].mxu0
      %701 = vmatprep.mubr.bf16.mxu0 %v444
      %702 = vmatmul.mubr.bf16.gmra.mrb[0].mxu0 %v443
      %v703 = vpop.f32.mrb[0].mxu0
      %v704 = vadd.f32 0.0, %v703
      %v705 = vpop.f32.mrb[0].mxu0
      %v706 = vpop.f32.mrb[0].mxu0
      %v707 = vadd.f32 0.0, %v706
      %v708 = vpop.f32.mrb[0].mxu0
      %709 = vmatprep.mubr.bf16.mxu0 %v446
      %710 = vmatmul.mubr.bf16.gmra.mrb[0].mxu0 %v445
      %v711 = vpop.f32.mrb[0].mxu0
      %v712 = vadd.f32 0.0, %v711
      %v713 = vpop.f32.mrb[0].mxu0
      %v714 = vpop.f32.mrb[0].mxu0
      %v715 = vadd.f32 0.0, %v714
      %v716 = vpop.f32.mrb[0].mxu0
      %717 = vmatprep.mubr.bf16.mxu0 %v448
      %718 = vmatmul.mubr.bf16.gmra.mrb[0].mxu0 %v447
      %v719 = vpop.f32.mrb[0].mxu0
      %v720 = vadd.f32 0.0, %v719
      %v721 = vpop.f32.mrb[0].mxu0
      %v722 = vpop.f32.mrb[0].mxu0
      %v723 = vadd.f32 0.0, %v722
      %v724 = vpop.f32.mrb[0].mxu0
      %725 = vmatprep.mubr.bf16.mxu0 %v450
      %726 = vmatmul.mubr.bf16.gmra.mrb[0].mxu0 %v449
      %v727 = vpop.f32.mrb[0].mxu0
      %v728 = vadd.f32 0.0, %v727
      %v729 = vpop.f32.mrb[0].mxu0
      %v730 = vpop.f32.mrb[0].mxu0
      %v731 = vadd.f32 0.0, %v730
      %v732 = vpop.f32.mrb[0].mxu0
      %733 = vmatprep.mubr.bf16.mxu0 %v452
      %734 = vmatmul.mubr.bf16.gmra.mrb[0].mxu0 %v451
      %v735 = vpop.f32.mrb[0].mxu0
      %v736 = vadd.f32 0.0, %v735
      %v737 = vpop.f32.mrb[0].mxu0
      %v738 = vpop.f32.mrb[0].mxu0
      %v739 = vadd.f32 0.0, %v738
      %v740 = vpop.f32.mrb[0].mxu0
      %741 = vdwg.mxu0
      %v774 = vunpack.c.l.b16 %v195
      %v775 = vunpack.c.h.b16 %v195
      %v776 = vunpack.c.l.b16 %v196
      %v777 = vunpack.c.h.b16 %v196
      %v778 = vunpack.c.l.b16 %v197
      %v779 = vunpack.c.h.b16 %v197
      %v780 = vunpack.c.l.b16 %v198
      %v781 = vunpack.c.h.b16 %v198
      %v782 = vunpack.c.l.b16 %v199
      %v783 = vunpack.c.h.b16 %v199
      %v784 = vunpack.c.l.b16 %v200
      %v785 = vunpack.c.h.b16 %v200
      %v786 = vunpack.c.l.b16 %v201
      %v787 = vunpack.c.h.b16 %v201
      %v788 = vunpack.c.l.b16 %v202
      %v789 = vunpack.c.h.b16 %v202
      %v790 = vunpack.c.l.b16 %v203
      %v791 = vunpack.c.h.b16 %v203
      %v792 = vunpack.c.l.b16 %v204
      %v793 = vunpack.c.h.b16 %v204
      %v794 = vunpack.c.l.b16 %v205
      %v795 = vunpack.c.h.b16 %v205
      %v796 = vunpack.c.l.b16 %v206
      %v797 = vunpack.c.h.b16 %v206
      %v798 = vunpack.c.l.b16 %v207
      %v799 = vunpack.c.h.b16 %v207
      %v800 = vunpack.c.l.b16 %v208
      %v801 = vunpack.c.h.b16 %v208
      %v802 = vunpack.c.l.b16 %v209
      %v803 = vunpack.c.h.b16 %v209
      %v804 = vunpack.c.l.b16 %v210
      %v805 = vunpack.c.h.b16 %v210
      %v806 = vunpack.c.l.b16 %v211
      %v807 = vunpack.c.h.b16 %v211
      %v808 = vunpack.c.l.b16 %v212
      %v809 = vunpack.c.h.b16 %v212
      %v810 = vunpack.c.l.b16 %v213
      %v811 = vunpack.c.h.b16 %v213
      %v812 = vunpack.c.l.b16 %v214
      %v813 = vunpack.c.h.b16 %v214
      %v814 = vunpack.c.l.b16 %v215
      %v815 = vunpack.c.h.b16 %v215
      %v816 = vunpack.c.l.b16 %v216
      %v817 = vunpack.c.h.b16 %v216
      %v818 = vunpack.c.l.b16 %v217
      %v819 = vunpack.c.h.b16 %v217
      %v820 = vunpack.c.l.b16 %v218
      %v821 = vunpack.c.h.b16 %v218
      %v822 = vunpack.c.l.b16 %v219
      %v823 = vunpack.c.h.b16 %v219
      %v824 = vunpack.c.l.b16 %v220
      %v825 = vunpack.c.h.b16 %v220
      %v826 = vunpack.c.l.b16 %v221
      %v827 = vunpack.c.h.b16 %v221
      %v828 = vunpack.c.l.b16 %v222
      %v829 = vunpack.c.h.b16 %v222
      %v830 = vunpack.c.l.b16 %v223
      %v831 = vunpack.c.h.b16 %v223
      %v832 = vunpack.c.l.b16 %v224
      %v833 = vunpack.c.h.b16 %v224
      %v834 = vunpack.c.l.b16 %v225
      %v835 = vunpack.c.h.b16 %v225
      %v836 = vunpack.c.l.b16 %v226
      %v837 = vunpack.c.h.b16 %v226
      %v838 = vpack.c.b16 %v776, %v774
      %v839 = vpack.c.b16 %v777, %v775
      %v840 = vpack.c.b16 %v780, %v778
      %v841 = vpack.c.b16 %v781, %v779
      %v842 = vpack.c.b16 %v784, %v782
      %v843 = vpack.c.b16 %v785, %v783
      %v844 = vpack.c.b16 %v788, %v786
      %v845 = vpack.c.b16 %v789, %v787
      %v846 = vpack.c.b16 %v792, %v790
      %v847 = vpack.c.b16 %v793, %v791
      %v848 = vpack.c.b16 %v796, %v794
      %v849 = vpack.c.b16 %v797, %v795
      %v850 = vpack.c.b16 %v800, %v798
      %v851 = vpack.c.b16 %v801, %v799
      %v852 = vpack.c.b16 %v804, %v802
      %v853 = vpack.c.b16 %v805, %v803
      %v854 = vpack.c.b16 %v808, %v806
      %v855 = vpack.c.b16 %v809, %v807
      %v856 = vpack.c.b16 %v812, %v810
      %v857 = vpack.c.b16 %v813, %v811
      %v858 = vpack.c.b16 %v816, %v814
      %v859 = vpack.c.b16 %v817, %v815
      %v860 = vpack.c.b16 %v820, %v818
      %v861 = vpack.c.b16 %v821, %v819
      %v862 = vpack.c.b16 %v824, %v822
      %v863 = vpack.c.b16 %v825, %v823
      %v864 = vpack.c.b16 %v828, %v826
      %v865 = vpack.c.b16 %v829, %v827
      %v866 = vpack.c.b16 %v832, %v830
      %v867 = vpack.c.b16 %v833, %v831
      %v868 = vpack.c.b16 %v836, %v834
      %v869 = vpack.c.b16 %v837, %v835
      %v934 = vunpack.c.l.b16 %v227
      %v935 = vunpack.c.l.b16 %v228
      %v936 = vunpack.c.l.b16 %v229
      %v937 = vunpack.c.l.b16 %v230
      %v938 = vunpack.c.l.b16 %v231
      %v939 = vunpack.c.l.b16 %v232
      %v940 = vunpack.c.l.b16 %v233
      %v941 = vunpack.c.l.b16 %v234
      %v942 = vunpack.c.l.b16 %v235
      %v943 = vunpack.c.l.b16 %v236
      %v944 = vunpack.c.l.b16 %v237
      %v945 = vunpack.c.l.b16 %v238
      %v946 = vunpack.c.l.b16 %v239
      %v947 = vunpack.c.l.b16 %v240
      %v948 = vunpack.c.l.b16 %v241
      %v949 = vunpack.c.l.b16 %v242
      %v950 = vunpack.c.l.b16 %v243
      %v951 = vunpack.c.l.b16 %v244
      %v952 = vunpack.c.l.b16 %v245
      %v953 = vunpack.c.l.b16 %v246
      %v954 = vunpack.c.l.b16 %v247
      %v955 = vunpack.c.l.b16 %v248
      %v956 = vunpack.c.l.b16 %v249
      %v957 = vunpack.c.l.b16 %v250
      %v958 = vunpack.c.l.b16 %v251
      %v959 = vunpack.c.l.b16 %v252
      %v960 = vunpack.c.l.b16 %v253
      %v961 = vunpack.c.l.b16 %v254
      %v962 = vunpack.c.l.b16 %v255
      %v963 = vunpack.c.l.b16 %v256
      %v964 = vunpack.c.l.b16 %v257
      %v965 = vunpack.c.l.b16 %v258
      %v966 = vpack.c.b16 %v935, %v934
      %v967 = vpack.c.b16 %v937, %v936
      %v968 = vpack.c.b16 %v939, %v938
      %v969 = vpack.c.b16 %v941, %v940
      %v970 = vpack.c.b16 %v943, %v942
      %v971 = vpack.c.b16 %v945, %v944
      %v972 = vpack.c.b16 %v947, %v946
      %v973 = vpack.c.b16 %v949, %v948
      %v974 = vpack.c.b16 %v951, %v950
      %v975 = vpack.c.b16 %v953, %v952
      %v976 = vpack.c.b16 %v955, %v954
      %v977 = vpack.c.b16 %v957, %v956
      %v978 = vpack.c.b16 %v959, %v958
      %v979 = vpack.c.b16 %v961, %v960
      %v980 = vpack.c.b16 %v963, %v962
      %v981 = vpack.c.b16 %v965, %v964
      %998 = vmatprep.subr.bf16.mxu0 0
      %999 = vmatpush1.bf16.msra.mxu0 %v966
      %1000 = vmatprep.subr.bf16.mxu0 0
      %1001 = vmatpush1.bf16.msra.mxu0 %v967
      %1002 = vmatprep.subr.bf16.mxu0 0
      %1003 = vmatpush1.bf16.msra.mxu0 %v968
      %1004 = vmatprep.subr.bf16.mxu0 0
      %1005 = vmatpush1.bf16.msra.mxu0 %v969
      %1006 = vmatprep.subr.bf16.mxu0 0
      %1007 = vmatpush1.bf16.msra.mxu0 %v970
      %1008 = vmatprep.subr.bf16.mxu0 0
      %1009 = vmatpush1.bf16.msra.mxu0 %v971
      %1010 = vmatprep.subr.bf16.mxu0 0
      %1011 = vmatpush1.bf16.msra.mxu0 %v972
      %1012 = vmatprep.subr.bf16.mxu0 0
      %1013 = vmatpush1.bf16.msra.mxu0 %v973
      %1014 = vmatprep.subr.bf16.mxu0 0
      %1015 = vmatpush1.bf16.msra.mxu0 %v974
      %1016 = vmatprep.subr.bf16.mxu0 0
      %1017 = vmatpush1.bf16.msra.mxu0 %v975
      %1018 = vmatprep.subr.bf16.mxu0 0
      %1019 = vmatpush1.bf16.msra.mxu0 %v976
      %1020 = vmatprep.subr.bf16.mxu0 0
      %1021 = vmatpush1.bf16.msra.mxu0 %v977
      %1022 = vmatprep.subr.bf16.mxu0 0
      %1023 = vmatpush1.bf16.msra.mxu0 %v978
      %1024 = vmatprep.subr.bf16.mxu0 0
      %1025 = vmatpush1.bf16.msra.mxu0 %v979
      %1026 = vmatprep.subr.bf16.mxu0 0
      %1027 = vmatpush1.bf16.msra.mxu0 %v980
      %1028 = vmatprep.subr.bf16.mxu0 0
      %1029 = vmatpush1.bf16.msra.mxu0 %v981
      %1030 = vmatprep.mubr.bf16.mxu0 %v839
      %1031 = vmatmul.mubr.bf16.gmra.mrb[0].mxu0 %v838
      %v1032 = vpop.f32.mrb[0].mxu0
      %v1033 = vadd.f32 %v616, %v1032
      %v1034 = vpop.f32.mrb[0].mxu0
      %v1035 = vpop.f32.mrb[0].mxu0
      %v1036 = vadd.f32 %v619, %v1035
      %v1037 = vpop.f32.mrb[0].mxu0
      %1038 = vmatprep.mubr.bf16.mxu0 %v841
      %1039 = vmatmul.mubr.bf16.gmra.mrb[0].mxu0 %v840
      %v1040 = vpop.f32.mrb[0].mxu0
      %v1041 = vadd.f32 %v624, %v1040
      %v1042 = vpop.f32.mrb[0].mxu0
      %v1043 = vpop.f32.mrb[0].mxu0
      %v1044 = vadd.f32 %v627, %v1043
      %v1045 = vpop.f32.mrb[0].mxu0
      %1046 = vmatprep.mubr.bf16.mxu0 %v843
      %1047 = vmatmul.mubr.bf16.gmra.mrb[0].mxu0 %v842
      %v1048 = vpop.f32.mrb[0].mxu0
      %v1049 = vadd.f32 %v632, %v1048
      %v1050 = vpop.f32.mrb[0].mxu0
      %v1051 = vpop.f32.mrb[0].mxu0
      %v1052 = vadd.f32 %v635, %v1051
      %v1053 = vpop.f32.mrb[0].mxu0
      %1054 = vmatprep.mubr.bf16.mxu0 %v845
      %1055 = vmatmul.mubr.bf16.gmra.mrb[0].mxu0 %v844
      %v1056 = vpop.f32.mrb[0].mxu0
      %v1057 = vadd.f32 %v640, %v1056
      %v1058 = vpop.f32.mrb[0].mxu0
      %v1059 = vpop.f32.mrb[0].mxu0
      %v1060 = vadd.f32 %v643, %v1059
      %v1061 = vpop.f32.mrb[0].mxu0
      %1062 = vmatprep.mubr.bf16.mxu0 %v847
      %1063 = vmatmul.mubr.bf16.gmra.mrb[0].mxu0 %v846
      %v1064 = vpop.f32.mrb[0].mxu0
      %v1065 = vadd.f32 %v648, %v1064
      %v1066 = vpop.f32.mrb[0].mxu0
      %v1067 = vpop.f32.mrb[0].mxu0
      %v1068 = vadd.f32 %v651, %v1067
      %v1069 = vpop.f32.mrb[0].mxu0
      %1070 = vmatprep.mubr.bf16.mxu0 %v849
      %1071 = vmatmul.mubr.bf16.gmra.mrb[0].mxu0 %v848
      %v1072 = vpop.f32.mrb[0].mxu0
      %v1073 = vadd.f32 %v656, %v1072
      %v1074 = vpop.f32.mrb[0].mxu0
      %v1075 = vpop.f32.mrb[0].mxu0
      %v1076 = vadd.f32 %v659, %v1075
      %v1077 = vpop.f32.mrb[0].mxu0
      %1078 = vmatprep.mubr.bf16.mxu0 %v851
      %1079 = vmatmul.mubr.bf16.gmra.mrb[0].mxu0 %v850
      %v1080 = vpop.f32.mrb[0].mxu0
      %v1081 = vadd.f32 %v664, %v1080
      %v1082 = vpop.f32.mrb[0].mxu0
      %v1083 = vpop.f32.mrb[0].mxu0
      %v1084 = vadd.f32 %v667, %v1083
      %v1085 = vpop.f32.mrb[0].mxu0
      %1086 = vmatprep.mubr.bf16.mxu0 %v853
      %1087 = vmatmul.mubr.bf16.gmra.mrb[0].mxu0 %v852
      %v1088 = vpop.f32.mrb[0].mxu0
      %v1089 = vadd.f32 %v672, %v1088
      %v1090 = vpop.f32.mrb[0].mxu0
      %v1091 = vpop.f32.mrb[0].mxu0
      %v1092 = vadd.f32 %v675, %v1091
      %v1093 = vpop.f32.mrb[0].mxu0
      %1094 = vmatprep.mubr.bf16.mxu0 %v855
      %1095 = vmatmul.mubr.bf16.gmra.mrb[0].mxu0 %v854
      %v1096 = vpop.f32.mrb[0].mxu0
      %v1097 = vadd.f32 %v680, %v1096
      %v1098 = vpop.f32.mrb[0].mxu0
      %v1099 = vpop.f32.mrb[0].mxu0
      %v1100 = vadd.f32 %v683, %v1099
      %v1101 = vpop.f32.mrb[0].mxu0
      %1102 = vmatprep.mubr.bf16.mxu0 %v857
      %1103 = vmatmul.mubr.bf16.gmra.mrb[0].mxu0 %v856
      %v1104 = vpop.f32.mrb[0].mxu0
      %v1105 = vadd.f32 %v688, %v1104
      %v1106 = vpop.f32.mrb[0].mxu0
      %v1107 = vpop.f32.mrb[0].mxu0
      %v1108 = vadd.f32 %v691, %v1107
      %v1109 = vpop.f32.mrb[0].mxu0
      %1110 = vmatprep.mubr.bf16.mxu0 %v859
      %1111 = vmatmul.mubr.bf16.gmra.mrb[0].mxu0 %v858
      %v1112 = vpop.f32.mrb[0].mxu0
      %v1113 = vadd.f32 %v696, %v1112
      %v1114 = vpop.f32.mrb[0].mxu0
      %v1115 = vpop.f32.mrb[0].mxu0
      %v1116 = vadd.f32 %v699, %v1115
      %v1117 = vpop.f32.mrb[0].mxu0
      %1118 = vmatprep.mubr.bf16.mxu0 %v861
      %1119 = vmatmul.mubr.bf16.gmra.mrb[0].mxu0 %v860
      %v1120 = vpop.f32.mrb[0].mxu0
      %v1121 = vadd.f32 %v704, %v1120
      %v1122 = vpop.f32.mrb[0].mxu0
      %v1123 = vpop.f32.mrb[0].mxu0
      %v1124 = vadd.f32 %v707, %v1123
      %v1125 = vpop.f32.mrb[0].mxu0
      %1126 = vmatprep.mubr.bf16.mxu0 %v863
      %1127 = vmatmul.mubr.bf16.gmra.mrb[0].mxu0 %v862
      %v1128 = vpop.f32.mrb[0].mxu0
      %v1129 = vadd.f32 %v712, %v1128
      %v1130 = vpop.f32.mrb[0].mxu0
      %v1131 = vpop.f32.mrb[0].mxu0
      %v1132 = vadd.f32 %v715, %v1131
      %v1133 = vpop.f32.mrb[0].mxu0
      %1134 = vmatprep.mubr.bf16.mxu0 %v865
      %1135 = vmatmul.mubr.bf16.gmra.mrb[0].mxu0 %v864
      %v1136 = vpop.f32.mrb[0].mxu0
      %v1137 = vadd.f32 %v720, %v1136
      %v1138 = vpop.f32.mrb[0].mxu0
      %v1139 = vpop.f32.mrb[0].mxu0
      %v1140 = vadd.f32 %v723, %v1139
      %v1141 = vpop.f32.mrb[0].mxu0
      %1142 = vmatprep.mubr.bf16.mxu0 %v867
      %1143 = vmatmul.mubr.bf16.gmra.mrb[0].mxu0 %v866
      %v1144 = vpop.f32.mrb[0].mxu0
      %v1145 = vadd.f32 %v728, %v1144
      %v1146 = vpop.f32.mrb[0].mxu0
      %v1147 = vpop.f32.mrb[0].mxu0
      %v1148 = vadd.f32 %v731, %v1147
      %v1149 = vpop.f32.mrb[0].mxu0
      %1150 = vmatprep.mubr.bf16.mxu0 %v869
      %1151 = vmatmul.mubr.bf16.gmra.mrb[0].mxu0 %v868
      %v1152 = vpop.f32.mrb[0].mxu0
      %v1153 = vadd.f32 %v736, %v1152
      %v1154 = vpop.f32.mrb[0].mxu0
      %v1155 = vpop.f32.mrb[0].mxu0
      %v1156 = vadd.f32 %v739, %v1155
      %v1157 = vpop.f32.mrb[0].mxu0
      %1158 = vdwg.mxu0
      %v1159 = vld [vmem:[%s183 + $0x10] sm:$0xff]
      %v1160 = vld [vmem:[%s183 + $0x18] sm:$0xff]
      %v1161 = vld [vmem:[%s183 + $0x20] sm:$0xff]
      %v1162 = vld [vmem:[%s183 + $0x28] sm:$0xff]
      %v1163 = vld [vmem:[%s183 + $0x30] sm:$0xff]
      %v1164 = vld [vmem:[%s183 + $0x38] sm:$0xff]
      %v1165 = vld [vmem:[%s183 + $0x40] sm:$0xff]
      %v1166 = vld [vmem:[%s183 + $0x48] sm:$0xff]
      %v1167 = vld [vmem:[%s183 + $0x50] sm:$0xff]
      %v1168 = vld [vmem:[%s183 + $0x58] sm:$0xff]
      %v1169 = vld [vmem:[%s183 + $0x60] sm:$0xff]
      %v1170 = vld [vmem:[%s183 + $0x68] sm:$0xff]
      %v1171 = vld [vmem:[%s183 + $0x70] sm:$0xff]
      %v1172 = vld [vmem:[%s183 + $0x78] sm:$0xff]
      %v1173 = vld [vmem:[%s183 + $0x80] sm:$0xff]
      %v1174 = vld [vmem:[%s183 + $0x88] sm:$0xff]
      %v1175 = vld [vmem:[%s183 + $0x90] sm:$0xff]
      %v1176 = vld [vmem:[%s183 + $0x98] sm:$0xff]
      %v1177 = vld [vmem:[%s183 + $0xa0] sm:$0xff]
      %v1178 = vld [vmem:[%s183 + $0xa8] sm:$0xff]
      %v1179 = vld [vmem:[%s183 + $0xb0] sm:$0xff]
      %v1180 = vld [vmem:[%s183 + $0xb8] sm:$0xff]
      %v1181 = vld [vmem:[%s183 + $0xc0] sm:$0xff]
      %v1182 = vld [vmem:[%s183 + $0xc8] sm:$0xff]
      %v1183 = vld [vmem:[%s183 + $0xd0] sm:$0xff]
      %v1184 = vld [vmem:[%s183 + $0xd8] sm:$0xff]
      %v1185 = vld [vmem:[%s183 + $0xe0] sm:$0xff]
      %v1186 = vld [vmem:[%s183 + $0xe8] sm:$0xff]
      %v1187 = vld [vmem:[%s183 + $0xf0] sm:$0xff]
      %v1188 = vld [vmem:[%s183 + $0xf8] sm:$0xff]
      %v1189 = vld [vmem:[%s183 + $0x100] sm:$0xff]
      %v1190 = vld [vmem:[%s183 + $0x108] sm:$0xff]
      %s1191 = scalar_lea.vmem %s1, 256
      %v1192 = vld [vmem:[%s1191] sm:$0xf]
      %v1193 = vld [vmem:[%s1191 + $0x4] sm:$0xf]
      %v1194 = vld [vmem:[%s1191 + $0x8] sm:$0xf]
      %v1195 = vld [vmem:[%s1191 + $0xc] sm:$0xf]
      %v1196 = vld [vmem:[%s1191 + $0x10] sm:$0xf]
      %v1197 = vld [vmem:[%s1191 + $0x14] sm:$0xf]
      %v1198 = vld [vmem:[%s1191 + $0x18] sm:$0xf]
      %v1199 = vld [vmem:[%s1191 + $0x1c] sm:$0xf]
      %v1200 = vld [vmem:[%s1191 + $0x20] sm:$0xf]
      %v1201 = vld [vmem:[%s1191 + $0x24] sm:$0xf]
      %v1202 = vld [vmem:[%s1191 + $0x28] sm:$0xf]
      %v1203 = vld [vmem:[%s1191 + $0x2c] sm:$0xf]
      %v1204 = vld [vmem:[%s1191 + $0x30] sm:$0xf]
      %v1205 = vld [vmem:[%s1191 + $0x34] sm:$0xf]
      %v1206 = vld [vmem:[%s1191 + $0x38] sm:$0xf]
      %v1207 = vld [vmem:[%s1191 + $0x3c] sm:$0xf]
      %v1208 = vld [vmem:[%s1191 + $0x40] sm:$0xf]
      %v1209 = vld [vmem:[%s1191 + $0x44] sm:$0xf]
      %v1210 = vld [vmem:[%s1191 + $0x48] sm:$0xf]
      %v1211 = vld [vmem:[%s1191 + $0x4c] sm:$0xf]
      %v1212 = vld [vmem:[%s1191 + $0x50] sm:$0xf]
      %v1213 = vld [vmem:[%s1191 + $0x54] sm:$0xf]
      %v1214 = vld [vmem:[%s1191 + $0x58] sm:$0xf]
      %v1215 = vld [vmem:[%s1191 + $0x5c] sm:$0xf]
      %v1216 = vld [vmem:[%s1191 + $0x60] sm:$0xf]
      %v1217 = vld [vmem:[%s1191 + $0x64] sm:$0xf]
      %v1218 = vld [vmem:[%s1191 + $0x68] sm:$0xf]
      %v1219 = vld [vmem:[%s1191 + $0x6c] sm:$0xf]
      %v1220 = vld [vmem:[%s1191 + $0x70] sm:$0xf]
      %v1221 = vld [vmem:[%s1191 + $0x74] sm:$0xf]
      %v1222 = vld [vmem:[%s1191 + $0x78] sm:$0xf]
      %v1223 = vld [vmem:[%s1191 + $0x7c] sm:$0xf]
      %v1256 = vunpack.c.l.b16 %v1159
      %v1257 = vunpack.c.h.b16 %v1159
      %v1258 = vunpack.c.l.b16 %v1160
      %v1259 = vunpack.c.h.b16 %v1160
      %v1260 = vunpack.c.l.b16 %v1161
      %v1261 = vunpack.c.h.b16 %v1161
      %v1262 = vunpack.c.l.b16 %v1162
      %v1263 = vunpack.c.h.b16 %v1162
      %v1264 = vunpack.c.l.b16 %v1163
      %v1265 = vunpack.c.h.b16 %v1163
      %v1266 = vunpack.c.l.b16 %v1164
      %v1267 = vunpack.c.h.b16 %v1164
      %v1268 = vunpack.c.l.b16 %v1165
      %v1269 = vunpack.c.h.b16 %v1165
      %v1270 = vunpack.c.l.b16 %v1166
      %v1271 = vunpack.c.h.b16 %v1166
      %v1272 = vunpack.c.l.b16 %v1167
      %v1273 = vunpack.c.h.b16 %v1167
      %v1274 = vunpack.c.l.b16 %v1168
      %v1275 = vunpack.c.h.b16 %v1168
      %v1276 = vunpack.c.l.b16 %v1169
      %v1277 = vunpack.c.h.b16 %v1169
      %v1278 = vunpack.c.l.b16 %v1170
      %v1279 = vunpack.c.h.b16 %v1170
      %v1280 = vunpack.c.l.b16 %v1171
      %v1281 = vunpack.c.h.b16 %v1171
      %v1282 = vunpack.c.l.b16 %v1172
      %v1283 = vunpack.c.h.b16 %v1172
      %v1284 = vunpack.c.l.b16 %v1173
      %v1285 = vunpack.c.h.b16 %v1173
      %v1286 = vunpack.c.l.b16 %v1174
      %v1287 = vunpack.c.h.b16 %v1174
      %v1288 = vunpack.c.l.b16 %v1175
      %v1289 = vunpack.c.h.b16 %v1175
      %v1290 = vunpack.c.l.b16 %v1176
      %v1291 = vunpack.c.h.b16 %v1176
      %v1292 = vunpack.c.l.b16 %v1177
      %v1293 = vunpack.c.h.b16 %v1177
      %v1294 = vunpack.c.l.b16 %v1178
      %v1295 = vunpack.c.h.b16 %v1178
      %v1296 = vunpack.c.l.b16 %v1179
      %v1297 = vunpack.c.h.b16 %v1179
      %v1298 = vunpack.c.l.b16 %v1180
      %v1299 = vunpack.c.h.b16 %v1180
      %v1300 = vunpack.c.l.b16 %v1181
      %v1301 = vunpack.c.h.b16 %v1181
      %v1302 = vunpack.c.l.b16 %v1182
      %v1303 = vunpack.c.h.b16 %v1182
      %v1304 = vunpack.c.l.b16 %v1183
      %v1305 = vunpack.c.h.b16 %v1183
      %v1306 = vunpack.c.l.b16 %v1184
      %v1307 = vunpack.c.h.b16 %v1184
      %v1308 = vunpack.c.l.b16 %v1185
      %v1309 = vunpack.c.h.b16 %v1185
      %v1310 = vunpack.c.l.b16 %v1186
      %v1311 = vunpack.c.h.b16 %v1186
      %v1312 = vunpack.c.l.b16 %v1187
      %v1313 = vunpack.c.h.b16 %v1187
      %v1314 = vunpack.c.l.b16 %v1188
      %v1315 = vunpack.c.h.b16 %v1188
      %v1316 = vunpack.c.l.b16 %v1189
      %v1317 = vunpack.c.h.b16 %v1189
      %v1318 = vunpack.c.l.b16 %v1190
      %v1319 = vunpack.c.h.b16 %v1190
      %v1320 = vpack.c.b16 %v1258, %v1256
      %v1321 = vpack.c.b16 %v1259, %v1257
      %v1322 = vpack.c.b16 %v1262, %v1260
      %v1323 = vpack.c.b16 %v1263, %v1261
      %v1324 = vpack.c.b16 %v1266, %v1264
      %v1325 = vpack.c.b16 %v1267, %v1265
      %v1326 = vpack.c.b16 %v1270, %v1268
      %v1327 = vpack.c.b16 %v1271, %v1269
      %v1328 = vpack.c.b16 %v1274, %v1272
      %v1329 = vpack.c.b16 %v1275, %v1273
      %v1330 = vpack.c.b16 %v1278, %v1276
      %v1331 = vpack.c.b16 %v1279, %v1277
      %v1332 = vpack.c.b16 %v1282, %v1280
      %v1333 = vpack.c.b16 %v1283, %v1281
      %v1334 = vpack.c.b16 %v1286, %v1284
      %v1335 = vpack.c.b16 %v1287, %v1285
      %v1336 = vpack.c.b16 %v1290, %v1288
      %v1337 = vpack.c.b16 %v1291, %v1289
      %v1338 = vpack.c.b16 %v1294, %v1292
      %v1339 = vpack.c.b16 %v1295, %v1293
      %v1340 = vpack.c.b16 %v1298, %v1296
      %v1341 = vpack.c.b16 %v1299, %v1297
      %v1342 = vpack.c.b16 %v1302, %v1300
      %v1343 = vpack.c.b16 %v1303, %v1301
      %v1344 = vpack.c.b16 %v1306, %v1304
      %v1345 = vpack.c.b16 %v1307, %v1305
      %v1346 = vpack.c.b16 %v1310, %v1308
      %v1347 = vpack.c.b16 %v1311, %v1309
      %v1348 = vpack.c.b16 %v1314, %v1312
      %v1349 = vpack.c.b16 %v1315, %v1313
      %v1350 = vpack.c.b16 %v1318, %v1316
      %v1351 = vpack.c.b16 %v1319, %v1317
      %v1416 = vunpack.c.l.b16 %v1192
      %v1417 = vunpack.c.l.b16 %v1193
      %v1418 = vunpack.c.l.b16 %v1194
      %v1419 = vunpack.c.l.b16 %v1195
      %v1420 = vunpack.c.l.b16 %v1196
      %v1421 = vunpack.c.l.b16 %v1197
      %v1422 = vunpack.c.l.b16 %v1198
      %v1423 = vunpack.c.l.b16 %v1199
      %v1424 = vunpack.c.l.b16 %v1200
      %v1425 = vunpack.c.l.b16 %v1201
      %v1426 = vunpack.c.l.b16 %v1202
      %v1427 = vunpack.c.l.b16 %v1203
      %v1428 = vunpack.c.l.b16 %v1204
      %v1429 = vunpack.c.l.b16 %v1205
      %v1430 = vunpack.c.l.b16 %v1206
      %v1431 = vunpack.c.l.b16 %v1207
      %v1432 = vunpack.c.l.b16 %v1208
      %v1433 = vunpack.c.l.b16 %v1209
      %v1434 = vunpack.c.l.b16 %v1210
      %v1435 = vunpack.c.l.b16 %v1211
      %v1436 = vunpack.c.l.b16 %v1212
      %v1437 = vunpack.c.l.b16 %v1213
      %v1438 = vunpack.c.l.b16 %v1214
      %v1439 = vunpack.c.l.b16 %v1215
      %v1440 = vunpack.c.l.b16 %v1216
      %v1441 = vunpack.c.l.b16 %v1217
      %v1442 = vunpack.c.l.b16 %v1218
      %v1443 = vunpack.c.l.b16 %v1219
      %v1444 = vunpack.c.l.b16 %v1220
      %v1445 = vunpack.c.l.b16 %v1221
      %v1446 = vunpack.c.l.b16 %v1222
      %v1447 = vunpack.c.l.b16 %v1223
      %v1448 = vpack.c.b16 %v1417, %v1416
      %v1449 = vpack.c.b16 %v1419, %v1418
      %v1450 = vpack.c.b16 %v1421, %v1420
      %v1451 = vpack.c.b16 %v1423, %v1422
      %v1452 = vpack.c.b16 %v1425, %v1424
      %v1453 = vpack.c.b16 %v1427, %v1426
      %v1454 = vpack.c.b16 %v1429, %v1428
      %v1455 = vpack.c.b16 %v1431, %v1430
      %v1456 = vpack.c.b16 %v1433, %v1432
      %v1457 = vpack.c.b16 %v1435, %v1434
      %v1458 = vpack.c.b16 %v1437, %v1436
      %v1459 = vpack.c.b16 %v1439, %v1438
      %v1460 = vpack.c.b16 %v1441, %v1440
      %v1461 = vpack.c.b16 %v1443, %v1442
      %v1462 = vpack.c.b16 %v1445, %v1444
      %v1463 = vpack.c.b16 %v1447, %v1446
      %1480 = vmatprep.subr.bf16.mxu0 0
      %1481 = vmatpush1.bf16.msra.mxu0 %v1448
      %1482 = vmatprep.subr.bf16.mxu0 0
      %1483 = vmatpush1.bf16.msra.mxu0 %v1449
      %1484 = vmatprep.subr.bf16.mxu0 0
      %1485 = vmatpush1.bf16.msra.mxu0 %v1450
      %1486 = vmatprep.subr.bf16.mxu0 0
      %1487 = vmatpush1.bf16.msra.mxu0 %v1451
      %1488 = vmatprep.subr.bf16.mxu0 0
      %1489 = vmatpush1.bf16.msra.mxu0 %v1452
      %1490 = vmatprep.subr.bf16.mxu0 0
      %1491 = vmatpush1.bf16.msra.mxu0 %v1453
      %1492 = vmatprep.subr.bf16.mxu0 0
      %1493 = vmatpush1.bf16.msra.mxu0 %v1454
      %1494 = vmatprep.subr.bf16.mxu0 0
      %1495 = vmatpush1.bf16.msra.mxu0 %v1455
      %1496 = vmatprep.subr.bf16.mxu0 0
      %1497 = vmatpush1.bf16.msra.mxu0 %v1456
      %1498 = vmatprep.subr.bf16.mxu0 0
      %1499 = vmatpush1.bf16.msra.mxu0 %v1457
      %1500 = vmatprep.subr.bf16.mxu0 0
      %1501 = vmatpush1.bf16.msra.mxu0 %v1458
      %1502 = vmatprep.subr.bf16.mxu0 0
      %1503 = vmatpush1.bf16.msra.mxu0 %v1459
      %1504 = vmatprep.subr.bf16.mxu0 0
      %1505 = vmatpush1.bf16.msra.mxu0 %v1460
      %1506 = vmatprep.subr.bf16.mxu0 0
      %1507 = vmatpush1.bf16.msra.mxu0 %v1461
      %1508 = vmatprep.subr.bf16.mxu0 0
      %1509 = vmatpush1.bf16.msra.mxu0 %v1462
      %1510 = vmatprep.subr.bf16.mxu0 0
      %1511 = vmatpush1.bf16.msra.mxu0 %v1463
      %1512 = vmatprep.mubr.bf16.mxu0 %v1321
      %1513 = vmatmul.mubr.bf16.gmra.mrb[0].mxu0 %v1320
      %v1514 = vpop.f32.mrb[0].mxu0
      %v1515 = vadd.f32 0.0, %v1514
      %v1516 = vpop.f32.mrb[0].mxu0
      %v1517 = vpop.f32.mrb[0].mxu0
      %v1518 = vadd.f32 0.0, %v1517
      %v1519 = vpop.f32.mrb[0].mxu0
      %1520 = vmatprep.mubr.bf16.mxu0 %v1323
      %1521 = vmatmul.mubr.bf16.gmra.mrb[0].mxu0 %v1322
      %v1522 = vpop.f32.mrb[0].mxu0
      %v1523 = vadd.f32 0.0, %v1522
      %v1524 = vpop.f32.mrb[0].mxu0
      %v1525 = vpop.f32.mrb[0].mxu0
      %v1526 = vadd.f32 0.0, %v1525
      %v1527 = vpop.f32.mrb[0].mxu0
      %1528 = vmatprep.mubr.bf16.mxu0 %v1325
      %1529 = vmatmul.mubr.bf16.gmra.mrb[0].mxu0 %v1324
      %v1530 = vpop.f32.mrb[0].mxu0
      %v1531 = vadd.f32 0.0, %v1530
      %v1532 = vpop.f32.mrb[0].mxu0
      %v1533 = vpop.f32.mrb[0].mxu0
      %v1534 = vadd.f32 0.0, %v1533
      %v1535 = vpop.f32.mrb[0].mxu0
      %1536 = vmatprep.mubr.bf16.mxu0 %v1327
      %1537 = vmatmul.mubr.bf16.gmra.mrb[0].mxu0 %v1326
      %v1538 = vpop.f32.mrb[0].mxu0
      %v1539 = vadd.f32 0.0, %v1538
      %v1540 = vpop.f32.mrb[0].mxu0
      %v1541 = vpop.f32.mrb[0].mxu0
      %v1542 = vadd.f32 0.0, %v1541
      %v1543 = vpop.f32.mrb[0].mxu0
      %1544 = vmatprep.mubr.bf16.mxu0 %v1329
      %1545 = vmatmul.mubr.bf16.gmra.mrb[0].mxu0 %v1328
      %v1546 = vpop.f32.mrb[0].mxu0
      %v1547 = vadd.f32 0.0, %v1546
      %v1548 = vpop.f32.mrb[0].mxu0
      %v1549 = vpop.f32.mrb[0].mxu0
      %v1550 = vadd.f32 0.0, %v1549
      %v1551 = vpop.f32.mrb[0].mxu0
      %1552 = vmatprep.mubr.bf16.mxu0 %v1331
      %1553 = vmatmul.mubr.bf16.gmra.mrb[0].mxu0 %v1330
      %v1554 = vpop.f32.mrb[0].mxu0
      %v1555 = vadd.f32 0.0, %v1554
      %v1556 = vpop.f32.mrb[0].mxu0
      %v1557 = vpop.f32.mrb[0].mxu0
      %v1558 = vadd.f32 0.0, %v1557
      %v1559 = vpop.f32.mrb[0].mxu0
      %1560 = vmatprep.mubr.bf16.mxu0 %v1333
      %1561 = vmatmul.mubr.bf16.gmra.mrb[0].mxu0 %v1332
      %v1562 = vpop.f32.mrb[0].mxu0
      %v1563 = vadd.f32 0.0, %v1562
      %v1564 = vpop.f32.mrb[0].mxu0
      %v1565 = vpop.f32.mrb[0].mxu0
      %v1566 = vadd.f32 0.0, %v1565
      %v1567 = vpop.f32.mrb[0].mxu0
      %1568 = vmatprep.mubr.bf16.mxu0 %v1335
      %1569 = vmatmul.mubr.bf16.gmra.mrb[0].mxu0 %v1334
      %v1570 = vpop.f32.mrb[0].mxu0
      %v1571 = vadd.f32 0.0, %v1570
      %v1572 = vpop.f32.mrb[0].mxu0
      %v1573 = vpop.f32.mrb[0].mxu0
      %v1574 = vadd.f32 0.0, %v1573
      %v1575 = vpop.f32.mrb[0].mxu0
      %1576 = vmatprep.mubr.bf16.mxu0 %v1337
      %1577 = vmatmul.mubr.bf16.gmra.mrb[0].mxu0 %v1336
      %v1578 = vpop.f32.mrb[0].mxu0
      %v1579 = vadd.f32 0.0, %v1578
      %v1580 = vpop.f32.mrb[0].mxu0
      %v1581 = vpop.f32.mrb[0].mxu0
      %v1582 = vadd.f32 0.0, %v1581
      %v1583 = vpop.f32.mrb[0].mxu0
      %1584 = vmatprep.mubr.bf16.mxu0 %v1339
      %1585 = vmatmul.mubr.bf16.gmra.mrb[0].mxu0 %v1338
      %v1586 = vpop.f32.mrb[0].mxu0
      %v1587 = vadd.f32 0.0, %v1586
      %v1588 = vpop.f32.mrb[0].mxu0
      %v1589 = vpop.f32.mrb[0].mxu0
      %v1590 = vadd.f32 0.0, %v1589
      %v1591 = vpop.f32.mrb[0].mxu0
      %1592 = vmatprep.mubr.bf16.mxu0 %v1341
      %1593 = vmatmul.mubr.bf16.gmra.mrb[0].mxu0 %v1340
      %v1594 = vpop.f32.mrb[0].mxu0
      %v1595 = vadd.f32 0.0, %v1594
      %v1596 = vpop.f32.mrb[0].mxu0
      %v1597 = vpop.f32.mrb[0].mxu0
      %v1598 = vadd.f32 0.0, %v1597
      %v1599 = vpop.f32.mrb[0].mxu0
      %1600 = vmatprep.mubr.bf16.mxu0 %v1343
      %1601 = vmatmul.mubr.bf16.gmra.mrb[0].mxu0 %v1342
      %v1602 = vpop.f32.mrb[0].mxu0
      %v1603 = vadd.f32 0.0, %v1602
      %v1604 = vpop.f32.mrb[0].mxu0
      %v1605 = vpop.f32.mrb[0].mxu0
      %v1606 = vadd.f32 0.0, %v1605
      %v1607 = vpop.f32.mrb[0].mxu0
      %1608 = vmatprep.mubr.bf16.mxu0 %v1345
      %1609 = vmatmul.mubr.bf16.gmra.mrb[0].mxu0 %v1344
      %v1610 = vpop.f32.mrb[0].mxu0
      %v1611 = vadd.f32 0.0, %v1610
      %v1612 = vpop.f32.mrb[0].mxu0
      %v1613 = vpop.f32.mrb[0].mxu0
      %v1614 = vadd.f32 0.0, %v1613
      %v1615 = vpop.f32.mrb[0].mxu0
      %1616 = vmatprep.mubr.bf16.mxu0 %v1347
      %1617 = vmatmul.mubr.bf16.gmra.mrb[0].mxu0 %v1346
      %v1618 = vpop.f32.mrb[0].mxu0
      %v1619 = vadd.f32 0.0, %v1618
      %v1620 = vpop.f32.mrb[0].mxu0
      %v1621 = vpop.f32.mrb[0].mxu0
      %v1622 = vadd.f32 0.0, %v1621
      %v1623 = vpop.f32.mrb[0].mxu0
      %1624 = vmatprep.mubr.bf16.mxu0 %v1349
      %1625 = vmatmul.mubr.bf16.gmra.mrb[0].mxu0 %v1348
      %v1626 = vpop.f32.mrb[0].mxu0
      %v1627 = vadd.f32 0.0, %v1626
      %v1628 = vpop.f32.mrb[0].mxu0
      %v1629 = vpop.f32.mrb[0].mxu0
      %v1630 = vadd.f32 0.0, %v1629
      %v1631 = vpop.f32.mrb[0].mxu0
      %1632 = vmatprep.mubr.bf16.mxu0 %v1351
      %1633 = vmatmul.mubr.bf16.gmra.mrb[0].mxu0 %v1350
      %v1634 = vpop.f32.mrb[0].mxu0
      %v1635 = vadd.f32 0.0, %v1634
      %v1636 = vpop.f32.mrb[0].mxu0
      %v1637 = vpop.f32.mrb[0].mxu0
      %v1638 = vadd.f32 0.0, %v1637
      %v1639 = vpop.f32.mrb[0].mxu0
      %1640 = vdwg.mxu0
      %v1641 = vadd.f32 %v1033, %v1515
      %v1642 = vadd.f32 %v1036, %v1518
      %v1643 = vadd.f32 %v1041, %v1523
      %v1644 = vadd.f32 %v1044, %v1526
      %v1645 = vadd.f32 %v1049, %v1531
      %v1646 = vadd.f32 %v1052, %v1534
      %v1647 = vadd.f32 %v1057, %v1539
      %v1648 = vadd.f32 %v1060, %v1542
      %v1649 = vadd.f32 %v1065, %v1547
      %v1650 = vadd.f32 %v1068, %v1550
      %v1651 = vadd.f32 %v1073, %v1555
      %v1652 = vadd.f32 %v1076, %v1558
      %v1653 = vadd.f32 %v1081, %v1563
      %v1654 = vadd.f32 %v1084, %v1566
      %v1655 = vadd.f32 %v1089, %v1571
      %v1656 = vadd.f32 %v1092, %v1574
      %v1657 = vadd.f32 %v1097, %v1579
      %v1658 = vadd.f32 %v1100, %v1582
      %v1659 = vadd.f32 %v1105, %v1587
      %v1660 = vadd.f32 %v1108, %v1590
      %v1661 = vadd.f32 %v1113, %v1595
      %v1662 = vadd.f32 %v1116, %v1598
      %v1663 = vadd.f32 %v1121, %v1603
      %v1664 = vadd.f32 %v1124, %v1606
      %v1665 = vadd.f32 %v1129, %v1611
      %v1666 = vadd.f32 %v1132, %v1614
      %v1667 = vadd.f32 %v1137, %v1619
      %v1668 = vadd.f32 %v1140, %v1622
      %v1669 = vadd.f32 %v1145, %v1627
      %v1670 = vadd.f32 %v1148, %v1630
      %v1671 = vadd.f32 %v1153, %v1635
      %v1672 = vadd.f32 %v1156, %v1638
      %v1673 = vld [vmem:[%s259 + $0x10] sm:$0xff]
      %v1674 = vld [vmem:[%s259 + $0x18] sm:$0xff]
      %v1675 = vld [vmem:[%s259 + $0x20] sm:$0xff]
      %v1676 = vld [vmem:[%s259 + $0x28] sm:$0xff]
      %v1677 = vld [vmem:[%s259 + $0x30] sm:$0xff]
      %v1678 = vld [vmem:[%s259 + $0x38] sm:$0xff]
      %v1679 = vld [vmem:[%s259 + $0x40] sm:$0xff]
      %v1680 = vld [vmem:[%s259 + $0x48] sm:$0xff]
      %v1681 = vld [vmem:[%s259 + $0x50] sm:$0xff]
      %v1682 = vld [vmem:[%s259 + $0x58] sm:$0xff]
      %v1683 = vld [vmem:[%s259 + $0x60] sm:$0xff]
      %v1684 = vld [vmem:[%s259 + $0x68] sm:$0xff]
      %v1685 = vld [vmem:[%s259 + $0x70] sm:$0xff]
      %v1686 = vld [vmem:[%s259 + $0x78] sm:$0xff]
      %v1687 = vld [vmem:[%s259 + $0x80] sm:$0xff]
      %v1688 = vld [vmem:[%s259 + $0x88] sm:$0xff]
      %v1689 = vld [vmem:[%s259 + $0x90] sm:$0xff]
      %v1690 = vld [vmem:[%s259 + $0x98] sm:$0xff]
      %v1691 = vld [vmem:[%s259 + $0xa0] sm:$0xff]
      %v1692 = vld [vmem:[%s259 + $0xa8] sm:$0xff]
      %v1693 = vld [vmem:[%s259 + $0xb0] sm:$0xff]
      %v1694 = vld [vmem:[%s259 + $0xb8] sm:$0xff]
      %v1695 = vld [vmem:[%s259 + $0xc0] sm:$0xff]
      %v1696 = vld [vmem:[%s259 + $0xc8] sm:$0xff]
      %v1697 = vld [vmem:[%s259 + $0xd0] sm:$0xff]
      %v1698 = vld [vmem:[%s259 + $0xd8] sm:$0xff]
      %v1699 = vld [vmem:[%s259 + $0xe0] sm:$0xff]
      %v1700 = vld [vmem:[%s259 + $0xe8] sm:$0xff]
      %v1701 = vld [vmem:[%s259 + $0xf0] sm:$0xff]
      %v1702 = vld [vmem:[%s259 + $0xf8] sm:$0xff]
      %v1703 = vld [vmem:[%s259 + $0x100] sm:$0xff]
      %v1704 = vld [vmem:[%s259 + $0x108] sm:$0xff]
      %s1705 = scalar_lea.vmem %s1, 384
      %v1706 = vld [vmem:[%s1705] sm:$0xf]
      %v1707 = vld [vmem:[%s1705 + $0x4] sm:$0xf]
      %v1708 = vld [vmem:[%s1705 + $0x8] sm:$0xf]
      %v1709 = vld [vmem:[%s1705 + $0xc] sm:$0xf]
      %v1710 = vld [vmem:[%s1705 + $0x10] sm:$0xf]
      %v1711 = vld [vmem:[%s1705 + $0x14] sm:$0xf]
      %v1712 = vld [vmem:[%s1705 + $0x18] sm:$0xf]
      %v1713 = vld [vmem:[%s1705 + $0x1c] sm:$0xf]
      %v1714 = vld [vmem:[%s1705 + $0x20] sm:$0xf]
      %v1715 = vld [vmem:[%s1705 + $0x24] sm:$0xf]
      %v1716 = vld [vmem:[%s1705 + $0x28] sm:$0xf]
      %v1717 = vld [vmem:[%s1705 + $0x2c] sm:$0xf]
      %v1718 = vld [vmem:[%s1705 + $0x30] sm:$0xf]
      %v1719 = vld [vmem:[%s1705 + $0x34] sm:$0xf]
      %v1720 = vld [vmem:[%s1705 + $0x38] sm:$0xf]
      %v1721 = vld [vmem:[%s1705 + $0x3c] sm:$0xf]
      %v1722 = vld [vmem:[%s1705 + $0x40] sm:$0xf]
      %v1723 = vld [vmem:[%s1705 + $0x44] sm:$0xf]
      %v1724 = vld [vmem:[%s1705 + $0x48] sm:$0xf]
      %v1725 = vld [vmem:[%s1705 + $0x4c] sm:$0xf]
      %v1726 = vld [vmem:[%s1705 + $0x50] sm:$0xf]
      %v1727 = vld [vmem:[%s1705 + $0x54] sm:$0xf]
      %v1728 = vld [vmem:[%s1705 + $0x58] sm:$0xf]
      %v1729 = vld [vmem:[%s1705 + $0x5c] sm:$0xf]
      %v1730 = vld [vmem:[%s1705 + $0x60] sm:$0xf]
      %v1731 = vld [vmem:[%s1705 + $0x64] sm:$0xf]
      %v1732 = vld [vmem:[%s1705 + $0x68] sm:$0xf]
      %v1733 = vld [vmem:[%s1705 + $0x6c] sm:$0xf]
      %v1734 = vld [vmem:[%s1705 + $0x70] sm:$0xf]
      %v1735 = vld [vmem:[%s1705 + $0x74] sm:$0xf]
      %v1736 = vld [vmem:[%s1705 + $0x78] sm:$0xf]
      %v1737 = vld [vmem:[%s1705 + $0x7c] sm:$0xf]
      %v1770 = vunpack.c.l.b16 %v1673
      %v1771 = vunpack.c.h.b16 %v1673
      %v1772 = vunpack.c.l.b16 %v1674
      %v1773 = vunpack.c.h.b16 %v1674
      %v1774 = vunpack.c.l.b16 %v1675
      %v1775 = vunpack.c.h.b16 %v1675
      %v1776 = vunpack.c.l.b16 %v1676
      %v1777 = vunpack.c.h.b16 %v1676
      %v1778 = vunpack.c.l.b16 %v1677
      %v1779 = vunpack.c.h.b16 %v1677
      %v1780 = vunpack.c.l.b16 %v1678
      %v1781 = vunpack.c.h.b16 %v1678
      %v1782 = vunpack.c.l.b16 %v1679
      %v1783 = vunpack.c.h.b16 %v1679
      %v1784 = vunpack.c.l.b16 %v1680
      %v1785 = vunpack.c.h.b16 %v1680
      %v1786 = vunpack.c.l.b16 %v1681
      %v1787 = vunpack.c.h.b16 %v1681
      %v1788 = vunpack.c.l.b16 %v1682
      %v1789 = vunpack.c.h.b16 %v1682
      %v1790 = vunpack.c.l.b16 %v1683
      %v1791 = vunpack.c.h.b16 %v1683
      %v1792 = vunpack.c.l.b16 %v1684
      %v1793 = vunpack.c.h.b16 %v1684
      %v1794 = vunpack.c.l.b16 %v1685
      %v1795 = vunpack.c.h.b16 %v1685
      %v1796 = vunpack.c.l.b16 %v1686
      %v1797 = vunpack.c.h.b16 %v1686
      %v1798 = vunpack.c.l.b16 %v1687
      %v1799 = vunpack.c.h.b16 %v1687
      %v1800 = vunpack.c.l.b16 %v1688
      %v1801 = vunpack.c.h.b16 %v1688
      %v1802 = vunpack.c.l.b16 %v1689
      %v1803 = vunpack.c.h.b16 %v1689
      %v1804 = vunpack.c.l.b16 %v1690
      %v1805 = vunpack.c.h.b16 %v1690
      %v1806 = vunpack.c.l.b16 %v1691
      %v1807 = vunpack.c.h.b16 %v1691
      %v1808 = vunpack.c.l.b16 %v1692
      %v1809 = vunpack.c.h.b16 %v1692
      %v1810 = vunpack.c.l.b16 %v1693
      %v1811 = vunpack.c.h.b16 %v1693
      %v1812 = vunpack.c.l.b16 %v1694
      %v1813 = vunpack.c.h.b16 %v1694
      %v1814 = vunpack.c.l.b16 %v1695
      %v1815 = vunpack.c.h.b16 %v1695
      %v1816 = vunpack.c.l.b16 %v1696
      %v1817 = vunpack.c.h.b16 %v1696
      %v1818 = vunpack.c.l.b16 %v1697
      %v1819 = vunpack.c.h.b16 %v1697
      %v1820 = vunpack.c.l.b16 %v1698
      %v1821 = vunpack.c.h.b16 %v1698
      %v1822 = vunpack.c.l.b16 %v1699
      %v1823 = vunpack.c.h.b16 %v1699
      %v1824 = vunpack.c.l.b16 %v1700
      %v1825 = vunpack.c.h.b16 %v1700
      %v1826 = vunpack.c.l.b16 %v1701
      %v1827 = vunpack.c.h.b16 %v1701
      %v1828 = vunpack.c.l.b16 %v1702
      %v1829 = vunpack.c.h.b16 %v1702
      %v1830 = vunpack.c.l.b16 %v1703
      %v1831 = vunpack.c.h.b16 %v1703
      %v1832 = vunpack.c.l.b16 %v1704
      %v1833 = vunpack.c.h.b16 %v1704
      %v1834 = vpack.c.b16 %v1772, %v1770
      %v1835 = vpack.c.b16 %v1773, %v1771
      %v1836 = vpack.c.b16 %v1776, %v1774
      %v1837 = vpack.c.b16 %v1777, %v1775
      %v1838 = vpack.c.b16 %v1780, %v1778
      %v1839 = vpack.c.b16 %v1781, %v1779
      %v1840 = vpack.c.b16 %v1784, %v1782
      %v1841 = vpack.c.b16 %v1785, %v1783
      %v1842 = vpack.c.b16 %v1788, %v1786
      %v1843 = vpack.c.b16 %v1789, %v1787
      %v1844 = vpack.c.b16 %v1792, %v1790
      %v1845 = vpack.c.b16 %v1793, %v1791
      %v1846 = vpack.c.b16 %v1796, %v1794
      %v1847 = vpack.c.b16 %v1797, %v1795
      %v1848 = vpack.c.b16 %v1800, %v1798
      %v1849 = vpack.c.b16 %v1801, %v1799
      %v1850 = vpack.c.b16 %v1804, %v1802
      %v1851 = vpack.c.b16 %v1805, %v1803
      %v1852 = vpack.c.b16 %v1808, %v1806
      %v1853 = vpack.c.b16 %v1809, %v1807
      %v1854 = vpack.c.b16 %v1812, %v1810
      %v1855 = vpack.c.b16 %v1813, %v1811
      %v1856 = vpack.c.b16 %v1816, %v1814
      %v1857 = vpack.c.b16 %v1817, %v1815
      %v1858 = vpack.c.b16 %v1820, %v1818
      %v1859 = vpack.c.b16 %v1821, %v1819
      %v1860 = vpack.c.b16 %v1824, %v1822
      %v1861 = vpack.c.b16 %v1825, %v1823
      %v1862 = vpack.c.b16 %v1828, %v1826
      %v1863 = vpack.c.b16 %v1829, %v1827
      %v1864 = vpack.c.b16 %v1832, %v1830
      %v1865 = vpack.c.b16 %v1833, %v1831
      %v1930 = vunpack.c.l.b16 %v1706
      %v1931 = vunpack.c.l.b16 %v1707
      %v1932 = vunpack.c.l.b16 %v1708
      %v1933 = vunpack.c.l.b16 %v1709
      %v1934 = vunpack.c.l.b16 %v1710
      %v1935 = vunpack.c.l.b16 %v1711
      %v1936 = vunpack.c.l.b16 %v1712
      %v1937 = vunpack.c.l.b16 %v1713
      %v1938 = vunpack.c.l.b16 %v1714
      %v1939 = vunpack.c.l.b16 %v1715
      %v1940 = vunpack.c.l.b16 %v1716
      %v1941 = vunpack.c.l.b16 %v1717
      %v1942 = vunpack.c.l.b16 %v1718
      %v1943 = vunpack.c.l.b16 %v1719
      %v1944 = vunpack.c.l.b16 %v1720
      %v1945 = vunpack.c.l.b16 %v1721
      %v1946 = vunpack.c.l.b16 %v1722
      %v1947 = vunpack.c.l.b16 %v1723
      %v1948 = vunpack.c.l.b16 %v1724
      %v1949 = vunpack.c.l.b16 %v1725
      %v1950 = vunpack.c.l.b16 %v1726
      %v1951 = vunpack.c.l.b16 %v1727
      %v1952 = vunpack.c.l.b16 %v1728
      %v1953 = vunpack.c.l.b16 %v1729
      %v1954 = vunpack.c.l.b16 %v1730
      %v1955 = vunpack.c.l.b16 %v1731
      %v1956 = vunpack.c.l.b16 %v1732
      %v1957 = vunpack.c.l.b16 %v1733
      %v1958 = vunpack.c.l.b16 %v1734
      %v1959 = vunpack.c.l.b16 %v1735
      %v1960 = vunpack.c.l.b16 %v1736
      %v1961 = vunpack.c.l.b16 %v1737
      %v1962 = vpack.c.b16 %v1931, %v1930
      %v1963 = vpack.c.b16 %v1933, %v1932
      %v1964 = vpack.c.b16 %v1935, %v1934
      %v1965 = vpack.c.b16 %v1937, %v1936
      %v1966 = vpack.c.b16 %v1939, %v1938
      %v1967 = vpack.c.b16 %v1941, %v1940
      %v1968 = vpack.c.b16 %v1943, %v1942
      %v1969 = vpack.c.b16 %v1945, %v1944
      %v1970 = vpack.c.b16 %v1947, %v1946
      %v1971 = vpack.c.b16 %v1949, %v1948
      %v1972 = vpack.c.b16 %v1951, %v1950
      %v1973 = vpack.c.b16 %v1953, %v1952
      %v1974 = vpack.c.b16 %v1955, %v1954
      %v1975 = vpack.c.b16 %v1957, %v1956
      %v1976 = vpack.c.b16 %v1959, %v1958
      %v1977 = vpack.c.b16 %v1961, %v1960
      %1994 = vmatprep.subr.bf16.mxu0 0
      %1995 = vmatpush1.bf16.msra.mxu0 %v1962
      %1996 = vmatprep.subr.bf16.mxu0 0
      %1997 = vmatpush1.bf16.msra.mxu0 %v1963
      %1998 = vmatprep.subr.bf16.mxu0 0
      %1999 = vmatpush1.bf16.msra.mxu0 %v1964
      %2000 = vmatprep.subr.bf16.mxu0 0
      %2001 = vmatpush1.bf16.msra.mxu0 %v1965
      %2002 = vmatprep.subr.bf16.mxu0 0
      %2003 = vmatpush1.bf16.msra.mxu0 %v1966
      %2004 = vmatprep.subr.bf16.mxu0 0
      %2005 = vmatpush1.bf16.msra.mxu0 %v1967
      %2006 = vmatprep.subr.bf16.mxu0 0
      %2007 = vmatpush1.bf16.msra.mxu0 %v1968
      %2008 = vmatprep.subr.bf16.mxu0 0
      %2009 = vmatpush1.bf16.msra.mxu0 %v1969
      %2010 = vmatprep.subr.bf16.mxu0 0
      %2011 = vmatpush1.bf16.msra.mxu0 %v1970
      %2012 = vmatprep.subr.bf16.mxu0 0
      %2013 = vmatpush1.bf16.msra.mxu0 %v1971
      %2014 = vmatprep.subr.bf16.mxu0 0
      %2015 = vmatpush1.bf16.msra.mxu0 %v1972
      %2016 = vmatprep.subr.bf16.mxu0 0
      %2017 = vmatpush1.bf16.msra.mxu0 %v1973
      %2018 = vmatprep.subr.bf16.mxu0 0
      %2019 = vmatpush1.bf16.msra.mxu0 %v1974
      %2020 = vmatprep.subr.bf16.mxu0 0
      %2021 = vmatpush1.bf16.msra.mxu0 %v1975
      %2022 = vmatprep.subr.bf16.mxu0 0
      %2023 = vmatpush1.bf16.msra.mxu0 %v1976
      %2024 = vmatprep.subr.bf16.mxu0 0
      %2025 = vmatpush1.bf16.msra.mxu0 %v1977
      %2026 = vmatprep.mubr.bf16.mxu0 %v1835
      %2027 = vmatmul.mubr.bf16.gmra.mrb[0].mxu0 %v1834
      %v2028 = vpop.f32.mrb[0].mxu0
      %v2029 = vadd.f32 0.0, %v2028
      %v2030 = vpop.f32.mrb[0].mxu0
      %v2031 = vpop.f32.mrb[0].mxu0
      %v2032 = vadd.f32 0.0, %v2031
      %v2033 = vpop.f32.mrb[0].mxu0
      %2034 = vmatprep.mubr.bf16.mxu0 %v1837
      %2035 = vmatmul.mubr.bf16.gmra.mrb[0].mxu0 %v1836
      %v2036 = vpop.f32.mrb[0].mxu0
      %v2037 = vadd.f32 0.0, %v2036
      %v2038 = vpop.f32.mrb[0].mxu0
      %v2039 = vpop.f32.mrb[0].mxu0
      %v2040 = vadd.f32 0.0, %v2039
      %v2041 = vpop.f32.mrb[0].mxu0
      %2042 = vmatprep.mubr.bf16.mxu0 %v1839
      %2043 = vmatmul.mubr.bf16.gmra.mrb[0].mxu0 %v1838
      %v2044 = vpop.f32.mrb[0].mxu0
      %v2045 = vadd.f32 0.0, %v2044
      %v2046 = vpop.f32.mrb[0].mxu0
      %v2047 = vpop.f32.mrb[0].mxu0
      %v2048 = vadd.f32 0.0, %v2047
      %v2049 = vpop.f32.mrb[0].mxu0
      %2050 = vmatprep.mubr.bf16.mxu0 %v1841
      %2051 = vmatmul.mubr.bf16.gmra.mrb[0].mxu0 %v1840
      %v2052 = vpop.f32.mrb[0].mxu0
      %v2053 = vadd.f32 0.0, %v2052
      %v2054 = vpop.f32.mrb[0].mxu0
      %v2055 = vpop.f32.mrb[0].mxu0
      %v2056 = vadd.f32 0.0, %v2055
      %v2057 = vpop.f32.mrb[0].mxu0
      %2058 = vmatprep.mubr.bf16.mxu0 %v1843
      %2059 = vmatmul.mubr.bf16.gmra.mrb[0].mxu0 %v1842
      %v2060 = vpop.f32.mrb[0].mxu0
      %v2061 = vadd.f32 0.0, %v2060
      %v2062 = vpop.f32.mrb[0].mxu0
      %v2063 = vpop.f32.mrb[0].mxu0
      %v2064 = vadd.f32 0.0, %v2063
      %v2065 = vpop.f32.mrb[0].mxu0
      %2066 = vmatprep.mubr.bf16.mxu0 %v1845
      %2067 = vmatmul.mubr.bf16.gmra.mrb[0].mxu0 %v1844
      %v2068 = vpop.f32.mrb[0].mxu0
      %v2069 = vadd.f32 0.0, %v2068
      %v2070 = vpop.f32.mrb[0].mxu0
      %v2071 = vpop.f32.mrb[0].mxu0
      %v2072 = vadd.f32 0.0, %v2071
      %v2073 = vpop.f32.mrb[0].mxu0
      %2074 = vmatprep.mubr.bf16.mxu0 %v1847
      %2075 = vmatmul.mubr.bf16.gmra.mrb[0].mxu0 %v1846
      %v2076 = vpop.f32.mrb[0].mxu0
      %v2077 = vadd.f32 0.0, %v2076
      %v2078 = vpop.f32.mrb[0].mxu0
      %v2079 = vpop.f32.mrb[0].mxu0
      %v2080 = vadd.f32 0.0, %v2079
      %v2081 = vpop.f32.mrb[0].mxu0
      %2082 = vmatprep.mubr.bf16.mxu0 %v1849
      %2083 = vmatmul.mubr.bf16.gmra.mrb[0].mxu0 %v1848
      %v2084 = vpop.f32.mrb[0].mxu0
      %v2085 = vadd.f32 0.0, %v2084
      %v2086 = vpop.f32.mrb[0].mxu0
      %v2087 = vpop.f32.mrb[0].mxu0
      %v2088 = vadd.f32 0.0, %v2087
      %v2089 = vpop.f32.mrb[0].mxu0
      %2090 = vmatprep.mubr.bf16.mxu0 %v1851
      %2091 = vmatmul.mubr.bf16.gmra.mrb[0].mxu0 %v1850
      %v2092 = vpop.f32.mrb[0].mxu0
      %v2093 = vadd.f32 0.0, %v2092
      %v2094 = vpop.f32.mrb[0].mxu0
      %v2095 = vpop.f32.mrb[0].mxu0
      %v2096 = vadd.f32 0.0, %v2095
      %v2097 = vpop.f32.mrb[0].mxu0
      %2098 = vmatprep.mubr.bf16.mxu0 %v1853
      %2099 = vmatmul.mubr.bf16.gmra.mrb[0].mxu0 %v1852
      %v2100 = vpop.f32.mrb[0].mxu0
      %v2101 = vadd.f32 0.0, %v2100
      %v2102 = vpop.f32.mrb[0].mxu0
      %v2103 = vpop.f32.mrb[0].mxu0
      %v2104 = vadd.f32 0.0, %v2103
      %v2105 = vpop.f32.mrb[0].mxu0
      %2106 = vmatprep.mubr.bf16.mxu0 %v1855
      %2107 = vmatmul.mubr.bf16.gmra.mrb[0].mxu0 %v1854
      %v2108 = vpop.f32.mrb[0].mxu0
      %v2109 = vadd.f32 0.0, %v2108
      %v2110 = vpop.f32.mrb[0].mxu0
      %v2111 = vpop.f32.mrb[0].mxu0
      %v2112 = vadd.f32 0.0, %v2111
      %v2113 = vpop.f32.mrb[0].mxu0
      %2114 = vmatprep.mubr.bf16.mxu0 %v1857
      %2115 = vmatmul.mubr.bf16.gmra.mrb[0].mxu0 %v1856
      %v2116 = vpop.f32.mrb[0].mxu0
      %v2117 = vadd.f32 0.0, %v2116
      %v2118 = vpop.f32.mrb[0].mxu0
      %v2119 = vpop.f32.mrb[0].mxu0
      %v2120 = vadd.f32 0.0, %v2119
      %v2121 = vpop.f32.mrb[0].mxu0
      %2122 = vmatprep.mubr.bf16.mxu0 %v1859
      %2123 = vmatmul.mubr.bf16.gmra.mrb[0].mxu0 %v1858
      %v2124 = vpop.f32.mrb[0].mxu0
      %v2125 = vadd.f32 0.0, %v2124
      %v2126 = vpop.f32.mrb[0].mxu0
      %v2127 = vpop.f32.mrb[0].mxu0
      %v2128 = vadd.f32 0.0, %v2127
      %v2129 = vpop.f32.mrb[0].mxu0
      %2130 = vmatprep.mubr.bf16.mxu0 %v1861
      %2131 = vmatmul.mubr.bf16.gmra.mrb[0].mxu0 %v1860
      %v2132 = vpop.f32.mrb[0].mxu0
      %v2133 = vadd.f32 0.0, %v2132
      %v2134 = vpop.f32.mrb[0].mxu0
      %v2135 = vpop.f32.mrb[0].mxu0
      %v2136 = vadd.f32 0.0, %v2135
      %v2137 = vpop.f32.mrb[0].mxu0
      %2138 = vmatprep.mubr.bf16.mxu0 %v1863
      %2139 = vmatmul.mubr.bf16.gmra.mrb[0].mxu0 %v1862
      %v2140 = vpop.f32.mrb[0].mxu0
      %v2141 = vadd.f32 0.0, %v2140
      %v2142 = vpop.f32.mrb[0].mxu0
      %v2143 = vpop.f32.mrb[0].mxu0
      %v2144 = vadd.f32 0.0, %v2143
      %v2145 = vpop.f32.mrb[0].mxu0
      %2146 = vmatprep.mubr.bf16.mxu0 %v1865
      %2147 = vmatmul.mubr.bf16.gmra.mrb[0].mxu0 %v1864
      %v2148 = vpop.f32.mrb[0].mxu0
      %v2149 = vadd.f32 0.0, %v2148
      %v2150 = vpop.f32.mrb[0].mxu0
      %v2151 = vpop.f32.mrb[0].mxu0
      %v2152 = vadd.f32 0.0, %v2151
      %v2153 = vpop.f32.mrb[0].mxu0
      %2154 = vdwg.mxu0
      %v2155 = vadd.f32 %v1641, %v2029
      %v2156 = vadd.f32 %v1642, %v2032
      %v2157 = vadd.f32 %v1643, %v2037
      %v2158 = vadd.f32 %v1644, %v2040
      %v2159 = vadd.f32 %v1645, %v2045
      %v2160 = vadd.f32 %v1646, %v2048
      %v2161 = vadd.f32 %v1647, %v2053
      %v2162 = vadd.f32 %v1648, %v2056
      %v2163 = vadd.f32 %v1649, %v2061
      %v2164 = vadd.f32 %v1650, %v2064
      %v2165 = vadd.f32 %v1651, %v2069
      %v2166 = vadd.f32 %v1652, %v2072
      %v2167 = vadd.f32 %v1653, %v2077
      %v2168 = vadd.f32 %v1654, %v2080
      %v2169 = vadd.f32 %v1655, %v2085
      %v2170 = vadd.f32 %v1656, %v2088
      %v2171 = vadd.f32 %v1657, %v2093
      %v2172 = vadd.f32 %v1658, %v2096
      %v2173 = vadd.f32 %v1659, %v2101
      %v2174 = vadd.f32 %v1660, %v2104
      %v2175 = vadd.f32 %v1661, %v2109
      %v2176 = vadd.f32 %v1662, %v2112
      %v2177 = vadd.f32 %v1663, %v2117
      %v2178 = vadd.f32 %v1664, %v2120
      %v2179 = vadd.f32 %v1665, %v2125
      %v2180 = vadd.f32 %v1666, %v2128
      %v2181 = vadd.f32 %v1667, %v2133
      %v2182 = vadd.f32 %v1668, %v2136
      %v2183 = vadd.f32 %v1669, %v2141
      %v2184 = vadd.f32 %v1670, %v2144
      %v2185 = vadd.f32 %v1671, %v2149
      %v2186 = vadd.f32 %v1672, %v2152
      %v2187 = vld [vmem:[%s2] sm:$0x1]
      %v2189 = vlaneseq
      %v2190 = vshrl.u32 %v2189, 7
      %v2191 = vsub.s32 0, %v2190
      %v2192 = vrot.slane %v2187, %v2191
      %v2194 = vadd.f32 %v2155, %v2192
      %v2195 = vadd.f32 %v2156, %v2192
      %v2196 = vadd.f32 %v2157, %v2192
      %v2197 = vadd.f32 %v2158, %v2192
      %v2198 = vadd.f32 %v2159, %v2192
      %v2199 = vadd.f32 %v2160, %v2192
      %v2200 = vadd.f32 %v2161, %v2192
      %v2201 = vadd.f32 %v2162, %v2192
      %v2202 = vadd.f32 %v2163, %v2192
      %v2203 = vadd.f32 %v2164, %v2192
      %v2204 = vadd.f32 %v2165, %v2192
      %v2205 = vadd.f32 %v2166, %v2192
      %v2206 = vadd.f32 %v2167, %v2192
      %v2207 = vadd.f32 %v2168, %v2192
      %v2208 = vadd.f32 %v2169, %v2192
      %v2209 = vadd.f32 %v2170, %v2192
      %v2210 = vadd.f32 %v2171, %v2192
      %v2211 = vadd.f32 %v2172, %v2192
      %v2212 = vadd.f32 %v2173, %v2192
      %v2213 = vadd.f32 %v2174, %v2192
      %v2214 = vadd.f32 %v2175, %v2192
      %v2215 = vadd.f32 %v2176, %v2192
      %v2216 = vadd.f32 %v2177, %v2192
      %v2217 = vadd.f32 %v2178, %v2192
      %v2218 = vadd.f32 %v2179, %v2192
      %v2219 = vadd.f32 %v2180, %v2192
      %v2220 = vadd.f32 %v2181, %v2192
      %v2221 = vadd.f32 %v2182, %v2192
      %v2222 = vadd.f32 %v2183, %v2192
      %v2223 = vadd.f32 %v2184, %v2192
      %v2224 = vadd.f32 %v2185, %v2192
      %v2225 = vadd.f32 %v2186, %v2192
      %v2226 = vadd.f32 %v2194, %v2195
      %v2227 = vadd.f32 %v2226, %v2196
      %v2228 = vadd.f32 %v2227, %v2197
      %v2229 = vadd.f32 %v2228, %v2198
      %v2230 = vadd.f32 %v2229, %v2199
      %v2231 = vadd.f32 %v2230, %v2200
      %v2232 = vadd.f32 %v2231, %v2201
      %v2233 = vadd.f32 %v2232, %v2202
      %v2234 = vadd.f32 %v2233, %v2203
      %v2235 = vadd.f32 %v2234, %v2204
      %v2236 = vadd.f32 %v2235, %v2205
      %v2237 = vadd.f32 %v2236, %v2206
      %v2238 = vadd.f32 %v2237, %v2207
      %v2239 = vadd.f32 %v2238, %v2208
      %v2240 = vadd.f32 %v2239, %v2209
      %v2241 = vadd.f32 %v2240, %v2210
      %v2242 = vadd.f32 %v2241, %v2211
      %v2243 = vadd.f32 %v2242, %v2212
      %v2244 = vadd.f32 %v2243, %v2213
      %v2245 = vadd.f32 %v2244, %v2214
      %v2246 = vadd.f32 %v2245, %v2215
      %v2247 = vadd.f32 %v2246, %v2216
      %v2248 = vadd.f32 %v2247, %v2217
      %v2249 = vadd.f32 %v2248, %v2218
      %v2250 = vadd.f32 %v2249, %v2219
      %v2251 = vadd.f32 %v2250, %v2220
      %v2252 = vadd.f32 %v2251, %v2221
      %v2253 = vadd.f32 %v2252, %v2222
      %v2254 = vadd.f32 %v2253, %v2223
      %v2255 = vadd.f32 %v2254, %v2224
      %v2256 = vadd.f32 %v2255, %v2225
      %v2257 = vrot.slane %v2256, 4
      %v2258 = vadd.f32 %v2256, %v2257
      %v2259 = vrot.slane %v2258, 2
      %v2260 = vadd.f32 %v2258, %v2259
      %v2261 = vrot.slane %v2260, 1
      %v2262 = vadd.f32 %v2260, %v2261
      %v2263 = vrcp.pop 256.0
      %v2264 = vmul.f32 %v2262, %v2263
      %v2265 = vsub.f32 %v2194, %v2264
      %v2266 = vsub.f32 %v2195, %v2264
      %v2267 = vsub.f32 %v2196, %v2264
      %v2268 = vsub.f32 %v2197, %v2264
      %v2269 = vsub.f32 %v2198, %v2264
      %v2270 = vsub.f32 %v2199, %v2264
      %v2271 = vsub.f32 %v2200, %v2264
      %v2272 = vsub.f32 %v2201, %v2264
      %v2273 = vsub.f32 %v2202, %v2264
      %v2274 = vsub.f32 %v2203, %v2264
      %v2275 = vsub.f32 %v2204, %v2264
      %v2276 = vsub.f32 %v2205, %v2264
      %v2277 = vsub.f32 %v2206, %v2264
      %v2278 = vsub.f32 %v2207, %v2264
      %v2279 = vsub.f32 %v2208, %v2264
      %v2280 = vsub.f32 %v2209, %v2264
      %v2281 = vsub.f32 %v2210, %v2264
      %v2282 = vsub.f32 %v2211, %v2264
      %v2283 = vsub.f32 %v2212, %v2264
      %v2284 = vsub.f32 %v2213, %v2264
      %v2285 = vsub.f32 %v2214, %v2264
      %v2286 = vsub.f32 %v2215, %v2264
      %v2287 = vsub.f32 %v2216, %v2264
      %v2288 = vsub.f32 %v2217, %v2264
      %v2289 = vsub.f32 %v2218, %v2264
      %v2290 = vsub.f32 %v2219, %v2264
      %v2291 = vsub.f32 %v2220, %v2264
      %v2292 = vsub.f32 %v2221, %v2264
      %v2293 = vsub.f32 %v2222, %v2264
      %v2294 = vsub.f32 %v2223, %v2264
      %v2295 = vsub.f32 %v2224, %v2264
      %v2296 = vsub.f32 %v2225, %v2264
      %v2297 = vmul.f32 %v2265, %v2265
      %v2298 = vmul.f32 %v2266, %v2266
      %v2299 = vmul.f32 %v2267, %v2267
      %v2300 = vmul.f32 %v2268, %v2268
      %v2301 = vmul.f32 %v2269, %v2269
      %v2302 = vmul.f32 %v2270, %v2270
      %v2303 = vmul.f32 %v2271, %v2271
      %v2304 = vmul.f32 %v2272, %v2272
      %v2305 = vmul.f32 %v2273, %v2273
      %v2306 = vmul.f32 %v2274, %v2274
      %v2307 = vmul.f32 %v2275, %v2275
      %v2308 = vmul.f32 %v2276, %v2276
      %v2309 = vmul.f32 %v2277, %v2277
      %v2310 = vmul.f32 %v2278, %v2278
      %v2311 = vmul.f32 %v2279, %v2279
      %v2312 = vmul.f32 %v2280, %v2280
      %v2313 = vmul.f32 %v2281, %v2281
      %v2314 = vmul.f32 %v2282, %v2282
      %v2315 = vmul.f32 %v2283, %v2283
      %v2316 = vmul.f32 %v2284, %v2284
      %v2317 = vmul.f32 %v2285, %v2285
      %v2318 = vmul.f32 %v2286, %v2286
      %v2319 = vmul.f32 %v2287, %v2287
      %v2320 = vmul.f32 %v2288, %v2288
      %v2321 = vmul.f32 %v2289, %v2289
      %v2322 = vmul.f32 %v2290, %v2290
      %v2323 = vmul.f32 %v2291, %v2291
      %v2324 = vmul.f32 %v2292, %v2292
      %v2325 = vmul.f32 %v2293, %v2293
      %v2326 = vmul.f32 %v2294, %v2294
      %v2327 = vmul.f32 %v2295, %v2295
      %v2328 = vmul.f32 %v2296, %v2296
      %v2329 = vadd.f32 %v2297, %v2298
      %v2330 = vadd.f32 %v2329, %v2299
      %v2331 = vadd.f32 %v2330, %v2300
      %v2332 = vadd.f32 %v2331, %v2301
      %v2333 = vadd.f32 %v2332, %v2302
      %v2334 = vadd.f32 %v2333, %v2303
      %v2335 = vadd.f32 %v2334, %v2304
      %v2336 = vadd.f32 %v2335, %v2305
      %v2337 = vadd.f32 %v2336, %v2306
      %v2338 = vadd.f32 %v2337, %v2307
      %v2339 = vadd.f32 %v2338, %v2308
      %v2340 = vadd.f32 %v2339, %v2309
      %v2341 = vadd.f32 %v2340, %v2310
      %v2342 = vadd.f32 %v2341, %v2311
      %v2343 = vadd.f32 %v2342, %v2312
      %v2344 = vadd.f32 %v2343, %v2313
      %v2345 = vadd.f32 %v2344, %v2314
      %v2346 = vadd.f32 %v2345, %v2315
      %v2347 = vadd.f32 %v2346, %v2316
      %v2348 = vadd.f32 %v2347, %v2317
      %v2349 = vadd.f32 %v2348, %v2318
      %v2350 = vadd.f32 %v2349, %v2319
      %v2351 = vadd.f32 %v2350, %v2320
      %v2352 = vadd.f32 %v2351, %v2321
      %v2353 = vadd.f32 %v2352, %v2322
      %v2354 = vadd.f32 %v2353, %v2323
      %v2355 = vadd.f32 %v2354, %v2324
      %v2356 = vadd.f32 %v2355, %v2325
      %v2357 = vadd.f32 %v2356, %v2326
      %v2358 = vadd.f32 %v2357, %v2327
      %v2359 = vadd.f32 %v2358, %v2328
      %v2360 = vrot.slane %v2359, 4
      %v2361 = vadd.f32 %v2359, %v2360
      %v2362 = vrot.slane %v2361, 2
      %v2363 = vadd.f32 %v2361, %v2362
      %v2364 = vrot.slane %v2363, 1
      %v2365 = vadd.f32 %v2363, %v2364
      %v2366 = vmul.f32 %v2365, %v2263
      %v2367 = vadd.f32 %v2366, 1e-05
      %v2368 = vrsqrt.pop %v2367
      %v2369 = vmul.f32 %v2265, %v2368
      %v2370 = vmul.f32 %v2266, %v2368
      %v2371 = vmul.f32 %v2267, %v2368
      %v2372 = vmul.f32 %v2268, %v2368
      %v2373 = vmul.f32 %v2269, %v2368
      %v2374 = vmul.f32 %v2270, %v2368
      %v2375 = vmul.f32 %v2271, %v2368
      %v2376 = vmul.f32 %v2272, %v2368
      %v2377 = vmul.f32 %v2273, %v2368
      %v2378 = vmul.f32 %v2274, %v2368
      %v2379 = vmul.f32 %v2275, %v2368
      %v2380 = vmul.f32 %v2276, %v2368
      %v2381 = vmul.f32 %v2277, %v2368
      %v2382 = vmul.f32 %v2278, %v2368
      %v2383 = vmul.f32 %v2279, %v2368
      %v2384 = vmul.f32 %v2280, %v2368
      %v2385 = vmul.f32 %v2281, %v2368
      %v2386 = vmul.f32 %v2282, %v2368
      %v2387 = vmul.f32 %v2283, %v2368
      %v2388 = vmul.f32 %v2284, %v2368
      %v2389 = vmul.f32 %v2285, %v2368
      %v2390 = vmul.f32 %v2286, %v2368
      %v2391 = vmul.f32 %v2287, %v2368
      %v2392 = vmul.f32 %v2288, %v2368
      %v2393 = vmul.f32 %v2289, %v2368
      %v2394 = vmul.f32 %v2290, %v2368
      %v2395 = vmul.f32 %v2291, %v2368
      %v2396 = vmul.f32 %v2292, %v2368
      %v2397 = vmul.f32 %v2293, %v2368
      %v2398 = vmul.f32 %v2294, %v2368
      %v2399 = vmul.f32 %v2295, %v2368
      %v2400 = vmul.f32 %v2296, %v2368
      %vm2401 = vcmp.gt.f32.partialorder %v2369, 0.0
      %vm2402 = vcmp.gt.f32.partialorder %v2370, 0.0
      %vm2403 = vcmp.gt.f32.partialorder %v2371, 0.0
      %vm2404 = vcmp.gt.f32.partialorder %v2372, 0.0
      %vm2405 = vcmp.gt.f32.partialorder %v2373, 0.0
      %vm2406 = vcmp.gt.f32.partialorder %v2374, 0.0
      %vm2407 = vcmp.gt.f32.partialorder %v2375, 0.0
      %vm2408 = vcmp.gt.f32.partialorder %v2376, 0.0
      %vm2409 = vcmp.gt.f32.partialorder %v2377, 0.0
      %vm2410 = vcmp.gt.f32.partialorder %v2378, 0.0
      %vm2411 = vcmp.gt.f32.partialorder %v2379, 0.0
      %vm2412 = vcmp.gt.f32.partialorder %v2380, 0.0
      %vm2413 = vcmp.gt.f32.partialorder %v2381, 0.0
      %vm2414 = vcmp.gt.f32.partialorder %v2382, 0.0
      %vm2415 = vcmp.gt.f32.partialorder %v2383, 0.0
      %vm2416 = vcmp.gt.f32.partialorder %v2384, 0.0
      %vm2417 = vcmp.gt.f32.partialorder %v2385, 0.0
      %vm2418 = vcmp.gt.f32.partialorder %v2386, 0.0
      %vm2419 = vcmp.gt.f32.partialorder %v2387, 0.0
      %vm2420 = vcmp.gt.f32.partialorder %v2388, 0.0
      %vm2421 = vcmp.gt.f32.partialorder %v2389, 0.0
      %vm2422 = vcmp.gt.f32.partialorder %v2390, 0.0
      %vm2423 = vcmp.gt.f32.partialorder %v2391, 0.0
      %vm2424 = vcmp.gt.f32.partialorder %v2392, 0.0
      %vm2425 = vcmp.gt.f32.partialorder %v2393, 0.0
      %vm2426 = vcmp.gt.f32.partialorder %v2394, 0.0
      %vm2427 = vcmp.gt.f32.partialorder %v2395, 0.0
      %vm2428 = vcmp.gt.f32.partialorder %v2396, 0.0
      %vm2429 = vcmp.gt.f32.partialorder %v2397, 0.0
      %vm2430 = vcmp.gt.f32.partialorder %v2398, 0.0
      %vm2431 = vcmp.gt.f32.partialorder %v2399, 0.0
      %vm2432 = vcmp.gt.f32.partialorder %v2400, 0.0
      %v2433 = vmul.f32 %v2369, 0.2
      %v2434 = vmul.f32 %v2370, 0.2
      %v2435 = vmul.f32 %v2371, 0.2
      %v2436 = vmul.f32 %v2372, 0.2
      %v2437 = vmul.f32 %v2373, 0.2
      %v2438 = vmul.f32 %v2374, 0.2
      %v2439 = vmul.f32 %v2375, 0.2
      %v2440 = vmul.f32 %v2376, 0.2
      %v2441 = vmul.f32 %v2377, 0.2
      %v2442 = vmul.f32 %v2378, 0.2
      %v2443 = vmul.f32 %v2379, 0.2
      %v2444 = vmul.f32 %v2380, 0.2
      %v2445 = vmul.f32 %v2381, 0.2
      %v2446 = vmul.f32 %v2382, 0.2
      %v2447 = vmul.f32 %v2383, 0.2
      %v2448 = vmul.f32 %v2384, 0.2
      %v2449 = vmul.f32 %v2385, 0.2
      %v2450 = vmul.f32 %v2386, 0.2
      %v2451 = vmul.f32 %v2387, 0.2
      %v2452 = vmul.f32 %v2388, 0.2
      %v2453 = vmul.f32 %v2389, 0.2
      %v2454 = vmul.f32 %v2390, 0.2
      %v2455 = vmul.f32 %v2391, 0.2
      %v2456 = vmul.f32 %v2392, 0.2
      %v2457 = vmul.f32 %v2393, 0.2
      %v2458 = vmul.f32 %v2394, 0.2
      %v2459 = vmul.f32 %v2395, 0.2
      %v2460 = vmul.f32 %v2396, 0.2
      %v2461 = vmul.f32 %v2397, 0.2
      %v2462 = vmul.f32 %v2398, 0.2
      %v2463 = vmul.f32 %v2399, 0.2
      %v2464 = vmul.f32 %v2400, 0.2
      %v2465 = vsel %vm2401, %v2369, %v2433
      %v2466 = vsel %vm2402, %v2370, %v2434
      %v2467 = vsel %vm2403, %v2371, %v2435
      %v2468 = vsel %vm2404, %v2372, %v2436
      %v2469 = vsel %vm2405, %v2373, %v2437
      %v2470 = vsel %vm2406, %v2374, %v2438
      %v2471 = vsel %vm2407, %v2375, %v2439
      %v2472 = vsel %vm2408, %v2376, %v2440
      %v2473 = vsel %vm2409, %v2377, %v2441
      %v2474 = vsel %vm2410, %v2378, %v2442
      %v2475 = vsel %vm2411, %v2379, %v2443
      %v2476 = vsel %vm2412, %v2380, %v2444
      %v2477 = vsel %vm2413, %v2381, %v2445
      %v2478 = vsel %vm2414, %v2382, %v2446
      %v2479 = vsel %vm2415, %v2383, %v2447
      %v2480 = vsel %vm2416, %v2384, %v2448
      %v2481 = vsel %vm2417, %v2385, %v2449
      %v2482 = vsel %vm2418, %v2386, %v2450
      %v2483 = vsel %vm2419, %v2387, %v2451
      %v2484 = vsel %vm2420, %v2388, %v2452
      %v2485 = vsel %vm2421, %v2389, %v2453
      %v2486 = vsel %vm2422, %v2390, %v2454
      %v2487 = vsel %vm2423, %v2391, %v2455
      %v2488 = vsel %vm2424, %v2392, %v2456
      %v2489 = vsel %vm2425, %v2393, %v2457
      %v2490 = vsel %vm2426, %v2394, %v2458
      %v2491 = vsel %vm2427, %v2395, %v2459
      %v2492 = vsel %vm2428, %v2396, %v2460
      %v2493 = vsel %vm2429, %v2397, %v2461
      %v2494 = vsel %vm2430, %v2398, %v2462
      %v2495 = vsel %vm2431, %v2399, %v2463
      %v2496 = vsel %vm2432, %v2400, %v2464
      %2497 = vst [vmem:[%s192] sm:$0xff] %v2465
      %2498 = vst [vmem:[%s192 + $0x8] sm:$0xff] %v2466
      %2499 = vst [vmem:[%s192 + $0x10] sm:$0xff] %v2467
      %2500 = vst [vmem:[%s192 + $0x18] sm:$0xff] %v2468
      %2501 = vst [vmem:[%s192 + $0x20] sm:$0xff] %v2469
      %2502 = vst [vmem:[%s192 + $0x28] sm:$0xff] %v2470
      %2503 = vst [vmem:[%s192 + $0x30] sm:$0xff] %v2471
      %2504 = vst [vmem:[%s192 + $0x38] sm:$0xff] %v2472
      %2505 = vst [vmem:[%s192 + $0x40] sm:$0xff] %v2473
      %2506 = vst [vmem:[%s192 + $0x48] sm:$0xff] %v2474
      %2507 = vst [vmem:[%s192 + $0x50] sm:$0xff] %v2475
      %2508 = vst [vmem:[%s192 + $0x58] sm:$0xff] %v2476
      %2509 = vst [vmem:[%s192 + $0x60] sm:$0xff] %v2477
      %2510 = vst [vmem:[%s192 + $0x68] sm:$0xff] %v2478
      %2511 = vst [vmem:[%s192 + $0x70] sm:$0xff] %v2479
      %2512 = vst [vmem:[%s192 + $0x78] sm:$0xff] %v2480
      %2513 = vst [vmem:[%s192 + $0x80] sm:$0xff] %v2481
      %2514 = vst [vmem:[%s192 + $0x88] sm:$0xff] %v2482
      %2515 = vst [vmem:[%s192 + $0x90] sm:$0xff] %v2483
      %2516 = vst [vmem:[%s192 + $0x98] sm:$0xff] %v2484
      %2517 = vst [vmem:[%s192 + $0xa0] sm:$0xff] %v2485
      %2518 = vst [vmem:[%s192 + $0xa8] sm:$0xff] %v2486
      %2519 = vst [vmem:[%s192 + $0xb0] sm:$0xff] %v2487
      %2520 = vst [vmem:[%s192 + $0xb8] sm:$0xff] %v2488
      %2521 = vst [vmem:[%s192 + $0xc0] sm:$0xff] %v2489
      %2522 = vst [vmem:[%s192 + $0xc8] sm:$0xff] %v2490
      %2523 = vst [vmem:[%s192 + $0xd0] sm:$0xff] %v2491
      %2524 = vst [vmem:[%s192 + $0xd8] sm:$0xff] %v2492
      %2525 = vst [vmem:[%s192 + $0xe0] sm:$0xff] %v2493
      %2526 = vst [vmem:[%s192 + $0xe8] sm:$0xff] %v2494
      %2527 = vst [vmem:[%s192 + $0xf0] sm:$0xff] %v2495
      %2528 = vst [vmem:[%s192 + $0xf8] sm:$0xff] %v2496
      %s2529 = smul.u32 32, %s19
      %p2530 = scmp.lt.s32.totalorder %s18, 1
      %s2531 = scalar_select %p2530, %s18, 1
      %p2532 = scmp.lt.s32.totalorder %s2529, 31
      %s2533 = scalar_select %p2532, %s2529, 31
      %s2534 = smul.addr %s2531, 32
      %s2535 = sadd.s32 %s2533, %s2534
      %s2536 = smul.addr %s2535, 8
      %s2537 = scalar_lea.vmem %s3, %s2536
      // Predicated region
      $region33: #{discriminator_forward.6} parent=31 // pred_check
        %p2538 = pneg %p114
      $region34: #{discriminator_forward.6} parent=31 // pred_check_branch
        %2540 = sbr.rel (%p2538) target = $region36
      $region35: #{discriminator_forward.6} parent=31 // pred_region
        %s2541 = smul.u32 32, %s19
      $region36: #{discriminator_forward.6} parent=31 // pred_fallthru
        _
    $region32: #{discriminator_forward.6} parent=5 // pred_fallthru
      _
    %p2542 = scmp.le.s32.totalorder 2, %s9
    // Predicated region
    $region37: #{discriminator_forward.6} parent=5 // pred_check
      %p2543 = pneg %p2542
    $region38: #{discriminator_forward.6} parent=5 // pred_check_branch
      %2545 = sbr.rel (%p2543) target = $region40
    $region39: #{discriminator_forward.6} parent=5 // pred_region
      %s2546 = ssub.s32 %s9, 2
      // Predicated region
      $region41: #{discriminator_forward.6} parent=39 // pred_check
        %p2547 = pneg %p120
      $region42: #{discriminator_forward.6} parent=39 // pred_check_branch
        %2549 = sbr.rel (%p2547) target = $region44
      $region43: #{discriminator_forward.6} parent=39 // pred_region
        %s2550 = smul.u32 32, %s21
        %p2551 = scmp.lt.s32.totalorder %s20, 1
        %s2552 = scalar_select %p2551, %s20, 1
        %p2553 = scmp.lt.s32.totalorder %s2550, 31
        %s2554 = scalar_select %p2553, %s2550, 31
        %s2555 = smul.addr %s2552, 32
        %s2556 = sadd.s32 %s2554, %s2555
        %s2557 = smul.addr %s2556, 8
        %s2558 = scalar_lea.vmem %s3, %s2557
      $region44: #{discriminator_forward.6} parent=39 // pred_fallthru
        _
    $region40: #{discriminator_forward.6} parent=5 // pred_fallthru
      _
  $region6: #{discriminator_forward.6} parent=0 // loop_footer
    %s13 = sadd.s32 1, %s9
  $region7: #{discriminator_forward.6} parent=0 // loop_footer_branch
    %8 = sbr.rel target = $region3
  $region8: #{discriminator_forward.6} parent=0 // loop_exit
    _

// kernel: discriminator_forward.7
$region0: #{discriminator_forward.7}
  #allocation0 [shape = 'u32[]', space=smem, size = 0x4, offset = 0x4, fixed_abs, tag = 'smem constant byte address 0x4 - core index']
  #allocation1 [shape = 'u32[144,128]{1,0:T(1,128)}', space=vmem, size = 0x12000, scoped, tag = 'internal scratch']
  %s0 = inlined_call_operand.vmem [shape: bf16[2,2,72,512], index: 0, kind: input, shape index: {}]
  %s1 = inlined_call_operand.vmem [shape: bf16[4,512,256], index: 1, kind: input, shape index: {}]
  %s2 = inlined_call_operand.vmem [shape: f32[1,256], index: 2, kind: input, shape index: {}]
  %s3 = inlined_call_operand.vmem [shape: f32[2,64,256], index: 3, kind: output, shape index: {}]
  %s4 = sld [smem:[#allocation0]]
  $region45: #{discriminator_forward.7} parent=0
    _
  %s6 = ssub.s32 1, %s4
  %s7 = scalar_select 0, %s6, %s4
  loop: start=0, step=1, limit=4
  $region2: #{discriminator_forward.7} parent=0 // loop_pre_header
    _
  $region3: #{discriminator_forward.7} parent=0 // loop_header
    %s9 = sphi 0, %s13
    %p10 = scmp.ge.s32.totalorder %s9, 4
    %s16 = sphi 0, %s28
    %s17 = sphi 0, %s24
    %s18 = sphi 0, %s16
    %s19 = sphi 0, %s17
    %s20 = sphi 0, %s18
    %s21 = sphi 0, %s19
    %s31 = sphi 0, %s33
    %s34 = sphi 0, %s31
    %s35 = sphi 0, %s34
    %s51 = sphi 0, %s35
    %s55 = sphi 0, %s55
    %s57 = sphi 0, %s55
    %s58 = sphi 0, %s57
    %s72 = sphi 0, %s58
    %s76 = sphi 0, %s76
    %s78 = sphi 0, %s76
    %s79 = sphi 0, %s78
    %s93 = sphi 0, %s79
    %s101 = sphi 0, %s103
    %s104 = sphi 0, %s101
    %s105 = sphi 0, %s104
    %s121 = sphi 0, %s105
  $region4: #{discriminator_forward.7} parent=0 // loop_header_branch
    %12 = sbr.rel (%p10) target = $region8
  $region5: #{discriminator_forward.7} parent=0 // loop_body
    %s14 = ssub.s32 %s9, 1
    %s15 = ssub.s32 %s9, 2
    %s22 = sadd.s32 1, %s17
    %p23 = scmp.ge.s32.totalorder %s22, 1
    %s24 = scalar_select %p23, 0, %s22
    %s25 = sadd.s32 1, %s16
    %s26 = scalar_select %p23, %s25, %s16
    %p27 = scmp.ge.s32.totalorder %s26, 2
    %s28 = scalar_select %p27, 0, %s26
    %s29 = ssub.s32 %s16, %s28
    %p30 = scmp.eq.s32.totalorder %s29, 0
    %s32 = sadd.s32 %s31, 1
    %s33 = scalar_select %p30, %s31, %s32
    %p36 = pneg %p30
    %p37 = scmp.eq.s32.totalorder %s9, 1
    %p38 = por %p36, %p37
    %p39 = scmp.ne.s32.totalorder %s31, %s34
    %p40 = scmp.eq.s32.totalorder %s9, 0
    %p41 = por %p39, %p40
    %p42 = scmp.ne.s32.totalorder %s31, %s34
    %p43 = scmp.eq.s32.totalorder %s14, 1
    %p44 = por %p42, %p43
    %p45 = scmp.ne.s32.totalorder %s34, %s35
    %p46 = scmp.eq.s32.totalorder %s14, 0
    %p47 = por %p45, %p46
    %p48 = scmp.ne.s32.totalorder %s34, %s35
    %p49 = scmp.eq.s32.totalorder %s15, 1
    %p50 = por %p48, %p49
    %p52 = scmp.ne.s32.totalorder %s35, %s51
    %p53 = scmp.eq.s32.totalorder %s15, 0
    %p54 = por %p52, %p53
    %s56 = sadd.s32 %s55, 1
    %p59 = scmp.eq.s32.totalorder %s9, 1
    %p60 = scmp.ne.s32.totalorder %s55, %s57
    %p61 = scmp.eq.s32.totalorder %s9, 0
    %p62 = por %p60, %p61
    %p63 = scmp.ne.s32.totalorder %s55, %s57
    %p64 = scmp.eq.s32.totalorder %s14, 1
    %p65 = por %p63, %p64
    %p66 = scmp.ne.s32.totalorder %s57, %s58
    %p67 = scmp.eq.s32.totalorder %s14, 0
    %p68 = por %p66, %p67
    %p69 = scmp.ne.s32.totalorder %s57, %s58
    %p70 = scmp.eq.s32.totalorder %s15, 1
    %p71 = por %p69, %p70
    %p73 = scmp.ne.s32.totalorder %s58, %s72
    %p74 = scmp.eq.s32.totalorder %s15, 0
    %p75 = por %p73, %p74
    %s77 = sadd.s32 %s76, 1
    %p80 = scmp.eq.s32.totalorder %s9, 1
    %p81 = scmp.ne.s32.totalorder %s76, %s78
    %p82 = scmp.eq.s32.totalorder %s9, 0
    %p83 = por %p81, %p82
    %p84 = scmp.ne.s32.totalorder %s76, %s78
    %p85 = scmp.eq.s32.totalorder %s14, 1
    %p86 = por %p84, %p85
    %p87 = scmp.ne.s32.totalorder %s78, %s79
    %p88 = scmp.eq.s32.totalorder %s14, 0
    %p89 = por %p87, %p88
    %p90 = scmp.ne.s32.totalorder %s78, %s79
    %p91 = scmp.eq.s32.totalorder %s15, 1
    %p92 = por %p90, %p91
    %p94 = scmp.ne.s32.totalorder %s79, %s93
    %p95 = scmp.eq.s32.totalorder %s15, 0
    %p96 = por %p94, %p95
    %s97 = ssub.s32 %s16, %s28
    %s98 = ssub.s32 %s17, %s24
    %s99 = sor.u32 %s97, %s98
    %p100 = scmp.eq.s32.totalorder %s99, 0
    %s102 = sadd.s32 %s101, 1
    %s103 = scalar_select %p100, %s101, %s102
    %p106 = pneg %p100
    %p107 = scmp.eq.s32.totalorder %s9, 1
    %p108 = por %p106, %p107
    %p109 = scmp.ne.s32.totalorder %s101, %s104
    %p110 = scmp.eq.s32.totalorder %s9, 0
    %p111 = por %p109, %p110
    %p112 = scmp.ne.s32.totalorder %s101, %s104
    %p113 = scmp.eq.s32.totalorder %s14, 1
    %p114 = por %p112, %p113
    %p115 = scmp.ne.s32.totalorder %s104, %s105
    %p116 = scmp.eq.s32.totalorder %s14, 0
    %p117 = por %p115, %p116
    %p118 = scmp.ne.s32.totalorder %s104, %s105
    %p119 = scmp.eq.s32.totalorder %s15, 1
    %p120 = por %p118, %p119
    %p122 = scmp.ne.s32.totalorder %s105, %s121
    %p123 = scmp.eq.s32.totalorder %s15, 0
    %p124 = por %p122, %p123
    %p125 = scmp.le.s32.totalorder 1, %s9
    %p126 = scmp.lt.s32.totalorder %s9, 3
    %p127 = pnand %p125, %p126
    %p128 = pneg %p127
    // Predicated region
    $region9: #{discriminator_forward.7} parent=5 // pred_check
      _
    $region10: #{discriminator_forward.7} parent=5 // pred_check_branch
      %130 = sbr.rel (%p127) target = $region12
    $region11: #{discriminator_forward.7} parent=5 // pred_region
      %s131 = ssub.s32 %s9, 1
      // Predicated region
      $region13: #{discriminator_forward.7} parent=11 // pred_check
        %p132 = pneg %p68
      $region14: #{discriminator_forward.7} parent=11 // pred_check_branch
        %134 = sbr.rel (%p132) target = $region16
      $region15: #{discriminator_forward.7} parent=11 // pred_region
        _
      $region16: #{discriminator_forward.7} parent=11 // pred_fallthru
        _
      // Predicated region
      $region17: #{discriminator_forward.7} parent=11 // pred_check
        %p135 = pneg %p89
      $region18: #{discriminator_forward.7} parent=11 // pred_check_branch
        %137 = sbr.rel (%p135) target = $region20
      $region19: #{discriminator_forward.7} parent=11 // pred_region
        _
      $region20: #{discriminator_forward.7} parent=11 // pred_fallthru
        _
    $region12: #{discriminator_forward.7} parent=5 // pred_fallthru
      _
    %p138 = scmp.lt.s32.totalorder %s9, 2
    // Predicated region
    $region21: #{discriminator_forward.7} parent=5 // pred_check
      %p139 = pneg %p138
    $region22: #{discriminator_forward.7} parent=5 // pred_check_branch
      %141 = sbr.rel (%p139) target = $region24
    $region23: #{discriminator_forward.7} parent=5 // pred_region
      // Predicated region
      $region25: #{discriminator_forward.7} parent=23 // pred_check
        %p142 = pneg %p41
      $region26: #{discriminator_forward.7} parent=23 // pred_check_branch
        %144 = sbr.rel (%p142) target = $region28
      $region27: #{discriminator_forward.7} parent=23 // pred_region
        %p145 = scmp.lt.s32.totalorder %s16, 1
        %s146 = scalar_select %p145, %s16, 1
        %s147 = smul.addr %s146, 72
        %s148 = smul.addr %s147, 4
        %s149 = scalar_lea.vmem %s0, %s148
      $region28: #{discriminator_forward.7} parent=23 // pred_fallthru
        _
    $region24: #{discriminator_forward.7} parent=5 // pred_fallthru
      _
    %p150 = scmp.le.s32.totalorder 1, %s9
    %p151 = scmp.lt.s32.totalorder %s9, 3
    %p152 = pnand %p150, %p151
    %p153 = pneg %p152
    // Predicated region
    $region29: #{discriminator_forward.7} parent=5 // pred_check
      _
    $region30: #{discriminator_forward.7} parent=5 // pred_check_branch
      %155 = sbr.rel (%p152) target = $region32
    $region31: #{discriminator_forward.7} parent=5 // pred_region
      %s156 = ssub.s32 %s9, 1
      %p157 = scmp.lt.s32.totalorder %s18, 1
      %s158 = scalar_select %p157, %s18, 1
      %s159 = smul.addr %s158, 72
      %s160 = smul.addr %s159, 4
      %s161 = scalar_lea.vmem %s0, %s160
      %p162 = pneg %p47
      %p163 = pneg %p44
      %p164 = pneg %p68
      %p165 = pneg %p65
      %p166 = pneg %p89
      %p167 = pneg %p86
      %p168 = pneg %p117
      %p169 = pneg %p114
      %s170 = smul.u32 8, %s19
      %p171 = scmp.lt.s32.totalorder %s18, 1
      %s172 = scalar_select %p171, %s18, 1
      %p173 = scmp.lt.s32.totalorder %s170, 7
      %s174 = scalar_select %p173, %s170, 7
      %s175 = smul.addr %s174, 2
      %s176 = smul.addr %s172, 16
      %s177 = sadd.s32 %s175, %s176
      %s178 = smul.addr %s177, 8
      %s179 = scalar_lea.vmem %s3, %s178
      %p180 = scmp.lt.s32.totalorder %s18, 1
      %s181 = scalar_select %p180, %s18, 1
      %s182 = smul.addr %s181, 72
      %s183 = smul.addr %s182, 4
      %s184 = scalar_lea.vmem %s0, %s183
      %s185 = smul.u32 8, %s19
      %p186 = scmp.lt.s32.totalorder %s18, 1
      %s187 = scalar_select %p186, %s18, 1
      %p188 = scmp.lt.s32.totalorder %s185, 7
      %s189 = scalar_select %p188, %s185, 7
      %s190 = smul.addr %s189, 2
      %s191 = smul.addr %s187, 16
      %s192 = sadd.s32 %s190, %s191
      %s193 = smul.addr %s192, 8
      %s194 = scalar_lea.vmem %s3, %s193
      %s195 = smul.u32 8, %s19
      %v196 = vld [vmem:[%s184] sm:$0xff]
      %v197 = vld [vmem:[%s184 + $0x8] sm:$0xff]
      %v198 = vld [vmem:[%s184 + $0x10] sm:$0xff]
      %v199 = vld [vmem:[%s184 + $0x18] sm:$0xff]
      %v200 = vld [vmem:[%s184 + $0x20] sm:$0xff]
      %v201 = vld [vmem:[%s184 + $0x28] sm:$0xff]
      %v202 = vld [vmem:[%s184 + $0x30] sm:$0xff]
      %v203 = vld [vmem:[%s184 + $0x38] sm:$0xff]
      %v204 = vld [vmem:[%s184 + $0x40] sm:$0xff]
      %v205 = vld [vmem:[%s184 + $0x48] sm:$0xff]
      %v206 = vld [vmem:[%s184 + $0x50] sm:$0xff]
      %v207 = vld [vmem:[%s184 + $0x58] sm:$0xff]
      %v208 = vld [vmem:[%s184 + $0x60] sm:$0xff]
      %v209 = vld [vmem:[%s184 + $0x68] sm:$0xff]
      %v210 = vld [vmem:[%s184 + $0x70] sm:$0xff]
      %v211 = vld [vmem:[%s184 + $0x78] sm:$0xff]
      %v212 = vld [vmem:[%s1] sm:$0xff]
      %v213 = vld [vmem:[%s1 + $0x8] sm:$0xff]
      %v214 = vld [vmem:[%s1 + $0x10] sm:$0xff]
      %v215 = vld [vmem:[%s1 + $0x18] sm:$0xff]
      %v216 = vld [vmem:[%s1 + $0x20] sm:$0xff]
      %v217 = vld [vmem:[%s1 + $0x28] sm:$0xff]
      %v218 = vld [vmem:[%s1 + $0x30] sm:$0xff]
      %v219 = vld [vmem:[%s1 + $0x38] sm:$0xff]
      %v220 = vld [vmem:[%s1 + $0x40] sm:$0xff]
      %v221 = vld [vmem:[%s1 + $0x48] sm:$0xff]
      %v222 = vld [vmem:[%s1 + $0x50] sm:$0xff]
      %v223 = vld [vmem:[%s1 + $0x58] sm:$0xff]
      %v224 = vld [vmem:[%s1 + $0x60] sm:$0xff]
      %v225 = vld [vmem:[%s1 + $0x68] sm:$0xff]
      %v226 = vld [vmem:[%s1 + $0x70] sm:$0xff]
      %v227 = vld [vmem:[%s1 + $0x78] sm:$0xff]
      %v228 = vld [vmem:[%s1 + $0x80] sm:$0xff]
      %v229 = vld [vmem:[%s1 + $0x88] sm:$0xff]
      %v230 = vld [vmem:[%s1 + $0x90] sm:$0xff]
      %v231 = vld [vmem:[%s1 + $0x98] sm:$0xff]
      %v232 = vld [vmem:[%s1 + $0xa0] sm:$0xff]
      %v233 = vld [vmem:[%s1 + $0xa8] sm:$0xff]
      %v234 = vld [vmem:[%s1 + $0xb0] sm:$0xff]
      %v235 = vld [vmem:[%s1 + $0xb8] sm:$0xff]
      %v236 = vld [vmem:[%s1 + $0xc0] sm:$0xff]
      %v237 = vld [vmem:[%s1 + $0xc8] sm:$0xff]
      %v238 = vld [vmem:[%s1 + $0xd0] sm:$0xff]
      %v239 = vld [vmem:[%s1 + $0xd8] sm:$0xff]
      %v240 = vld [vmem:[%s1 + $0xe0] sm:$0xff]
      %v241 = vld [vmem:[%s1 + $0xe8] sm:$0xff]
      %v242 = vld [vmem:[%s1 + $0xf0] sm:$0xff]
      %v243 = vld [vmem:[%s1 + $0xf8] sm:$0xff]
      %v244 = vld [vmem:[%s1 + $0x100] sm:$0xff]
      %v245 = vld [vmem:[%s1 + $0x108] sm:$0xff]
      %v246 = vld [vmem:[%s1 + $0x110] sm:$0xff]
      %v247 = vld [vmem:[%s1 + $0x118] sm:$0xff]
      %v248 = vld [vmem:[%s1 + $0x120] sm:$0xff]
      %v249 = vld [vmem:[%s1 + $0x128] sm:$0xff]
      %v250 = vld [vmem:[%s1 + $0x130] sm:$0xff]
      %v251 = vld [vmem:[%s1 + $0x138] sm:$0xff]
      %v252 = vld [vmem:[%s1 + $0x140] sm:$0xff]
      %v253 = vld [vmem:[%s1 + $0x148] sm:$0xff]
      %v254 = vld [vmem:[%s1 + $0x150] sm:$0xff]
      %v255 = vld [vmem:[%s1 + $0x158] sm:$0xff]
      %v256 = vld [vmem:[%s1 + $0x160] sm:$0xff]
      %v257 = vld [vmem:[%s1 + $0x168] sm:$0xff]
      %v258 = vld [vmem:[%s1 + $0x170] sm:$0xff]
      %v259 = vld [vmem:[%s1 + $0x178] sm:$0xff]
      %v260 = vld [vmem:[%s1 + $0x180] sm:$0xff]
      %v261 = vld [vmem:[%s1 + $0x188] sm:$0xff]
      %v262 = vld [vmem:[%s1 + $0x190] sm:$0xff]
      %v263 = vld [vmem:[%s1 + $0x198] sm:$0xff]
      %v264 = vld [vmem:[%s1 + $0x1a0] sm:$0xff]
      %v265 = vld [vmem:[%s1 + $0x1a8] sm:$0xff]
      %v266 = vld [vmem:[%s1 + $0x1b0] sm:$0xff]
      %v267 = vld [vmem:[%s1 + $0x1b8] sm:$0xff]
      %v268 = vld [vmem:[%s1 + $0x1c0] sm:$0xff]
      %v269 = vld [vmem:[%s1 + $0x1c8] sm:$0xff]
      %v270 = vld [vmem:[%s1 + $0x1d0] sm:$0xff]
      %v271 = vld [vmem:[%s1 + $0x1d8] sm:$0xff]
      %v272 = vld [vmem:[%s1 + $0x1e0] sm:$0xff]
      %v273 = vld [vmem:[%s1 + $0x1e8] sm:$0xff]
      %v274 = vld [vmem:[%s1 + $0x1f0] sm:$0xff]
      %v275 = vld [vmem:[%s1 + $0x1f8] sm:$0xff]
      %s276 = scalar_lea.vmem %s184, 144
      %v277 = vld [vmem:[%s276] sm:$0xff]
      %v278 = vld [vmem:[%s276 + $0x8] sm:$0xff]
      %v279 = vld [vmem:[%s276 + $0x10] sm:$0xff]
      %v280 = vld [vmem:[%s276 + $0x18] sm:$0xff]
      %v281 = vld [vmem:[%s276 + $0x20] sm:$0xff]
      %v282 = vld [vmem:[%s276 + $0x28] sm:$0xff]
      %v283 = vld [vmem:[%s276 + $0x30] sm:$0xff]
      %v284 = vld [vmem:[%s276 + $0x38] sm:$0xff]
      %v285 = vld [vmem:[%s276 + $0x40] sm:$0xff]
      %v286 = vld [vmem:[%s276 + $0x48] sm:$0xff]
      %v287 = vld [vmem:[%s276 + $0x50] sm:$0xff]
      %v288 = vld [vmem:[%s276 + $0x58] sm:$0xff]
      %v289 = vld [vmem:[%s276 + $0x60] sm:$0xff]
      %v290 = vld [vmem:[%s276 + $0x68] sm:$0xff]
      %v291 = vld [vmem:[%s276 + $0x70] sm:$0xff]
      %v292 = vld [vmem:[%s276 + $0x78] sm:$0xff]
      %s293 = scalar_lea.vmem %s1, 512
      %v294 = vld [vmem:[%s293] sm:$0xff]
      %v295 = vld [vmem:[%s293 + $0x8] sm:$0xff]
      %v296 = vld [vmem:[%s293 + $0x10] sm:$0xff]
      %v297 = vld [vmem:[%s293 + $0x18] sm:$0xff]
      %v298 = vld [vmem:[%s293 + $0x20] sm:$0xff]
      %v299 = vld [vmem:[%s293 + $0x28] sm:$0xff]
      %v300 = vld [vmem:[%s293 + $0x30] sm:$0xff]
      %v301 = vld [vmem:[%s293 + $0x38] sm:$0xff]
      %v302 = vld [vmem:[%s293 + $0x40] sm:$0xff]
      %v303 = vld [vmem:[%s293 + $0x48] sm:$0xff]
      %v304 = vld [vmem:[%s293 + $0x50] sm:$0xff]
      %v305 = vld [vmem:[%s293 + $0x58] sm:$0xff]
      %v306 = vld [vmem:[%s293 + $0x60] sm:$0xff]
      %v307 = vld [vmem:[%s293 + $0x68] sm:$0xff]
      %v308 = vld [vmem:[%s293 + $0x70] sm:$0xff]
      %v309 = vld [vmem:[%s293 + $0x78] sm:$0xff]
      %v310 = vld [vmem:[%s293 + $0x80] sm:$0xff]
      %v311 = vld [vmem:[%s293 + $0x88] sm:$0xff]
      %v312 = vld [vmem:[%s293 + $0x90] sm:$0xff]
      %v313 = vld [vmem:[%s293 + $0x98] sm:$0xff]
      %v314 = vld [vmem:[%s293 + $0xa0] sm:$0xff]
      %v315 = vld [vmem:[%s293 + $0xa8] sm:$0xff]
      %v316 = vld [vmem:[%s293 + $0xb0] sm:$0xff]
      %v317 = vld [vmem:[%s293 + $0xb8] sm:$0xff]
      %v318 = vld [vmem:[%s293 + $0xc0] sm:$0xff]
      %v319 = vld [vmem:[%s293 + $0xc8] sm:$0xff]
      %v320 = vld [vmem:[%s293 + $0xd0] sm:$0xff]
      %v321 = vld [vmem:[%s293 + $0xd8] sm:$0xff]
      %v322 = vld [vmem:[%s293 + $0xe0] sm:$0xff]
      %v323 = vld [vmem:[%s293 + $0xe8] sm:$0xff]
      %v324 = vld [vmem:[%s293 + $0xf0] sm:$0xff]
      %v325 = vld [vmem:[%s293 + $0xf8] sm:$0xff]
      %v326 = vld [vmem:[%s293 + $0x100] sm:$0xff]
      %v327 = vld [vmem:[%s293 + $0x108] sm:$0xff]
      %v328 = vld [vmem:[%s293 + $0x110] sm:$0xff]
      %v329 = vld [vmem:[%s293 + $0x118] sm:$0xff]
      %v330 = vld [vmem:[%s293 + $0x120] sm:$0xff]
      %v331 = vld [vmem:[%s293 + $0x128] sm:$0xff]
      %v332 = vld [vmem:[%s293 + $0x130] sm:$0xff]
      %v333 = vld [vmem:[%s293 + $0x138] sm:$0xff]
      %v334 = vld [vmem:[%s293 + $0x140] sm:$0xff]
      %v335 = vld [vmem:[%s293 + $0x148] sm:$0xff]
      %v336 = vld [vmem:[%s293 + $0x150] sm:$0xff]
      %v337 = vld [vmem:[%s293 + $0x158] sm:$0xff]
      %v338 = vld [vmem:[%s293 + $0x160] sm:$0xff]
      %v339 = vld [vmem:[%s293 + $0x168] sm:$0xff]
      %v340 = vld [vmem:[%s293 + $0x170] sm:$0xff]
      %v341 = vld [vmem:[%s293 + $0x178] sm:$0xff]
      %v342 = vld [vmem:[%s293 + $0x180] sm:$0xff]
      %v343 = vld [vmem:[%s293 + $0x188] sm:$0xff]
      %v344 = vld [vmem:[%s293 + $0x190] sm:$0xff]
      %v345 = vld [vmem:[%s293 + $0x198] sm:$0xff]
      %v346 = vld [vmem:[%s293 + $0x1a0] sm:$0xff]
      %v347 = vld [vmem:[%s293 + $0x1a8] sm:$0xff]
      %v348 = vld [vmem:[%s293 + $0x1b0] sm:$0xff]
      %v349 = vld [vmem:[%s293 + $0x1b8] sm:$0xff]
      %v350 = vld [vmem:[%s293 + $0x1c0] sm:$0xff]
      %v351 = vld [vmem:[%s293 + $0x1c8] sm:$0xff]
      %v352 = vld [vmem:[%s293 + $0x1d0] sm:$0xff]
      %v353 = vld [vmem:[%s293 + $0x1d8] sm:$0xff]
      %v354 = vld [vmem:[%s293 + $0x1e0] sm:$0xff]
      %v355 = vld [vmem:[%s293 + $0x1e8] sm:$0xff]
      %v356 = vld [vmem:[%s293 + $0x1f0] sm:$0xff]
      %v357 = vld [vmem:[%s293 + $0x1f8] sm:$0xff]
      %v374 = vunpack.c.l.b16 %v277
      %v375 = vunpack.c.h.b16 %v277
      %v376 = vunpack.c.l.b16 %v278
      %v377 = vunpack.c.h.b16 %v278
      %v378 = vunpack.c.l.b16 %v279
      %v379 = vunpack.c.h.b16 %v279
      %v380 = vunpack.c.l.b16 %v280
      %v381 = vunpack.c.h.b16 %v280
      %v382 = vunpack.c.l.b16 %v281
      %v383 = vunpack.c.h.b16 %v281
      %v384 = vunpack.c.l.b16 %v282
      %v385 = vunpack.c.h.b16 %v282
      %v386 = vunpack.c.l.b16 %v283
      %v387 = vunpack.c.h.b16 %v283
      %v388 = vunpack.c.l.b16 %v284
      %v389 = vunpack.c.h.b16 %v284
      %v390 = vunpack.c.l.b16 %v285
      %v391 = vunpack.c.h.b16 %v285
      %v392 = vunpack.c.l.b16 %v286
      %v393 = vunpack.c.h.b16 %v286
      %v394 = vunpack.c.l.b16 %v287
      %v395 = vunpack.c.h.b16 %v287
      %v396 = vunpack.c.l.b16 %v288
      %v397 = vunpack.c.h.b16 %v288
      %v398 = vunpack.c.l.b16 %v289
      %v399 = vunpack.c.h.b16 %v289
      %v400 = vunpack.c.l.b16 %v290
      %v401 = vunpack.c.h.b16 %v290
      %v402 = vunpack.c.l.b16 %v291
      %v403 = vunpack.c.h.b16 %v291
      %v404 = vunpack.c.l.b16 %v292
      %v405 = vunpack.c.h.b16 %v292
      %v406 = vpack.c.b16 %v378, %v374
      %v407 = vpack.c.b16 %v379, %v375
      %v408 = vpack.c.b16 %v380, %v376
      %v409 = vpack.c.b16 %v381, %v377
      %v410 = vpack.c.b16 %v386, %v382
      %v411 = vpack.c.b16 %v387, %v383
      %v412 = vpack.c.b16 %v388, %v384
      %v413 = vpack.c.b16 %v389, %v385
      %v414 = vpack.c.b16 %v394, %v390
      %v415 = vpack.c.b16 %v395, %v391
      %v416 = vpack.c.b16 %v396, %v392
      %v417 = vpack.c.b16 %v397, %v393
      %v418 = vpack.c.b16 %v402, %v398
      %v419 = vpack.c.b16 %v403, %v399
      %v420 = vpack.c.b16 %v404, %v400
      %v421 = vpack.c.b16 %v405, %v401
      %v502 = vunpack.c.l.b16 %v294
      %v503 = vunpack.c.h.b16 %v294
      %v504 = vunpack.c.l.b16 %v295
      %v505 = vunpack.c.h.b16 %v295
      %v506 = vunpack.c.l.b16 %v296
      %v507 = vunpack.c.h.b16 %v296
      %v508 = vunpack.c.l.b16 %v297
      %v509 = vunpack.c.h.b16 %v297
      %v510 = vunpack.c.l.b16 %v298
      %v511 = vunpack.c.h.b16 %v298
      %v512 = vunpack.c.l.b16 %v299
      %v513 = vunpack.c.h.b16 %v299
      %v514 = vunpack.c.l.b16 %v300
      %v515 = vunpack.c.h.b16 %v300
      %v516 = vunpack.c.l.b16 %v301
      %v517 = vunpack.c.h.b16 %v301
      %v518 = vunpack.c.l.b16 %v302
      %v519 = vunpack.c.h.b16 %v302
      %v520 = vunpack.c.l.b16 %v303
      %v521 = vunpack.c.h.b16 %v303
      %v522 = vunpack.c.l.b16 %v304
      %v523 = vunpack.c.h.b16 %v304
      %v524 = vunpack.c.l.b16 %v305
      %v525 = vunpack.c.h.b16 %v305
      %v526 = vunpack.c.l.b16 %v306
      %v527 = vunpack.c.h.b16 %v306
      %v528 = vunpack.c.l.b16 %v307
      %v529 = vunpack.c.h.b16 %v307
      %v530 = vunpack.c.l.b16 %v308
      %v531 = vunpack.c.h.b16 %v308
      %v532 = vunpack.c.l.b16 %v309
      %v533 = vunpack.c.h.b16 %v309
      %v534 = vunpack.c.l.b16 %v310
      %v535 = vunpack.c.h.b16 %v310
      %v536 = vunpack.c.l.b16 %v311
      %v537 = vunpack.c.h.b16 %v311
      %v538 = vunpack.c.l.b16 %v312
      %v539 = vunpack.c.h.b16 %v312
      %v540 = vunpack.c.l.b16 %v313
      %v541 = vunpack.c.h.b16 %v313
      %v542 = vunpack.c.l.b16 %v314
      %v543 = vunpack.c.h.b16 %v314
      %v544 = vunpack.c.l.b16 %v315
      %v545 = vunpack.c.h.b16 %v315
      %v546 = vunpack.c.l.b16 %v316
      %v547 = vunpack.c.h.b16 %v316
      %v548 = vunpack.c.l.b16 %v317
      %v549 = vunpack.c.h.b16 %v317
      %v550 = vunpack.c.l.b16 %v318
      %v551 = vunpack.c.h.b16 %v318
      %v552 = vunpack.c.l.b16 %v319
      %v553 = vunpack.c.h.b16 %v319
      %v554 = vunpack.c.l.b16 %v320
      %v555 = vunpack.c.h.b16 %v320
      %v556 = vunpack.c.l.b16 %v321
      %v557 = vunpack.c.h.b16 %v321
      %v558 = vunpack.c.l.b16 %v322
      %v559 = vunpack.c.h.b16 %v322
      %v560 = vunpack.c.l.b16 %v323
      %v561 = vunpack.c.h.b16 %v323
      %v562 = vunpack.c.l.b16 %v324
      %v563 = vunpack.c.h.b16 %v324
      %v564 = vunpack.c.l.b16 %v325
      %v565 = vunpack.c.h.b16 %v325
      %v566 = vunpack.c.l.b16 %v326
      %v567 = vunpack.c.h.b16 %v326
      %v568 = vunpack.c.l.b16 %v327
      %v569 = vunpack.c.h.b16 %v327
      %v570 = vunpack.c.l.b16 %v328
      %v571 = vunpack.c.h.b16 %v328
      %v572 = vunpack.c.l.b16 %v329
      %v573 = vunpack.c.h.b16 %v329
      %v574 = vunpack.c.l.b16 %v330
      %v575 = vunpack.c.h.b16 %v330
      %v576 = vunpack.c.l.b16 %v331
      %v577 = vunpack.c.h.b16 %v331
      %v578 = vunpack.c.l.b16 %v332
      %v579 = vunpack.c.h.b16 %v332
      %v580 = vunpack.c.l.b16 %v333
      %v581 = vunpack.c.h.b16 %v333
      %v582 = vunpack.c.l.b16 %v334
      %v583 = vunpack.c.h.b16 %v334
      %v584 = vunpack.c.l.b16 %v335
      %v585 = vunpack.c.h.b16 %v335
      %v586 = vunpack.c.l.b16 %v336
      %v587 = vunpack.c.h.b16 %v336
      %v588 = vunpack.c.l.b16 %v337
      %v589 = vunpack.c.h.b16 %v337
      %v590 = vunpack.c.l.b16 %v338
      %v591 = vunpack.c.h.b16 %v338
      %v592 = vunpack.c.l.b16 %v339
      %v593 = vunpack.c.h.b16 %v339
      %v594 = vunpack.c.l.b16 %v340
      %v595 = vunpack.c.h.b16 %v340
      %v596 = vunpack.c.l.b16 %v341
      %v597 = vunpack.c.h.b16 %v341
      %v598 = vunpack.c.l.b16 %v342
      %v599 = vunpack.c.h.b16 %v342
      %v600 = vunpack.c.l.b16 %v343
      %v601 = vunpack.c.h.b16 %v343
      %v602 = vunpack.c.l.b16 %v344
      %v603 = vunpack.c.h.b16 %v344
      %v604 = vunpack.c.l.b16 %v345
      %v605 = vunpack.c.h.b16 %v345
      %v606 = vunpack.c.l.b16 %v346
      %v607 = vunpack.c.h.b16 %v346
      %v608 = vunpack.c.l.b16 %v347
      %v609 = vunpack.c.h.b16 %v347
      %v610 = vunpack.c.l.b16 %v348
      %v611 = vunpack.c.h.b16 %v348
      %v612 = vunpack.c.l.b16 %v349
      %v613 = vunpack.c.h.b16 %v349
      %v614 = vunpack.c.l.b16 %v350
      %v615 = vunpack.c.h.b16 %v350
      %v616 = vunpack.c.l.b16 %v351
      %v617 = vunpack.c.h.b16 %v351
      %v618 = vunpack.c.l.b16 %v352
      %v619 = vunpack.c.h.b16 %v352
      %v620 = vunpack.c.l.b16 %v353
      %v621 = vunpack.c.h.b16 %v353
      %v622 = vunpack.c.l.b16 %v354
      %v623 = vunpack.c.h.b16 %v354
      %v624 = vunpack.c.l.b16 %v355
      %v625 = vunpack.c.h.b16 %v355
      %v626 = vunpack.c.l.b16 %v356
      %v627 = vunpack.c.h.b16 %v356
      %v628 = vunpack.c.l.b16 %v357
      %v629 = vunpack.c.h.b16 %v357
      %v630 = vpack.c.b16 %v504, %v502
      %v631 = vpack.c.b16 %v505, %v503
      %v632 = vpack.c.b16 %v508, %v506
      %v633 = vpack.c.b16 %v509, %v507
      %v634 = vpack.c.b16 %v512, %v510
      %v635 = vpack.c.b16 %v513, %v511
      %v636 = vpack.c.b16 %v516, %v514
      %v637 = vpack.c.b16 %v517, %v515
      %v638 = vpack.c.b16 %v520, %v518
      %v639 = vpack.c.b16 %v521, %v519
      %v640 = vpack.c.b16 %v524, %v522
      %v641 = vpack.c.b16 %v525, %v523
      %v642 = vpack.c.b16 %v528, %v526
      %v643 = vpack.c.b16 %v529, %v527
      %v644 = vpack.c.b16 %v532, %v530
      %v645 = vpack.c.b16 %v533, %v531
      %v646 = vpack.c.b16 %v536, %v534
      %v647 = vpack.c.b16 %v537, %v535
      %v648 = vpack.c.b16 %v540, %v538
      %v649 = vpack.c.b16 %v541, %v539
      %v650 = vpack.c.b16 %v544, %v542
      %v651 = vpack.c.b16 %v545, %v543
      %v652 = vpack.c.b16 %v548, %v546
      %v653 = vpack.c.b16 %v549, %v547
      %v654 = vpack.c.b16 %v552, %v550
      %v655 = vpack.c.b16 %v553, %v551
      %v656 = vpack.c.b16 %v556, %v554
      %v657 = vpack.c.b16 %v557, %v555
      %v658 = vpack.c.b16 %v560, %v558
      %v659 = vpack.c.b16 %v561, %v559
      %v660 = vpack.c.b16 %v564, %v562
      %v661 = vpack.c.b16 %v565, %v563
      %v662 = vpack.c.b16 %v568, %v566
      %v663 = vpack.c.b16 %v569, %v567
      %v664 = vpack.c.b16 %v572, %v570
      %v665 = vpack.c.b16 %v573, %v571
      %v666 = vpack.c.b16 %v576, %v574
      %v667 = vpack.c.b16 %v577, %v575
      %v668 = vpack.c.b16 %v580, %v578
      %v669 = vpack.c.b16 %v581, %v579
      %v670 = vpack.c.b16 %v584, %v582
      %v671 = vpack.c.b16 %v585, %v583
      %v672 = vpack.c.b16 %v588, %v586
      %v673 = vpack.c.b16 %v589, %v587
      %v674 = vpack.c.b16 %v592, %v590
      %v675 = vpack.c.b16 %v593, %v591
      %v676 = vpack.c.b16 %v596, %v594
      %v677 = vpack.c.b16 %v597, %v595
      %v678 = vpack.c.b16 %v600, %v598
      %v679 = vpack.c.b16 %v601, %v599
      %v680 = vpack.c.b16 %v604, %v602
      %v681 = vpack.c.b16 %v605, %v603
      %v682 = vpack.c.b16 %v608, %v606
      %v683 = vpack.c.b16 %v609, %v607
      %v684 = vpack.c.b16 %v612, %v610
      %v685 = vpack.c.b16 %v613, %v611
      %v686 = vpack.c.b16 %v616, %v614
      %v687 = vpack.c.b16 %v617, %v615
      %v688 = vpack.c.b16 %v620, %v618
      %v689 = vpack.c.b16 %v621, %v619
      %v690 = vpack.c.b16 %v624, %v622
      %v691 = vpack.c.b16 %v625, %v623
      %v692 = vpack.c.b16 %v628, %v626
      %v693 = vpack.c.b16 %v629, %v627
      %758 = vmatprep.subr.bf16.mxu0 %v631
      %759 = vmatpush1.bf16.msra.mxu0 %v630
      %760 = vmatprep.subr.bf16.mxu0 %v633
      %761 = vmatpush1.bf16.msra.mxu0 %v632
      %762 = vmatprep.subr.bf16.mxu0 %v635
      %763 = vmatpush1.bf16.msra.mxu0 %v634
      %764 = vmatprep.subr.bf16.mxu0 %v637
      %765 = vmatpush1.bf16.msra.mxu0 %v636
      %766 = vmatprep.subr.bf16.mxu0 %v639
      %767 = vmatpush1.bf16.msra.mxu0 %v638
      %768 = vmatprep.subr.bf16.mxu0 %v641
      %769 = vmatpush1.bf16.msra.mxu0 %v640
      %770 = vmatprep.subr.bf16.mxu0 %v643
      %771 = vmatpush1.bf16.msra.mxu0 %v642
      %772 = vmatprep.subr.bf16.mxu0 %v645
      %773 = vmatpush1.bf16.msra.mxu0 %v644
      %774 = vmatprep.subr.bf16.mxu0 %v647
      %775 = vmatpush1.bf16.msra.mxu0 %v646
      %776 = vmatprep.subr.bf16.mxu0 %v649
      %777 = vmatpush1.bf16.msra.mxu0 %v648
      %778 = vmatprep.subr.bf16.mxu0 %v651
      %779 = vmatpush1.bf16.msra.mxu0 %v650
      %780 = vmatprep.subr.bf16.mxu0 %v653
      %781 = vmatpush1.bf16.msra.mxu0 %v652
      %782 = vmatprep.subr.bf16.mxu0 %v655
      %783 = vmatpush1.bf16.msra.mxu0 %v654
      %784 = vmatprep.subr.bf16.mxu0 %v657
      %785 = vmatpush1.bf16.msra.mxu0 %v656
      %786 = vmatprep.subr.bf16.mxu0 %v659
      %787 = vmatpush1.bf16.msra.mxu0 %v658
      %788 = vmatprep.subr.bf16.mxu0 %v661
      %789 = vmatpush1.bf16.msra.mxu0 %v660
      %790 = vmatprep.mubr.bf16.mxu0 %v407
      %791 = vmatmul.mubr.bf16.gmra.mrb[0].mxu0 %v406
      %v792 = vpop.f32.mrb[0].mxu0
      %v793 = vadd.f32 0.0, %v792
      %v794 = vpop.f32.mrb[0].mxu0
      %v795 = vadd.f32 0.0, %v794
      %v796 = vpop.f32.mrb[0].mxu0
      %v797 = vadd.f32 0.0, %v796
      %v798 = vpop.f32.mrb[0].mxu0
      %v799 = vadd.f32 0.0, %v798
      %800 = vmatprep.mubr.bf16.mxu0 %v411
      %801 = vmatmul.mubr.bf16.gmra.mrb[0].mxu0 %v410
      %v802 = vpop.f32.mrb[0].mxu0
      %v803 = vadd.f32 0.0, %v802
      %v804 = vpop.f32.mrb[0].mxu0
      %v805 = vadd.f32 0.0, %v804
      %v806 = vpop.f32.mrb[0].mxu0
      %v807 = vadd.f32 0.0, %v806
      %v808 = vpop.f32.mrb[0].mxu0
      %v809 = vadd.f32 0.0, %v808
      %810 = vmatprep.mubr.bf16.mxu0 %v415
      %811 = vmatmul.mubr.bf16.gmra.mrb[0].mxu0 %v414
      %v812 = vpop.f32.mrb[0].mxu0
      %v813 = vadd.f32 0.0, %v812
      %v814 = vpop.f32.mrb[0].mxu0
      %v815 = vadd.f32 0.0, %v814
      %v816 = vpop.f32.mrb[0].mxu0
      %v817 = vadd.f32 0.0, %v816
      %v818 = vpop.f32.mrb[0].mxu0
      %v819 = vadd.f32 0.0, %v818
      %820 = vmatprep.mubr.bf16.mxu0 %v419
      %821 = vmatmul.mubr.bf16.gmra.mrb[0].mxu0 %v418
      %v822 = vpop.f32.mrb[0].mxu0
      %v823 = vadd.f32 0.0, %v822
      %v824 = vpop.f32.mrb[0].mxu0
      %v825 = vadd.f32 0.0, %v824
      %v826 = vpop.f32.mrb[0].mxu0
      %v827 = vadd.f32 0.0, %v826
      %v828 = vpop.f32.mrb[0].mxu0
      %v829 = vadd.f32 0.0, %v828
      %830 = vdwg.mxu0
      %831 = vmatprep.subr.bf16.mxu0 %v663
      %832 = vmatpush1.bf16.msra.mxu0 %v662
      %833 = vmatprep.subr.bf16.mxu0 %v665
      %834 = vmatpush1.bf16.msra.mxu0 %v664
      %835 = vmatprep.subr.bf16.mxu0 %v667
      %836 = vmatpush1.bf16.msra.mxu0 %v666
      %837 = vmatprep.subr.bf16.mxu0 %v669
      %838 = vmatpush1.bf16.msra.mxu0 %v668
      %839 = vmatprep.subr.bf16.mxu0 %v671
      %840 = vmatpush1.bf16.msra.mxu0 %v670
      %841 = vmatprep.subr.bf16.mxu0 %v673
      %842 = vmatpush1.bf16.msra.mxu0 %v672
      %843 = vmatprep.subr.bf16.mxu0 %v675
      %844 = vmatpush1.bf16.msra.mxu0 %v674
      %845 = vmatprep.subr.bf16.mxu0 %v677
      %846 = vmatpush1.bf16.msra.mxu0 %v676
      %847 = vmatprep.subr.bf16.mxu0 %v679
      %848 = vmatpush1.bf16.msra.mxu0 %v678
      %849 = vmatprep.subr.bf16.mxu0 %v681
      %850 = vmatpush1.bf16.msra.mxu0 %v680
      %851 = vmatprep.subr.bf16.mxu0 %v683
      %852 = vmatpush1.bf16.msra.mxu0 %v682
      %853 = vmatprep.subr.bf16.mxu0 %v685
      %854 = vmatpush1.bf16.msra.mxu0 %v684
      %855 = vmatprep.subr.bf16.mxu0 %v687
      %856 = vmatpush1.bf16.msra.mxu0 %v686
      %857 = vmatprep.subr.bf16.mxu0 %v689
      %858 = vmatpush1.bf16.msra.mxu0 %v688
      %859 = vmatprep.subr.bf16.mxu0 %v691
      %860 = vmatpush1.bf16.msra.mxu0 %v690
      %861 = vmatprep.subr.bf16.mxu0 %v693
      %862 = vmatpush1.bf16.msra.mxu0 %v692
      %863 = vmatprep.mubr.bf16.mxu0 %v409
      %864 = vmatmul.mubr.bf16.gmra.mrb[0].mxu0 %v408
      %v865 = vpop.f32.mrb[0].mxu0
      %v866 = vadd.f32 %v793, %v865
      %v867 = vpop.f32.mrb[0].mxu0
      %v868 = vadd.f32 %v795, %v867
      %v869 = vpop.f32.mrb[0].mxu0
      %v870 = vadd.f32 %v797, %v869
      %v871 = vpop.f32.mrb[0].mxu0
      %v872 = vadd.f32 %v799, %v871
      %873 = vmatprep.mubr.bf16.mxu0 %v413
      %874 = vmatmul.mubr.bf16.gmra.mrb[0].mxu0 %v412
      %v875 = vpop.f32.mrb[0].mxu0
      %v876 = vadd.f32 %v803, %v875
      %v877 = vpop.f32.mrb[0].mxu0
      %v878 = vadd.f32 %v805, %v877
      %v879 = vpop.f32.mrb[0].mxu0
      %v880 = vadd.f32 %v807, %v879
      %v881 = vpop.f32.mrb[0].mxu0
      %v882 = vadd.f32 %v809, %v881
      %883 = vmatprep.mubr.bf16.mxu0 %v417
      %884 = vmatmul.mubr.bf16.gmra.mrb[0].mxu0 %v416
      %v885 = vpop.f32.mrb[0].mxu0
      %v886 = vadd.f32 %v813, %v885
      %v887 = vpop.f32.mrb[0].mxu0
      %v888 = vadd.f32 %v815, %v887
      %v889 = vpop.f32.mrb[0].mxu0
      %v890 = vadd.f32 %v817, %v889
      %v891 = vpop.f32.mrb[0].mxu0
      %v892 = vadd.f32 %v819, %v891
      %893 = vmatprep.mubr.bf16.mxu0 %v421
      %894 = vmatmul.mubr.bf16.gmra.mrb[0].mxu0 %v420
      %v895 = vpop.f32.mrb[0].mxu0
      %v896 = vadd.f32 %v823, %v895
      %v897 = vpop.f32.mrb[0].mxu0
      %v898 = vadd.f32 %v825, %v897
      %v899 = vpop.f32.mrb[0].mxu0
      %v900 = vadd.f32 %v827, %v899
      %v901 = vpop.f32.mrb[0].mxu0
      %v902 = vadd.f32 %v829, %v901
      %903 = vdwg.mxu0
      %v920 = vunpack.c.l.b16 %v196
      %v921 = vunpack.c.h.b16 %v196
      %v922 = vunpack.c.l.b16 %v197
      %v923 = vunpack.c.h.b16 %v197
      %v924 = vunpack.c.l.b16 %v198
      %v925 = vunpack.c.h.b16 %v198
      %v926 = vunpack.c.l.b16 %v199
      %v927 = vunpack.c.h.b16 %v199
      %v928 = vunpack.c.l.b16 %v200
      %v929 = vunpack.c.h.b16 %v200
      %v930 = vunpack.c.l.b16 %v201
      %v931 = vunpack.c.h.b16 %v201
      %v932 = vunpack.c.l.b16 %v202
      %v933 = vunpack.c.h.b16 %v202
      %v934 = vunpack.c.l.b16 %v203
      %v935 = vunpack.c.h.b16 %v203
      %v936 = vunpack.c.l.b16 %v204
      %v937 = vunpack.c.h.b16 %v204
      %v938 = vunpack.c.l.b16 %v205
      %v939 = vunpack.c.h.b16 %v205
      %v940 = vunpack.c.l.b16 %v206
      %v941 = vunpack.c.h.b16 %v206
      %v942 = vunpack.c.l.b16 %v207
      %v943 = vunpack.c.h.b16 %v207
      %v944 = vunpack.c.l.b16 %v208
      %v945 = vunpack.c.h.b16 %v208
      %v946 = vunpack.c.l.b16 %v209
      %v947 = vunpack.c.h.b16 %v209
      %v948 = vunpack.c.l.b16 %v210
      %v949 = vunpack.c.h.b16 %v210
      %v950 = vunpack.c.l.b16 %v211
      %v951 = vunpack.c.h.b16 %v211
      %v952 = vpack.c.b16 %v924, %v920
      %v953 = vpack.c.b16 %v925, %v921
      %v954 = vpack.c.b16 %v926, %v922
      %v955 = vpack.c.b16 %v927, %v923
      %v956 = vpack.c.b16 %v932, %v928
      %v957 = vpack.c.b16 %v933, %v929
      %v958 = vpack.c.b16 %v934, %v930
      %v959 = vpack.c.b16 %v935, %v931
      %v960 = vpack.c.b16 %v940, %v936
      %v961 = vpack.c.b16 %v941, %v937
      %v962 = vpack.c.b16 %v942, %v938
      %v963 = vpack.c.b16 %v943, %v939
      %v964 = vpack.c.b16 %v948, %v944
      %v965 = vpack.c.b16 %v949, %v945
      %v966 = vpack.c.b16 %v950, %v946
      %v967 = vpack.c.b16 %v951, %v947
      %v1048 = vunpack.c.l.b16 %v212
      %v1049 = vunpack.c.h.b16 %v212
      %v1050 = vunpack.c.l.b16 %v213
      %v1051 = vunpack.c.h.b16 %v213
      %v1052 = vunpack.c.l.b16 %v214
      %v1053 = vunpack.c.h.b16 %v214
      %v1054 = vunpack.c.l.b16 %v215
      %v1055 = vunpack.c.h.b16 %v215
      %v1056 = vunpack.c.l.b16 %v216
      %v1057 = vunpack.c.h.b16 %v216
      %v1058 = vunpack.c.l.b16 %v217
      %v1059 = vunpack.c.h.b16 %v217
      %v1060 = vunpack.c.l.b16 %v218
      %v1061 = vunpack.c.h.b16 %v218
      %v1062 = vunpack.c.l.b16 %v219
      %v1063 = vunpack.c.h.b16 %v219
      %v1064 = vunpack.c.l.b16 %v220
      %v1065 = vunpack.c.h.b16 %v220
      %v1066 = vunpack.c.l.b16 %v221
      %v1067 = vunpack.c.h.b16 %v221
      %v1068 = vunpack.c.l.b16 %v222
      %v1069 = vunpack.c.h.b16 %v222
      %v1070 = vunpack.c.l.b16 %v223
      %v1071 = vunpack.c.h.b16 %v223
      %v1072 = vunpack.c.l.b16 %v224
      %v1073 = vunpack.c.h.b16 %v224
      %v1074 = vunpack.c.l.b16 %v225
      %v1075 = vunpack.c.h.b16 %v225
      %v1076 = vunpack.c.l.b16 %v226
      %v1077 = vunpack.c.h.b16 %v226
      %v1078 = vunpack.c.l.b16 %v227
      %v1079 = vunpack.c.h.b16 %v227
      %v1080 = vunpack.c.l.b16 %v228
      %v1081 = vunpack.c.h.b16 %v228
      %v1082 = vunpack.c.l.b16 %v229
      %v1083 = vunpack.c.h.b16 %v229
      %v1084 = vunpack.c.l.b16 %v230
      %v1085 = vunpack.c.h.b16 %v230
      %v1086 = vunpack.c.l.b16 %v231
      %v1087 = vunpack.c.h.b16 %v231
      %v1088 = vunpack.c.l.b16 %v232
      %v1089 = vunpack.c.h.b16 %v232
      %v1090 = vunpack.c.l.b16 %v233
      %v1091 = vunpack.c.h.b16 %v233
      %v1092 = vunpack.c.l.b16 %v234
      %v1093 = vunpack.c.h.b16 %v234
      %v1094 = vunpack.c.l.b16 %v235
      %v1095 = vunpack.c.h.b16 %v235
      %v1096 = vunpack.c.l.b16 %v236
      %v1097 = vunpack.c.h.b16 %v236
      %v1098 = vunpack.c.l.b16 %v237
      %v1099 = vunpack.c.h.b16 %v237
      %v1100 = vunpack.c.l.b16 %v238
      %v1101 = vunpack.c.h.b16 %v238
      %v1102 = vunpack.c.l.b16 %v239
      %v1103 = vunpack.c.h.b16 %v239
      %v1104 = vunpack.c.l.b16 %v240
      %v1105 = vunpack.c.h.b16 %v240
      %v1106 = vunpack.c.l.b16 %v241
      %v1107 = vunpack.c.h.b16 %v241
      %v1108 = vunpack.c.l.b16 %v242
      %v1109 = vunpack.c.h.b16 %v242
      %v1110 = vunpack.c.l.b16 %v243
      %v1111 = vunpack.c.h.b16 %v243
      %v1112 = vunpack.c.l.b16 %v244
      %v1113 = vunpack.c.h.b16 %v244
      %v1114 = vunpack.c.l.b16 %v245
      %v1115 = vunpack.c.h.b16 %v245
      %v1116 = vunpack.c.l.b16 %v246
      %v1117 = vunpack.c.h.b16 %v246
      %v1118 = vunpack.c.l.b16 %v247
      %v1119 = vunpack.c.h.b16 %v247
      %v1120 = vunpack.c.l.b16 %v248
      %v1121 = vunpack.c.h.b16 %v248
      %v1122 = vunpack.c.l.b16 %v249
      %v1123 = vunpack.c.h.b16 %v249
      %v1124 = vunpack.c.l.b16 %v250
      %v1125 = vunpack.c.h.b16 %v250
      %v1126 = vunpack.c.l.b16 %v251
      %v1127 = vunpack.c.h.b16 %v251
      %v1128 = vunpack.c.l.b16 %v252
      %v1129 = vunpack.c.h.b16 %v252
      %v1130 = vunpack.c.l.b16 %v253
      %v1131 = vunpack.c.h.b16 %v253
      %v1132 = vunpack.c.l.b16 %v254
      %v1133 = vunpack.c.h.b16 %v254
      %v1134 = vunpack.c.l.b16 %v255
      %v1135 = vunpack.c.h.b16 %v255
      %v1136 = vunpack.c.l.b16 %v256
      %v1137 = vunpack.c.h.b16 %v256
      %v1138 = vunpack.c.l.b16 %v257
      %v1139 = vunpack.c.h.b16 %v257
      %v1140 = vunpack.c.l.b16 %v258
      %v1141 = vunpack.c.h.b16 %v258
      %v1142 = vunpack.c.l.b16 %v259
      %v1143 = vunpack.c.h.b16 %v259
      %v1144 = vunpack.c.l.b16 %v260
      %v1145 = vunpack.c.h.b16 %v260
      %v1146 = vunpack.c.l.b16 %v261
      %v1147 = vunpack.c.h.b16 %v261
      %v1148 = vunpack.c.l.b16 %v262
      %v1149 = vunpack.c.h.b16 %v262
      %v1150 = vunpack.c.l.b16 %v263
      %v1151 = vunpack.c.h.b16 %v263
      %v1152 = vunpack.c.l.b16 %v264
      %v1153 = vunpack.c.h.b16 %v264
      %v1154 = vunpack.c.l.b16 %v265
      %v1155 = vunpack.c.h.b16 %v265
      %v1156 = vunpack.c.l.b16 %v266
      %v1157 = vunpack.c.h.b16 %v266
      %v1158 = vunpack.c.l.b16 %v267
      %v1159 = vunpack.c.h.b16 %v267
      %v1160 = vunpack.c.l.b16 %v268
      %v1161 = vunpack.c.h.b16 %v268
      %v1162 = vunpack.c.l.b16 %v269
      %v1163 = vunpack.c.h.b16 %v269
      %v1164 = vunpack.c.l.b16 %v270
      %v1165 = vunpack.c.h.b16 %v270
      %v1166 = vunpack.c.l.b16 %v271
      %v1167 = vunpack.c.h.b16 %v271
      %v1168 = vunpack.c.l.b16 %v272
      %v1169 = vunpack.c.h.b16 %v272
      %v1170 = vunpack.c.l.b16 %v273
      %v1171 = vunpack.c.h.b16 %v273
      %v1172 = vunpack.c.l.b16 %v274
      %v1173 = vunpack.c.h.b16 %v274
      %v1174 = vunpack.c.l.b16 %v275
      %v1175 = vunpack.c.h.b16 %v275
      %v1176 = vpack.c.b16 %v1050, %v1048
      %v1177 = vpack.c.b16 %v1051, %v1049
      %v1178 = vpack.c.b16 %v1054, %v1052
      %v1179 = vpack.c.b16 %v1055, %v1053
      %v1180 = vpack.c.b16 %v1058, %v1056
      %v1181 = vpack.c.b16 %v1059, %v1057
      %v1182 = vpack.c.b16 %v1062, %v1060
      %v1183 = vpack.c.b16 %v1063, %v1061
      %v1184 = vpack.c.b16 %v1066, %v1064
      %v1185 = vpack.c.b16 %v1067, %v1065
      %v1186 = vpack.c.b16 %v1070, %v1068
      %v1187 = vpack.c.b16 %v1071, %v1069
      %v1188 = vpack.c.b16 %v1074, %v1072
      %v1189 = vpack.c.b16 %v1075, %v1073
      %v1190 = vpack.c.b16 %v1078, %v1076
      %v1191 = vpack.c.b16 %v1079, %v1077
      %v1192 = vpack.c.b16 %v1082, %v1080
      %v1193 = vpack.c.b16 %v1083, %v1081
      %v1194 = vpack.c.b16 %v1086, %v1084
      %v1195 = vpack.c.b16 %v1087, %v1085
      %v1196 = vpack.c.b16 %v1090, %v1088
      %v1197 = vpack.c.b16 %v1091, %v1089
      %v1198 = vpack.c.b16 %v1094, %v1092
      %v1199 = vpack.c.b16 %v1095, %v1093
      %v1200 = vpack.c.b16 %v1098, %v1096
      %v1201 = vpack.c.b16 %v1099, %v1097
      %v1202 = vpack.c.b16 %v1102, %v1100
      %v1203 = vpack.c.b16 %v1103, %v1101
      %v1204 = vpack.c.b16 %v1106, %v1104
      %v1205 = vpack.c.b16 %v1107, %v1105
      %v1206 = vpack.c.b16 %v1110, %v1108
      %v1207 = vpack.c.b16 %v1111, %v1109
      %v1208 = vpack.c.b16 %v1114, %v1112
      %v1209 = vpack.c.b16 %v1115, %v1113
      %v1210 = vpack.c.b16 %v1118, %v1116
      %v1211 = vpack.c.b16 %v1119, %v1117
      %v1212 = vpack.c.b16 %v1122, %v1120
      %v1213 = vpack.c.b16 %v1123, %v1121
      %v1214 = vpack.c.b16 %v1126, %v1124
      %v1215 = vpack.c.b16 %v1127, %v1125
      %v1216 = vpack.c.b16 %v1130, %v1128
      %v1217 = vpack.c.b16 %v1131, %v1129
      %v1218 = vpack.c.b16 %v1134, %v1132
      %v1219 = vpack.c.b16 %v1135, %v1133
      %v1220 = vpack.c.b16 %v1138, %v1136
      %v1221 = vpack.c.b16 %v1139, %v1137
      %v1222 = vpack.c.b16 %v1142, %v1140
      %v1223 = vpack.c.b16 %v1143, %v1141
      %v1224 = vpack.c.b16 %v1146, %v1144
      %v1225 = vpack.c.b16 %v1147, %v1145
      %v1226 = vpack.c.b16 %v1150, %v1148
      %v1227 = vpack.c.b16 %v1151, %v1149
      %v1228 = vpack.c.b16 %v1154, %v1152
      %v1229 = vpack.c.b16 %v1155, %v1153
      %v1230 = vpack.c.b16 %v1158, %v1156
      %v1231 = vpack.c.b16 %v1159, %v1157
      %v1232 = vpack.c.b16 %v1162, %v1160
      %v1233 = vpack.c.b16 %v1163, %v1161
      %v1234 = vpack.c.b16 %v1166, %v1164
      %v1235 = vpack.c.b16 %v1167, %v1165
      %v1236 = vpack.c.b16 %v1170, %v1168
      %v1237 = vpack.c.b16 %v1171, %v1169
      %v1238 = vpack.c.b16 %v1174, %v1172
      %v1239 = vpack.c.b16 %v1175, %v1173
      %1304 = vmatprep.subr.bf16.mxu0 %v1177
      %1305 = vmatpush1.bf16.msra.mxu0 %v1176
      %1306 = vmatprep.subr.bf16.mxu0 %v1179
      %1307 = vmatpush1.bf16.msra.mxu0 %v1178
      %1308 = vmatprep.subr.bf16.mxu0 %v1181
      %1309 = vmatpush1.bf16.msra.mxu0 %v1180
      %1310 = vmatprep.subr.bf16.mxu0 %v1183
      %1311 = vmatpush1.bf16.msra.mxu0 %v1182
      %1312 = vmatprep.subr.bf16.mxu0 %v1185
      %1313 = vmatpush1.bf16.msra.mxu0 %v1184
      %1314 = vmatprep.subr.bf16.mxu0 %v1187
      %1315 = vmatpush1.bf16.msra.mxu0 %v1186
      %1316 = vmatprep.subr.bf16.mxu0 %v1189
      %1317 = vmatpush1.bf16.msra.mxu0 %v1188
      %1318 = vmatprep.subr.bf16.mxu0 %v1191
      %1319 = vmatpush1.bf16.msra.mxu0 %v1190
      %1320 = vmatprep.subr.bf16.mxu0 %v1193
      %1321 = vmatpush1.bf16.msra.mxu0 %v1192
      %1322 = vmatprep.subr.bf16.mxu0 %v1195
      %1323 = vmatpush1.bf16.msra.mxu0 %v1194
      %1324 = vmatprep.subr.bf16.mxu0 %v1197
      %1325 = vmatpush1.bf16.msra.mxu0 %v1196
      %1326 = vmatprep.subr.bf16.mxu0 %v1199
      %1327 = vmatpush1.bf16.msra.mxu0 %v1198
      %1328 = vmatprep.subr.bf16.mxu0 %v1201
      %1329 = vmatpush1.bf16.msra.mxu0 %v1200
      %1330 = vmatprep.subr.bf16.mxu0 %v1203
      %1331 = vmatpush1.bf16.msra.mxu0 %v1202
      %1332 = vmatprep.subr.bf16.mxu0 %v1205
      %1333 = vmatpush1.bf16.msra.mxu0 %v1204
      %1334 = vmatprep.subr.bf16.mxu0 %v1207
      %1335 = vmatpush1.bf16.msra.mxu0 %v1206
      %1336 = vmatprep.mubr.bf16.mxu0 %v953
      %1337 = vmatmul.mubr.bf16.gmra.mrb[0].mxu0 %v952
      %v1338 = vpop.f32.mrb[0].mxu0
      %v1339 = vadd.f32 %v866, %v1338
      %v1340 = vpop.f32.mrb[0].mxu0
      %v1341 = vadd.f32 %v868, %v1340
      %v1342 = vpop.f32.mrb[0].mxu0
      %v1343 = vadd.f32 %v870, %v1342
      %v1344 = vpop.f32.mrb[0].mxu0
      %v1345 = vadd.f32 %v872, %v1344
      %1346 = vmatprep.mubr.bf16.mxu0 %v957
      %1347 = vmatmul.mubr.bf16.gmra.mrb[0].mxu0 %v956
      %v1348 = vpop.f32.mrb[0].mxu0
      %v1349 = vadd.f32 %v876, %v1348
      %v1350 = vpop.f32.mrb[0].mxu0
      %v1351 = vadd.f32 %v878, %v1350
      %v1352 = vpop.f32.mrb[0].mxu0
      %v1353 = vadd.f32 %v880, %v1352
      %v1354 = vpop.f32.mrb[0].mxu0
      %v1355 = vadd.f32 %v882, %v1354
      %1356 = vmatprep.mubr.bf16.mxu0 %v961
      %1357 = vmatmul.mubr.bf16.gmra.mrb[0].mxu0 %v960
      %v1358 = vpop.f32.mrb[0].mxu0
      %v1359 = vadd.f32 %v886, %v1358
      %v1360 = vpop.f32.mrb[0].mxu0
      %v1361 = vadd.f32 %v888, %v1360
      %v1362 = vpop.f32.mrb[0].mxu0
      %v1363 = vadd.f32 %v890, %v1362
      %v1364 = vpop.f32.mrb[0].mxu0
      %v1365 = vadd.f32 %v892, %v1364
      %1366 = vmatprep.mubr.bf16.mxu0 %v965
      %1367 = vmatmul.mubr.bf16.gmra.mrb[0].mxu0 %v964
      %v1368 = vpop.f32.mrb[0].mxu0
      %v1369 = vadd.f32 %v896, %v1368
      %v1370 = vpop.f32.mrb[0].mxu0
      %v1371 = vadd.f32 %v898, %v1370
      %v1372 = vpop.f32.mrb[0].mxu0
      %v1373 = vadd.f32 %v900, %v1372
      %v1374 = vpop.f32.mrb[0].mxu0
      %v1375 = vadd.f32 %v902, %v1374
      %1376 = vdwg.mxu0
      %1377 = vmatprep.subr.bf16.mxu0 %v1209
      %1378 = vmatpush1.bf16.msra.mxu0 %v1208
      %1379 = vmatprep.subr.bf16.mxu0 %v1211
      %1380 = vmatpush1.bf16.msra.mxu0 %v1210
      %1381 = vmatprep.subr.bf16.mxu0 %v1213
      %1382 = vmatpush1.bf16.msra.mxu0 %v1212
      %1383 = vmatprep.subr.bf16.mxu0 %v1215
      %1384 = vmatpush1.bf16.msra.mxu0 %v1214
      %1385 = vmatprep.subr.bf16.mxu0 %v1217
      %1386 = vmatpush1.bf16.msra.mxu0 %v1216
      %1387 = vmatprep.subr.bf16.mxu0 %v1219
      %1388 = vmatpush1.bf16.msra.mxu0 %v1218
      %1389 = vmatprep.subr.bf16.mxu0 %v1221
      %1390 = vmatpush1.bf16.msra.mxu0 %v1220
      %1391 = vmatprep.subr.bf16.mxu0 %v1223
      %1392 = vmatpush1.bf16.msra.mxu0 %v1222
      %1393 = vmatprep.subr.bf16.mxu0 %v1225
      %1394 = vmatpush1.bf16.msra.mxu0 %v1224
      %1395 = vmatprep.subr.bf16.mxu0 %v1227
      %1396 = vmatpush1.bf16.msra.mxu0 %v1226
      %1397 = vmatprep.subr.bf16.mxu0 %v1229
      %1398 = vmatpush1.bf16.msra.mxu0 %v1228
      %1399 = vmatprep.subr.bf16.mxu0 %v1231
      %1400 = vmatpush1.bf16.msra.mxu0 %v1230
      %1401 = vmatprep.subr.bf16.mxu0 %v1233
      %1402 = vmatpush1.bf16.msra.mxu0 %v1232
      %1403 = vmatprep.subr.bf16.mxu0 %v1235
      %1404 = vmatpush1.bf16.msra.mxu0 %v1234
      %1405 = vmatprep.subr.bf16.mxu0 %v1237
      %1406 = vmatpush1.bf16.msra.mxu0 %v1236
      %1407 = vmatprep.subr.bf16.mxu0 %v1239
      %1408 = vmatpush1.bf16.msra.mxu0 %v1238
      %1409 = vmatprep.mubr.bf16.mxu0 %v955
      %1410 = vmatmul.mubr.bf16.gmra.mrb[0].mxu0 %v954
      %v1411 = vpop.f32.mrb[0].mxu0
      %v1412 = vadd.f32 %v1339, %v1411
      %v1413 = vpop.f32.mrb[0].mxu0
      %v1414 = vadd.f32 %v1341, %v1413
      %v1415 = vpop.f32.mrb[0].mxu0
      %v1416 = vadd.f32 %v1343, %v1415
      %v1417 = vpop.f32.mrb[0].mxu0
      %v1418 = vadd.f32 %v1345, %v1417
      %1419 = vmatprep.mubr.bf16.mxu0 %v959
      %1420 = vmatmul.mubr.bf16.gmra.mrb[0].mxu0 %v958
      %v1421 = vpop.f32.mrb[0].mxu0
      %v1422 = vadd.f32 %v1349, %v1421
      %v1423 = vpop.f32.mrb[0].mxu0
      %v1424 = vadd.f32 %v1351, %v1423
      %v1425 = vpop.f32.mrb[0].mxu0
      %v1426 = vadd.f32 %v1353, %v1425
      %v1427 = vpop.f32.mrb[0].mxu0
      %v1428 = vadd.f32 %v1355, %v1427
      %1429 = vmatprep.mubr.bf16.mxu0 %v963
      %1430 = vmatmul.mubr.bf16.gmra.mrb[0].mxu0 %v962
      %v1431 = vpop.f32.mrb[0].mxu0
      %v1432 = vadd.f32 %v1359, %v1431
      %v1433 = vpop.f32.mrb[0].mxu0
      %v1434 = vadd.f32 %v1361, %v1433
      %v1435 = vpop.f32.mrb[0].mxu0
      %v1436 = vadd.f32 %v1363, %v1435
      %v1437 = vpop.f32.mrb[0].mxu0
      %v1438 = vadd.f32 %v1365, %v1437
      %1439 = vmatprep.mubr.bf16.mxu0 %v967
      %1440 = vmatmul.mubr.bf16.gmra.mrb[0].mxu0 %v966
      %v1441 = vpop.f32.mrb[0].mxu0
      %v1442 = vadd.f32 %v1369, %v1441
      %v1443 = vpop.f32.mrb[0].mxu0
      %v1444 = vadd.f32 %v1371, %v1443
      %v1445 = vpop.f32.mrb[0].mxu0
      %v1446 = vadd.f32 %v1373, %v1445
      %v1447 = vpop.f32.mrb[0].mxu0
      %v1448 = vadd.f32 %v1375, %v1447
      %1449 = vdwg.mxu0
      %v1450 = vld [vmem:[%s184 + $0x10] sm:$0xff]
      %v1451 = vld [vmem:[%s184 + $0x18] sm:$0xff]
      %v1452 = vld [vmem:[%s184 + $0x20] sm:$0xff]
      %v1453 = vld [vmem:[%s184 + $0x28] sm:$0xff]
      %v1454 = vld [vmem:[%s184 + $0x30] sm:$0xff]
      %v1455 = vld [vmem:[%s184 + $0x38] sm:$0xff]
      %v1456 = vld [vmem:[%s184 + $0x40] sm:$0xff]
      %v1457 = vld [vmem:[%s184 + $0x48] sm:$0xff]
      %v1458 = vld [vmem:[%s184 + $0x50] sm:$0xff]
      %v1459 = vld [vmem:[%s184 + $0x58] sm:$0xff]
      %v1460 = vld [vmem:[%s184 + $0x60] sm:$0xff]
      %v1461 = vld [vmem:[%s184 + $0x68] sm:$0xff]
      %v1462 = vld [vmem:[%s184 + $0x70] sm:$0xff]
      %v1463 = vld [vmem:[%s184 + $0x78] sm:$0xff]
      %v1464 = vld [vmem:[%s184 + $0x80] sm:$0xff]
      %v1465 = vld [vmem:[%s184 + $0x88] sm:$0xff]
      %s1466 = scalar_lea.vmem %s1, 1024
      %v1467 = vld [vmem:[%s1466] sm:$0xff]
      %v1468 = vld [vmem:[%s1466 + $0x8] sm:$0xff]
      %v1469 = vld [vmem:[%s1466 + $0x10] sm:$0xff]
      %v1470 = vld [vmem:[%s1466 + $0x18] sm:$0xff]
      %v1471 = vld [vmem:[%s1466 + $0x20] sm:$0xff]
      %v1472 = vld [vmem:[%s1466 + $0x28] sm:$0xff]
      %v1473 = vld [vmem:[%s1466 + $0x30] sm:$0xff]
      %v1474 = vld [vmem:[%s1466 + $0x38] sm:$0xff]
      %v1475 = vld [vmem:[%s1466 + $0x40] sm:$0xff]
      %v1476 = vld [vmem:[%s1466 + $0x48] sm:$0xff]
      %v1477 = vld [vmem:[%s1466 + $0x50] sm:$0xff]
      %v1478 = vld [vmem:[%s1466 + $0x58] sm:$0xff]
      %v1479 = vld [vmem:[%s1466 + $0x60] sm:$0xff]
      %v1480 = vld [vmem:[%s1466 + $0x68] sm:$0xff]
      %v1481 = vld [vmem:[%s1466 + $0x70] sm:$0xff]
      %v1482 = vld [vmem:[%s1466 + $0x78] sm:$0xff]
      %v1483 = vld [vmem:[%s1466 + $0x80] sm:$0xff]
      %v1484 = vld [vmem:[%s1466 + $0x88] sm:$0xff]
      %v1485 = vld [vmem:[%s1466 + $0x90] sm:$0xff]
      %v1486 = vld [vmem:[%s1466 + $0x98] sm:$0xff]
      %v1487 = vld [vmem:[%s1466 + $0xa0] sm:$0xff]
      %v1488 = vld [vmem:[%s1466 + $0xa8] sm:$0xff]
      %v1489 = vld [vmem:[%s1466 + $0xb0] sm:$0xff]
      %v1490 = vld [vmem:[%s1466 + $0xb8] sm:$0xff]
      %v1491 = vld [vmem:[%s1466 + $0xc0] sm:$0xff]
      %v1492 = vld [vmem:[%s1466 + $0xc8] sm:$0xff]
      %v1493 = vld [vmem:[%s1466 + $0xd0] sm:$0xff]
      %v1494 = vld [vmem:[%s1466 + $0xd8] sm:$0xff]
      %v1495 = vld [vmem:[%s1466 + $0xe0] sm:$0xff]
      %v1496 = vld [vmem:[%s1466 + $0xe8] sm:$0xff]
      %v1497 = vld [vmem:[%s1466 + $0xf0] sm:$0xff]
      %v1498 = vld [vmem:[%s1466 + $0xf8] sm:$0xff]
      %v1499 = vld [vmem:[%s1466 + $0x100] sm:$0xff]
      %v1500 = vld [vmem:[%s1466 + $0x108] sm:$0xff]
      %v1501 = vld [vmem:[%s1466 + $0x110] sm:$0xff]
      %v1502 = vld [vmem:[%s1466 + $0x118] sm:$0xff]
      %v1503 = vld [vmem:[%s1466 + $0x120] sm:$0xff]
      %v1504 = vld [vmem:[%s1466 + $0x128] sm:$0xff]
      %v1505 = vld [vmem:[%s1466 + $0x130] sm:$0xff]
      %v1506 = vld [vmem:[%s1466 + $0x138] sm:$0xff]
      %v1507 = vld [vmem:[%s1466 + $0x140] sm:$0xff]
      %v1508 = vld [vmem:[%s1466 + $0x148] sm:$0xff]
      %v1509 = vld [vmem:[%s1466 + $0x150] sm:$0xff]
      %v1510 = vld [vmem:[%s1466 + $0x158] sm:$0xff]
      %v1511 = vld [vmem:[%s1466 + $0x160] sm:$0xff]
      %v1512 = vld [vmem:[%s1466 + $0x168] sm:$0xff]
      %v1513 = vld [vmem:[%s1466 + $0x170] sm:$0xff]
      %v1514 = vld [vmem:[%s1466 + $0x178] sm:$0xff]
      %v1515 = vld [vmem:[%s1466 + $0x180] sm:$0xff]
      %v1516 = vld [vmem:[%s1466 + $0x188] sm:$0xff]
      %v1517 = vld [vmem:[%s1466 + $0x190] sm:$0xff]
      %v1518 = vld [vmem:[%s1466 + $0x198] sm:$0xff]
      %v1519 = vld [vmem:[%s1466 + $0x1a0] sm:$0xff]
      %v1520 = vld [vmem:[%s1466 + $0x1a8] sm:$0xff]
      %v1521 = vld [vmem:[%s1466 + $0x1b0] sm:$0xff]
      %v1522 = vld [vmem:[%s1466 + $0x1b8] sm:$0xff]
      %v1523 = vld [vmem:[%s1466 + $0x1c0] sm:$0xff]
      %v1524 = vld [vmem:[%s1466 + $0x1c8] sm:$0xff]
      %v1525 = vld [vmem:[%s1466 + $0x1d0] sm:$0xff]
      %v1526 = vld [vmem:[%s1466 + $0x1d8] sm:$0xff]
      %v1527 = vld [vmem:[%s1466 + $0x1e0] sm:$0xff]
      %v1528 = vld [vmem:[%s1466 + $0x1e8] sm:$0xff]
      %v1529 = vld [vmem:[%s1466 + $0x1f0] sm:$0xff]
      %v1530 = vld [vmem:[%s1466 + $0x1f8] sm:$0xff]
      %v1547 = vunpack.c.l.b16 %v1450
      %v1548 = vunpack.c.h.b16 %v1450
      %v1549 = vunpack.c.l.b16 %v1451
      %v1550 = vunpack.c.h.b16 %v1451
      %v1551 = vunpack.c.l.b16 %v1452
      %v1552 = vunpack.c.h.b16 %v1452
      %v1553 = vunpack.c.l.b16 %v1453
      %v1554 = vunpack.c.h.b16 %v1453
      %v1555 = vunpack.c.l.b16 %v1454
      %v1556 = vunpack.c.h.b16 %v1454
      %v1557 = vunpack.c.l.b16 %v1455
      %v1558 = vunpack.c.h.b16 %v1455
      %v1559 = vunpack.c.l.b16 %v1456
      %v1560 = vunpack.c.h.b16 %v1456
      %v1561 = vunpack.c.l.b16 %v1457
      %v1562 = vunpack.c.h.b16 %v1457
      %v1563 = vunpack.c.l.b16 %v1458
      %v1564 = vunpack.c.h.b16 %v1458
      %v1565 = vunpack.c.l.b16 %v1459
      %v1566 = vunpack.c.h.b16 %v1459
      %v1567 = vunpack.c.l.b16 %v1460
      %v1568 = vunpack.c.h.b16 %v1460
      %v1569 = vunpack.c.l.b16 %v1461
      %v1570 = vunpack.c.h.b16 %v1461
      %v1571 = vunpack.c.l.b16 %v1462
      %v1572 = vunpack.c.h.b16 %v1462
      %v1573 = vunpack.c.l.b16 %v1463
      %v1574 = vunpack.c.h.b16 %v1463
      %v1575 = vunpack.c.l.b16 %v1464
      %v1576 = vunpack.c.h.b16 %v1464
      %v1577 = vunpack.c.l.b16 %v1465
      %v1578 = vunpack.c.h.b16 %v1465
      %v1579 = vpack.c.b16 %v1551, %v1547
      %v1580 = vpack.c.b16 %v1552, %v1548
      %v1581 = vpack.c.b16 %v1553, %v1549
      %v1582 = vpack.c.b16 %v1554, %v1550
      %v1583 = vpack.c.b16 %v1559, %v1555
      %v1584 = vpack.c.b16 %v1560, %v1556
      %v1585 = vpack.c.b16 %v1561, %v1557
      %v1586 = vpack.c.b16 %v1562, %v1558
      %v1587 = vpack.c.b16 %v1567, %v1563
      %v1588 = vpack.c.b16 %v1568, %v1564
      %v1589 = vpack.c.b16 %v1569, %v1565
      %v1590 = vpack.c.b16 %v1570, %v1566
      %v1591 = vpack.c.b16 %v1575, %v1571
      %v1592 = vpack.c.b16 %v1576, %v1572
      %v1593 = vpack.c.b16 %v1577, %v1573
      %v1594 = vpack.c.b16 %v1578, %v1574
      %v1675 = vunpack.c.l.b16 %v1467
      %v1676 = vunpack.c.h.b16 %v1467
      %v1677 = vunpack.c.l.b16 %v1468
      %v1678 = vunpack.c.h.b16 %v1468
      %v1679 = vunpack.c.l.b16 %v1469
      %v1680 = vunpack.c.h.b16 %v1469
      %v1681 = vunpack.c.l.b16 %v1470
      %v1682 = vunpack.c.h.b16 %v1470
      %v1683 = vunpack.c.l.b16 %v1471
      %v1684 = vunpack.c.h.b16 %v1471
      %v1685 = vunpack.c.l.b16 %v1472
      %v1686 = vunpack.c.h.b16 %v1472
      %v1687 = vunpack.c.l.b16 %v1473
      %v1688 = vunpack.c.h.b16 %v1473
      %v1689 = vunpack.c.l.b16 %v1474
      %v1690 = vunpack.c.h.b16 %v1474
      %v1691 = vunpack.c.l.b16 %v1475
      %v1692 = vunpack.c.h.b16 %v1475
      %v1693 = vunpack.c.l.b16 %v1476
      %v1694 = vunpack.c.h.b16 %v1476
      %v1695 = vunpack.c.l.b16 %v1477
      %v1696 = vunpack.c.h.b16 %v1477
      %v1697 = vunpack.c.l.b16 %v1478
      %v1698 = vunpack.c.h.b16 %v1478
      %v1699 = vunpack.c.l.b16 %v1479
      %v1700 = vunpack.c.h.b16 %v1479
      %v1701 = vunpack.c.l.b16 %v1480
      %v1702 = vunpack.c.h.b16 %v1480
      %v1703 = vunpack.c.l.b16 %v1481
      %v1704 = vunpack.c.h.b16 %v1481
      %v1705 = vunpack.c.l.b16 %v1482
      %v1706 = vunpack.c.h.b16 %v1482
      %v1707 = vunpack.c.l.b16 %v1483
      %v1708 = vunpack.c.h.b16 %v1483
      %v1709 = vunpack.c.l.b16 %v1484
      %v1710 = vunpack.c.h.b16 %v1484
      %v1711 = vunpack.c.l.b16 %v1485
      %v1712 = vunpack.c.h.b16 %v1485
      %v1713 = vunpack.c.l.b16 %v1486
      %v1714 = vunpack.c.h.b16 %v1486
      %v1715 = vunpack.c.l.b16 %v1487
      %v1716 = vunpack.c.h.b16 %v1487
      %v1717 = vunpack.c.l.b16 %v1488
      %v1718 = vunpack.c.h.b16 %v1488
      %v1719 = vunpack.c.l.b16 %v1489
      %v1720 = vunpack.c.h.b16 %v1489
      %v1721 = vunpack.c.l.b16 %v1490
      %v1722 = vunpack.c.h.b16 %v1490
      %v1723 = vunpack.c.l.b16 %v1491
      %v1724 = vunpack.c.h.b16 %v1491
      %v1725 = vunpack.c.l.b16 %v1492
      %v1726 = vunpack.c.h.b16 %v1492
      %v1727 = vunpack.c.l.b16 %v1493
      %v1728 = vunpack.c.h.b16 %v1493
      %v1729 = vunpack.c.l.b16 %v1494
      %v1730 = vunpack.c.h.b16 %v1494
      %v1731 = vunpack.c.l.b16 %v1495
      %v1732 = vunpack.c.h.b16 %v1495
      %v1733 = vunpack.c.l.b16 %v1496
      %v1734 = vunpack.c.h.b16 %v1496
      %v1735 = vunpack.c.l.b16 %v1497
      %v1736 = vunpack.c.h.b16 %v1497
      %v1737 = vunpack.c.l.b16 %v1498
      %v1738 = vunpack.c.h.b16 %v1498
      %v1739 = vunpack.c.l.b16 %v1499
      %v1740 = vunpack.c.h.b16 %v1499
      %v1741 = vunpack.c.l.b16 %v1500
      %v1742 = vunpack.c.h.b16 %v1500
      %v1743 = vunpack.c.l.b16 %v1501
      %v1744 = vunpack.c.h.b16 %v1501
      %v1745 = vunpack.c.l.b16 %v1502
      %v1746 = vunpack.c.h.b16 %v1502
      %v1747 = vunpack.c.l.b16 %v1503
      %v1748 = vunpack.c.h.b16 %v1503
      %v1749 = vunpack.c.l.b16 %v1504
      %v1750 = vunpack.c.h.b16 %v1504
      %v1751 = vunpack.c.l.b16 %v1505
      %v1752 = vunpack.c.h.b16 %v1505
      %v1753 = vunpack.c.l.b16 %v1506
      %v1754 = vunpack.c.h.b16 %v1506
      %v1755 = vunpack.c.l.b16 %v1507
      %v1756 = vunpack.c.h.b16 %v1507
      %v1757 = vunpack.c.l.b16 %v1508
      %v1758 = vunpack.c.h.b16 %v1508
      %v1759 = vunpack.c.l.b16 %v1509
      %v1760 = vunpack.c.h.b16 %v1509
      %v1761 = vunpack.c.l.b16 %v1510
      %v1762 = vunpack.c.h.b16 %v1510
      %v1763 = vunpack.c.l.b16 %v1511
      %v1764 = vunpack.c.h.b16 %v1511
      %v1765 = vunpack.c.l.b16 %v1512
      %v1766 = vunpack.c.h.b16 %v1512
      %v1767 = vunpack.c.l.b16 %v1513
      %v1768 = vunpack.c.h.b16 %v1513
      %v1769 = vunpack.c.l.b16 %v1514
      %v1770 = vunpack.c.h.b16 %v1514
      %v1771 = vunpack.c.l.b16 %v1515
      %v1772 = vunpack.c.h.b16 %v1515
      %v1773 = vunpack.c.l.b16 %v1516
      %v1774 = vunpack.c.h.b16 %v1516
      %v1775 = vunpack.c.l.b16 %v1517
      %v1776 = vunpack.c.h.b16 %v1517
      %v1777 = vunpack.c.l.b16 %v1518
      %v1778 = vunpack.c.h.b16 %v1518
      %v1779 = vunpack.c.l.b16 %v1519
      %v1780 = vunpack.c.h.b16 %v1519
      %v1781 = vunpack.c.l.b16 %v1520
      %v1782 = vunpack.c.h.b16 %v1520
      %v1783 = vunpack.c.l.b16 %v1521
      %v1784 = vunpack.c.h.b16 %v1521
      %v1785 = vunpack.c.l.b16 %v1522
      %v1786 = vunpack.c.h.b16 %v1522
      %v1787 = vunpack.c.l.b16 %v1523
      %v1788 = vunpack.c.h.b16 %v1523
      %v1789 = vunpack.c.l.b16 %v1524
      %v1790 = vunpack.c.h.b16 %v1524
      %v1791 = vunpack.c.l.b16 %v1525
      %v1792 = vunpack.c.h.b16 %v1525
      %v1793 = vunpack.c.l.b16 %v1526
      %v1794 = vunpack.c.h.b16 %v1526
      %v1795 = vunpack.c.l.b16 %v1527
      %v1796 = vunpack.c.h.b16 %v1527
      %v1797 = vunpack.c.l.b16 %v1528
      %v1798 = vunpack.c.h.b16 %v1528
      %v1799 = vunpack.c.l.b16 %v1529
      %v1800 = vunpack.c.h.b16 %v1529
      %v1801 = vunpack.c.l.b16 %v1530
      %v1802 = vunpack.c.h.b16 %v1530
      %v1803 = vpack.c.b16 %v1677, %v1675
      %v1804 = vpack.c.b16 %v1678, %v1676
      %v1805 = vpack.c.b16 %v1681, %v1679
      %v1806 = vpack.c.b16 %v1682, %v1680
      %v1807 = vpack.c.b16 %v1685, %v1683
      %v1808 = vpack.c.b16 %v1686, %v1684
      %v1809 = vpack.c.b16 %v1689, %v1687
      %v1810 = vpack.c.b16 %v1690, %v1688
      %v1811 = vpack.c.b16 %v1693, %v1691
      %v1812 = vpack.c.b16 %v1694, %v1692
      %v1813 = vpack.c.b16 %v1697, %v1695
      %v1814 = vpack.c.b16 %v1698, %v1696
      %v1815 = vpack.c.b16 %v1701, %v1699
      %v1816 = vpack.c.b16 %v1702, %v1700
      %v1817 = vpack.c.b16 %v1705, %v1703
      %v1818 = vpack.c.b16 %v1706, %v1704
      %v1819 = vpack.c.b16 %v1709, %v1707
      %v1820 = vpack.c.b16 %v1710, %v1708
      %v1821 = vpack.c.b16 %v1713, %v1711
      %v1822 = vpack.c.b16 %v1714, %v1712
      %v1823 = vpack.c.b16 %v1717, %v1715
      %v1824 = vpack.c.b16 %v1718, %v1716
      %v1825 = vpack.c.b16 %v1721, %v1719
      %v1826 = vpack.c.b16 %v1722, %v1720
      %v1827 = vpack.c.b16 %v1725, %v1723
      %v1828 = vpack.c.b16 %v1726, %v1724
      %v1829 = vpack.c.b16 %v1729, %v1727
      %v1830 = vpack.c.b16 %v1730, %v1728
      %v1831 = vpack.c.b16 %v1733, %v1731
      %v1832 = vpack.c.b16 %v1734, %v1732
      %v1833 = vpack.c.b16 %v1737, %v1735
      %v1834 = vpack.c.b16 %v1738, %v1736
      %v1835 = vpack.c.b16 %v1741, %v1739
      %v1836 = vpack.c.b16 %v1742, %v1740
      %v1837 = vpack.c.b16 %v1745, %v1743
      %v1838 = vpack.c.b16 %v1746, %v1744
      %v1839 = vpack.c.b16 %v1749, %v1747
      %v1840 = vpack.c.b16 %v1750, %v1748
      %v1841 = vpack.c.b16 %v1753, %v1751
      %v1842 = vpack.c.b16 %v1754, %v1752
      %v1843 = vpack.c.b16 %v1757, %v1755
      %v1844 = vpack.c.b16 %v1758, %v1756
      %v1845 = vpack.c.b16 %v1761, %v1759
      %v1846 = vpack.c.b16 %v1762, %v1760
      %v1847 = vpack.c.b16 %v1765, %v1763
      %v1848 = vpack.c.b16 %v1766, %v1764
      %v1849 = vpack.c.b16 %v1769, %v1767
      %v1850 = vpack.c.b16 %v1770, %v1768
      %v1851 = vpack.c.b16 %v1773, %v1771
      %v1852 = vpack.c.b16 %v1774, %v1772
      %v1853 = vpack.c.b16 %v1777, %v1775
      %v1854 = vpack.c.b16 %v1778, %v1776
      %v1855 = vpack.c.b16 %v1781, %v1779
      %v1856 = vpack.c.b16 %v1782, %v1780
      %v1857 = vpack.c.b16 %v1785, %v1783
      %v1858 = vpack.c.b16 %v1786, %v1784
      %v1859 = vpack.c.b16 %v1789, %v1787
      %v1860 = vpack.c.b16 %v1790, %v1788
      %v1861 = vpack.c.b16 %v1793, %v1791
      %v1862 = vpack.c.b16 %v1794, %v1792
      %v1863 = vpack.c.b16 %v1797, %v1795
      %v1864 = vpack.c.b16 %v1798, %v1796
      %v1865 = vpack.c.b16 %v1801, %v1799
      %v1866 = vpack.c.b16 %v1802, %v1800
      %1931 = vmatprep.subr.bf16.mxu0 %v1804
      %1932 = vmatpush1.bf16.msra.mxu0 %v1803
      %1933 = vmatprep.subr.bf16.mxu0 %v1806
      %1934 = vmatpush1.bf16.msra.mxu0 %v1805
      %1935 = vmatprep.subr.bf16.mxu0 %v1808
      %1936 = vmatpush1.bf16.msra.mxu0 %v1807
      %1937 = vmatprep.subr.bf16.mxu0 %v1810
      %1938 = vmatpush1.bf16.msra.mxu0 %v1809
      %1939 = vmatprep.subr.bf16.mxu0 %v1812
      %1940 = vmatpush1.bf16.msra.mxu0 %v1811
      %1941 = vmatprep.subr.bf16.mxu0 %v1814
      %1942 = vmatpush1.bf16.msra.mxu0 %v1813
      %1943 = vmatprep.subr.bf16.mxu0 %v1816
      %1944 = vmatpush1.bf16.msra.mxu0 %v1815
      %1945 = vmatprep.subr.bf16.mxu0 %v1818
      %1946 = vmatpush1.bf16.msra.mxu0 %v1817
      %1947 = vmatprep.subr.bf16.mxu0 %v1820
      %1948 = vmatpush1.bf16.msra.mxu0 %v1819
      %1949 = vmatprep.subr.bf16.mxu0 %v1822
      %1950 = vmatpush1.bf16.msra.mxu0 %v1821
      %1951 = vmatprep.subr.bf16.mxu0 %v1824
      %1952 = vmatpush1.bf16.msra.mxu0 %v1823
      %1953 = vmatprep.subr.bf16.mxu0 %v1826
      %1954 = vmatpush1.bf16.msra.mxu0 %v1825
      %1955 = vmatprep.subr.bf16.mxu0 %v1828
      %1956 = vmatpush1.bf16.msra.mxu0 %v1827
      %1957 = vmatprep.subr.bf16.mxu0 %v1830
      %1958 = vmatpush1.bf16.msra.mxu0 %v1829
      %1959 = vmatprep.subr.bf16.mxu0 %v1832
      %1960 = vmatpush1.bf16.msra.mxu0 %v1831
      %1961 = vmatprep.subr.bf16.mxu0 %v1834
      %1962 = vmatpush1.bf16.msra.mxu0 %v1833
      %1963 = vmatprep.mubr.bf16.mxu0 %v1580
      %1964 = vmatmul.mubr.bf16.gmra.mrb[0].mxu0 %v1579
      %v1965 = vpop.f32.mrb[0].mxu0
      %v1966 = vadd.f32 0.0, %v1965
      %v1967 = vpop.f32.mrb[0].mxu0
      %v1968 = vadd.f32 0.0, %v1967
      %v1969 = vpop.f32.mrb[0].mxu0
      %v1970 = vadd.f32 0.0, %v1969
      %v1971 = vpop.f32.mrb[0].mxu0
      %v1972 = vadd.f32 0.0, %v1971
      %1973 = vmatprep.mubr.bf16.mxu0 %v1584
      %1974 = vmatmul.mubr.bf16.gmra.mrb[0].mxu0 %v1583
      %v1975 = vpop.f32.mrb[0].mxu0
      %v1976 = vadd.f32 0.0, %v1975
      %v1977 = vpop.f32.mrb[0].mxu0
      %v1978 = vadd.f32 0.0, %v1977
      %v1979 = vpop.f32.mrb[0].mxu0
      %v1980 = vadd.f32 0.0, %v1979
      %v1981 = vpop.f32.mrb[0].mxu0
      %v1982 = vadd.f32 0.0, %v1981
      %1983 = vmatprep.mubr.bf16.mxu0 %v1588
      %1984 = vmatmul.mubr.bf16.gmra.mrb[0].mxu0 %v1587
      %v1985 = vpop.f32.mrb[0].mxu0
      %v1986 = vadd.f32 0.0, %v1985
      %v1987 = vpop.f32.mrb[0].mxu0
      %v1988 = vadd.f32 0.0, %v1987
      %v1989 = vpop.f32.mrb[0].mxu0
      %v1990 = vadd.f32 0.0, %v1989
      %v1991 = vpop.f32.mrb[0].mxu0
      %v1992 = vadd.f32 0.0, %v1991
      %1993 = vmatprep.mubr.bf16.mxu0 %v1592
      %1994 = vmatmul.mubr.bf16.gmra.mrb[0].mxu0 %v1591
      %v1995 = vpop.f32.mrb[0].mxu0
      %v1996 = vadd.f32 0.0, %v1995
      %v1997 = vpop.f32.mrb[0].mxu0
      %v1998 = vadd.f32 0.0, %v1997
      %v1999 = vpop.f32.mrb[0].mxu0
      %v2000 = vadd.f32 0.0, %v1999
      %v2001 = vpop.f32.mrb[0].mxu0
      %v2002 = vadd.f32 0.0, %v2001
      %2003 = vdwg.mxu0
      %2004 = vmatprep.subr.bf16.mxu0 %v1836
      %2005 = vmatpush1.bf16.msra.mxu0 %v1835
      %2006 = vmatprep.subr.bf16.mxu0 %v1838
      %2007 = vmatpush1.bf16.msra.mxu0 %v1837
      %2008 = vmatprep.subr.bf16.mxu0 %v1840
      %2009 = vmatpush1.bf16.msra.mxu0 %v1839
      %2010 = vmatprep.subr.bf16.mxu0 %v1842
      %2011 = vmatpush1.bf16.msra.mxu0 %v1841
      %2012 = vmatprep.subr.bf16.mxu0 %v1844
      %2013 = vmatpush1.bf16.msra.mxu0 %v1843
      %2014 = vmatprep.subr.bf16.mxu0 %v1846
      %2015 = vmatpush1.bf16.msra.mxu0 %v1845
      %2016 = vmatprep.subr.bf16.mxu0 %v1848
      %2017 = vmatpush1.bf16.msra.mxu0 %v1847
      %2018 = vmatprep.subr.bf16.mxu0 %v1850
      %2019 = vmatpush1.bf16.msra.mxu0 %v1849
      %2020 = vmatprep.subr.bf16.mxu0 %v1852
      %2021 = vmatpush1.bf16.msra.mxu0 %v1851
      %2022 = vmatprep.subr.bf16.mxu0 %v1854
      %2023 = vmatpush1.bf16.msra.mxu0 %v1853
      %2024 = vmatprep.subr.bf16.mxu0 %v1856
      %2025 = vmatpush1.bf16.msra.mxu0 %v1855
      %2026 = vmatprep.subr.bf16.mxu0 %v1858
      %2027 = vmatpush1.bf16.msra.mxu0 %v1857
      %2028 = vmatprep.subr.bf16.mxu0 %v1860
      %2029 = vmatpush1.bf16.msra.mxu0 %v1859
      %2030 = vmatprep.subr.bf16.mxu0 %v1862
      %2031 = vmatpush1.bf16.msra.mxu0 %v1861
      %2032 = vmatprep.subr.bf16.mxu0 %v1864
      %2033 = vmatpush1.bf16.msra.mxu0 %v1863
      %2034 = vmatprep.subr.bf16.mxu0 %v1866
      %2035 = vmatpush1.bf16.msra.mxu0 %v1865
      %2036 = vmatprep.mubr.bf16.mxu0 %v1582
      %2037 = vmatmul.mubr.bf16.gmra.mrb[0].mxu0 %v1581
      %v2038 = vpop.f32.mrb[0].mxu0
      %v2039 = vadd.f32 %v1966, %v2038
      %v2040 = vpop.f32.mrb[0].mxu0
      %v2041 = vadd.f32 %v1968, %v2040
      %v2042 = vpop.f32.mrb[0].mxu0
      %v2043 = vadd.f32 %v1970, %v2042
      %v2044 = vpop.f32.mrb[0].mxu0
      %v2045 = vadd.f32 %v1972, %v2044
      %2046 = vmatprep.mubr.bf16.mxu0 %v1586
      %2047 = vmatmul.mubr.bf16.gmra.mrb[0].mxu0 %v1585
      %v2048 = vpop.f32.mrb[0].mxu0
      %v2049 = vadd.f32 %v1976, %v2048
      %v2050 = vpop.f32.mrb[0].mxu0
      %v2051 = vadd.f32 %v1978, %v2050
      %v2052 = vpop.f32.mrb[0].mxu0
      %v2053 = vadd.f32 %v1980, %v2052
      %v2054 = vpop.f32.mrb[0].mxu0
      %v2055 = vadd.f32 %v1982, %v2054
      %2056 = vmatprep.mubr.bf16.mxu0 %v1590
      %2057 = vmatmul.mubr.bf16.gmra.mrb[0].mxu0 %v1589
      %v2058 = vpop.f32.mrb[0].mxu0
      %v2059 = vadd.f32 %v1986, %v2058
      %v2060 = vpop.f32.mrb[0].mxu0
      %v2061 = vadd.f32 %v1988, %v2060
      %v2062 = vpop.f32.mrb[0].mxu0
      %v2063 = vadd.f32 %v1990, %v2062
      %v2064 = vpop.f32.mrb[0].mxu0
      %v2065 = vadd.f32 %v1992, %v2064
      %2066 = vmatprep.mubr.bf16.mxu0 %v1594
      %2067 = vmatmul.mubr.bf16.gmra.mrb[0].mxu0 %v1593
      %v2068 = vpop.f32.mrb[0].mxu0
      %v2069 = vadd.f32 %v1996, %v2068
      %v2070 = vpop.f32.mrb[0].mxu0
      %v2071 = vadd.f32 %v1998, %v2070
      %v2072 = vpop.f32.mrb[0].mxu0
      %v2073 = vadd.f32 %v2000, %v2072
      %v2074 = vpop.f32.mrb[0].mxu0
      %v2075 = vadd.f32 %v2002, %v2074
      %2076 = vdwg.mxu0
      %v2077 = vadd.f32 %v1412, %v2039
      %v2078 = vadd.f32 %v1414, %v2041
      %v2079 = vadd.f32 %v1416, %v2043
      %v2080 = vadd.f32 %v1418, %v2045
      %v2081 = vadd.f32 %v1422, %v2049
      %v2082 = vadd.f32 %v1424, %v2051
      %v2083 = vadd.f32 %v1426, %v2053
      %v2084 = vadd.f32 %v1428, %v2055
      %v2085 = vadd.f32 %v1432, %v2059
      %v2086 = vadd.f32 %v1434, %v2061
      %v2087 = vadd.f32 %v1436, %v2063
      %v2088 = vadd.f32 %v1438, %v2065
      %v2089 = vadd.f32 %v1442, %v2069
      %v2090 = vadd.f32 %v1444, %v2071
      %v2091 = vadd.f32 %v1446, %v2073
      %v2092 = vadd.f32 %v1448, %v2075
      %v2093 = vld [vmem:[%s276 + $0x10] sm:$0xff]
      %v2094 = vld [vmem:[%s276 + $0x18] sm:$0xff]
      %v2095 = vld [vmem:[%s276 + $0x20] sm:$0xff]
      %v2096 = vld [vmem:[%s276 + $0x28] sm:$0xff]
      %v2097 = vld [vmem:[%s276 + $0x30] sm:$0xff]
      %v2098 = vld [vmem:[%s276 + $0x38] sm:$0xff]
      %v2099 = vld [vmem:[%s276 + $0x40] sm:$0xff]
      %v2100 = vld [vmem:[%s276 + $0x48] sm:$0xff]
      %v2101 = vld [vmem:[%s276 + $0x50] sm:$0xff]
      %v2102 = vld [vmem:[%s276 + $0x58] sm:$0xff]
      %v2103 = vld [vmem:[%s276 + $0x60] sm:$0xff]
      %v2104 = vld [vmem:[%s276 + $0x68] sm:$0xff]
      %v2105 = vld [vmem:[%s276 + $0x70] sm:$0xff]
      %v2106 = vld [vmem:[%s276 + $0x78] sm:$0xff]
      %v2107 = vld [vmem:[%s276 + $0x80] sm:$0xff]
      %v2108 = vld [vmem:[%s276 + $0x88] sm:$0xff]
      %s2109 = scalar_lea.vmem %s1, 1536
      %v2110 = vld [vmem:[%s2109] sm:$0xff]
      %v2111 = vld [vmem:[%s2109 + $0x8] sm:$0xff]
      %v2112 = vld [vmem:[%s2109 + $0x10] sm:$0xff]
      %v2113 = vld [vmem:[%s2109 + $0x18] sm:$0xff]
      %v2114 = vld [vmem:[%s2109 + $0x20] sm:$0xff]
      %v2115 = vld [vmem:[%s2109 + $0x28] sm:$0xff]
      %v2116 = vld [vmem:[%s2109 + $0x30] sm:$0xff]
      %v2117 = vld [vmem:[%s2109 + $0x38] sm:$0xff]
      %v2118 = vld [vmem:[%s2109 + $0x40] sm:$0xff]
      %v2119 = vld [vmem:[%s2109 + $0x48] sm:$0xff]
      %v2120 = vld [vmem:[%s2109 + $0x50] sm:$0xff]
      %v2121 = vld [vmem:[%s2109 + $0x58] sm:$0xff]
      %v2122 = vld [vmem:[%s2109 + $0x60] sm:$0xff]
      %v2123 = vld [vmem:[%s2109 + $0x68] sm:$0xff]
      %v2124 = vld [vmem:[%s2109 + $0x70] sm:$0xff]
      %v2125 = vld [vmem:[%s2109 + $0x78] sm:$0xff]
      %v2126 = vld [vmem:[%s2109 + $0x80] sm:$0xff]
      %v2127 = vld [vmem:[%s2109 + $0x88] sm:$0xff]
      %v2128 = vld [vmem:[%s2109 + $0x90] sm:$0xff]
      %v2129 = vld [vmem:[%s2109 + $0x98] sm:$0xff]
      %v2130 = vld [vmem:[%s2109 + $0xa0] sm:$0xff]
      %v2131 = vld [vmem:[%s2109 + $0xa8] sm:$0xff]
      %v2132 = vld [vmem:[%s2109 + $0xb0] sm:$0xff]
      %v2133 = vld [vmem:[%s2109 + $0xb8] sm:$0xff]
      %v2134 = vld [vmem:[%s2109 + $0xc0] sm:$0xff]
      %v2135 = vld [vmem:[%s2109 + $0xc8] sm:$0xff]
      %v2136 = vld [vmem:[%s2109 + $0xd0] sm:$0xff]
      %v2137 = vld [vmem:[%s2109 + $0xd8] sm:$0xff]
      %v2138 = vld [vmem:[%s2109 + $0xe0] sm:$0xff]
      %v2139 = vld [vmem:[%s2109 + $0xe8] sm:$0xff]
      %v2140 = vld [vmem:[%s2109 + $0xf0] sm:$0xff]
      %v2141 = vld [vmem:[%s2109 + $0xf8] sm:$0xff]
      %v2142 = vld [vmem:[%s2109 + $0x100] sm:$0xff]
      %v2143 = vld [vmem:[%s2109 + $0x108] sm:$0xff]
      %v2144 = vld [vmem:[%s2109 + $0x110] sm:$0xff]
      %v2145 = vld [vmem:[%s2109 + $0x118] sm:$0xff]
      %v2146 = vld [vmem:[%s2109 + $0x120] sm:$0xff]
      %v2147 = vld [vmem:[%s2109 + $0x128] sm:$0xff]
      %v2148 = vld [vmem:[%s2109 + $0x130] sm:$0xff]
      %v2149 = vld [vmem:[%s2109 + $0x138] sm:$0xff]
      %v2150 = vld [vmem:[%s2109 + $0x140] sm:$0xff]
      %v2151 = vld [vmem:[%s2109 + $0x148] sm:$0xff]
      %v2152 = vld [vmem:[%s2109 + $0x150] sm:$0xff]
      %v2153 = vld [vmem:[%s2109 + $0x158] sm:$0xff]
      %v2154 = vld [vmem:[%s2109 + $0x160] sm:$0xff]
      %v2155 = vld [vmem:[%s2109 + $0x168] sm:$0xff]
      %v2156 = vld [vmem:[%s2109 + $0x170] sm:$0xff]
      %v2157 = vld [vmem:[%s2109 + $0x178] sm:$0xff]
      %v2158 = vld [vmem:[%s2109 + $0x180] sm:$0xff]
      %v2159 = vld [vmem:[%s2109 + $0x188] sm:$0xff]
      %v2160 = vld [vmem:[%s2109 + $0x190] sm:$0xff]
      %v2161 = vld [vmem:[%s2109 + $0x198] sm:$0xff]
      %v2162 = vld [vmem:[%s2109 + $0x1a0] sm:$0xff]
      %v2163 = vld [vmem:[%s2109 + $0x1a8] sm:$0xff]
      %v2164 = vld [vmem:[%s2109 + $0x1b0] sm:$0xff]
      %v2165 = vld [vmem:[%s2109 + $0x1b8] sm:$0xff]
      %v2166 = vld [vmem:[%s2109 + $0x1c0] sm:$0xff]
      %v2167 = vld [vmem:[%s2109 + $0x1c8] sm:$0xff]
      %v2168 = vld [vmem:[%s2109 + $0x1d0] sm:$0xff]
      %v2169 = vld [vmem:[%s2109 + $0x1d8] sm:$0xff]
      %v2170 = vld [vmem:[%s2109 + $0x1e0] sm:$0xff]
      %v2171 = vld [vmem:[%s2109 + $0x1e8] sm:$0xff]
      %v2172 = vld [vmem:[%s2109 + $0x1f0] sm:$0xff]
      %v2173 = vld [vmem:[%s2109 + $0x1f8] sm:$0xff]
      %v2190 = vunpack.c.l.b16 %v2093
      %v2191 = vunpack.c.h.b16 %v2093
      %v2192 = vunpack.c.l.b16 %v2094
      %v2193 = vunpack.c.h.b16 %v2094
      %v2194 = vunpack.c.l.b16 %v2095
      %v2195 = vunpack.c.h.b16 %v2095
      %v2196 = vunpack.c.l.b16 %v2096
      %v2197 = vunpack.c.h.b16 %v2096
      %v2198 = vunpack.c.l.b16 %v2097
      %v2199 = vunpack.c.h.b16 %v2097
      %v2200 = vunpack.c.l.b16 %v2098
      %v2201 = vunpack.c.h.b16 %v2098
      %v2202 = vunpack.c.l.b16 %v2099
      %v2203 = vunpack.c.h.b16 %v2099
      %v2204 = vunpack.c.l.b16 %v2100
      %v2205 = vunpack.c.h.b16 %v2100
      %v2206 = vunpack.c.l.b16 %v2101
      %v2207 = vunpack.c.h.b16 %v2101
      %v2208 = vunpack.c.l.b16 %v2102
      %v2209 = vunpack.c.h.b16 %v2102
      %v2210 = vunpack.c.l.b16 %v2103
      %v2211 = vunpack.c.h.b16 %v2103
      %v2212 = vunpack.c.l.b16 %v2104
      %v2213 = vunpack.c.h.b16 %v2104
      %v2214 = vunpack.c.l.b16 %v2105
      %v2215 = vunpack.c.h.b16 %v2105
      %v2216 = vunpack.c.l.b16 %v2106
      %v2217 = vunpack.c.h.b16 %v2106
      %v2218 = vunpack.c.l.b16 %v2107
      %v2219 = vunpack.c.h.b16 %v2107
      %v2220 = vunpack.c.l.b16 %v2108
      %v2221 = vunpack.c.h.b16 %v2108
      %v2222 = vpack.c.b16 %v2194, %v2190
      %v2223 = vpack.c.b16 %v2195, %v2191
      %v2224 = vpack.c.b16 %v2196, %v2192
      %v2225 = vpack.c.b16 %v2197, %v2193
      %v2226 = vpack.c.b16 %v2202, %v2198
      %v2227 = vpack.c.b16 %v2203, %v2199
      %v2228 = vpack.c.b16 %v2204, %v2200
      %v2229 = vpack.c.b16 %v2205, %v2201
      %v2230 = vpack.c.b16 %v2210, %v2206
      %v2231 = vpack.c.b16 %v2211, %v2207
      %v2232 = vpack.c.b16 %v2212, %v2208
      %v2233 = vpack.c.b16 %v2213, %v2209
      %v2234 = vpack.c.b16 %v2218, %v2214
      %v2235 = vpack.c.b16 %v2219, %v2215
      %v2236 = vpack.c.b16 %v2220, %v2216
      %v2237 = vpack.c.b16 %v2221, %v2217
      %v2318 = vunpack.c.l.b16 %v2110
      %v2319 = vunpack.c.h.b16 %v2110
      %v2320 = vunpack.c.l.b16 %v2111
      %v2321 = vunpack.c.h.b16 %v2111
      %v2322 = vunpack.c.l.b16 %v2112
      %v2323 = vunpack.c.h.b16 %v2112
      %v2324 = vunpack.c.l.b16 %v2113
      %v2325 = vunpack.c.h.b16 %v2113
      %v2326 = vunpack.c.l.b16 %v2114
      %v2327 = vunpack.c.h.b16 %v2114
      %v2328 = vunpack.c.l.b16 %v2115
      %v2329 = vunpack.c.h.b16 %v2115
      %v2330 = vunpack.c.l.b16 %v2116
      %v2331 = vunpack.c.h.b16 %v2116
      %v2332 = vunpack.c.l.b16 %v2117
      %v2333 = vunpack.c.h.b16 %v2117
      %v2334 = vunpack.c.l.b16 %v2118
      %v2335 = vunpack.c.h.b16 %v2118
      %v2336 = vunpack.c.l.b16 %v2119
      %v2337 = vunpack.c.h.b16 %v2119
      %v2338 = vunpack.c.l.b16 %v2120
      %v2339 = vunpack.c.h.b16 %v2120
      %v2340 = vunpack.c.l.b16 %v2121
      %v2341 = vunpack.c.h.b16 %v2121
      %v2342 = vunpack.c.l.b16 %v2122
      %v2343 = vunpack.c.h.b16 %v2122
      %v2344 = vunpack.c.l.b16 %v2123
      %v2345 = vunpack.c.h.b16 %v2123
      %v2346 = vunpack.c.l.b16 %v2124
      %v2347 = vunpack.c.h.b16 %v2124
      %v2348 = vunpack.c.l.b16 %v2125
      %v2349 = vunpack.c.h.b16 %v2125
      %v2350 = vunpack.c.l.b16 %v2126
      %v2351 = vunpack.c.h.b16 %v2126
      %v2352 = vunpack.c.l.b16 %v2127
      %v2353 = vunpack.c.h.b16 %v2127
      %v2354 = vunpack.c.l.b16 %v2128
      %v2355 = vunpack.c.h.b16 %v2128
      %v2356 = vunpack.c.l.b16 %v2129
      %v2357 = vunpack.c.h.b16 %v2129
      %v2358 = vunpack.c.l.b16 %v2130
      %v2359 = vunpack.c.h.b16 %v2130
      %v2360 = vunpack.c.l.b16 %v2131
      %v2361 = vunpack.c.h.b16 %v2131
      %v2362 = vunpack.c.l.b16 %v2132
      %v2363 = vunpack.c.h.b16 %v2132
      %v2364 = vunpack.c.l.b16 %v2133
      %v2365 = vunpack.c.h.b16 %v2133
      %v2366 = vunpack.c.l.b16 %v2134
      %v2367 = vunpack.c.h.b16 %v2134
      %v2368 = vunpack.c.l.b16 %v2135
      %v2369 = vunpack.c.h.b16 %v2135
      %v2370 = vunpack.c.l.b16 %v2136
      %v2371 = vunpack.c.h.b16 %v2136
      %v2372 = vunpack.c.l.b16 %v2137
      %v2373 = vunpack.c.h.b16 %v2137
      %v2374 = vunpack.c.l.b16 %v2138
      %v2375 = vunpack.c.h.b16 %v2138
      %v2376 = vunpack.c.l.b16 %v2139
      %v2377 = vunpack.c.h.b16 %v2139
      %v2378 = vunpack.c.l.b16 %v2140
      %v2379 = vunpack.c.h.b16 %v2140
      %v2380 = vunpack.c.l.b16 %v2141
      %v2381 = vunpack.c.h.b16 %v2141
      %v2382 = vunpack.c.l.b16 %v2142
      %v2383 = vunpack.c.h.b16 %v2142
      %v2384 = vunpack.c.l.b16 %v2143
      %v2385 = vunpack.c.h.b16 %v2143
      %v2386 = vunpack.c.l.b16 %v2144
      %v2387 = vunpack.c.h.b16 %v2144
      %v2388 = vunpack.c.l.b16 %v2145
      %v2389 = vunpack.c.h.b16 %v2145
      %v2390 = vunpack.c.l.b16 %v2146
      %v2391 = vunpack.c.h.b16 %v2146
      %v2392 = vunpack.c.l.b16 %v2147
      %v2393 = vunpack.c.h.b16 %v2147
      %v2394 = vunpack.c.l.b16 %v2148
      %v2395 = vunpack.c.h.b16 %v2148
      %v2396 = vunpack.c.l.b16 %v2149
      %v2397 = vunpack.c.h.b16 %v2149
      %v2398 = vunpack.c.l.b16 %v2150
      %v2399 = vunpack.c.h.b16 %v2150
      %v2400 = vunpack.c.l.b16 %v2151
      %v2401 = vunpack.c.h.b16 %v2151
      %v2402 = vunpack.c.l.b16 %v2152
      %v2403 = vunpack.c.h.b16 %v2152
      %v2404 = vunpack.c.l.b16 %v2153
      %v2405 = vunpack.c.h.b16 %v2153
      %v2406 = vunpack.c.l.b16 %v2154
      %v2407 = vunpack.c.h.b16 %v2154
      %v2408 = vunpack.c.l.b16 %v2155
      %v2409 = vunpack.c.h.b16 %v2155
      %v2410 = vunpack.c.l.b16 %v2156
      %v2411 = vunpack.c.h.b16 %v2156
      %v2412 = vunpack.c.l.b16 %v2157
      %v2413 = vunpack.c.h.b16 %v2157
      %v2414 = vunpack.c.l.b16 %v2158
      %v2415 = vunpack.c.h.b16 %v2158
      %v2416 = vunpack.c.l.b16 %v2159
      %v2417 = vunpack.c.h.b16 %v2159
      %v2418 = vunpack.c.l.b16 %v2160
      %v2419 = vunpack.c.h.b16 %v2160
      %v2420 = vunpack.c.l.b16 %v2161
      %v2421 = vunpack.c.h.b16 %v2161
      %v2422 = vunpack.c.l.b16 %v2162
      %v2423 = vunpack.c.h.b16 %v2162
      %v2424 = vunpack.c.l.b16 %v2163
      %v2425 = vunpack.c.h.b16 %v2163
      %v2426 = vunpack.c.l.b16 %v2164
      %v2427 = vunpack.c.h.b16 %v2164
      %v2428 = vunpack.c.l.b16 %v2165
      %v2429 = vunpack.c.h.b16 %v2165
      %v2430 = vunpack.c.l.b16 %v2166
      %v2431 = vunpack.c.h.b16 %v2166
      %v2432 = vunpack.c.l.b16 %v2167
      %v2433 = vunpack.c.h.b16 %v2167
      %v2434 = vunpack.c.l.b16 %v2168
      %v2435 = vunpack.c.h.b16 %v2168
      %v2436 = vunpack.c.l.b16 %v2169
      %v2437 = vunpack.c.h.b16 %v2169
      %v2438 = vunpack.c.l.b16 %v2170
      %v2439 = vunpack.c.h.b16 %v2170
      %v2440 = vunpack.c.l.b16 %v2171
      %v2441 = vunpack.c.h.b16 %v2171
      %v2442 = vunpack.c.l.b16 %v2172
      %v2443 = vunpack.c.h.b16 %v2172
      %v2444 = vunpack.c.l.b16 %v2173
      %v2445 = vunpack.c.h.b16 %v2173
      %v2446 = vpack.c.b16 %v2320, %v2318
      %v2447 = vpack.c.b16 %v2321, %v2319
      %v2448 = vpack.c.b16 %v2324, %v2322
      %v2449 = vpack.c.b16 %v2325, %v2323
      %v2450 = vpack.c.b16 %v2328, %v2326
      %v2451 = vpack.c.b16 %v2329, %v2327
      %v2452 = vpack.c.b16 %v2332, %v2330
      %v2453 = vpack.c.b16 %v2333, %v2331
      %v2454 = vpack.c.b16 %v2336, %v2334
      %v2455 = vpack.c.b16 %v2337, %v2335
      %v2456 = vpack.c.b16 %v2340, %v2338
      %v2457 = vpack.c.b16 %v2341, %v2339
      %v2458 = vpack.c.b16 %v2344, %v2342
      %v2459 = vpack.c.b16 %v2345, %v2343
      %v2460 = vpack.c.b16 %v2348, %v2346
      %v2461 = vpack.c.b16 %v2349, %v2347
      %v2462 = vpack.c.b16 %v2352, %v2350
      %v2463 = vpack.c.b16 %v2353, %v2351
      %v2464 = vpack.c.b16 %v2356, %v2354
      %v2465 = vpack.c.b16 %v2357, %v2355
      %v2466 = vpack.c.b16 %v2360, %v2358
      %v2467 = vpack.c.b16 %v2361, %v2359
      %v2468 = vpack.c.b16 %v2364, %v2362
      %v2469 = vpack.c.b16 %v2365, %v2363
      %v2470 = vpack.c.b16 %v2368, %v2366
      %v2471 = vpack.c.b16 %v2369, %v2367
      %v2472 = vpack.c.b16 %v2372, %v2370
      %v2473 = vpack.c.b16 %v2373, %v2371
      %v2474 = vpack.c.b16 %v2376, %v2374
      %v2475 = vpack.c.b16 %v2377, %v2375
      %v2476 = vpack.c.b16 %v2380, %v2378
      %v2477 = vpack.c.b16 %v2381, %v2379
      %v2478 = vpack.c.b16 %v2384, %v2382
      %v2479 = vpack.c.b16 %v2385, %v2383
      %v2480 = vpack.c.b16 %v2388, %v2386
      %v2481 = vpack.c.b16 %v2389, %v2387
      %v2482 = vpack.c.b16 %v2392, %v2390
      %v2483 = vpack.c.b16 %v2393, %v2391
      %v2484 = vpack.c.b16 %v2396, %v2394
      %v2485 = vpack.c.b16 %v2397, %v2395
      %v2486 = vpack.c.b16 %v2400, %v2398
      %v2487 = vpack.c.b16 %v2401, %v2399
      %v2488 = vpack.c.b16 %v2404, %v2402
      %v2489 = vpack.c.b16 %v2405, %v2403
      %v2490 = vpack.c.b16 %v2408, %v2406
      %v2491 = vpack.c.b16 %v2409, %v2407
      %v2492 = vpack.c.b16 %v2412, %v2410
      %v2493 = vpack.c.b16 %v2413, %v2411
      %v2494 = vpack.c.b16 %v2416, %v2414
      %v2495 = vpack.c.b16 %v2417, %v2415
      %v2496 = vpack.c.b16 %v2420, %v2418
      %v2497 = vpack.c.b16 %v2421, %v2419
      %v2498 = vpack.c.b16 %v2424, %v2422
      %v2499 = vpack.c.b16 %v2425, %v2423
      %v2500 = vpack.c.b16 %v2428, %v2426
      %v2501 = vpack.c.b16 %v2429, %v2427
      %v2502 = vpack.c.b16 %v2432, %v2430
      %v2503 = vpack.c.b16 %v2433, %v2431
      %v2504 = vpack.c.b16 %v2436, %v2434
      %v2505 = vpack.c.b16 %v2437, %v2435
      %v2506 = vpack.c.b16 %v2440, %v2438
      %v2507 = vpack.c.b16 %v2441, %v2439
      %v2508 = vpack.c.b16 %v2444, %v2442
      %v2509 = vpack.c.b16 %v2445, %v2443
      %2574 = vmatprep.subr.bf16.mxu0 %v2447
      %2575 = vmatpush1.bf16.msra.mxu0 %v2446
      %2576 = vmatprep.subr.bf16.mxu0 %v2449
      %2577 = vmatpush1.bf16.msra.mxu0 %v2448
      %2578 = vmatprep.subr.bf16.mxu0 %v2451
      %2579 = vmatpush1.bf16.msra.mxu0 %v2450
      %2580 = vmatprep.subr.bf16.mxu0 %v2453
      %2581 = vmatpush1.bf16.msra.mxu0 %v2452
      %2582 = vmatprep.subr.bf16.mxu0 %v2455
      %2583 = vmatpush1.bf16.msra.mxu0 %v2454
      %2584 = vmatprep.subr.bf16.mxu0 %v2457
      %2585 = vmatpush1.bf16.msra.mxu0 %v2456
      %2586 = vmatprep.subr.bf16.mxu0 %v2459
      %2587 = vmatpush1.bf16.msra.mxu0 %v2458
      %2588 = vmatprep.subr.bf16.mxu0 %v2461
      %2589 = vmatpush1.bf16.msra.mxu0 %v2460
      %2590 = vmatprep.subr.bf16.mxu0 %v2463
      %2591 = vmatpush1.bf16.msra.mxu0 %v2462
      %2592 = vmatprep.subr.bf16.mxu0 %v2465
      %2593 = vmatpush1.bf16.msra.mxu0 %v2464
      %2594 = vmatprep.subr.bf16.mxu0 %v2467
      %2595 = vmatpush1.bf16.msra.mxu0 %v2466
      %2596 = vmatprep.subr.bf16.mxu0 %v2469
      %2597 = vmatpush1.bf16.msra.mxu0 %v2468
      %2598 = vmatprep.subr.bf16.mxu0 %v2471
      %2599 = vmatpush1.bf16.msra.mxu0 %v2470
      %2600 = vmatprep.subr.bf16.mxu0 %v2473
      %2601 = vmatpush1.bf16.msra.mxu0 %v2472
      %2602 = vmatprep.subr.bf16.mxu0 %v2475
      %2603 = vmatpush1.bf16.msra.mxu0 %v2474
      %2604 = vmatprep.subr.bf16.mxu0 %v2477
      %2605 = vmatpush1.bf16.msra.mxu0 %v2476
      %2606 = vmatprep.mubr.bf16.mxu0 %v2223
      %2607 = vmatmul.mubr.bf16.gmra.mrb[0].mxu0 %v2222
      %v2608 = vpop.f32.mrb[0].mxu0
      %v2609 = vadd.f32 0.0, %v2608
      %v2610 = vpop.f32.mrb[0].mxu0
      %v2611 = vadd.f32 0.0, %v2610
      %v2612 = vpop.f32.mrb[0].mxu0
      %v2613 = vadd.f32 0.0, %v2612
      %v2614 = vpop.f32.mrb[0].mxu0
      %v2615 = vadd.f32 0.0, %v2614
      %2616 = vmatprep.mubr.bf16.mxu0 %v2227
      %2617 = vmatmul.mubr.bf16.gmra.mrb[0].mxu0 %v2226
      %v2618 = vpop.f32.mrb[0].mxu0
      %v2619 = vadd.f32 0.0, %v2618
      %v2620 = vpop.f32.mrb[0].mxu0
      %v2621 = vadd.f32 0.0, %v2620
      %v2622 = vpop.f32.mrb[0].mxu0
      %v2623 = vadd.f32 0.0, %v2622
      %v2624 = vpop.f32.mrb[0].mxu0
      %v2625 = vadd.f32 0.0, %v2624
      %2626 = vmatprep.mubr.bf16.mxu0 %v2231
      %2627 = vmatmul.mubr.bf16.gmra.mrb[0].mxu0 %v2230
      %v2628 = vpop.f32.mrb[0].mxu0
      %v2629 = vadd.f32 0.0, %v2628
      %v2630 = vpop.f32.mrb[0].mxu0
      %v2631 = vadd.f32 0.0, %v2630
      %v2632 = vpop.f32.mrb[0].mxu0
      %v2633 = vadd.f32 0.0, %v2632
      %v2634 = vpop.f32.mrb[0].mxu0
      %v2635 = vadd.f32 0.0, %v2634
      %2636 = vmatprep.mubr.bf16.mxu0 %v2235
      %2637 = vmatmul.mubr.bf16.gmra.mrb[0].mxu0 %v2234
      %v2638 = vpop.f32.mrb[0].mxu0
      %v2639 = vadd.f32 0.0, %v2638
      %v2640 = vpop.f32.mrb[0].mxu0
      %v2641 = vadd.f32 0.0, %v2640
      %v2642 = vpop.f32.mrb[0].mxu0
      %v2643 = vadd.f32 0.0, %v2642
      %v2644 = vpop.f32.mrb[0].mxu0
      %v2645 = vadd.f32 0.0, %v2644
      %2646 = vdwg.mxu0
      %2647 = vmatprep.subr.bf16.mxu0 %v2479
      %2648 = vmatpush1.bf16.msra.mxu0 %v2478
      %2649 = vmatprep.subr.bf16.mxu0 %v2481
      %2650 = vmatpush1.bf16.msra.mxu0 %v2480
      %2651 = vmatprep.subr.bf16.mxu0 %v2483
      %2652 = vmatpush1.bf16.msra.mxu0 %v2482
      %2653 = vmatprep.subr.bf16.mxu0 %v2485
      %2654 = vmatpush1.bf16.msra.mxu0 %v2484
      %2655 = vmatprep.subr.bf16.mxu0 %v2487
      %2656 = vmatpush1.bf16.msra.mxu0 %v2486
      %2657 = vmatprep.subr.bf16.mxu0 %v2489
      %2658 = vmatpush1.bf16.msra.mxu0 %v2488
      %2659 = vmatprep.subr.bf16.mxu0 %v2491
      %2660 = vmatpush1.bf16.msra.mxu0 %v2490
      %2661 = vmatprep.subr.bf16.mxu0 %v2493
      %2662 = vmatpush1.bf16.msra.mxu0 %v2492
      %2663 = vmatprep.subr.bf16.mxu0 %v2495
      %2664 = vmatpush1.bf16.msra.mxu0 %v2494
      %2665 = vmatprep.subr.bf16.mxu0 %v2497
      %2666 = vmatpush1.bf16.msra.mxu0 %v2496
      %2667 = vmatprep.subr.bf16.mxu0 %v2499
      %2668 = vmatpush1.bf16.msra.mxu0 %v2498
      %2669 = vmatprep.subr.bf16.mxu0 %v2501
      %2670 = vmatpush1.bf16.msra.mxu0 %v2500
      %2671 = vmatprep.subr.bf16.mxu0 %v2503
      %2672 = vmatpush1.bf16.msra.mxu0 %v2502
      %2673 = vmatprep.subr.bf16.mxu0 %v2505
      %2674 = vmatpush1.bf16.msra.mxu0 %v2504
      %2675 = vmatprep.subr.bf16.mxu0 %v2507
      %2676 = vmatpush1.bf16.msra.mxu0 %v2506
      %2677 = vmatprep.subr.bf16.mxu0 %v2509
      %2678 = vmatpush1.bf16.msra.mxu0 %v2508
      %2679 = vmatprep.mubr.bf16.mxu0 %v2225
      %2680 = vmatmul.mubr.bf16.gmra.mrb[0].mxu0 %v2224
      %v2681 = vpop.f32.mrb[0].mxu0
      %v2682 = vadd.f32 %v2609, %v2681
      %v2683 = vpop.f32.mrb[0].mxu0
      %v2684 = vadd.f32 %v2611, %v2683
      %v2685 = vpop.f32.mrb[0].mxu0
      %v2686 = vadd.f32 %v2613, %v2685
      %v2687 = vpop.f32.mrb[0].mxu0
      %v2688 = vadd.f32 %v2615, %v2687
      %2689 = vmatprep.mubr.bf16.mxu0 %v2229
      %2690 = vmatmul.mubr.bf16.gmra.mrb[0].mxu0 %v2228
      %v2691 = vpop.f32.mrb[0].mxu0
      %v2692 = vadd.f32 %v2619, %v2691
      %v2693 = vpop.f32.mrb[0].mxu0
      %v2694 = vadd.f32 %v2621, %v2693
      %v2695 = vpop.f32.mrb[0].mxu0
      %v2696 = vadd.f32 %v2623, %v2695
      %v2697 = vpop.f32.mrb[0].mxu0
      %v2698 = vadd.f32 %v2625, %v2697
      %2699 = vmatprep.mubr.bf16.mxu0 %v2233
      %2700 = vmatmul.mubr.bf16.gmra.mrb[0].mxu0 %v2232
      %v2701 = vpop.f32.mrb[0].mxu0
      %v2702 = vadd.f32 %v2629, %v2701
      %v2703 = vpop.f32.mrb[0].mxu0
      %v2704 = vadd.f32 %v2631, %v2703
      %v2705 = vpop.f32.mrb[0].mxu0
      %v2706 = vadd.f32 %v2633, %v2705
      %v2707 = vpop.f32.mrb[0].mxu0
      %v2708 = vadd.f32 %v2635, %v2707
      %2709 = vmatprep.mubr.bf16.mxu0 %v2237
      %2710 = vmatmul.mubr.bf16.gmra.mrb[0].mxu0 %v2236
      %v2711 = vpop.f32.mrb[0].mxu0
      %v2712 = vadd.f32 %v2639, %v2711
      %v2713 = vpop.f32.mrb[0].mxu0
      %v2714 = vadd.f32 %v2641, %v2713
      %v2715 = vpop.f32.mrb[0].mxu0
      %v2716 = vadd.f32 %v2643, %v2715
      %v2717 = vpop.f32.mrb[0].mxu0
      %v2718 = vadd.f32 %v2645, %v2717
      %2719 = vdwg.mxu0
      %v2720 = vadd.f32 %v2077, %v2682
      %v2721 = vadd.f32 %v2078, %v2684
      %v2722 = vadd.f32 %v2079, %v2686
      %v2723 = vadd.f32 %v2080, %v2688
      %v2724 = vadd.f32 %v2081, %v2692
      %v2725 = vadd.f32 %v2082, %v2694
      %v2726 = vadd.f32 %v2083, %v2696
      %v2727 = vadd.f32 %v2084, %v2698
      %v2728 = vadd.f32 %v2085, %v2702
      %v2729 = vadd.f32 %v2086, %v2704
      %v2730 = vadd.f32 %v2087, %v2706
      %v2731 = vadd.f32 %v2088, %v2708
      %v2732 = vadd.f32 %v2089, %v2712
      %v2733 = vadd.f32 %v2090, %v2714
      %v2734 = vadd.f32 %v2091, %v2716
      %v2735 = vadd.f32 %v2092, %v2718
      %v2736 = vld [vmem:[%s2] sm:$0x3]
      %v2738 = vlaneseq
      %v2739 = vshrl.u32 %v2738, 7
      %v2740 = vsub.s32 0, %v2739
      %v2741 = vrot.slane %v2736, %v2740
      %v2742 = vlaneseq
      %v2743 = vshrl.u32 %v2742, 7
      %v2744 = vsub.s32 1, %v2743
      %v2745 = vrot.slane %v2736, %v2744
      %v2748 = vadd.f32 %v2720, %v2741
      %v2749 = vadd.f32 %v2721, %v2745
      %v2750 = vadd.f32 %v2722, %v2741
      %v2751 = vadd.f32 %v2723, %v2745
      %v2752 = vadd.f32 %v2724, %v2741
      %v2753 = vadd.f32 %v2725, %v2745
      %v2754 = vadd.f32 %v2726, %v2741
      %v2755 = vadd.f32 %v2727, %v2745
      %v2756 = vadd.f32 %v2728, %v2741
      %v2757 = vadd.f32 %v2729, %v2745
      %v2758 = vadd.f32 %v2730, %v2741
      %v2759 = vadd.f32 %v2731, %v2745
      %v2760 = vadd.f32 %v2732, %v2741
      %v2761 = vadd.f32 %v2733, %v2745
      %v2762 = vadd.f32 %v2734, %v2741
      %v2763 = vadd.f32 %v2735, %v2745
      %v2764 = vadd.f32 %v2748, %v2750
      %v2765 = vadd.f32 %v2764, %v2752
      %v2766 = vadd.f32 %v2765, %v2754
      %v2767 = vadd.f32 %v2766, %v2756
      %v2768 = vadd.f32 %v2767, %v2758
      %v2769 = vadd.f32 %v2768, %v2760
      %v2770 = vadd.f32 %v2769, %v2762
      %v2771 = vrot.slane %v2770, 4
      %v2772 = vadd.f32 %v2770, %v2771
      %v2773 = vrot.slane %v2772, 2
      %v2774 = vadd.f32 %v2772, %v2773
      %v2775 = vrot.slane %v2774, 1
      %v2776 = vadd.f32 %v2774, %v2775
      %v2777 = vadd.f32 %v2749, %v2751
      %v2778 = vadd.f32 %v2777, %v2753
      %v2779 = vadd.f32 %v2778, %v2755
      %v2780 = vadd.f32 %v2779, %v2757
      %v2781 = vadd.f32 %v2780, %v2759
      %v2782 = vadd.f32 %v2781, %v2761
      %v2783 = vadd.f32 %v2782, %v2763
      %v2784 = vrot.slane %v2783, 4
      %v2785 = vadd.f32 %v2783, %v2784
      %v2786 = vrot.slane %v2785, 2
      %v2787 = vadd.f32 %v2785, %v2786
      %v2788 = vrot.slane %v2787, 1
      %v2789 = vadd.f32 %v2787, %v2788
      %v2790 = vrcp.pop 64.0
      %v2791 = vmul.f32 %v2776, %v2790
      %v2792 = vmul.f32 %v2789, %v2790
      %v2793 = vsub.f32 %v2748, %v2791
      %v2794 = vsub.f32 %v2749, %v2792
      %v2795 = vsub.f32 %v2750, %v2791
      %v2796 = vsub.f32 %v2751, %v2792
      %v2797 = vsub.f32 %v2752, %v2791
      %v2798 = vsub.f32 %v2753, %v2792
      %v2799 = vsub.f32 %v2754, %v2791
      %v2800 = vsub.f32 %v2755, %v2792
      %v2801 = vsub.f32 %v2756, %v2791
      %v2802 = vsub.f32 %v2757, %v2792
      %v2803 = vsub.f32 %v2758, %v2791
      %v2804 = vsub.f32 %v2759, %v2792
      %v2805 = vsub.f32 %v2760, %v2791
      %v2806 = vsub.f32 %v2761, %v2792
      %v2807 = vsub.f32 %v2762, %v2791
      %v2808 = vsub.f32 %v2763, %v2792
      %v2809 = vmul.f32 %v2793, %v2793
      %v2810 = vmul.f32 %v2794, %v2794
      %v2811 = vmul.f32 %v2795, %v2795
      %v2812 = vmul.f32 %v2796, %v2796
      %v2813 = vmul.f32 %v2797, %v2797
      %v2814 = vmul.f32 %v2798, %v2798
      %v2815 = vmul.f32 %v2799, %v2799
      %v2816 = vmul.f32 %v2800, %v2800
      %v2817 = vmul.f32 %v2801, %v2801
      %v2818 = vmul.f32 %v2802, %v2802
      %v2819 = vmul.f32 %v2803, %v2803
      %v2820 = vmul.f32 %v2804, %v2804
      %v2821 = vmul.f32 %v2805, %v2805
      %v2822 = vmul.f32 %v2806, %v2806
      %v2823 = vmul.f32 %v2807, %v2807
      %v2824 = vmul.f32 %v2808, %v2808
      %v2825 = vadd.f32 %v2809, %v2811
      %v2826 = vadd.f32 %v2825, %v2813
      %v2827 = vadd.f32 %v2826, %v2815
      %v2828 = vadd.f32 %v2827, %v2817
      %v2829 = vadd.f32 %v2828, %v2819
      %v2830 = vadd.f32 %v2829, %v2821
      %v2831 = vadd.f32 %v2830, %v2823
      %v2832 = vrot.slane %v2831, 4
      %v2833 = vadd.f32 %v2831, %v2832
      %v2834 = vrot.slane %v2833, 2
      %v2835 = vadd.f32 %v2833, %v2834
      %v2836 = vrot.slane %v2835, 1
      %v2837 = vadd.f32 %v2835, %v2836
      %v2838 = vadd.f32 %v2810, %v2812
      %v2839 = vadd.f32 %v2838, %v2814
      %v2840 = vadd.f32 %v2839, %v2816
      %v2841 = vadd.f32 %v2840, %v2818
      %v2842 = vadd.f32 %v2841, %v2820
      %v2843 = vadd.f32 %v2842, %v2822
      %v2844 = vadd.f32 %v2843, %v2824
      %v2845 = vrot.slane %v2844, 4
      %v2846 = vadd.f32 %v2844, %v2845
      %v2847 = vrot.slane %v2846, 2
      %v2848 = vadd.f32 %v2846, %v2847
      %v2849 = vrot.slane %v2848, 1
      %v2850 = vadd.f32 %v2848, %v2849
      %v2851 = vmul.f32 %v2837, %v2790
      %v2852 = vmul.f32 %v2850, %v2790
      %v2853 = vadd.f32 %v2851, 1e-05
      %v2854 = vadd.f32 %v2852, 1e-05
      %v2855 = vrsqrt.pop %v2853
      %v2856 = vrsqrt.pop %v2854
      %v2857 = vmul.f32 %v2793, %v2855
      %v2858 = vmul.f32 %v2794, %v2856
      %v2859 = vmul.f32 %v2795, %v2855
      %v2860 = vmul.f32 %v2796, %v2856
      %v2861 = vmul.f32 %v2797, %v2855
      %v2862 = vmul.f32 %v2798, %v2856
      %v2863 = vmul.f32 %v2799, %v2855
      %v2864 = vmul.f32 %v2800, %v2856
      %v2865 = vmul.f32 %v2801, %v2855
      %v2866 = vmul.f32 %v2802, %v2856
      %v2867 = vmul.f32 %v2803, %v2855
      %v2868 = vmul.f32 %v2804, %v2856
      %v2869 = vmul.f32 %v2805, %v2855
      %v2870 = vmul.f32 %v2806, %v2856
      %v2871 = vmul.f32 %v2807, %v2855
      %v2872 = vmul.f32 %v2808, %v2856
      %vm2873 = vcmp.gt.f32.partialorder %v2857, 0.0
      %vm2874 = vcmp.gt.f32.partialorder %v2858, 0.0
      %vm2875 = vcmp.gt.f32.partialorder %v2859, 0.0
      %vm2876 = vcmp.gt.f32.partialorder %v2860, 0.0
      %vm2877 = vcmp.gt.f32.partialorder %v2861, 0.0
      %vm2878 = vcmp.gt.f32.partialorder %v2862, 0.0
      %vm2879 = vcmp.gt.f32.partialorder %v2863, 0.0
      %vm2880 = vcmp.gt.f32.partialorder %v2864, 0.0
      %vm2881 = vcmp.gt.f32.partialorder %v2865, 0.0
      %vm2882 = vcmp.gt.f32.partialorder %v2866, 0.0
      %vm2883 = vcmp.gt.f32.partialorder %v2867, 0.0
      %vm2884 = vcmp.gt.f32.partialorder %v2868, 0.0
      %vm2885 = vcmp.gt.f32.partialorder %v2869, 0.0
      %vm2886 = vcmp.gt.f32.partialorder %v2870, 0.0
      %vm2887 = vcmp.gt.f32.partialorder %v2871, 0.0
      %vm2888 = vcmp.gt.f32.partialorder %v2872, 0.0
      %v2889 = vmul.f32 %v2857, 0.2
      %v2890 = vmul.f32 %v2858, 0.2
      %v2891 = vmul.f32 %v2859, 0.2
      %v2892 = vmul.f32 %v2860, 0.2
      %v2893 = vmul.f32 %v2861, 0.2
      %v2894 = vmul.f32 %v2862, 0.2
      %v2895 = vmul.f32 %v2863, 0.2
      %v2896 = vmul.f32 %v2864, 0.2
      %v2897 = vmul.f32 %v2865, 0.2
      %v2898 = vmul.f32 %v2866, 0.2
      %v2899 = vmul.f32 %v2867, 0.2
      %v2900 = vmul.f32 %v2868, 0.2
      %v2901 = vmul.f32 %v2869, 0.2
      %v2902 = vmul.f32 %v2870, 0.2
      %v2903 = vmul.f32 %v2871, 0.2
      %v2904 = vmul.f32 %v2872, 0.2
      %v2905 = vsel %vm2873, %v2857, %v2889
      %v2906 = vsel %vm2874, %v2858, %v2890
      %v2907 = vsel %vm2875, %v2859, %v2891
      %v2908 = vsel %vm2876, %v2860, %v2892
      %v2909 = vsel %vm2877, %v2861, %v2893
      %v2910 = vsel %vm2878, %v2862, %v2894
      %v2911 = vsel %vm2879, %v2863, %v2895
      %v2912 = vsel %vm2880, %v2864, %v2896
      %v2913 = vsel %vm2881, %v2865, %v2897
      %v2914 = vsel %vm2882, %v2866, %v2898
      %v2915 = vsel %vm2883, %v2867, %v2899
      %v2916 = vsel %vm2884, %v2868, %v2900
      %v2917 = vsel %vm2885, %v2869, %v2901
      %v2918 = vsel %vm2886, %v2870, %v2902
      %v2919 = vsel %vm2887, %v2871, %v2903
      %v2920 = vsel %vm2888, %v2872, %v2904
      %2921 = vst [vmem:[%s194] sm:$0xff] %v2905
      %2922 = vst [vmem:[%s194 + $0x8] sm:$0xff] %v2906
      %2923 = vst [vmem:[%s194 + $0x10] sm:$0xff] %v2907
      %2924 = vst [vmem:[%s194 + $0x18] sm:$0xff] %v2908
      %2925 = vst [vmem:[%s194 + $0x20] sm:$0xff] %v2909
      %2926 = vst [vmem:[%s194 + $0x28] sm:$0xff] %v2910
      %2927 = vst [vmem:[%s194 + $0x30] sm:$0xff] %v2911
      %2928 = vst [vmem:[%s194 + $0x38] sm:$0xff] %v2912
      %2929 = vst [vmem:[%s194 + $0x40] sm:$0xff] %v2913
      %2930 = vst [vmem:[%s194 + $0x48] sm:$0xff] %v2914
      %2931 = vst [vmem:[%s194 + $0x50] sm:$0xff] %v2915
      %2932 = vst [vmem:[%s194 + $0x58] sm:$0xff] %v2916
      %2933 = vst [vmem:[%s194 + $0x60] sm:$0xff] %v2917
      %2934 = vst [vmem:[%s194 + $0x68] sm:$0xff] %v2918
      %2935 = vst [vmem:[%s194 + $0x70] sm:$0xff] %v2919
      %2936 = vst [vmem:[%s194 + $0x78] sm:$0xff] %v2920
      %s2937 = smul.u32 8, %s19
      %p2938 = scmp.lt.s32.totalorder %s18, 1
      %s2939 = scalar_select %p2938, %s18, 1
      %p2940 = scmp.lt.s32.totalorder %s2937, 7
      %s2941 = scalar_select %p2940, %s2937, 7
      %s2942 = smul.addr %s2941, 2
      %s2943 = smul.addr %s2939, 16
      %s2944 = sadd.s32 %s2942, %s2943
      %s2945 = smul.addr %s2944, 8
      %s2946 = scalar_lea.vmem %s3, %s2945
      // Predicated region
      $region33: #{discriminator_forward.7} parent=31 // pred_check
        %p2947 = pneg %p114
      $region34: #{discriminator_forward.7} parent=31 // pred_check_branch
        %2949 = sbr.rel (%p2947) target = $region36
      $region35: #{discriminator_forward.7} parent=31 // pred_region
        %s2950 = smul.u32 8, %s19
      $region36: #{discriminator_forward.7} parent=31 // pred_fallthru
        _
    $region32: #{discriminator_forward.7} parent=5 // pred_fallthru
      _
    %p2951 = scmp.le.s32.totalorder 2, %s9
    // Predicated region
    $region37: #{discriminator_forward.7} parent=5 // pred_check
      %p2952 = pneg %p2951
    $region38: #{discriminator_forward.7} parent=5 // pred_check_branch
      %2954 = sbr.rel (%p2952) target = $region40
    $region39: #{discriminator_forward.7} parent=5 // pred_region
      %s2955 = ssub.s32 %s9, 2
      // Predicated region
      $region41: #{discriminator_forward.7} parent=39 // pred_check
        %p2956 = pneg %p120
      $region42: #{discriminator_forward.7} parent=39 // pred_check_branch
        %2958 = sbr.rel (%p2956) target = $region44
      $region43: #{discriminator_forward.7} parent=39 // pred_region
        %s2959 = smul.u32 8, %s21
        %p2960 = scmp.lt.s32.totalorder %s20, 1
        %s2961 = scalar_select %p2960, %s20, 1
        %p2962 = scmp.lt.s32.totalorder %s2959, 7
        %s2963 = scalar_select %p2962, %s2959, 7
        %s2964 = smul.addr %s2963, 2
        %s2965 = smul.addr %s2961, 16
        %s2966 = sadd.s32 %s2964, %s2965
        %s2967 = smul.addr %s2966, 8
        %s2968 = scalar_lea.vmem %s3, %s2967
      $region44: #{discriminator_forward.7} parent=39 // pred_fallthru
        _
    $region40: #{discriminator_forward.7} parent=5 // pred_fallthru
      _
  $region6: #{discriminator_forward.7} parent=0 // loop_footer
    %s13 = sadd.s32 1, %s9
  $region7: #{discriminator_forward.7} parent=0 // loop_footer_branch
    %8 = sbr.rel target = $region3
  $region8: #{discriminator_forward.7} parent=0 // loop_exit
    _

// kernel: discriminator_forward.9
$region0: #{discriminator_forward.9}
  #allocation0 [shape = 'u32[]', space=smem, size = 0x4, offset = 0x4, fixed_abs, tag = 'smem constant byte address 0x4 - core index']
  #allocation1 [shape = 'u32[144,128]{1,0:T(1,128)}', space=vmem, size = 0x12000, scoped, tag = 'internal scratch']
  %s0 = inlined_call_operand.vmem [shape: f32[2,4096], index: 0, kind: input, shape index: {}]
  %s1 = inlined_call_operand.vmem [shape: bf16[2,256], index: 1, kind: input, shape index: {}]
  %s2 = inlined_call_operand.vmem [shape: bf16[256,128], index: 2, kind: input, shape index: {}]
  %s3 = inlined_call_operand.vmem [shape: f32[1,128], index: 3, kind: input, shape index: {}]
  %s4 = inlined_call_operand.vmem [shape: f32[1,4096], index: 4, kind: input, shape index: {}]
  %s5 = inlined_call_operand.vmem [shape: f32[1,128], index: 5, kind: input, shape index: {}]
  %s6 = inlined_call_operand.vmem [shape: f32[2,1], index: 6, kind: output, shape index: {}]
  %s7 = sld [smem:[#allocation0]]
  $region34: #{discriminator_forward.9} parent=0
    _
  %s9 = ssub.s32 1, %s7
  %s10 = scalar_select 0, %s9, %s7
  // Predicated region
  $region2: #{discriminator_forward.9} parent=0 // pred_check
    _
  $region3: #{discriminator_forward.9} parent=0 // pred_check_branch
    %12 = sbr.rel (0) target = $region5
  $region4: #{discriminator_forward.9} parent=0 // pred_region
    _
  $region5: #{discriminator_forward.9} parent=0 // pred_fallthru
    _
  // Predicated region
  $region6: #{discriminator_forward.9} parent=0 // pred_check
    _
  $region7: #{discriminator_forward.9} parent=0 // pred_check_branch
    %14 = sbr.rel (0) target = $region9
  $region8: #{discriminator_forward.9} parent=0 // pred_region
    _
  $region9: #{discriminator_forward.9} parent=0 // pred_fallthru
    _
  // Predicated region
  $region10: #{discriminator_forward.9} parent=0 // pred_check
    _
  $region11: #{discriminator_forward.9} parent=0 // pred_check_branch
    %16 = sbr.rel (0) target = $region13
  $region12: #{discriminator_forward.9} parent=0 // pred_region
    _
  $region13: #{discriminator_forward.9} parent=0 // pred_fallthru
    _
  // Predicated region
  $region14: #{discriminator_forward.9} parent=0 // pred_check
    _
  $region15: #{discriminator_forward.9} parent=0 // pred_check_branch
    %18 = sbr.rel (0) target = $region17
  $region16: #{discriminator_forward.9} parent=0 // pred_region
    _
  $region17: #{discriminator_forward.9} parent=0 // pred_fallthru
    _
  // Predicated region
  $region18: #{discriminator_forward.9} parent=0 // pred_check
    _
  $region19: #{discriminator_forward.9} parent=0 // pred_check_branch
    %20 = sbr.rel (0) target = $region21
  $region20: #{discriminator_forward.9} parent=0 // pred_region
    _
  $region21: #{discriminator_forward.9} parent=0 // pred_fallthru
    _
  // Predicated region
  $region22: #{discriminator_forward.9} parent=0 // pred_check
    _
  $region23: #{discriminator_forward.9} parent=0 // pred_check_branch
    %22 = sbr.rel (0) target = $region25
  $region24: #{discriminator_forward.9} parent=0 // pred_region
    _
  $region25: #{discriminator_forward.9} parent=0 // pred_fallthru
    _
  %v24 = vld [vmem:[%s1] sm:$0x3]
  %v25 = vld [vmem:[%s2] sm:$0xf]
  %v26 = vld [vmem:[%s2 + $0x4] sm:$0xf]
  %v27 = vld [vmem:[%s2 + $0x8] sm:$0xf]
  %v28 = vld [vmem:[%s2 + $0xc] sm:$0xf]
  %v29 = vld [vmem:[%s2 + $0x10] sm:$0xf]
  %v30 = vld [vmem:[%s2 + $0x14] sm:$0xf]
  %v31 = vld [vmem:[%s2 + $0x18] sm:$0xf]
  %v32 = vld [vmem:[%s2 + $0x1c] sm:$0xf]
  %v33 = vld [vmem:[%s2 + $0x20] sm:$0xf]
  %v34 = vld [vmem:[%s2 + $0x24] sm:$0xf]
  %v35 = vld [vmem:[%s2 + $0x28] sm:$0xf]
  %v36 = vld [vmem:[%s2 + $0x2c] sm:$0xf]
  %v37 = vld [vmem:[%s2 + $0x30] sm:$0xf]
  %v38 = vld [vmem:[%s2 + $0x34] sm:$0xf]
  %v39 = vld [vmem:[%s2 + $0x38] sm:$0xf]
  %v40 = vld [vmem:[%s2 + $0x3c] sm:$0xf]
  %v41 = vld [vmem:[%s2 + $0x40] sm:$0xf]
  %v42 = vld [vmem:[%s2 + $0x44] sm:$0xf]
  %v43 = vld [vmem:[%s2 + $0x48] sm:$0xf]
  %v44 = vld [vmem:[%s2 + $0x4c] sm:$0xf]
  %v45 = vld [vmem:[%s2 + $0x50] sm:$0xf]
  %v46 = vld [vmem:[%s2 + $0x54] sm:$0xf]
  %v47 = vld [vmem:[%s2 + $0x58] sm:$0xf]
  %v48 = vld [vmem:[%s2 + $0x5c] sm:$0xf]
  %v49 = vld [vmem:[%s2 + $0x60] sm:$0xf]
  %v50 = vld [vmem:[%s2 + $0x64] sm:$0xf]
  %v51 = vld [vmem:[%s2 + $0x68] sm:$0xf]
  %v52 = vld [vmem:[%s2 + $0x6c] sm:$0xf]
  %v53 = vld [vmem:[%s2 + $0x70] sm:$0xf]
  %v54 = vld [vmem:[%s2 + $0x74] sm:$0xf]
  %v55 = vld [vmem:[%s2 + $0x78] sm:$0xf]
  %v56 = vld [vmem:[%s2 + $0x7c] sm:$0xf]
  %v57 = vld [vmem:[%s3] sm:$0x1]
  %v59 = vlaneseq
  %v60 = vshrl.u32 %v59, 7
  %v61 = vsub.s32 0, %v60
  %v62 = vrot.slane %v57, %v61
  %v66 = vunpack.c.l.s4 1966171168
  %v67 = vunpack.c.0.s8 %v66
  %v68 = vlaneseq
  %v69 = vshrl.u32 %v68, 7
  %v70 = vsub.s32 %v67, %v69
  %v71 = vrot.slane %v24, %v70
  %v72 = vcombine.high %v71, %v71
  %v74 = vunpack.c.l.s4 1966171168
  %v75 = vunpack.c.0.s8 %v74
  %v76 = vlaneseq
  %v77 = vshrl.u32 %v76, 7
  %v78 = vsub.s32 %v75, %v77
  %v79 = vrot.slane %v71, %v78
  %v81 = vunpack.c.l.s4 1966171168
  %v82 = vunpack.c.0.s8 %v81
  %v83 = vlaneseq
  %v84 = vshrl.u32 %v83, 7
  %v85 = vsub.s32 %v82, %v84
  %v86 = vrot.slane %v72, %v85
  %v121 = vunpack.c.l.b16 %v25
  %v122 = vunpack.c.l.b16 %v26
  %v123 = vunpack.c.l.b16 %v27
  %v124 = vunpack.c.l.b16 %v28
  %v125 = vunpack.c.l.b16 %v29
  %v126 = vunpack.c.l.b16 %v30
  %v127 = vunpack.c.l.b16 %v31
  %v128 = vunpack.c.l.b16 %v32
  %v129 = vunpack.c.l.b16 %v33
  %v130 = vunpack.c.l.b16 %v34
  %v131 = vunpack.c.l.b16 %v35
  %v132 = vunpack.c.l.b16 %v36
  %v133 = vunpack.c.l.b16 %v37
  %v134 = vunpack.c.l.b16 %v38
  %v135 = vunpack.c.l.b16 %v39
  %v136 = vunpack.c.l.b16 %v40
  %v137 = vunpack.c.l.b16 %v41
  %v138 = vunpack.c.l.b16 %v42
  %v139 = vunpack.c.l.b16 %v43
  %v140 = vunpack.c.l.b16 %v44
  %v141 = vunpack.c.l.b16 %v45
  %v142 = vunpack.c.l.b16 %v46
  %v143 = vunpack.c.l.b16 %v47
  %v144 = vunpack.c.l.b16 %v48
  %v145 = vunpack.c.l.b16 %v49
  %v146 = vunpack.c.l.b16 %v50
  %v147 = vunpack.c.l.b16 %v51
  %v148 = vunpack.c.l.b16 %v52
  %v149 = vunpack.c.l.b16 %v53
  %v150 = vunpack.c.l.b16 %v54
  %v151 = vunpack.c.l.b16 %v55
  %v152 = vunpack.c.l.b16 %v56
  %v153 = vpack.c.b16 %v122, %v121
  %v154 = vpack.c.b16 %v124, %v123
  %v155 = vpack.c.b16 %v126, %v125
  %v156 = vpack.c.b16 %v128, %v127
  %v157 = vpack.c.b16 %v130, %v129
  %v158 = vpack.c.b16 %v132, %v131
  %v159 = vpack.c.b16 %v134, %v133
  %v160 = vpack.c.b16 %v136, %v135
  %v161 = vpack.c.b16 %v138, %v137
  %v162 = vpack.c.b16 %v140, %v139
  %v163 = vpack.c.b16 %v142, %v141
  %v164 = vpack.c.b16 %v144, %v143
  %v165 = vpack.c.b16 %v146, %v145
  %v166 = vpack.c.b16 %v148, %v147
  %v167 = vpack.c.b16 %v150, %v149
  %v168 = vpack.c.b16 %v152, %v151
  %185 = vmatprep.subr.bf16.mxu0 0
  %186 = vmatpush1.bf16.msra.mxu0 %v153
  %187 = vmatprep.subr.bf16.mxu0 0
  %188 = vmatpush1.bf16.msra.mxu0 %v154
  %189 = vmatprep.subr.bf16.mxu0 0
  %190 = vmatpush1.bf16.msra.mxu0 %v155
  %191 = vmatprep.subr.bf16.mxu0 0
  %192 = vmatpush1.bf16.msra.mxu0 %v156
  %193 = vmatprep.subr.bf16.mxu0 0
  %194 = vmatpush1.bf16.msra.mxu0 %v157
  %195 = vmatprep.subr.bf16.mxu0 0
  %196 = vmatpush1.bf16.msra.mxu0 %v158
  %197 = vmatprep.subr.bf16.mxu0 0
  %198 = vmatpush1.bf16.msra.mxu0 %v159
  %199 = vmatprep.subr.bf16.mxu0 0
  %200 = vmatpush1.bf16.msra.mxu0 %v160
  %201 = vmatprep.subr.bf16.mxu0 0
  %202 = vmatpush1.bf16.msra.mxu0 %v161
  %203 = vmatprep.subr.bf16.mxu0 0
  %204 = vmatpush1.bf16.msra.mxu0 %v162
  %205 = vmatprep.subr.bf16.mxu0 0
  %206 = vmatpush1.bf16.msra.mxu0 %v163
  %207 = vmatprep.subr.bf16.mxu0 0
  %208 = vmatpush1.bf16.msra.mxu0 %v164
  %209 = vmatprep.subr.bf16.mxu0 0
  %210 = vmatpush1.bf16.msra.mxu0 %v165
  %211 = vmatprep.subr.bf16.mxu0 0
  %212 = vmatpush1.bf16.msra.mxu0 %v166
  %213 = vmatprep.subr.bf16.mxu0 0
  %214 = vmatpush1.bf16.msra.mxu0 %v167
  %215 = vmatprep.subr.bf16.mxu0 0
  %216 = vmatpush1.bf16.msra.mxu0 %v168
  %217 = vmatprep.mubr.bf16.mxu0 %v86
  %218 = vmatmul.mubr.bf16.gmra.mrb[0].mxu0 %v79
  %v219 = vpop.f32.mrb[0].mxu0
  %v220 = vadd.f32 %v62, %v219
  %v221 = vpop.f32.mrb[0].mxu0
  %v222 = vpop.f32.mrb[0].mxu0
  %v223 = vpop.f32.mrb[0].mxu0
  %224 = vdwg.mxu0
  %v225 = vld [vmem:[%s0] sm:$0xff]
  %v226 = vld [vmem:[%s0 + $0x8] sm:$0xff]
  %v227 = vld [vmem:[%s0 + $0x10] sm:$0xff]
  %v228 = vld [vmem:[%s0 + $0x18] sm:$0xff]
  %v229 = vld [vmem:[%s0 + $0x20] sm:$0xff]
  %v230 = vld [vmem:[%s0 + $0x28] sm:$0xff]
  %v231 = vld [vmem:[%s0 + $0x30] sm:$0xff]
  %v232 = vld [vmem:[%s0 + $0x38] sm:$0xff]
  %v233 = vld [vmem:[%s4] sm:$0xff]
  %v234 = vld [vmem:[%s4 + $0x8] sm:$0xff]
  %v235 = vld [vmem:[%s4 + $0x10] sm:$0xff]
  %v236 = vld [vmem:[%s4 + $0x18] sm:$0xff]
  %v241 = vlaneseq
  %v242 = vshrl.u32 %v241, 7
  %v243 = vsub.s32 0, %v242
  %v244 = vrot.slane %v233, %v243
  %v245 = vlaneseq
  %v246 = vshrl.u32 %v245, 7
  %v247 = vsub.s32 1, %v246
  %v248 = vrot.slane %v233, %v247
  %v249 = vlaneseq
  %v250 = vshrl.u32 %v249, 7
  %v251 = vsub.s32 2, %v250
  %v252 = vrot.slane %v233, %v251
  %v253 = vlaneseq
  %v254 = vshrl.u32 %v253, 7
  %v255 = vsub.s32 3, %v254
  %v256 = vrot.slane %v233, %v255
  %v257 = vlaneseq
  %v258 = vshrl.u32 %v257, 7
  %v259 = vsub.s32 4, %v258
  %v260 = vrot.slane %v233, %v259
  %v261 = vlaneseq
  %v262 = vshrl.u32 %v261, 7
  %v263 = vsub.s32 5, %v262
  %v264 = vrot.slane %v233, %v263
  %v265 = vlaneseq
  %v266 = vshrl.u32 %v265, 7
  %v267 = vsub.s32 6, %v266
  %v268 = vrot.slane %v233, %v267
  %v269 = vlaneseq
  %v270 = vshrl.u32 %v269, 7
  %v271 = vsub.s32 7, %v270
  %v272 = vrot.slane %v233, %v271
  %v273 = vlaneseq
  %v274 = vshrl.u32 %v273, 7
  %v275 = vsub.s32 0, %v274
  %v276 = vrot.slane %v234, %v275
  %v277 = vlaneseq
  %v278 = vshrl.u32 %v277, 7
  %v279 = vsub.s32 1, %v278
  %v280 = vrot.slane %v234, %v279
  %v281 = vlaneseq
  %v282 = vshrl.u32 %v281, 7
  %v283 = vsub.s32 2, %v282
  %v284 = vrot.slane %v234, %v283
  %v285 = vlaneseq
  %v286 = vshrl.u32 %v285, 7
  %v287 = vsub.s32 3, %v286
  %v288 = vrot.slane %v234, %v287
  %v289 = vlaneseq
  %v290 = vshrl.u32 %v289, 7
  %v291 = vsub.s32 4, %v290
  %v292 = vrot.slane %v234, %v291
  %v293 = vlaneseq
  %v294 = vshrl.u32 %v293, 7
  %v295 = vsub.s32 5, %v294
  %v296 = vrot.slane %v234, %v295
  %v297 = vlaneseq
  %v298 = vshrl.u32 %v297, 7
  %v299 = vsub.s32 6, %v298
  %v300 = vrot.slane %v234, %v299
  %v301 = vlaneseq
  %v302 = vshrl.u32 %v301, 7
  %v303 = vsub.s32 7, %v302
  %v304 = vrot.slane %v234, %v303
  %v305 = vlaneseq
  %v306 = vshrl.u32 %v305, 7
  %v307 = vsub.s32 0, %v306
  %v308 = vrot.slane %v235, %v307
  %v309 = vlaneseq
  %v310 = vshrl.u32 %v309, 7
  %v311 = vsub.s32 1, %v310
  %v312 = vrot.slane %v235, %v311
  %v313 = vlaneseq
  %v314 = vshrl.u32 %v313, 7
  %v315 = vsub.s32 2, %v314
  %v316 = vrot.slane %v235, %v315
  %v317 = vlaneseq
  %v318 = vshrl.u32 %v317, 7
  %v319 = vsub.s32 3, %v318
  %v320 = vrot.slane %v235, %v319
  %v321 = vlaneseq
  %v322 = vshrl.u32 %v321, 7
  %v323 = vsub.s32 4, %v322
  %v324 = vrot.slane %v235, %v323
  %v325 = vlaneseq
  %v326 = vshrl.u32 %v325, 7
  %v327 = vsub.s32 5, %v326
  %v328 = vrot.slane %v235, %v327
  %v329 = vlaneseq
  %v330 = vshrl.u32 %v329, 7
  %v331 = vsub.s32 6, %v330
  %v332 = vrot.slane %v235, %v331
  %v333 = vlaneseq
  %v334 = vshrl.u32 %v333, 7
  %v335 = vsub.s32 7, %v334
  %v336 = vrot.slane %v235, %v335
  %v337 = vlaneseq
  %v338 = vshrl.u32 %v337, 7
  %v339 = vsub.s32 0, %v338
  %v340 = vrot.slane %v236, %v339
  %v341 = vlaneseq
  %v342 = vshrl.u32 %v341, 7
  %v343 = vsub.s32 1, %v342
  %v344 = vrot.slane %v236, %v343
  %v345 = vlaneseq
  %v346 = vshrl.u32 %v345, 7
  %v347 = vsub.s32 2, %v346
  %v348 = vrot.slane %v236, %v347
  %v349 = vlaneseq
  %v350 = vshrl.u32 %v349, 7
  %v351 = vsub.s32 3, %v350
  %v352 = vrot.slane %v236, %v351
  %v353 = vlaneseq
  %v354 = vshrl.u32 %v353, 7
  %v355 = vsub.s32 4, %v354
  %v356 = vrot.slane %v236, %v355
  %v357 = vlaneseq
  %v358 = vshrl.u32 %v357, 7
  %v359 = vsub.s32 5, %v358
  %v360 = vrot.slane %v236, %v359
  %v361 = vlaneseq
  %v362 = vshrl.u32 %v361, 7
  %v363 = vsub.s32 6, %v362
  %v364 = vrot.slane %v236, %v363
  %v365 = vlaneseq
  %v366 = vshrl.u32 %v365, 7
  %v367 = vsub.s32 7, %v366
  %v368 = vrot.slane %v236, %v367
  %v369 = vcombine.low %v244, %v248
  %v370 = vcombine.low %v252, %v256
  %v372 = vunpack.c.l.s4 1983009808
  %v373 = vunpack.c.0.s8 %v372
  %v374 = vlaneseq
  %v375 = vshrl.u32 %v374, 7
  %v376 = vsub.s32 %v373, %v375
  %v377 = vrot.slane %v369, %v376
  %v379 = vunpack.c.l.s4 1983009808
  %v380 = vunpack.c.0.s8 %v379
  %v381 = vlaneseq
  %v382 = vshrl.u32 %v381, 7
  %v383 = vsub.s32 %v380, %v382
  %v384 = vrot.slane %v370, %v383
  %v385 = vcombine.low %v377, %v384
  %v386 = vcombine.low %v260, %v264
  %v387 = vcombine.low %v268, %v272
  %v389 = vunpack.c.l.s4 1983009808
  %v390 = vunpack.c.0.s8 %v389
  %v391 = vlaneseq
  %v392 = vshrl.u32 %v391, 7
  %v393 = vsub.s32 %v390, %v392
  %v394 = vrot.slane %v386, %v393
  %v396 = vunpack.c.l.s4 1983009808
  %v397 = vunpack.c.0.s8 %v396
  %v398 = vlaneseq
  %v399 = vshrl.u32 %v398, 7
  %v400 = vsub.s32 %v397, %v399
  %v401 = vrot.slane %v387, %v400
  %v402 = vcombine.low %v394, %v401
  %v403 = vcombine.low %v276, %v280
  %v404 = vcombine.low %v284, %v288
  %v406 = vunpack.c.l.s4 1983009808
  %v407 = vunpack.c.0.s8 %v406
  %v408 = vlaneseq
  %v409 = vshrl.u32 %v408, 7
  %v410 = vsub.s32 %v407, %v409
  %v411 = vrot.slane %v403, %v410
  %v413 = vunpack.c.l.s4 1983009808
  %v414 = vunpack.c.0.s8 %v413
  %v415 = vlaneseq
  %v416 = vshrl.u32 %v415, 7
  %v417 = vsub.s32 %v414, %v416
  %v418 = vrot.slane %v404, %v417
  %v419 = vcombine.low %v411, %v418
  %v420 = vcombine.low %v292, %v296
  %v421 = vcombine.low %v300, %v304
  %v423 = vunpack.c.l.s4 1983009808
  %v424 = vunpack.c.0.s8 %v423
  %v425 = vlaneseq
  %v426 = vshrl.u32 %v425, 7
  %v427 = vsub.s32 %v424, %v426
  %v428 = vrot.slane %v420, %v427
  %v430 = vunpack.c.l.s4 1983009808
  %v431 = vunpack.c.0.s8 %v430
  %v432 = vlaneseq
  %v433 = vshrl.u32 %v432, 7
  %v434 = vsub.s32 %v431, %v433
  %v435 = vrot.slane %v421, %v434
  %v436 = vcombine.low %v428, %v435
  %v437 = vcombine.low %v308, %v312
  %v438 = vcombine.low %v316, %v320
  %v440 = vunpack.c.l.s4 1983009808
  %v441 = vunpack.c.0.s8 %v440
  %v442 = vlaneseq
  %v443 = vshrl.u32 %v442, 7
  %v444 = vsub.s32 %v441, %v443
  %v445 = vrot.slane %v437, %v444
  %v447 = vunpack.c.l.s4 1983009808
  %v448 = vunpack.c.0.s8 %v447
  %v449 = vlaneseq
  %v450 = vshrl.u32 %v449, 7
  %v451 = vsub.s32 %v448, %v450
  %v452 = vrot.slane %v438, %v451
  %v453 = vcombine.low %v445, %v452
  %v454 = vcombine.low %v324, %v328
  %v455 = vcombine.low %v332, %v336
  %v457 = vunpack.c.l.s4 1983009808
  %v458 = vunpack.c.0.s8 %v457
  %v459 = vlaneseq
  %v460 = vshrl.u32 %v459, 7
  %v461 = vsub.s32 %v458, %v460
  %v462 = vrot.slane %v454, %v461
  %v464 = vunpack.c.l.s4 1983009808
  %v465 = vunpack.c.0.s8 %v464
  %v466 = vlaneseq
  %v467 = vshrl.u32 %v466, 7
  %v468 = vsub.s32 %v465, %v467
  %v469 = vrot.slane %v455, %v468
  %v470 = vcombine.low %v462, %v469
  %v471 = vcombine.low %v340, %v344
  %v472 = vcombine.low %v348, %v352
  %v474 = vunpack.c.l.s4 1983009808
  %v475 = vunpack.c.0.s8 %v474
  %v476 = vlaneseq
  %v477 = vshrl.u32 %v476, 7
  %v478 = vsub.s32 %v475, %v477
  %v479 = vrot.slane %v471, %v478
  %v481 = vunpack.c.l.s4 1983009808
  %v482 = vunpack.c.0.s8 %v481
  %v483 = vlaneseq
  %v484 = vshrl.u32 %v483, 7
  %v485 = vsub.s32 %v482, %v484
  %v486 = vrot.slane %v472, %v485
  %v487 = vcombine.low %v479, %v486
  %v488 = vcombine.low %v356, %v360
  %v489 = vcombine.low %v364, %v368
  %v491 = vunpack.c.l.s4 1983009808
  %v492 = vunpack.c.0.s8 %v491
  %v493 = vlaneseq
  %v494 = vshrl.u32 %v493, 7
  %v495 = vsub.s32 %v492, %v494
  %v496 = vrot.slane %v488, %v495
  %v498 = vunpack.c.l.s4 1983009808
  %v499 = vunpack.c.0.s8 %v498
  %v500 = vlaneseq
  %v501 = vshrl.u32 %v500, 7
  %v502 = vsub.s32 %v499, %v501
  %v503 = vrot.slane %v489, %v502
  %v504 = vcombine.low %v496, %v503
  %v513 = vmul.f32 %v225, %v385
  %v514 = vmul.f32 %v226, %v402
  %v515 = vmul.f32 %v227, %v419
  %v516 = vmul.f32 %v228, %v436
  %v517 = vmul.f32 %v229, %v453
  %v518 = vmul.f32 %v230, %v470
  %v519 = vmul.f32 %v231, %v487
  %v520 = vmul.f32 %v232, %v504
  %v529 = vcombine.high %v513, %v513
  %v531 = vunpack.c.l.s4 1983009808
  %v532 = vunpack.c.0.s8 %v531
  %v533 = vlaneseq
  %v534 = vshrl.u32 %v533, 7
  %v535 = vsub.s32 %v532, %v534
  %v536 = vrot.slane %v513, %v535
  %v538 = vunpack.c.l.s4 1983009808
  %v539 = vunpack.c.0.s8 %v538
  %v540 = vlaneseq
  %v541 = vshrl.u32 %v540, 7
  %v542 = vsub.s32 %v539, %v541
  %v543 = vrot.slane %v529, %v542
  %v544 = vcombine.high %v536, %v536
  %v545 = vcombine.high %v543, %v543
  %v546 = vcombine.high %v514, %v514
  %v548 = vunpack.c.l.s4 1983009808
  %v549 = vunpack.c.0.s8 %v548
  %v550 = vlaneseq
  %v551 = vshrl.u32 %v550, 7
  %v552 = vsub.s32 %v549, %v551
  %v553 = vrot.slane %v514, %v552
  %v555 = vunpack.c.l.s4 1983009808
  %v556 = vunpack.c.0.s8 %v555
  %v557 = vlaneseq
  %v558 = vshrl.u32 %v557, 7
  %v559 = vsub.s32 %v556, %v558
  %v560 = vrot.slane %v546, %v559
  %v561 = vcombine.high %v553, %v553
  %v562 = vcombine.high %v560, %v560
  %v563 = vcombine.high %v515, %v515
  %v565 = vunpack.c.l.s4 1983009808
  %v566 = vunpack.c.0.s8 %v565
  %v567 = vlaneseq
  %v568 = vshrl.u32 %v567, 7
  %v569 = vsub.s32 %v566, %v568
  %v570 = vrot.slane %v515, %v569
  %v572 = vunpack.c.l.s4 1983009808
  %v573 = vunpack.c.0.s8 %v572
  %v574 = vlaneseq
  %v575 = vshrl.u32 %v574, 7
  %v576 = vsub.s32 %v573, %v575
  %v577 = vrot.slane %v563, %v576
  %v578 = vcombine.high %v570, %v570
  %v579 = vcombine.high %v577, %v577
  %v580 = vcombine.high %v516, %v516
  %v582 = vunpack.c.l.s4 1983009808
  %v583 = vunpack.c.0.s8 %v582
  %v584 = vlaneseq
  %v585 = vshrl.u32 %v584, 7
  %v586 = vsub.s32 %v583, %v585
  %v587 = vrot.slane %v516, %v586
  %v589 = vunpack.c.l.s4 1983009808
  %v590 = vunpack.c.0.s8 %v589
  %v591 = vlaneseq
  %v592 = vshrl.u32 %v591, 7
  %v593 = vsub.s32 %v590, %v592
  %v594 = vrot.slane %v580, %v593
  %v595 = vcombine.high %v587, %v587
  %v596 = vcombine.high %v594, %v594
  %v597 = vcombine.high %v517, %v517
  %v599 = vunpack.c.l.s4 1983009808
  %v600 = vunpack.c.0.s8 %v599
  %v601 = vlaneseq
  %v602 = vshrl.u32 %v601, 7
  %v603 = vsub.s32 %v600, %v602
  %v604 = vrot.slane %v517, %v603
  %v606 = vunpack.c.l.s4 1983009808
  %v607 = vunpack.c.0.s8 %v606
  %v608 = vlaneseq
  %v609 = vshrl.u32 %v608, 7
  %v610 = vsub.s32 %v607, %v609
  %v611 = vrot.slane %v597, %v610
  %v612 = vcombine.high %v604, %v604
  %v613 = vcombine.high %v611, %v611
  %v614 = vcombine.high %v518, %v518
  %v616 = vunpack.c.l.s4 1983009808
  %v617 = vunpack.c.0.s8 %v616
  %v618 = vlaneseq
  %v619 = vshrl.u32 %v618, 7
  %v620 = vsub.s32 %v617, %v619
  %v621 = vrot.slane %v518, %v620
  %v623 = vunpack.c.l.s4 1983009808
  %v624 = vunpack.c.0.s8 %v623
  %v625 = vlaneseq
  %v626 = vshrl.u32 %v625, 7
  %v627 = vsub.s32 %v624, %v626
  %v628 = vrot.slane %v614, %v627
  %v629 = vcombine.high %v621, %v621
  %v630 = vcombine.high %v628, %v628
  %v631 = vcombine.high %v519, %v519
  %v633 = vunpack.c.l.s4 1983009808
  %v634 = vunpack.c.0.s8 %v633
  %v635 = vlaneseq
  %v636 = vshrl.u32 %v635, 7
  %v637 = vsub.s32 %v634, %v636
  %v638 = vrot.slane %v519, %v637
  %v640 = vunpack.c.l.s4 1983009808
  %v641 = vunpack.c.0.s8 %v640
  %v642 = vlaneseq
  %v643 = vshrl.u32 %v642, 7
  %v644 = vsub.s32 %v641, %v643
  %v645 = vrot.slane %v631, %v644
  %v646 = vcombine.high %v638, %v638
  %v647 = vcombine.high %v645, %v645
  %v648 = vcombine.high %v520, %v520
  %v650 = vunpack.c.l.s4 1983009808
  %v651 = vunpack.c.0.s8 %v650
  %v652 = vlaneseq
  %v653 = vshrl.u32 %v652, 7
  %v654 = vsub.s32 %v651, %v653
  %v655 = vrot.slane %v520, %v654
  %v657 = vunpack.c.l.s4 1983009808
  %v658 = vunpack.c.0.s8 %v657
  %v659 = vlaneseq
  %v660 = vshrl.u32 %v659, 7
  %v661 = vsub.s32 %v658, %v660
  %v662 = vrot.slane %v648, %v661
  %v663 = vcombine.high %v655, %v655
  %v664 = vcombine.high %v662, %v662
  %vm697 = vcmask 1041408
  %v698 = vsel %vm697, %v536, 0.0
  %v699 = vsel %vm697, %v544, 0.0
  %v700 = vadd.f32 %v698, %v699
  %v701 = vsel %vm697, %v543, 0.0
  %v702 = vadd.f32 %v700, %v701
  %v703 = vsel %vm697, %v545, 0.0
  %v704 = vadd.f32 %v702, %v703
  %v705 = vsel %vm697, %v553, 0.0
  %v706 = vadd.f32 %v704, %v705
  %v707 = vsel %vm697, %v561, 0.0
  %v708 = vadd.f32 %v706, %v707
  %v709 = vsel %vm697, %v560, 0.0
  %v710 = vadd.f32 %v708, %v709
  %v711 = vsel %vm697, %v562, 0.0
  %v712 = vadd.f32 %v710, %v711
  %v713 = vsel %vm697, %v570, 0.0
  %v714 = vadd.f32 %v712, %v713
  %v715 = vsel %vm697, %v578, 0.0
  %v716 = vadd.f32 %v714, %v715
  %v717 = vsel %vm697, %v577, 0.0
  %v718 = vadd.f32 %v716, %v717
  %v719 = vsel %vm697, %v579, 0.0
  %v720 = vadd.f32 %v718, %v719
  %v721 = vsel %vm697, %v587, 0.0
  %v722 = vadd.f32 %v720, %v721
  %v723 = vsel %vm697, %v595, 0.0
  %v724 = vadd.f32 %v722, %v723
  %v725 = vsel %vm697, %v594, 0.0
  %v726 = vadd.f32 %v724, %v725
  %v727 = vsel %vm697, %v596, 0.0
  %v728 = vadd.f32 %v726, %v727
  %v729 = vsel %vm697, %v604, 0.0
  %v730 = vadd.f32 %v728, %v729
  %v731 = vsel %vm697, %v612, 0.0
  %v732 = vadd.f32 %v730, %v731
  %v733 = vsel %vm697, %v611, 0.0
  %v734 = vadd.f32 %v732, %v733
  %v735 = vsel %vm697, %v613, 0.0
  %v736 = vadd.f32 %v734, %v735
  %v737 = vsel %vm697, %v621, 0.0
  %v738 = vadd.f32 %v736, %v737
  %v739 = vsel %vm697, %v629, 0.0
  %v740 = vadd.f32 %v738, %v739
  %v741 = vsel %vm697, %v628, 0.0
  %v742 = vadd.f32 %v740, %v741
  %v743 = vsel %vm697, %v630, 0.0
  %v744 = vadd.f32 %v742, %v743
  %v745 = vsel %vm697, %v638, 0.0
  %v746 = vadd.f32 %v744, %v745
  %v747 = vsel %vm697, %v646, 0.0
  %v748 = vadd.f32 %v746, %v747
  %v749 = vsel %vm697, %v645, 0.0
  %v750 = vadd.f32 %v748, %v749
  %v751 = vsel %vm697, %v647, 0.0
  %v752 = vadd.f32 %v750, %v751
  %v753 = vsel %vm697, %v655, 0.0
  %v754 = vadd.f32 %v752, %v753
  %v755 = vsel %vm697, %v663, 0.0
  %v756 = vadd.f32 %v754, %v755
  %v757 = vsel %vm697, %v662, 0.0
  %v758 = vadd.f32 %v756, %v757
  %v759 = vsel %vm697, %v664, 0.0
  %v760 = vadd.f32 %v758, %v759
  %761 = vadd.xlane.f32.xlu0 %v760
  %v762 = vpop.xlane.xlu0 %761
  %v763 = vld [vmem:[%s5] sm:$0x1]
  %v765 = vlaneseq
  %v766 = vshrl.u32 %v765, 7
  %v767 = vsub.s32 0, %v766
  %v768 = vrot.slane %v763, %v767
  %v770 = vmul.f32 %v220, %v768
  %v771 = vsel %vm697, %v770, 0.0
  %772 = vadd.xlane.f32.xlu0 %v771
  %v773 = vpop.xlane.xlu0 %772
  %v774 = vadd.f32 %v762, %v773
  %v775 = vxor.u32 %v774, 2147483648
  %v776 = vmul.f32 %v775, 1.442695
  %v777 = vpow.pop %v776
  %v778 = vadd.f32 %v777, 1.0
  %v779 = vrcp.pop %v778
  %v780 = vmul.f32 1.0, %v779
  %vm781 = vcmask 1024
  %782 = vst.msk [vmem:[%s6] sm:$0x3] %vm781, %v780
  // Predicated region
  $region26: #{discriminator_forward.9} parent=0 // pred_check
    _
  $region27: #{discriminator_forward.9} parent=0 // pred_check_branch
    %784 = sbr.rel (0) target = $region29
  $region28: #{discriminator_forward.9} parent=0 // pred_region
    _
  $region29: #{discriminator_forward.9} parent=0 // pred_fallthru
    _
  // Predicated region
  $region30: #{discriminator_forward.9} parent=0 // pred_check
    _
  $region31: #{discriminator_forward.9} parent=0 // pred_check_branch
    %786 = sbr.rel (0) target = $region33
  $region32: #{discriminator_forward.9} parent=0 // pred_region
    _
  $region33: #{discriminator_forward.9} parent=0 // pred_fallthru
    _

// kernel: discriminator_forward.8
$region0: #{discriminator_forward.8}
  #allocation0 [shape = 'u32[]', space=smem, size = 0x4, offset = 0x4, fixed_abs, tag = 'smem constant byte address 0x4 - core index']
  #allocation1 [shape = 'u32[144,128]{1,0:T(1,128)}', space=vmem, size = 0x12000, scoped, tag = 'internal scratch']
  %s0 = inlined_call_operand.vmem [shape: bf16[2,2,20,1024], index: 0, kind: input, shape index: {}]
  %s1 = inlined_call_operand.vmem [shape: bf16[4,1024,256], index: 1, kind: input, shape index: {}]
  %s2 = inlined_call_operand.vmem [shape: f32[1,256], index: 2, kind: input, shape index: {}]
  %s3 = inlined_call_operand.vmem [shape: f32[2,16,256], index: 3, kind: output, shape index: {}]
  %s4 = sld [smem:[#allocation0]]
  $region45: #{discriminator_forward.8} parent=0
    _
  %s6 = ssub.s32 1, %s4
  %s7 = scalar_select 0, %s6, %s4
  loop: start=0, step=1, limit=4
  $region2: #{discriminator_forward.8} parent=0 // loop_pre_header
    _
  $region3: #{discriminator_forward.8} parent=0 // loop_header
    %s9 = sphi 0, %s13
    %p10 = scmp.ge.s32.totalorder %s9, 4
    %s16 = sphi 0, %s28
    %s17 = sphi 0, %s24
    %s18 = sphi 0, %s16
    %s19 = sphi 0, %s17
    %s20 = sphi 0, %s18
    %s21 = sphi 0, %s19
    %s31 = sphi 0, %s33
    %s34 = sphi 0, %s31
    %s35 = sphi 0, %s34
    %s51 = sphi 0, %s35
    %s55 = sphi 0, %s55
    %s57 = sphi 0, %s55
    %s58 = sphi 0, %s57
    %s72 = sphi 0, %s58
    %s76 = sphi 0, %s76
    %s78 = sphi 0, %s76
    %s79 = sphi 0, %s78
    %s93 = sphi 0, %s79
    %s101 = sphi 0, %s103
    %s104 = sphi 0, %s101
    %s105 = sphi 0, %s104
    %s121 = sphi 0, %s105
  $region4: #{discriminator_forward.8} parent=0 // loop_header_branch
    %12 = sbr.rel (%p10) target = $region8
  $region5: #{discriminator_forward.8} parent=0 // loop_body
    %s14 = ssub.s32 %s9, 1
    %s15 = ssub.s32 %s9, 2
    %s22 = sadd.s32 1, %s17
    %p23 = scmp.ge.s32.totalorder %s22, 1
    %s24 = scalar_select %p23, 0, %s22
    %s25 = sadd.s32 1, %s16
    %s26 = scalar_select %p23, %s25, %s16
    %p27 = scmp.ge.s32.totalorder %s26, 2
    %s28 = scalar_select %p27, 0, %s26
    %s29 = ssub.s32 %s16, %s28
    %p30 = scmp.eq.s32.totalorder %s29, 0
    %s32 = sadd.s32 %s31, 1
    %s33 = scalar_select %p30, %s31, %s32
    %p36 = pneg %p30
    %p37 = scmp.eq.s32.totalorder %s9, 1
    %p38 = por %p36, %p37
    %p39 = scmp.ne.s32.totalorder %s31, %s34
    %p40 = scmp.eq.s32.totalorder %s9, 0
    %p41 = por %p39, %p40
    %p42 = scmp.ne.s32.totalorder %s31, %s34
    %p43 = scmp.eq.s32.totalorder %s14, 1
    %p44 = por %p42, %p43
    %p45 = scmp.ne.s32.totalorder %s34, %s35
    %p46 = scmp.eq.s32.totalorder %s14, 0
    %p47 = por %p45, %p46
    %p48 = scmp.ne.s32.totalorder %s34, %s35
    %p49 = scmp.eq.s32.totalorder %s15, 1
    %p50 = por %p48, %p49
    %p52 = scmp.ne.s32.totalorder %s35, %s51
    %p53 = scmp.eq.s32.totalorder %s15, 0
    %p54 = por %p52, %p53
    %s56 = sadd.s32 %s55, 1
    %p59 = scmp.eq.s32.totalorder %s9, 1
    %p60 = scmp.ne.s32.totalorder %s55, %s57
    %p61 = scmp.eq.s32.totalorder %s9, 0
    %p62 = por %p60, %p61
    %p63 = scmp.ne.s32.totalorder %s55, %s57
    %p64 = scmp.eq.s32.totalorder %s14, 1
    %p65 = por %p63, %p64
    %p66 = scmp.ne.s32.totalorder %s57, %s58
    %p67 = scmp.eq.s32.totalorder %s14, 0
    %p68 = por %p66, %p67
    %p69 = scmp.ne.s32.totalorder %s57, %s58
    %p70 = scmp.eq.s32.totalorder %s15, 1
    %p71 = por %p69, %p70
    %p73 = scmp.ne.s32.totalorder %s58, %s72
    %p74 = scmp.eq.s32.totalorder %s15, 0
    %p75 = por %p73, %p74
    %s77 = sadd.s32 %s76, 1
    %p80 = scmp.eq.s32.totalorder %s9, 1
    %p81 = scmp.ne.s32.totalorder %s76, %s78
    %p82 = scmp.eq.s32.totalorder %s9, 0
    %p83 = por %p81, %p82
    %p84 = scmp.ne.s32.totalorder %s76, %s78
    %p85 = scmp.eq.s32.totalorder %s14, 1
    %p86 = por %p84, %p85
    %p87 = scmp.ne.s32.totalorder %s78, %s79
    %p88 = scmp.eq.s32.totalorder %s14, 0
    %p89 = por %p87, %p88
    %p90 = scmp.ne.s32.totalorder %s78, %s79
    %p91 = scmp.eq.s32.totalorder %s15, 1
    %p92 = por %p90, %p91
    %p94 = scmp.ne.s32.totalorder %s79, %s93
    %p95 = scmp.eq.s32.totalorder %s15, 0
    %p96 = por %p94, %p95
    %s97 = ssub.s32 %s16, %s28
    %s98 = ssub.s32 %s17, %s24
    %s99 = sor.u32 %s97, %s98
    %p100 = scmp.eq.s32.totalorder %s99, 0
    %s102 = sadd.s32 %s101, 1
    %s103 = scalar_select %p100, %s101, %s102
    %p106 = pneg %p100
    %p107 = scmp.eq.s32.totalorder %s9, 1
    %p108 = por %p106, %p107
    %p109 = scmp.ne.s32.totalorder %s101, %s104
    %p110 = scmp.eq.s32.totalorder %s9, 0
    %p111 = por %p109, %p110
    %p112 = scmp.ne.s32.totalorder %s101, %s104
    %p113 = scmp.eq.s32.totalorder %s14, 1
    %p114 = por %p112, %p113
    %p115 = scmp.ne.s32.totalorder %s104, %s105
    %p116 = scmp.eq.s32.totalorder %s14, 0
    %p117 = por %p115, %p116
    %p118 = scmp.ne.s32.totalorder %s104, %s105
    %p119 = scmp.eq.s32.totalorder %s15, 1
    %p120 = por %p118, %p119
    %p122 = scmp.ne.s32.totalorder %s105, %s121
    %p123 = scmp.eq.s32.totalorder %s15, 0
    %p124 = por %p122, %p123
    %p125 = scmp.le.s32.totalorder 1, %s9
    %p126 = scmp.lt.s32.totalorder %s9, 3
    %p127 = pnand %p125, %p126
    %p128 = pneg %p127
    // Predicated region
    $region9: #{discriminator_forward.8} parent=5 // pred_check
      _
    $region10: #{discriminator_forward.8} parent=5 // pred_check_branch
      %130 = sbr.rel (%p127) target = $region12
    $region11: #{discriminator_forward.8} parent=5 // pred_region
      %s131 = ssub.s32 %s9, 1
      // Predicated region
      $region13: #{discriminator_forward.8} parent=11 // pred_check
        %p132 = pneg %p68
      $region14: #{discriminator_forward.8} parent=11 // pred_check_branch
        %134 = sbr.rel (%p132) target = $region16
      $region15: #{discriminator_forward.8} parent=11 // pred_region
        _
      $region16: #{discriminator_forward.8} parent=11 // pred_fallthru
        _
      // Predicated region
      $region17: #{discriminator_forward.8} parent=11 // pred_check
        %p135 = pneg %p89
      $region18: #{discriminator_forward.8} parent=11 // pred_check_branch
        %137 = sbr.rel (%p135) target = $region20
      $region19: #{discriminator_forward.8} parent=11 // pred_region
        _
      $region20: #{discriminator_forward.8} parent=11 // pred_fallthru
        _
    $region12: #{discriminator_forward.8} parent=5 // pred_fallthru
      _
    %p138 = scmp.lt.s32.totalorder %s9, 2
    // Predicated region
    $region21: #{discriminator_forward.8} parent=5 // pred_check
      %p139 = pneg %p138
    $region22: #{discriminator_forward.8} parent=5 // pred_check_branch
      %141 = sbr.rel (%p139) target = $region24
    $region23: #{discriminator_forward.8} parent=5 // pred_region
      // Predicated region
      $region25: #{discriminator_forward.8} parent=23 // pred_check
        %p142 = pneg %p41
      $region26: #{discriminator_forward.8} parent=23 // pred_check_branch
        %144 = sbr.rel (%p142) target = $region28
      $region27: #{discriminator_forward.8} parent=23 // pred_region
        %p145 = scmp.lt.s32.totalorder %s16, 1
        %s146 = scalar_select %p145, %s16, 1
        %s147 = smul.addr %s146, 48
        %s148 = smul.addr %s147, 4
        %s149 = scalar_lea.vmem %s0, %s148
      $region28: #{discriminator_forward.8} parent=23 // pred_fallthru
        _
    $region24: #{discriminator_forward.8} parent=5 // pred_fallthru
      _
    %p150 = scmp.le.s32.totalorder 1, %s9
    %p151 = scmp.lt.s32.totalorder %s9, 3
    %p152 = pnand %p150, %p151
    %p153 = pneg %p152
    // Predicated region
    $region29: #{discriminator_forward.8} parent=5 // pred_check
      _
    $region30: #{discriminator_forward.8} parent=5 // pred_check_branch
      %155 = sbr.rel (%p152) target = $region32
    $region31: #{discriminator_forward.8} parent=5 // pred_region
      %s156 = ssub.s32 %s9, 1
      %p157 = scmp.lt.s32.totalorder %s18, 1
      %s158 = scalar_select %p157, %s18, 1
      %s159 = smul.addr %s158, 48
      %s160 = smul.addr %s159, 4
      %s161 = scalar_lea.vmem %s0, %s160
      %p162 = pneg %p47
      %p163 = pneg %p44
      %p164 = pneg %p68
      %p165 = pneg %p65
      %p166 = pneg %p89
      %p167 = pneg %p86
      %p168 = pneg %p117
      %p169 = pneg %p114
      %s170 = smul.u32 2, %s19
      %p171 = scmp.lt.s32.totalorder %s18, 1
      %s172 = scalar_select %p171, %s18, 1
      %p173 = scmp.lt.s32.totalorder %s170, 1
      %s174 = scalar_select %p173, %s170, 1
      %s175 = smul.addr %s174, 2
      %s176 = smul.addr %s172, 4
      %s177 = sadd.s32 %s175, %s176
      %s178 = smul.addr %s177, 8
      %s179 = scalar_lea.vmem %s3, %s178
      %p180 = scmp.lt.s32.totalorder %s18, 1
      %s181 = scalar_select %p180, %s18, 1
      %s182 = smul.addr %s181, 48
      %s183 = smul.addr %s182, 4
      %s184 = scalar_lea.vmem %s0, %s183
      %s185 = smul.u32 2, %s19
      %p186 = scmp.lt.s32.totalorder %s18, 1
      %s187 = scalar_select %p186, %s18, 1
      %p188 = scmp.lt.s32.totalorder %s185, 1
      %s189 = scalar_select %p188, %s185, 1
      %s190 = smul.addr %s189, 2
      %s191 = smul.addr %s187, 4
      %s192 = sadd.s32 %s190, %s191
      %s193 = smul.addr %s192, 8
      %s194 = scalar_lea.vmem %s3, %s193
      %s195 = smul.u32 2, %s19
      %v196 = vld [vmem:[%s184] sm:$0xff]
      %v197 = vld [vmem:[%s184 + $0x8] sm:$0xff]
      %v198 = vld [vmem:[%s184 + $0x10] sm:$0xff]
      %v199 = vld [vmem:[%s184 + $0x18] sm:$0xff]
      %v200 = vld [vmem:[%s184 + $0x20] sm:$0xff]
      %v201 = vld [vmem:[%s184 + $0x28] sm:$0xff]
      %v202 = vld [vmem:[%s184 + $0x30] sm:$0xff]
      %v203 = vld [vmem:[%s184 + $0x38] sm:$0xff]
      %v204 = vld [vmem:[%s1] sm:$0xff]
      %v205 = vld [vmem:[%s1 + $0x8] sm:$0xff]
      %v206 = vld [vmem:[%s1 + $0x10] sm:$0xff]
      %v207 = vld [vmem:[%s1 + $0x18] sm:$0xff]
      %v208 = vld [vmem:[%s1 + $0x20] sm:$0xff]
      %v209 = vld [vmem:[%s1 + $0x28] sm:$0xff]
      %v210 = vld [vmem:[%s1 + $0x30] sm:$0xff]
      %v211 = vld [vmem:[%s1 + $0x38] sm:$0xff]
      %v212 = vld [vmem:[%s1 + $0x40] sm:$0xff]
      %v213 = vld [vmem:[%s1 + $0x48] sm:$0xff]
      %v214 = vld [vmem:[%s1 + $0x50] sm:$0xff]
      %v215 = vld [vmem:[%s1 + $0x58] sm:$0xff]
      %v216 = vld [vmem:[%s1 + $0x60] sm:$0xff]
      %v217 = vld [vmem:[%s1 + $0x68] sm:$0xff]
      %v218 = vld [vmem:[%s1 + $0x70] sm:$0xff]
      %v219 = vld [vmem:[%s1 + $0x78] sm:$0xff]
      %v220 = vld [vmem:[%s1 + $0x80] sm:$0xff]
      %v221 = vld [vmem:[%s1 + $0x88] sm:$0xff]
      %v222 = vld [vmem:[%s1 + $0x90] sm:$0xff]
      %v223 = vld [vmem:[%s1 + $0x98] sm:$0xff]
      %v224 = vld [vmem:[%s1 + $0xa0] sm:$0xff]
      %v225 = vld [vmem:[%s1 + $0xa8] sm:$0xff]
      %v226 = vld [vmem:[%s1 + $0xb0] sm:$0xff]
      %v227 = vld [vmem:[%s1 + $0xb8] sm:$0xff]
      %v228 = vld [vmem:[%s1 + $0xc0] sm:$0xff]
      %v229 = vld [vmem:[%s1 + $0xc8] sm:$0xff]
      %v230 = vld [vmem:[%s1 + $0xd0] sm:$0xff]
      %v231 = vld [vmem:[%s1 + $0xd8] sm:$0xff]
      %v232 = vld [vmem:[%s1 + $0xe0] sm:$0xff]
      %v233 = vld [vmem:[%s1 + $0xe8] sm:$0xff]
      %v234 = vld [vmem:[%s1 + $0xf0] sm:$0xff]
      %v235 = vld [vmem:[%s1 + $0xf8] sm:$0xff]
      %v236 = vld [vmem:[%s1 + $0x100] sm:$0xff]
      %v237 = vld [vmem:[%s1 + $0x108] sm:$0xff]
      %v238 = vld [vmem:[%s1 + $0x110] sm:$0xff]
      %v239 = vld [vmem:[%s1 + $0x118] sm:$0xff]
      %v240 = vld [vmem:[%s1 + $0x120] sm:$0xff]
      %v241 = vld [vmem:[%s1 + $0x128] sm:$0xff]
      %v242 = vld [vmem:[%s1 + $0x130] sm:$0xff]
      %v243 = vld [vmem:[%s1 + $0x138] sm:$0xff]
      %v244 = vld [vmem:[%s1 + $0x140] sm:$0xff]
      %v245 = vld [vmem:[%s1 + $0x148] sm:$0xff]
      %v246 = vld [vmem:[%s1 + $0x150] sm:$0xff]
      %v247 = vld [vmem:[%s1 + $0x158] sm:$0xff]
      %v248 = vld [vmem:[%s1 + $0x160] sm:$0xff]
      %v249 = vld [vmem:[%s1 + $0x168] sm:$0xff]
      %v250 = vld [vmem:[%s1 + $0x170] sm:$0xff]
      %v251 = vld [vmem:[%s1 + $0x178] sm:$0xff]
      %v252 = vld [vmem:[%s1 + $0x180] sm:$0xff]
      %v253 = vld [vmem:[%s1 + $0x188] sm:$0xff]
      %v254 = vld [vmem:[%s1 + $0x190] sm:$0xff]
      %v255 = vld [vmem:[%s1 + $0x198] sm:$0xff]
      %v256 = vld [vmem:[%s1 + $0x1a0] sm:$0xff]
      %v257 = vld [vmem:[%s1 + $0x1a8] sm:$0xff]
      %v258 = vld [vmem:[%s1 + $0x1b0] sm:$0xff]
      %v259 = vld [vmem:[%s1 + $0x1b8] sm:$0xff]
      %v260 = vld [vmem:[%s1 + $0x1c0] sm:$0xff]
      %v261 = vld [vmem:[%s1 + $0x1c8] sm:$0xff]
      %v262 = vld [vmem:[%s1 + $0x1d0] sm:$0xff]
      %v263 = vld [vmem:[%s1 + $0x1d8] sm:$0xff]
      %v264 = vld [vmem:[%s1 + $0x1e0] sm:$0xff]
      %v265 = vld [vmem:[%s1 + $0x1e8] sm:$0xff]
      %v266 = vld [vmem:[%s1 + $0x1f0] sm:$0xff]
      %v267 = vld [vmem:[%s1 + $0x1f8] sm:$0xff]
      %v268 = vld [vmem:[%s1 + $0x200] sm:$0xff]
      %v269 = vld [vmem:[%s1 + $0x208] sm:$0xff]
      %v270 = vld [vmem:[%s1 + $0x210] sm:$0xff]
      %v271 = vld [vmem:[%s1 + $0x218] sm:$0xff]
      %v272 = vld [vmem:[%s1 + $0x220] sm:$0xff]
      %v273 = vld [vmem:[%s1 + $0x228] sm:$0xff]
      %v274 = vld [vmem:[%s1 + $0x230] sm:$0xff]
      %v275 = vld [vmem:[%s1 + $0x238] sm:$0xff]
      %v276 = vld [vmem:[%s1 + $0x240] sm:$0xff]
      %v277 = vld [vmem:[%s1 + $0x248] sm:$0xff]
      %v278 = vld [vmem:[%s1 + $0x250] sm:$0xff]
      %v279 = vld [vmem:[%s1 + $0x258] sm:$0xff]
      %v280 = vld [vmem:[%s1 + $0x260] sm:$0xff]
      %v281 = vld [vmem:[%s1 + $0x268] sm:$0xff]
      %v282 = vld [vmem:[%s1 + $0x270] sm:$0xff]
      %v283 = vld [vmem:[%s1 + $0x278] sm:$0xff]
      %v284 = vld [vmem:[%s1 + $0x280] sm:$0xff]
      %v285 = vld [vmem:[%s1 + $0x288] sm:$0xff]
      %v286 = vld [vmem:[%s1 + $0x290] sm:$0xff]
      %v287 = vld [vmem:[%s1 + $0x298] sm:$0xff]
      %v288 = vld [vmem:[%s1 + $0x2a0] sm:$0xff]
      %v289 = vld [vmem:[%s1 + $0x2a8] sm:$0xff]
      %v290 = vld [vmem:[%s1 + $0x2b0] sm:$0xff]
      %v291 = vld [vmem:[%s1 + $0x2b8] sm:$0xff]
      %v292 = vld [vmem:[%s1 + $0x2c0] sm:$0xff]
      %v293 = vld [vmem:[%s1 + $0x2c8] sm:$0xff]
      %v294 = vld [vmem:[%s1 + $0x2d0] sm:$0xff]
      %v295 = vld [vmem:[%s1 + $0x2d8] sm:$0xff]
      %v296 = vld [vmem:[%s1 + $0x2e0] sm:$0xff]
      %v297 = vld [vmem:[%s1 + $0x2e8] sm:$0xff]
      %v298 = vld [vmem:[%s1 + $0x2f0] sm:$0xff]
      %v299 = vld [vmem:[%s1 + $0x2f8] sm:$0xff]
      %v300 = vld [vmem:[%s1 + $0x300] sm:$0xff]
      %v301 = vld [vmem:[%s1 + $0x308] sm:$0xff]
      %v302 = vld [vmem:[%s1 + $0x310] sm:$0xff]
      %v303 = vld [vmem:[%s1 + $0x318] sm:$0xff]
      %v304 = vld [vmem:[%s1 + $0x320] sm:$0xff]
      %v305 = vld [vmem:[%s1 + $0x328] sm:$0xff]
      %v306 = vld [vmem:[%s1 + $0x330] sm:$0xff]
      %v307 = vld [vmem:[%s1 + $0x338] sm:$0xff]
      %v308 = vld [vmem:[%s1 + $0x340] sm:$0xff]
      %v309 = vld [vmem:[%s1 + $0x348] sm:$0xff]
      %v310 = vld [vmem:[%s1 + $0x350] sm:$0xff]
      %v311 = vld [vmem:[%s1 + $0x358] sm:$0xff]
      %v312 = vld [vmem:[%s1 + $0x360] sm:$0xff]
      %v313 = vld [vmem:[%s1 + $0x368] sm:$0xff]
      %v314 = vld [vmem:[%s1 + $0x370] sm:$0xff]
      %v315 = vld [vmem:[%s1 + $0x378] sm:$0xff]
      %v316 = vld [vmem:[%s1 + $0x380] sm:$0xff]
      %v317 = vld [vmem:[%s1 + $0x388] sm:$0xff]
      %v318 = vld [vmem:[%s1 + $0x390] sm:$0xff]
      %v319 = vld [vmem:[%s1 + $0x398] sm:$0xff]
      %v320 = vld [vmem:[%s1 + $0x3a0] sm:$0xff]
      %v321 = vld [vmem:[%s1 + $0x3a8] sm:$0xff]
      %v322 = vld [vmem:[%s1 + $0x3b0] sm:$0xff]
      %v323 = vld [vmem:[%s1 + $0x3b8] sm:$0xff]
      %v324 = vld [vmem:[%s1 + $0x3c0] sm:$0xff]
      %v325 = vld [vmem:[%s1 + $0x3c8] sm:$0xff]
      %v326 = vld [vmem:[%s1 + $0x3d0] sm:$0xff]
      %v327 = vld [vmem:[%s1 + $0x3d8] sm:$0xff]
      %v328 = vld [vmem:[%s1 + $0x3e0] sm:$0xff]
      %v329 = vld [vmem:[%s1 + $0x3e8] sm:$0xff]
      %v330 = vld [vmem:[%s1 + $0x3f0] sm:$0xff]
      %v331 = vld [vmem:[%s1 + $0x3f8] sm:$0xff]
      %s332 = scalar_lea.vmem %s184, 96
      %v333 = vld [vmem:[%s332] sm:$0xff]
      %v334 = vld [vmem:[%s332 + $0x8] sm:$0xff]
      %v335 = vld [vmem:[%s332 + $0x10] sm:$0xff]
      %v336 = vld [vmem:[%s332 + $0x18] sm:$0xff]
      %v337 = vld [vmem:[%s332 + $0x20] sm:$0xff]
      %v338 = vld [vmem:[%s332 + $0x28] sm:$0xff]
      %v339 = vld [vmem:[%s332 + $0x30] sm:$0xff]
      %v340 = vld [vmem:[%s332 + $0x38] sm:$0xff]
      %s341 = scalar_lea.vmem %s1, 1024
      %v342 = vld [vmem:[%s341] sm:$0xff]
      %v343 = vld [vmem:[%s341 + $0x8] sm:$0xff]
      %v344 = vld [vmem:[%s341 + $0x10] sm:$0xff]
      %v345 = vld [vmem:[%s341 + $0x18] sm:$0xff]
      %v346 = vld [vmem:[%s341 + $0x20] sm:$0xff]
      %v347 = vld [vmem:[%s341 + $0x28] sm:$0xff]
      %v348 = vld [vmem:[%s341 + $0x30] sm:$0xff]
      %v349 = vld [vmem:[%s341 + $0x38] sm:$0xff]
      %v350 = vld [vmem:[%s341 + $0x40] sm:$0xff]
      %v351 = vld [vmem:[%s341 + $0x48] sm:$0xff]
      %v352 = vld [vmem:[%s341 + $0x50] sm:$0xff]
      %v353 = vld [vmem:[%s341 + $0x58] sm:$0xff]
      %v354 = vld [vmem:[%s341 + $0x60] sm:$0xff]
      %v355 = vld [vmem:[%s341 + $0x68] sm:$0xff]
      %v356 = vld [vmem:[%s341 + $0x70] sm:$0xff]
      %v357 = vld [vmem:[%s341 + $0x78] sm:$0xff]
      %v358 = vld [vmem:[%s341 + $0x80] sm:$0xff]
      %v359 = vld [vmem:[%s341 + $0x88] sm:$0xff]
      %v360 = vld [vmem:[%s341 + $0x90] sm:$0xff]
      %v361 = vld [vmem:[%s341 + $0x98] sm:$0xff]
      %v362 = vld [vmem:[%s341 + $0xa0] sm:$0xff]
      %v363 = vld [vmem:[%s341 + $0xa8] sm:$0xff]
      %v364 = vld [vmem:[%s341 + $0xb0] sm:$0xff]
      %v365 = vld [vmem:[%s341 + $0xb8] sm:$0xff]
      %v366 = vld [vmem:[%s341 + $0xc0] sm:$0xff]
      %v367 = vld [vmem:[%s341 + $0xc8] sm:$0xff]
      %v368 = vld [vmem:[%s341 + $0xd0] sm:$0xff]
      %v369 = vld [vmem:[%s341 + $0xd8] sm:$0xff]
      %v370 = vld [vmem:[%s341 + $0xe0] sm:$0xff]
      %v371 = vld [vmem:[%s341 + $0xe8] sm:$0xff]
      %v372 = vld [vmem:[%s341 + $0xf0] sm:$0xff]
      %v373 = vld [vmem:[%s341 + $0xf8] sm:$0xff]
      %v374 = vld [vmem:[%s341 + $0x100] sm:$0xff]
      %v375 = vld [vmem:[%s341 + $0x108] sm:$0xff]
      %v376 = vld [vmem:[%s341 + $0x110] sm:$0xff]
      %v377 = vld [vmem:[%s341 + $0x118] sm:$0xff]
      %v378 = vld [vmem:[%s341 + $0x120] sm:$0xff]
      %v379 = vld [vmem:[%s341 + $0x128] sm:$0xff]
      %v380 = vld [vmem:[%s341 + $0x130] sm:$0xff]
      %v381 = vld [vmem:[%s341 + $0x138] sm:$0xff]
      %v382 = vld [vmem:[%s341 + $0x140] sm:$0xff]
      %v383 = vld [vmem:[%s341 + $0x148] sm:$0xff]
      %v384 = vld [vmem:[%s341 + $0x150] sm:$0xff]
      %v385 = vld [vmem:[%s341 + $0x158] sm:$0xff]
      %v386 = vld [vmem:[%s341 + $0x160] sm:$0xff]
      %v387 = vld [vmem:[%s341 + $0x168] sm:$0xff]
      %v388 = vld [vmem:[%s341 + $0x170] sm:$0xff]
      %v389 = vld [vmem:[%s341 + $0x178] sm:$0xff]
      %v390 = vld [vmem:[%s341 + $0x180] sm:$0xff]
      %v391 = vld [vmem:[%s341 + $0x188] sm:$0xff]
      %v392 = vld [vmem:[%s341 + $0x190] sm:$0xff]
      %v393 = vld [vmem:[%s341 + $0x198] sm:$0xff]
      %v394 = vld [vmem:[%s341 + $0x1a0] sm:$0xff]
      %v395 = vld [vmem:[%s341 + $0x1a8] sm:$0xff]
      %v396 = vld [vmem:[%s341 + $0x1b0] sm:$0xff]
      %v397 = vld [vmem:[%s341 + $0x1b8] sm:$0xff]
      %v398 = vld [vmem:[%s341 + $0x1c0] sm:$0xff]
      %v399 = vld [vmem:[%s341 + $0x1c8] sm:$0xff]
      %v400 = vld [vmem:[%s341 + $0x1d0] sm:$0xff]
      %v401 = vld [vmem:[%s341 + $0x1d8] sm:$0xff]
      %v402 = vld [vmem:[%s341 + $0x1e0] sm:$0xff]
      %v403 = vld [vmem:[%s341 + $0x1e8] sm:$0xff]
      %v404 = vld [vmem:[%s341 + $0x1f0] sm:$0xff]
      %v405 = vld [vmem:[%s341 + $0x1f8] sm:$0xff]
      %v406 = vld [vmem:[%s341 + $0x200] sm:$0xff]
      %v407 = vld [vmem:[%s341 + $0x208] sm:$0xff]
      %v408 = vld [vmem:[%s341 + $0x210] sm:$0xff]
      %v409 = vld [vmem:[%s341 + $0x218] sm:$0xff]
      %v410 = vld [vmem:[%s341 + $0x220] sm:$0xff]
      %v411 = vld [vmem:[%s341 + $0x228] sm:$0xff]
      %v412 = vld [vmem:[%s341 + $0x230] sm:$0xff]
      %v413 = vld [vmem:[%s341 + $0x238] sm:$0xff]
      %v414 = vld [vmem:[%s341 + $0x240] sm:$0xff]
      %v415 = vld [vmem:[%s341 + $0x248] sm:$0xff]
      %v416 = vld [vmem:[%s341 + $0x250] sm:$0xff]
      %v417 = vld [vmem:[%s341 + $0x258] sm:$0xff]
      %v418 = vld [vmem:[%s341 + $0x260] sm:$0xff]
      %v419 = vld [vmem:[%s341 + $0x268] sm:$0xff]
      %v420 = vld [vmem:[%s341 + $0x270] sm:$0xff]
      %v421 = vld [vmem:[%s341 + $0x278] sm:$0xff]
      %v422 = vld [vmem:[%s341 + $0x280] sm:$0xff]
      %v423 = vld [vmem:[%s341 + $0x288] sm:$0xff]
      %v424 = vld [vmem:[%s341 + $0x290] sm:$0xff]
      %v425 = vld [vmem:[%s341 + $0x298] sm:$0xff]
      %v426 = vld [vmem:[%s341 + $0x2a0] sm:$0xff]
      %v427 = vld [vmem:[%s341 + $0x2a8] sm:$0xff]
      %v428 = vld [vmem:[%s341 + $0x2b0] sm:$0xff]
      %v429 = vld [vmem:[%s341 + $0x2b8] sm:$0xff]
      %v430 = vld [vmem:[%s341 + $0x2c0] sm:$0xff]
      %v431 = vld [vmem:[%s341 + $0x2c8] sm:$0xff]
      %v432 = vld [vmem:[%s341 + $0x2d0] sm:$0xff]
      %v433 = vld [vmem:[%s341 + $0x2d8] sm:$0xff]
      %v434 = vld [vmem:[%s341 + $0x2e0] sm:$0xff]
      %v435 = vld [vmem:[%s341 + $0x2e8] sm:$0xff]
      %v436 = vld [vmem:[%s341 + $0x2f0] sm:$0xff]
      %v437 = vld [vmem:[%s341 + $0x2f8] sm:$0xff]
      %v438 = vld [vmem:[%s341 + $0x300] sm:$0xff]
      %v439 = vld [vmem:[%s341 + $0x308] sm:$0xff]
      %v440 = vld [vmem:[%s341 + $0x310] sm:$0xff]
      %v441 = vld [vmem:[%s341 + $0x318] sm:$0xff]
      %v442 = vld [vmem:[%s341 + $0x320] sm:$0xff]
      %v443 = vld [vmem:[%s341 + $0x328] sm:$0xff]
      %v444 = vld [vmem:[%s341 + $0x330] sm:$0xff]
      %v445 = vld [vmem:[%s341 + $0x338] sm:$0xff]
      %v446 = vld [vmem:[%s341 + $0x340] sm:$0xff]
      %v447 = vld [vmem:[%s341 + $0x348] sm:$0xff]
      %v448 = vld [vmem:[%s341 + $0x350] sm:$0xff]
      %v449 = vld [vmem:[%s341 + $0x358] sm:$0xff]
      %v450 = vld [vmem:[%s341 + $0x360] sm:$0xff]
      %v451 = vld [vmem:[%s341 + $0x368] sm:$0xff]
      %v452 = vld [vmem:[%s341 + $0x370] sm:$0xff]
      %v453 = vld [vmem:[%s341 + $0x378] sm:$0xff]
      %v454 = vld [vmem:[%s341 + $0x380] sm:$0xff]
      %v455 = vld [vmem:[%s341 + $0x388] sm:$0xff]
      %v456 = vld [vmem:[%s341 + $0x390] sm:$0xff]
      %v457 = vld [vmem:[%s341 + $0x398] sm:$0xff]
      %v458 = vld [vmem:[%s341 + $0x3a0] sm:$0xff]
      %v459 = vld [vmem:[%s341 + $0x3a8] sm:$0xff]
      %v460 = vld [vmem:[%s341 + $0x3b0] sm:$0xff]
      %v461 = vld [vmem:[%s341 + $0x3b8] sm:$0xff]
      %v462 = vld [vmem:[%s341 + $0x3c0] sm:$0xff]
      %v463 = vld [vmem:[%s341 + $0x3c8] sm:$0xff]
      %v464 = vld [vmem:[%s341 + $0x3d0] sm:$0xff]
      %v465 = vld [vmem:[%s341 + $0x3d8] sm:$0xff]
      %v466 = vld [vmem:[%s341 + $0x3e0] sm:$0xff]
      %v467 = vld [vmem:[%s341 + $0x3e8] sm:$0xff]
      %v468 = vld [vmem:[%s341 + $0x3f0] sm:$0xff]
      %v469 = vld [vmem:[%s341 + $0x3f8] sm:$0xff]
      %v478 = vunpack.c.l.b16 %v333
      %v479 = vunpack.c.h.b16 %v333
      %v480 = vunpack.c.l.b16 %v334
      %v481 = vunpack.c.h.b16 %v334
      %v482 = vunpack.c.l.b16 %v335
      %v483 = vunpack.c.h.b16 %v335
      %v484 = vunpack.c.l.b16 %v336
      %v485 = vunpack.c.h.b16 %v336
      %v486 = vunpack.c.l.b16 %v337
      %v487 = vunpack.c.h.b16 %v337
      %v488 = vunpack.c.l.b16 %v338
      %v489 = vunpack.c.h.b16 %v338
      %v490 = vunpack.c.l.b16 %v339
      %v491 = vunpack.c.h.b16 %v339
      %v492 = vunpack.c.l.b16 %v340
      %v493 = vunpack.c.h.b16 %v340
      %v494 = vpack.c.b16 %v486, %v478
      %v495 = vpack.c.b16 %v487, %v479
      %v496 = vpack.c.b16 %v488, %v480
      %v497 = vpack.c.b16 %v489, %v481
      %v498 = vpack.c.b16 %v490, %v482
      %v499 = vpack.c.b16 %v491, %v483
      %v500 = vpack.c.b16 %v492, %v484
      %v501 = vpack.c.b16 %v493, %v485
      %v638 = vunpack.c.l.b16 %v342
      %v639 = vunpack.c.h.b16 %v342
      %v640 = vunpack.c.l.b16 %v343
      %v641 = vunpack.c.h.b16 %v343
      %v642 = vunpack.c.l.b16 %v344
      %v643 = vunpack.c.h.b16 %v344
      %v644 = vunpack.c.l.b16 %v345
      %v645 = vunpack.c.h.b16 %v345
      %v646 = vunpack.c.l.b16 %v346
      %v647 = vunpack.c.h.b16 %v346
      %v648 = vunpack.c.l.b16 %v347
      %v649 = vunpack.c.h.b16 %v347
      %v650 = vunpack.c.l.b16 %v348
      %v651 = vunpack.c.h.b16 %v348
      %v652 = vunpack.c.l.b16 %v349
      %v653 = vunpack.c.h.b16 %v349
      %v654 = vunpack.c.l.b16 %v350
      %v655 = vunpack.c.h.b16 %v350
      %v656 = vunpack.c.l.b16 %v351
      %v657 = vunpack.c.h.b16 %v351
      %v658 = vunpack.c.l.b16 %v352
      %v659 = vunpack.c.h.b16 %v352
      %v660 = vunpack.c.l.b16 %v353
      %v661 = vunpack.c.h.b16 %v353
      %v662 = vunpack.c.l.b16 %v354
      %v663 = vunpack.c.h.b16 %v354
      %v664 = vunpack.c.l.b16 %v355
      %v665 = vunpack.c.h.b16 %v355
      %v666 = vunpack.c.l.b16 %v356
      %v667 = vunpack.c.h.b16 %v356
      %v668 = vunpack.c.l.b16 %v357
      %v669 = vunpack.c.h.b16 %v357
      %v670 = vunpack.c.l.b16 %v358
      %v671 = vunpack.c.h.b16 %v358
      %v672 = vunpack.c.l.b16 %v359
      %v673 = vunpack.c.h.b16 %v359
      %v674 = vunpack.c.l.b16 %v360
      %v675 = vunpack.c.h.b16 %v360
      %v676 = vunpack.c.l.b16 %v361
      %v677 = vunpack.c.h.b16 %v361
      %v678 = vunpack.c.l.b16 %v362
      %v679 = vunpack.c.h.b16 %v362
      %v680 = vunpack.c.l.b16 %v363
      %v681 = vunpack.c.h.b16 %v363
      %v682 = vunpack.c.l.b16 %v364
      %v683 = vunpack.c.h.b16 %v364
      %v684 = vunpack.c.l.b16 %v365
      %v685 = vunpack.c.h.b16 %v365
      %v686 = vunpack.c.l.b16 %v366
      %v687 = vunpack.c.h.b16 %v366
      %v688 = vunpack.c.l.b16 %v367
      %v689 = vunpack.c.h.b16 %v367
      %v690 = vunpack.c.l.b16 %v368
      %v691 = vunpack.c.h.b16 %v368
      %v692 = vunpack.c.l.b16 %v369
      %v693 = vunpack.c.h.b16 %v369
      %v694 = vunpack.c.l.b16 %v370
      %v695 = vunpack.c.h.b16 %v370
      %v696 = vunpack.c.l.b16 %v371
      %v697 = vunpack.c.h.b16 %v371
      %v698 = vunpack.c.l.b16 %v372
      %v699 = vunpack.c.h.b16 %v372
      %v700 = vunpack.c.l.b16 %v373
      %v701 = vunpack.c.h.b16 %v373
      %v702 = vunpack.c.l.b16 %v374
      %v703 = vunpack.c.h.b16 %v374
      %v704 = vunpack.c.l.b16 %v375
      %v705 = vunpack.c.h.b16 %v375
      %v706 = vunpack.c.l.b16 %v376
      %v707 = vunpack.c.h.b16 %v376
      %v708 = vunpack.c.l.b16 %v377
      %v709 = vunpack.c.h.b16 %v377
      %v710 = vunpack.c.l.b16 %v378
      %v711 = vunpack.c.h.b16 %v378
      %v712 = vunpack.c.l.b16 %v379
      %v713 = vunpack.c.h.b16 %v379
      %v714 = vunpack.c.l.b16 %v380
      %v715 = vunpack.c.h.b16 %v380
      %v716 = vunpack.c.l.b16 %v381
      %v717 = vunpack.c.h.b16 %v381
      %v718 = vunpack.c.l.b16 %v382
      %v719 = vunpack.c.h.b16 %v382
      %v720 = vunpack.c.l.b16 %v383
      %v721 = vunpack.c.h.b16 %v383
      %v722 = vunpack.c.l.b16 %v384
      %v723 = vunpack.c.h.b16 %v384
      %v724 = vunpack.c.l.b16 %v385
      %v725 = vunpack.c.h.b16 %v385
      %v726 = vunpack.c.l.b16 %v386
      %v727 = vunpack.c.h.b16 %v386
      %v728 = vunpack.c.l.b16 %v387
      %v729 = vunpack.c.h.b16 %v387
      %v730 = vunpack.c.l.b16 %v388
      %v731 = vunpack.c.h.b16 %v388
      %v732 = vunpack.c.l.b16 %v389
      %v733 = vunpack.c.h.b16 %v389
      %v734 = vunpack.c.l.b16 %v390
      %v735 = vunpack.c.h.b16 %v390
      %v736 = vunpack.c.l.b16 %v391
      %v737 = vunpack.c.h.b16 %v391
      %v738 = vunpack.c.l.b16 %v392
      %v739 = vunpack.c.h.b16 %v392
      %v740 = vunpack.c.l.b16 %v393
      %v741 = vunpack.c.h.b16 %v393
      %v742 = vunpack.c.l.b16 %v394
      %v743 = vunpack.c.h.b16 %v394
      %v744 = vunpack.c.l.b16 %v395
      %v745 = vunpack.c.h.b16 %v395
      %v746 = vunpack.c.l.b16 %v396
      %v747 = vunpack.c.h.b16 %v396
      %v748 = vunpack.c.l.b16 %v397
      %v749 = vunpack.c.h.b16 %v397
      %v750 = vunpack.c.l.b16 %v398
      %v751 = vunpack.c.h.b16 %v398
      %v752 = vunpack.c.l.b16 %v399
      %v753 = vunpack.c.h.b16 %v399
      %v754 = vunpack.c.l.b16 %v400
      %v755 = vunpack.c.h.b16 %v400
      %v756 = vunpack.c.l.b16 %v401
      %v757 = vunpack.c.h.b16 %v401
      %v758 = vunpack.c.l.b16 %v402
      %v759 = vunpack.c.h.b16 %v402
      %v760 = vunpack.c.l.b16 %v403
      %v761 = vunpack.c.h.b16 %v403
      %v762 = vunpack.c.l.b16 %v404
      %v763 = vunpack.c.h.b16 %v404
      %v764 = vunpack.c.l.b16 %v405
      %v765 = vunpack.c.h.b16 %v405
      %v766 = vunpack.c.l.b16 %v406
      %v767 = vunpack.c.h.b16 %v406
      %v768 = vunpack.c.l.b16 %v407
      %v769 = vunpack.c.h.b16 %v407
      %v770 = vunpack.c.l.b16 %v408
      %v771 = vunpack.c.h.b16 %v408
      %v772 = vunpack.c.l.b16 %v409
      %v773 = vunpack.c.h.b16 %v409
      %v774 = vunpack.c.l.b16 %v410
      %v775 = vunpack.c.h.b16 %v410
      %v776 = vunpack.c.l.b16 %v411
      %v777 = vunpack.c.h.b16 %v411
      %v778 = vunpack.c.l.b16 %v412
      %v779 = vunpack.c.h.b16 %v412
      %v780 = vunpack.c.l.b16 %v413
      %v781 = vunpack.c.h.b16 %v413
      %v782 = vunpack.c.l.b16 %v414
      %v783 = vunpack.c.h.b16 %v414
      %v784 = vunpack.c.l.b16 %v415
      %v785 = vunpack.c.h.b16 %v415
      %v786 = vunpack.c.l.b16 %v416
      %v787 = vunpack.c.h.b16 %v416
      %v788 = vunpack.c.l.b16 %v417
      %v789 = vunpack.c.h.b16 %v417
      %v790 = vunpack.c.l.b16 %v418
      %v791 = vunpack.c.h.b16 %v418
      %v792 = vunpack.c.l.b16 %v419
      %v793 = vunpack.c.h.b16 %v419
      %v794 = vunpack.c.l.b16 %v420
      %v795 = vunpack.c.h.b16 %v420
      %v796 = vunpack.c.l.b16 %v421
      %v797 = vunpack.c.h.b16 %v421
      %v798 = vunpack.c.l.b16 %v422
      %v799 = vunpack.c.h.b16 %v422
      %v800 = vunpack.c.l.b16 %v423
      %v801 = vunpack.c.h.b16 %v423
      %v802 = vunpack.c.l.b16 %v424
      %v803 = vunpack.c.h.b16 %v424
      %v804 = vunpack.c.l.b16 %v425
      %v805 = vunpack.c.h.b16 %v425
      %v806 = vunpack.c.l.b16 %v426
      %v807 = vunpack.c.h.b16 %v426
      %v808 = vunpack.c.l.b16 %v427
      %v809 = vunpack.c.h.b16 %v427
      %v810 = vunpack.c.l.b16 %v428
      %v811 = vunpack.c.h.b16 %v428
      %v812 = vunpack.c.l.b16 %v429
      %v813 = vunpack.c.h.b16 %v429
      %v814 = vunpack.c.l.b16 %v430
      %v815 = vunpack.c.h.b16 %v430
      %v816 = vunpack.c.l.b16 %v431
      %v817 = vunpack.c.h.b16 %v431
      %v818 = vunpack.c.l.b16 %v432
      %v819 = vunpack.c.h.b16 %v432
      %v820 = vunpack.c.l.b16 %v433
      %v821 = vunpack.c.h.b16 %v433
      %v822 = vunpack.c.l.b16 %v434
      %v823 = vunpack.c.h.b16 %v434
      %v824 = vunpack.c.l.b16 %v435
      %v825 = vunpack.c.h.b16 %v435
      %v826 = vunpack.c.l.b16 %v436
      %v827 = vunpack.c.h.b16 %v436
      %v828 = vunpack.c.l.b16 %v437
      %v829 = vunpack.c.h.b16 %v437
      %v830 = vunpack.c.l.b16 %v438
      %v831 = vunpack.c.h.b16 %v438
      %v832 = vunpack.c.l.b16 %v439
      %v833 = vunpack.c.h.b16 %v439
      %v834 = vunpack.c.l.b16 %v440
      %v835 = vunpack.c.h.b16 %v440
      %v836 = vunpack.c.l.b16 %v441
      %v837 = vunpack.c.h.b16 %v441
      %v838 = vunpack.c.l.b16 %v442
      %v839 = vunpack.c.h.b16 %v442
      %v840 = vunpack.c.l.b16 %v443
      %v841 = vunpack.c.h.b16 %v443
      %v842 = vunpack.c.l.b16 %v444
      %v843 = vunpack.c.h.b16 %v444
      %v844 = vunpack.c.l.b16 %v445
      %v845 = vunpack.c.h.b16 %v445
      %v846 = vunpack.c.l.b16 %v446
      %v847 = vunpack.c.h.b16 %v446
      %v848 = vunpack.c.l.b16 %v447
      %v849 = vunpack.c.h.b16 %v447
      %v850 = vunpack.c.l.b16 %v448
      %v851 = vunpack.c.h.b16 %v448
      %v852 = vunpack.c.l.b16 %v449
      %v853 = vunpack.c.h.b16 %v449
      %v854 = vunpack.c.l.b16 %v450
      %v855 = vunpack.c.h.b16 %v450
      %v856 = vunpack.c.l.b16 %v451
      %v857 = vunpack.c.h.b16 %v451
      %v858 = vunpack.c.l.b16 %v452
      %v859 = vunpack.c.h.b16 %v452
      %v860 = vunpack.c.l.b16 %v453
      %v861 = vunpack.c.h.b16 %v453
      %v862 = vunpack.c.l.b16 %v454
      %v863 = vunpack.c.h.b16 %v454
      %v864 = vunpack.c.l.b16 %v455
      %v865 = vunpack.c.h.b16 %v455
      %v866 = vunpack.c.l.b16 %v456
      %v867 = vunpack.c.h.b16 %v456
      %v868 = vunpack.c.l.b16 %v457
      %v869 = vunpack.c.h.b16 %v457
      %v870 = vunpack.c.l.b16 %v458
      %v871 = vunpack.c.h.b16 %v458
      %v872 = vunpack.c.l.b16 %v459
      %v873 = vunpack.c.h.b16 %v459
      %v874 = vunpack.c.l.b16 %v460
      %v875 = vunpack.c.h.b16 %v460
      %v876 = vunpack.c.l.b16 %v461
      %v877 = vunpack.c.h.b16 %v461
      %v878 = vunpack.c.l.b16 %v462
      %v879 = vunpack.c.h.b16 %v462
      %v880 = vunpack.c.l.b16 %v463
      %v881 = vunpack.c.h.b16 %v463
      %v882 = vunpack.c.l.b16 %v464
      %v883 = vunpack.c.h.b16 %v464
      %v884 = vunpack.c.l.b16 %v465
      %v885 = vunpack.c.h.b16 %v465
      %v886 = vunpack.c.l.b16 %v466
      %v887 = vunpack.c.h.b16 %v466
      %v888 = vunpack.c.l.b16 %v467
      %v889 = vunpack.c.h.b16 %v467
      %v890 = vunpack.c.l.b16 %v468
      %v891 = vunpack.c.h.b16 %v468
      %v892 = vunpack.c.l.b16 %v469
      %v893 = vunpack.c.h.b16 %v469
      %v894 = vpack.c.b16 %v640, %v638
      %v895 = vpack.c.b16 %v641, %v639
      %v896 = vpack.c.b16 %v644, %v642
      %v897 = vpack.c.b16 %v645, %v643
      %v898 = vpack.c.b16 %v648, %v646
      %v899 = vpack.c.b16 %v649, %v647
      %v900 = vpack.c.b16 %v652, %v650
      %v901 = vpack.c.b16 %v653, %v651
      %v902 = vpack.c.b16 %v656, %v654
      %v903 = vpack.c.b16 %v657, %v655
      %v904 = vpack.c.b16 %v660, %v658
      %v905 = vpack.c.b16 %v661, %v659
      %v906 = vpack.c.b16 %v664, %v662
      %v907 = vpack.c.b16 %v665, %v663
      %v908 = vpack.c.b16 %v668, %v666
      %v909 = vpack.c.b16 %v669, %v667
      %v910 = vpack.c.b16 %v672, %v670
      %v911 = vpack.c.b16 %v673, %v671
      %v912 = vpack.c.b16 %v676, %v674
      %v913 = vpack.c.b16 %v677, %v675
      %v914 = vpack.c.b16 %v680, %v678
      %v915 = vpack.c.b16 %v681, %v679
      %v916 = vpack.c.b16 %v684, %v682
      %v917 = vpack.c.b16 %v685, %v683
      %v918 = vpack.c.b16 %v688, %v686
      %v919 = vpack.c.b16 %v689, %v687
      %v920 = vpack.c.b16 %v692, %v690
      %v921 = vpack.c.b16 %v693, %v691
      %v922 = vpack.c.b16 %v696, %v694
      %v923 = vpack.c.b16 %v697, %v695
      %v924 = vpack.c.b16 %v700, %v698
      %v925 = vpack.c.b16 %v701, %v699
      %v926 = vpack.c.b16 %v704, %v702
      %v927 = vpack.c.b16 %v705, %v703
      %v928 = vpack.c.b16 %v708, %v706
      %v929 = vpack.c.b16 %v709, %v707
      %v930 = vpack.c.b16 %v712, %v710
      %v931 = vpack.c.b16 %v713, %v711
      %v932 = vpack.c.b16 %v716, %v714
      %v933 = vpack.c.b16 %v717, %v715
      %v934 = vpack.c.b16 %v720, %v718
      %v935 = vpack.c.b16 %v721, %v719
      %v936 = vpack.c.b16 %v724, %v722
      %v937 = vpack.c.b16 %v725, %v723
      %v938 = vpack.c.b16 %v728, %v726
      %v939 = vpack.c.b16 %v729, %v727
      %v940 = vpack.c.b16 %v732, %v730
      %v941 = vpack.c.b16 %v733, %v731
      %v942 = vpack.c.b16 %v736, %v734
      %v943 = vpack.c.b16 %v737, %v735
      %v944 = vpack.c.b16 %v740, %v738
      %v945 = vpack.c.b16 %v741, %v739
      %v946 = vpack.c.b16 %v744, %v742
      %v947 = vpack.c.b16 %v745, %v743
      %v948 = vpack.c.b16 %v748, %v746
      %v949 = vpack.c.b16 %v749, %v747
      %v950 = vpack.c.b16 %v752, %v750
      %v951 = vpack.c.b16 %v753, %v751
      %v952 = vpack.c.b16 %v756, %v754
      %v953 = vpack.c.b16 %v757, %v755
      %v954 = vpack.c.b16 %v760, %v758
      %v955 = vpack.c.b16 %v761, %v759
      %v956 = vpack.c.b16 %v764, %v762
      %v957 = vpack.c.b16 %v765, %v763
      %v958 = vpack.c.b16 %v768, %v766
      %v959 = vpack.c.b16 %v769, %v767
      %v960 = vpack.c.b16 %v772, %v770
      %v961 = vpack.c.b16 %v773, %v771
      %v962 = vpack.c.b16 %v776, %v774
      %v963 = vpack.c.b16 %v777, %v775
      %v964 = vpack.c.b16 %v780, %v778
      %v965 = vpack.c.b16 %v781, %v779
      %v966 = vpack.c.b16 %v784, %v782
      %v967 = vpack.c.b16 %v785, %v783
      %v968 = vpack.c.b16 %v788, %v786
      %v969 = vpack.c.b16 %v789, %v787
      %v970 = vpack.c.b16 %v792, %v790
      %v971 = vpack.c.b16 %v793, %v791
      %v972 = vpack.c.b16 %v796, %v794
      %v973 = vpack.c.b16 %v797, %v795
      %v974 = vpack.c.b16 %v800, %v798
      %v975 = vpack.c.b16 %v801, %v799
      %v976 = vpack.c.b16 %v804, %v802
      %v977 = vpack.c.b16 %v805, %v803
      %v978 = vpack.c.b16 %v808, %v806
      %v979 = vpack.c.b16 %v809, %v807
      %v980 = vpack.c.b16 %v812, %v810
      %v981 = vpack.c.b16 %v813, %v811
      %v982 = vpack.c.b16 %v816, %v814
      %v983 = vpack.c.b16 %v817, %v815
      %v984 = vpack.c.b16 %v820, %v818
      %v985 = vpack.c.b16 %v821, %v819
      %v986 = vpack.c.b16 %v824, %v822
      %v987 = vpack.c.b16 %v825, %v823
      %v988 = vpack.c.b16 %v828, %v826
      %v989 = vpack.c.b16 %v829, %v827
      %v990 = vpack.c.b16 %v832, %v830
      %v991 = vpack.c.b16 %v833, %v831
      %v992 = vpack.c.b16 %v836, %v834
      %v993 = vpack.c.b16 %v837, %v835
      %v994 = vpack.c.b16 %v840, %v838
      %v995 = vpack.c.b16 %v841, %v839
      %v996 = vpack.c.b16 %v844, %v842
      %v997 = vpack.c.b16 %v845, %v843
      %v998 = vpack.c.b16 %v848, %v846
      %v999 = vpack.c.b16 %v849, %v847
      %v1000 = vpack.c.b16 %v852, %v850
      %v1001 = vpack.c.b16 %v853, %v851
      %v1002 = vpack.c.b16 %v856, %v854
      %v1003 = vpack.c.b16 %v857, %v855
      %v1004 = vpack.c.b16 %v860, %v858
      %v1005 = vpack.c.b16 %v861, %v859
      %v1006 = vpack.c.b16 %v864, %v862
      %v1007 = vpack.c.b16 %v865, %v863
      %v1008 = vpack.c.b16 %v868, %v866
      %v1009 = vpack.c.b16 %v869, %v867
      %v1010 = vpack.c.b16 %v872, %v870
      %v1011 = vpack.c.b16 %v873, %v871
      %v1012 = vpack.c.b16 %v876, %v874
      %v1013 = vpack.c.b16 %v877, %v875
      %v1014 = vpack.c.b16 %v880, %v878
      %v1015 = vpack.c.b16 %v881, %v879
      %v1016 = vpack.c.b16 %v884, %v882
      %v1017 = vpack.c.b16 %v885, %v883
      %v1018 = vpack.c.b16 %v888, %v886
      %v1019 = vpack.c.b16 %v889, %v887
      %v1020 = vpack.c.b16 %v892, %v890
      %v1021 = vpack.c.b16 %v893, %v891
      %1150 = vmatprep.subr.bf16.mxu0 %v895
      %1151 = vmatpush1.bf16.msra.mxu0 %v894
      %1152 = vmatprep.subr.bf16.mxu0 %v897
      %1153 = vmatpush1.bf16.msra.mxu0 %v896
      %1154 = vmatprep.subr.bf16.mxu0 %v899
      %1155 = vmatpush1.bf16.msra.mxu0 %v898
      %1156 = vmatprep.subr.bf16.mxu0 %v901
      %1157 = vmatpush1.bf16.msra.mxu0 %v900
      %1158 = vmatprep.subr.bf16.mxu0 %v903
      %1159 = vmatpush1.bf16.msra.mxu0 %v902
      %1160 = vmatprep.subr.bf16.mxu0 %v905
      %1161 = vmatpush1.bf16.msra.mxu0 %v904
      %1162 = vmatprep.subr.bf16.mxu0 %v907
      %1163 = vmatpush1.bf16.msra.mxu0 %v906
      %1164 = vmatprep.subr.bf16.mxu0 %v909
      %1165 = vmatpush1.bf16.msra.mxu0 %v908
      %1166 = vmatprep.subr.bf16.mxu0 %v911
      %1167 = vmatpush1.bf16.msra.mxu0 %v910
      %1168 = vmatprep.subr.bf16.mxu0 %v913
      %1169 = vmatpush1.bf16.msra.mxu0 %v912
      %1170 = vmatprep.subr.bf16.mxu0 %v915
      %1171 = vmatpush1.bf16.msra.mxu0 %v914
      %1172 = vmatprep.subr.bf16.mxu0 %v917
      %1173 = vmatpush1.bf16.msra.mxu0 %v916
      %1174 = vmatprep.subr.bf16.mxu0 %v919
      %1175 = vmatpush1.bf16.msra.mxu0 %v918
      %1176 = vmatprep.subr.bf16.mxu0 %v921
      %1177 = vmatpush1.bf16.msra.mxu0 %v920
      %1178 = vmatprep.subr.bf16.mxu0 %v923
      %1179 = vmatpush1.bf16.msra.mxu0 %v922
      %1180 = vmatprep.subr.bf16.mxu0 %v925
      %1181 = vmatpush1.bf16.msra.mxu0 %v924
      %1182 = vmatprep.mubr.bf16.mxu0 %v495
      %1183 = vmatmul.mubr.bf16.gmra.mrb[0].mxu0 %v494
      %v1184 = vpop.f32.mrb[0].mxu0
      %v1185 = vadd.f32 0.0, %v1184
      %v1186 = vpop.f32.mrb[0].mxu0
      %v1187 = vadd.f32 0.0, %v1186
      %v1188 = vpop.f32.mrb[0].mxu0
      %v1189 = vadd.f32 0.0, %v1188
      %v1190 = vpop.f32.mrb[0].mxu0
      %v1191 = vadd.f32 0.0, %v1190
      %1192 = vdwg.mxu0
      %1193 = vmatprep.subr.bf16.mxu0 %v927
      %1194 = vmatpush1.bf16.msra.mxu0 %v926
      %1195 = vmatprep.subr.bf16.mxu0 %v929
      %1196 = vmatpush1.bf16.msra.mxu0 %v928
      %1197 = vmatprep.subr.bf16.mxu0 %v931
      %1198 = vmatpush1.bf16.msra.mxu0 %v930
      %1199 = vmatprep.subr.bf16.mxu0 %v933
      %1200 = vmatpush1.bf16.msra.mxu0 %v932
      %1201 = vmatprep.subr.bf16.mxu0 %v935
      %1202 = vmatpush1.bf16.msra.mxu0 %v934
      %1203 = vmatprep.subr.bf16.mxu0 %v937
      %1204 = vmatpush1.bf16.msra.mxu0 %v936
      %1205 = vmatprep.subr.bf16.mxu0 %v939
      %1206 = vmatpush1.bf16.msra.mxu0 %v938
      %1207 = vmatprep.subr.bf16.mxu0 %v941
      %1208 = vmatpush1.bf16.msra.mxu0 %v940
      %1209 = vmatprep.subr.bf16.mxu0 %v943
      %1210 = vmatpush1.bf16.msra.mxu0 %v942
      %1211 = vmatprep.subr.bf16.mxu0 %v945
      %1212 = vmatpush1.bf16.msra.mxu0 %v944
      %1213 = vmatprep.subr.bf16.mxu0 %v947
      %1214 = vmatpush1.bf16.msra.mxu0 %v946
      %1215 = vmatprep.subr.bf16.mxu0 %v949
      %1216 = vmatpush1.bf16.msra.mxu0 %v948
      %1217 = vmatprep.subr.bf16.mxu0 %v951
      %1218 = vmatpush1.bf16.msra.mxu0 %v950
      %1219 = vmatprep.subr.bf16.mxu0 %v953
      %1220 = vmatpush1.bf16.msra.mxu0 %v952
      %1221 = vmatprep.subr.bf16.mxu0 %v955
      %1222 = vmatpush1.bf16.msra.mxu0 %v954
      %1223 = vmatprep.subr.bf16.mxu0 %v957
      %1224 = vmatpush1.bf16.msra.mxu0 %v956
      %1225 = vmatprep.mubr.bf16.mxu0 %v497
      %1226 = vmatmul.mubr.bf16.gmra.mrb[0].mxu0 %v496
      %v1227 = vpop.f32.mrb[0].mxu0
      %v1228 = vadd.f32 %v1185, %v1227
      %v1229 = vpop.f32.mrb[0].mxu0
      %v1230 = vadd.f32 %v1187, %v1229
      %v1231 = vpop.f32.mrb[0].mxu0
      %v1232 = vadd.f32 %v1189, %v1231
      %v1233 = vpop.f32.mrb[0].mxu0
      %v1234 = vadd.f32 %v1191, %v1233
      %1235 = vdwg.mxu0
      %1236 = vmatprep.subr.bf16.mxu0 %v959
      %1237 = vmatpush1.bf16.msra.mxu0 %v958
      %1238 = vmatprep.subr.bf16.mxu0 %v961
      %1239 = vmatpush1.bf16.msra.mxu0 %v960
      %1240 = vmatprep.subr.bf16.mxu0 %v963
      %1241 = vmatpush1.bf16.msra.mxu0 %v962
      %1242 = vmatprep.subr.bf16.mxu0 %v965
      %1243 = vmatpush1.bf16.msra.mxu0 %v964
      %1244 = vmatprep.subr.bf16.mxu0 %v967
      %1245 = vmatpush1.bf16.msra.mxu0 %v966
      %1246 = vmatprep.subr.bf16.mxu0 %v969
      %1247 = vmatpush1.bf16.msra.mxu0 %v968
      %1248 = vmatprep.subr.bf16.mxu0 %v971
      %1249 = vmatpush1.bf16.msra.mxu0 %v970
      %1250 = vmatprep.subr.bf16.mxu0 %v973
      %1251 = vmatpush1.bf16.msra.mxu0 %v972
      %1252 = vmatprep.subr.bf16.mxu0 %v975
      %1253 = vmatpush1.bf16.msra.mxu0 %v974
      %1254 = vmatprep.subr.bf16.mxu0 %v977
      %1255 = vmatpush1.bf16.msra.mxu0 %v976
      %1256 = vmatprep.subr.bf16.mxu0 %v979
      %1257 = vmatpush1.bf16.msra.mxu0 %v978
      %1258 = vmatprep.subr.bf16.mxu0 %v981
      %1259 = vmatpush1.bf16.msra.mxu0 %v980
      %1260 = vmatprep.subr.bf16.mxu0 %v983
      %1261 = vmatpush1.bf16.msra.mxu0 %v982
      %1262 = vmatprep.subr.bf16.mxu0 %v985
      %1263 = vmatpush1.bf16.msra.mxu0 %v984
      %1264 = vmatprep.subr.bf16.mxu0 %v987
      %1265 = vmatpush1.bf16.msra.mxu0 %v986
      %1266 = vmatprep.subr.bf16.mxu0 %v989
      %1267 = vmatpush1.bf16.msra.mxu0 %v988
      %1268 = vmatprep.mubr.bf16.mxu0 %v499
      %1269 = vmatmul.mubr.bf16.gmra.mrb[0].mxu0 %v498
      %v1270 = vpop.f32.mrb[0].mxu0
      %v1271 = vadd.f32 %v1228, %v1270
      %v1272 = vpop.f32.mrb[0].mxu0
      %v1273 = vadd.f32 %v1230, %v1272
      %v1274 = vpop.f32.mrb[0].mxu0
      %v1275 = vadd.f32 %v1232, %v1274
      %v1276 = vpop.f32.mrb[0].mxu0
      %v1277 = vadd.f32 %v1234, %v1276
      %1278 = vdwg.mxu0
      %1279 = vmatprep.subr.bf16.mxu0 %v991
      %1280 = vmatpush1.bf16.msra.mxu0 %v990
      %1281 = vmatprep.subr.bf16.mxu0 %v993
      %1282 = vmatpush1.bf16.msra.mxu0 %v992
      %1283 = vmatprep.subr.bf16.mxu0 %v995
      %1284 = vmatpush1.bf16.msra.mxu0 %v994
      %1285 = vmatprep.subr.bf16.mxu0 %v997
      %1286 = vmatpush1.bf16.msra.mxu0 %v996
      %1287 = vmatprep.subr.bf16.mxu0 %v999
      %1288 = vmatpush1.bf16.msra.mxu0 %v998
      %1289 = vmatprep.subr.bf16.mxu0 %v1001
      %1290 = vmatpush1.bf16.msra.mxu0 %v1000
      %1291 = vmatprep.subr.bf16.mxu0 %v1003
      %1292 = vmatpush1.bf16.msra.mxu0 %v1002
      %1293 = vmatprep.subr.bf16.mxu0 %v1005
      %1294 = vmatpush1.bf16.msra.mxu0 %v1004
      %1295 = vmatprep.subr.bf16.mxu0 %v1007
      %1296 = vmatpush1.bf16.msra.mxu0 %v1006
      %1297 = vmatprep.subr.bf16.mxu0 %v1009
      %1298 = vmatpush1.bf16.msra.mxu0 %v1008
      %1299 = vmatprep.subr.bf16.mxu0 %v1011
      %1300 = vmatpush1.bf16.msra.mxu0 %v1010
      %1301 = vmatprep.subr.bf16.mxu0 %v1013
      %1302 = vmatpush1.bf16.msra.mxu0 %v1012
      %1303 = vmatprep.subr.bf16.mxu0 %v1015
      %1304 = vmatpush1.bf16.msra.mxu0 %v1014
      %1305 = vmatprep.subr.bf16.mxu0 %v1017
      %1306 = vmatpush1.bf16.msra.mxu0 %v1016
      %1307 = vmatprep.subr.bf16.mxu0 %v1019
      %1308 = vmatpush1.bf16.msra.mxu0 %v1018
      %1309 = vmatprep.subr.bf16.mxu0 %v1021
      %1310 = vmatpush1.bf16.msra.mxu0 %v1020
      %1311 = vmatprep.mubr.bf16.mxu0 %v501
      %1312 = vmatmul.mubr.bf16.gmra.mrb[0].mxu0 %v500
      %v1313 = vpop.f32.mrb[0].mxu0
      %v1314 = vadd.f32 %v1271, %v1313
      %v1315 = vpop.f32.mrb[0].mxu0
      %v1316 = vadd.f32 %v1273, %v1315
      %v1317 = vpop.f32.mrb[0].mxu0
      %v1318 = vadd.f32 %v1275, %v1317
      %v1319 = vpop.f32.mrb[0].mxu0
      %v1320 = vadd.f32 %v1277, %v1319
      %1321 = vdwg.mxu0
      %v1330 = vunpack.c.l.b16 %v196
      %v1331 = vunpack.c.h.b16 %v196
      %v1332 = vunpack.c.l.b16 %v197
      %v1333 = vunpack.c.h.b16 %v197
      %v1334 = vunpack.c.l.b16 %v198
      %v1335 = vunpack.c.h.b16 %v198
      %v1336 = vunpack.c.l.b16 %v199
      %v1337 = vunpack.c.h.b16 %v199
      %v1338 = vunpack.c.l.b16 %v200
      %v1339 = vunpack.c.h.b16 %v200
      %v1340 = vunpack.c.l.b16 %v201
      %v1341 = vunpack.c.h.b16 %v201
      %v1342 = vunpack.c.l.b16 %v202
      %v1343 = vunpack.c.h.b16 %v202
      %v1344 = vunpack.c.l.b16 %v203
      %v1345 = vunpack.c.h.b16 %v203
      %v1346 = vpack.c.b16 %v1338, %v1330
      %v1347 = vpack.c.b16 %v1339, %v1331
      %v1348 = vpack.c.b16 %v1340, %v1332
      %v1349 = vpack.c.b16 %v1341, %v1333
      %v1350 = vpack.c.b16 %v1342, %v1334
      %v1351 = vpack.c.b16 %v1343, %v1335
      %v1352 = vpack.c.b16 %v1344, %v1336
      %v1353 = vpack.c.b16 %v1345, %v1337
      %v1490 = vunpack.c.l.b16 %v204
      %v1491 = vunpack.c.h.b16 %v204
      %v1492 = vunpack.c.l.b16 %v205
      %v1493 = vunpack.c.h.b16 %v205
      %v1494 = vunpack.c.l.b16 %v206
      %v1495 = vunpack.c.h.b16 %v206
      %v1496 = vunpack.c.l.b16 %v207
      %v1497 = vunpack.c.h.b16 %v207
      %v1498 = vunpack.c.l.b16 %v208
      %v1499 = vunpack.c.h.b16 %v208
      %v1500 = vunpack.c.l.b16 %v209
      %v1501 = vunpack.c.h.b16 %v209
      %v1502 = vunpack.c.l.b16 %v210
      %v1503 = vunpack.c.h.b16 %v210
      %v1504 = vunpack.c.l.b16 %v211
      %v1505 = vunpack.c.h.b16 %v211
      %v1506 = vunpack.c.l.b16 %v212
      %v1507 = vunpack.c.h.b16 %v212
      %v1508 = vunpack.c.l.b16 %v213
      %v1509 = vunpack.c.h.b16 %v213
      %v1510 = vunpack.c.l.b16 %v214
      %v1511 = vunpack.c.h.b16 %v214
      %v1512 = vunpack.c.l.b16 %v215
      %v1513 = vunpack.c.h.b16 %v215
      %v1514 = vunpack.c.l.b16 %v216
      %v1515 = vunpack.c.h.b16 %v216
      %v1516 = vunpack.c.l.b16 %v217
      %v1517 = vunpack.c.h.b16 %v217
      %v1518 = vunpack.c.l.b16 %v218
      %v1519 = vunpack.c.h.b16 %v218
      %v1520 = vunpack.c.l.b16 %v219
      %v1521 = vunpack.c.h.b16 %v219
      %v1522 = vunpack.c.l.b16 %v220
      %v1523 = vunpack.c.h.b16 %v220
      %v1524 = vunpack.c.l.b16 %v221
      %v1525 = vunpack.c.h.b16 %v221
      %v1526 = vunpack.c.l.b16 %v222
      %v1527 = vunpack.c.h.b16 %v222
      %v1528 = vunpack.c.l.b16 %v223
      %v1529 = vunpack.c.h.b16 %v223
      %v1530 = vunpack.c.l.b16 %v224
      %v1531 = vunpack.c.h.b16 %v224
      %v1532 = vunpack.c.l.b16 %v225
      %v1533 = vunpack.c.h.b16 %v225
      %v1534 = vunpack.c.l.b16 %v226
      %v1535 = vunpack.c.h.b16 %v226
      %v1536 = vunpack.c.l.b16 %v227
      %v1537 = vunpack.c.h.b16 %v227
      %v1538 = vunpack.c.l.b16 %v228
      %v1539 = vunpack.c.h.b16 %v228
      %v1540 = vunpack.c.l.b16 %v229
      %v1541 = vunpack.c.h.b16 %v229
      %v1542 = vunpack.c.l.b16 %v230
      %v1543 = vunpack.c.h.b16 %v230
      %v1544 = vunpack.c.l.b16 %v231
      %v1545 = vunpack.c.h.b16 %v231
      %v1546 = vunpack.c.l.b16 %v232
      %v1547 = vunpack.c.h.b16 %v232
      %v1548 = vunpack.c.l.b16 %v233
      %v1549 = vunpack.c.h.b16 %v233
      %v1550 = vunpack.c.l.b16 %v234
      %v1551 = vunpack.c.h.b16 %v234
      %v1552 = vunpack.c.l.b16 %v235
      %v1553 = vunpack.c.h.b16 %v235
      %v1554 = vunpack.c.l.b16 %v236
      %v1555 = vunpack.c.h.b16 %v236
      %v1556 = vunpack.c.l.b16 %v237
      %v1557 = vunpack.c.h.b16 %v237
      %v1558 = vunpack.c.l.b16 %v238
      %v1559 = vunpack.c.h.b16 %v238
      %v1560 = vunpack.c.l.b16 %v239
      %v1561 = vunpack.c.h.b16 %v239
      %v1562 = vunpack.c.l.b16 %v240
      %v1563 = vunpack.c.h.b16 %v240
      %v1564 = vunpack.c.l.b16 %v241
      %v1565 = vunpack.c.h.b16 %v241
      %v1566 = vunpack.c.l.b16 %v242
      %v1567 = vunpack.c.h.b16 %v242
      %v1568 = vunpack.c.l.b16 %v243
      %v1569 = vunpack.c.h.b16 %v243
      %v1570 = vunpack.c.l.b16 %v244
      %v1571 = vunpack.c.h.b16 %v244
      %v1572 = vunpack.c.l.b16 %v245
      %v1573 = vunpack.c.h.b16 %v245
      %v1574 = vunpack.c.l.b16 %v246
      %v1575 = vunpack.c.h.b16 %v246
      %v1576 = vunpack.c.l.b16 %v247
      %v1577 = vunpack.c.h.b16 %v247
      %v1578 = vunpack.c.l.b16 %v248
      %v1579 = vunpack.c.h.b16 %v248
      %v1580 = vunpack.c.l.b16 %v249
      %v1581 = vunpack.c.h.b16 %v249
      %v1582 = vunpack.c.l.b16 %v250
      %v1583 = vunpack.c.h.b16 %v250
      %v1584 = vunpack.c.l.b16 %v251
      %v1585 = vunpack.c.h.b16 %v251
      %v1586 = vunpack.c.l.b16 %v252
      %v1587 = vunpack.c.h.b16 %v252
      %v1588 = vunpack.c.l.b16 %v253
      %v1589 = vunpack.c.h.b16 %v253
      %v1590 = vunpack.c.l.b16 %v254
      %v1591 = vunpack.c.h.b16 %v254
      %v1592 = vunpack.c.l.b16 %v255
      %v1593 = vunpack.c.h.b16 %v255
      %v1594 = vunpack.c.l.b16 %v256
      %v1595 = vunpack.c.h.b16 %v256
      %v1596 = vunpack.c.l.b16 %v257
      %v1597 = vunpack.c.h.b16 %v257
      %v1598 = vunpack.c.l.b16 %v258
      %v1599 = vunpack.c.h.b16 %v258
      %v1600 = vunpack.c.l.b16 %v259
      %v1601 = vunpack.c.h.b16 %v259
      %v1602 = vunpack.c.l.b16 %v260
      %v1603 = vunpack.c.h.b16 %v260
      %v1604 = vunpack.c.l.b16 %v261
      %v1605 = vunpack.c.h.b16 %v261
      %v1606 = vunpack.c.l.b16 %v262
      %v1607 = vunpack.c.h.b16 %v262
      %v1608 = vunpack.c.l.b16 %v263
      %v1609 = vunpack.c.h.b16 %v263
      %v1610 = vunpack.c.l.b16 %v264
      %v1611 = vunpack.c.h.b16 %v264
      %v1612 = vunpack.c.l.b16 %v265
      %v1613 = vunpack.c.h.b16 %v265
      %v1614 = vunpack.c.l.b16 %v266
      %v1615 = vunpack.c.h.b16 %v266
      %v1616 = vunpack.c.l.b16 %v267
      %v1617 = vunpack.c.h.b16 %v267
      %v1618 = vunpack.c.l.b16 %v268
      %v1619 = vunpack.c.h.b16 %v268
      %v1620 = vunpack.c.l.b16 %v269
      %v1621 = vunpack.c.h.b16 %v269
      %v1622 = vunpack.c.l.b16 %v270
      %v1623 = vunpack.c.h.b16 %v270
      %v1624 = vunpack.c.l.b16 %v271
      %v1625 = vunpack.c.h.b16 %v271
      %v1626 = vunpack.c.l.b16 %v272
      %v1627 = vunpack.c.h.b16 %v272
      %v1628 = vunpack.c.l.b16 %v273
      %v1629 = vunpack.c.h.b16 %v273
      %v1630 = vunpack.c.l.b16 %v274
      %v1631 = vunpack.c.h.b16 %v274
      %v1632 = vunpack.c.l.b16 %v275
      %v1633 = vunpack.c.h.b16 %v275
      %v1634 = vunpack.c.l.b16 %v276
      %v1635 = vunpack.c.h.b16 %v276
      %v1636 = vunpack.c.l.b16 %v277
      %v1637 = vunpack.c.h.b16 %v277
      %v1638 = vunpack.c.l.b16 %v278
      %v1639 = vunpack.c.h.b16 %v278
      %v1640 = vunpack.c.l.b16 %v279
      %v1641 = vunpack.c.h.b16 %v279
      %v1642 = vunpack.c.l.b16 %v280
      %v1643 = vunpack.c.h.b16 %v280
      %v1644 = vunpack.c.l.b16 %v281
      %v1645 = vunpack.c.h.b16 %v281
      %v1646 = vunpack.c.l.b16 %v282
      %v1647 = vunpack.c.h.b16 %v282
      %v1648 = vunpack.c.l.b16 %v283
      %v1649 = vunpack.c.h.b16 %v283
      %v1650 = vunpack.c.l.b16 %v284
      %v1651 = vunpack.c.h.b16 %v284
      %v1652 = vunpack.c.l.b16 %v285
      %v1653 = vunpack.c.h.b16 %v285
      %v1654 = vunpack.c.l.b16 %v286
      %v1655 = vunpack.c.h.b16 %v286
      %v1656 = vunpack.c.l.b16 %v287
      %v1657 = vunpack.c.h.b16 %v287
      %v1658 = vunpack.c.l.b16 %v288
      %v1659 = vunpack.c.h.b16 %v288
      %v1660 = vunpack.c.l.b16 %v289
      %v1661 = vunpack.c.h.b16 %v289
      %v1662 = vunpack.c.l.b16 %v290
      %v1663 = vunpack.c.h.b16 %v290
      %v1664 = vunpack.c.l.b16 %v291
      %v1665 = vunpack.c.h.b16 %v291
      %v1666 = vunpack.c.l.b16 %v292
      %v1667 = vunpack.c.h.b16 %v292
      %v1668 = vunpack.c.l.b16 %v293
      %v1669 = vunpack.c.h.b16 %v293
      %v1670 = vunpack.c.l.b16 %v294
      %v1671 = vunpack.c.h.b16 %v294
      %v1672 = vunpack.c.l.b16 %v295
      %v1673 = vunpack.c.h.b16 %v295
      %v1674 = vunpack.c.l.b16 %v296
      %v1675 = vunpack.c.h.b16 %v296
      %v1676 = vunpack.c.l.b16 %v297
      %v1677 = vunpack.c.h.b16 %v297
      %v1678 = vunpack.c.l.b16 %v298
      %v1679 = vunpack.c.h.b16 %v298
      %v1680 = vunpack.c.l.b16 %v299
      %v1681 = vunpack.c.h.b16 %v299
      %v1682 = vunpack.c.l.b16 %v300
      %v1683 = vunpack.c.h.b16 %v300
      %v1684 = vunpack.c.l.b16 %v301
      %v1685 = vunpack.c.h.b16 %v301
      %v1686 = vunpack.c.l.b16 %v302
      %v1687 = vunpack.c.h.b16 %v302
      %v1688 = vunpack.c.l.b16 %v303
      %v1689 = vunpack.c.h.b16 %v303
      %v1690 = vunpack.c.l.b16 %v304
      %v1691 = vunpack.c.h.b16 %v304
      %v1692 = vunpack.c.l.b16 %v305
      %v1693 = vunpack.c.h.b16 %v305
      %v1694 = vunpack.c.l.b16 %v306
      %v1695 = vunpack.c.h.b16 %v306
      %v1696 = vunpack.c.l.b16 %v307
      %v1697 = vunpack.c.h.b16 %v307
      %v1698 = vunpack.c.l.b16 %v308
      %v1699 = vunpack.c.h.b16 %v308
      %v1700 = vunpack.c.l.b16 %v309
      %v1701 = vunpack.c.h.b16 %v309
      %v1702 = vunpack.c.l.b16 %v310
      %v1703 = vunpack.c.h.b16 %v310
      %v1704 = vunpack.c.l.b16 %v311
      %v1705 = vunpack.c.h.b16 %v311
      %v1706 = vunpack.c.l.b16 %v312
      %v1707 = vunpack.c.h.b16 %v312
      %v1708 = vunpack.c.l.b16 %v313
      %v1709 = vunpack.c.h.b16 %v313
      %v1710 = vunpack.c.l.b16 %v314
      %v1711 = vunpack.c.h.b16 %v314
      %v1712 = vunpack.c.l.b16 %v315
      %v1713 = vunpack.c.h.b16 %v315
      %v1714 = vunpack.c.l.b16 %v316
      %v1715 = vunpack.c.h.b16 %v316
      %v1716 = vunpack.c.l.b16 %v317
      %v1717 = vunpack.c.h.b16 %v317
      %v1718 = vunpack.c.l.b16 %v318
      %v1719 = vunpack.c.h.b16 %v318
      %v1720 = vunpack.c.l.b16 %v319
      %v1721 = vunpack.c.h.b16 %v319
      %v1722 = vunpack.c.l.b16 %v320
      %v1723 = vunpack.c.h.b16 %v320
      %v1724 = vunpack.c.l.b16 %v321
      %v1725 = vunpack.c.h.b16 %v321
      %v1726 = vunpack.c.l.b16 %v322
      %v1727 = vunpack.c.h.b16 %v322
      %v1728 = vunpack.c.l.b16 %v323
      %v1729 = vunpack.c.h.b16 %v323
      %v1730 = vunpack.c.l.b16 %v324
      %v1731 = vunpack.c.h.b16 %v324
      %v1732 = vunpack.c.l.b16 %v325
      %v1733 = vunpack.c.h.b16 %v325
      %v1734 = vunpack.c.l.b16 %v326
      %v1735 = vunpack.c.h.b16 %v326
      %v1736 = vunpack.c.l.b16 %v327
      %v1737 = vunpack.c.h.b16 %v327
      %v1738 = vunpack.c.l.b16 %v328
      %v1739 = vunpack.c.h.b16 %v328
      %v1740 = vunpack.c.l.b16 %v329
      %v1741 = vunpack.c.h.b16 %v329
      %v1742 = vunpack.c.l.b16 %v330
      %v1743 = vunpack.c.h.b16 %v330
      %v1744 = vunpack.c.l.b16 %v331
      %v1745 = vunpack.c.h.b16 %v331
      %v1746 = vpack.c.b16 %v1492, %v1490
      %v1747 = vpack.c.b16 %v1493, %v1491
      %v1748 = vpack.c.b16 %v1496, %v1494
      %v1749 = vpack.c.b16 %v1497, %v1495
      %v1750 = vpack.c.b16 %v1500, %v1498
      %v1751 = vpack.c.b16 %v1501, %v1499
      %v1752 = vpack.c.b16 %v1504, %v1502
      %v1753 = vpack.c.b16 %v1505, %v1503
      %v1754 = vpack.c.b16 %v1508, %v1506
      %v1755 = vpack.c.b16 %v1509, %v1507
      %v1756 = vpack.c.b16 %v1512, %v1510
      %v1757 = vpack.c.b16 %v1513, %v1511
      %v1758 = vpack.c.b16 %v1516, %v1514
      %v1759 = vpack.c.b16 %v1517, %v1515
      %v1760 = vpack.c.b16 %v1520, %v1518
      %v1761 = vpack.c.b16 %v1521, %v1519
      %v1762 = vpack.c.b16 %v1524, %v1522
      %v1763 = vpack.c.b16 %v1525, %v1523
      %v1764 = vpack.c.b16 %v1528, %v1526
      %v1765 = vpack.c.b16 %v1529, %v1527
      %v1766 = vpack.c.b16 %v1532, %v1530
      %v1767 = vpack.c.b16 %v1533, %v1531
      %v1768 = vpack.c.b16 %v1536, %v1534
      %v1769 = vpack.c.b16 %v1537, %v1535
      %v1770 = vpack.c.b16 %v1540, %v1538
      %v1771 = vpack.c.b16 %v1541, %v1539
      %v1772 = vpack.c.b16 %v1544, %v1542
      %v1773 = vpack.c.b16 %v1545, %v1543
      %v1774 = vpack.c.b16 %v1548, %v1546
      %v1775 = vpack.c.b16 %v1549, %v1547
      %v1776 = vpack.c.b16 %v1552, %v1550
      %v1777 = vpack.c.b16 %v1553, %v1551
      %v1778 = vpack.c.b16 %v1556, %v1554
      %v1779 = vpack.c.b16 %v1557, %v1555
      %v1780 = vpack.c.b16 %v1560, %v1558
      %v1781 = vpack.c.b16 %v1561, %v1559
      %v1782 = vpack.c.b16 %v1564, %v1562
      %v1783 = vpack.c.b16 %v1565, %v1563
      %v1784 = vpack.c.b16 %v1568, %v1566
      %v1785 = vpack.c.b16 %v1569, %v1567
      %v1786 = vpack.c.b16 %v1572, %v1570
      %v1787 = vpack.c.b16 %v1573, %v1571
      %v1788 = vpack.c.b16 %v1576, %v1574
      %v1789 = vpack.c.b16 %v1577, %v1575
      %v1790 = vpack.c.b16 %v1580, %v1578
      %v1791 = vpack.c.b16 %v1581, %v1579
      %v1792 = vpack.c.b16 %v1584, %v1582
      %v1793 = vpack.c.b16 %v1585, %v1583
      %v1794 = vpack.c.b16 %v1588, %v1586
      %v1795 = vpack.c.b16 %v1589, %v1587
      %v1796 = vpack.c.b16 %v1592, %v1590
      %v1797 = vpack.c.b16 %v1593, %v1591
      %v1798 = vpack.c.b16 %v1596, %v1594
      %v1799 = vpack.c.b16 %v1597, %v1595
      %v1800 = vpack.c.b16 %v1600, %v1598
      %v1801 = vpack.c.b16 %v1601, %v1599
      %v1802 = vpack.c.b16 %v1604, %v1602
      %v1803 = vpack.c.b16 %v1605, %v1603
      %v1804 = vpack.c.b16 %v1608, %v1606
      %v1805 = vpack.c.b16 %v1609, %v1607
      %v1806 = vpack.c.b16 %v1612, %v1610
      %v1807 = vpack.c.b16 %v1613, %v1611
      %v1808 = vpack.c.b16 %v1616, %v1614
      %v1809 = vpack.c.b16 %v1617, %v1615
      %v1810 = vpack.c.b16 %v1620, %v1618
      %v1811 = vpack.c.b16 %v1621, %v1619
      %v1812 = vpack.c.b16 %v1624, %v1622
      %v1813 = vpack.c.b16 %v1625, %v1623
      %v1814 = vpack.c.b16 %v1628, %v1626
      %v1815 = vpack.c.b16 %v1629, %v1627
      %v1816 = vpack.c.b16 %v1632, %v1630
      %v1817 = vpack.c.b16 %v1633, %v1631
      %v1818 = vpack.c.b16 %v1636, %v1634
      %v1819 = vpack.c.b16 %v1637, %v1635
      %v1820 = vpack.c.b16 %v1640, %v1638
      %v1821 = vpack.c.b16 %v1641, %v1639
      %v1822 = vpack.c.b16 %v1644, %v1642
      %v1823 = vpack.c.b16 %v1645, %v1643
      %v1824 = vpack.c.b16 %v1648, %v1646
      %v1825 = vpack.c.b16 %v1649, %v1647
      %v1826 = vpack.c.b16 %v1652, %v1650
      %v1827 = vpack.c.b16 %v1653, %v1651
      %v1828 = vpack.c.b16 %v1656, %v1654
      %v1829 = vpack.c.b16 %v1657, %v1655
      %v1830 = vpack.c.b16 %v1660, %v1658
      %v1831 = vpack.c.b16 %v1661, %v1659
      %v1832 = vpack.c.b16 %v1664, %v1662
      %v1833 = vpack.c.b16 %v1665, %v1663
      %v1834 = vpack.c.b16 %v1668, %v1666
      %v1835 = vpack.c.b16 %v1669, %v1667
      %v1836 = vpack.c.b16 %v1672, %v1670
      %v1837 = vpack.c.b16 %v1673, %v1671
      %v1838 = vpack.c.b16 %v1676, %v1674
      %v1839 = vpack.c.b16 %v1677, %v1675
      %v1840 = vpack.c.b16 %v1680, %v1678
      %v1841 = vpack.c.b16 %v1681, %v1679
      %v1842 = vpack.c.b16 %v1684, %v1682
      %v1843 = vpack.c.b16 %v1685, %v1683
      %v1844 = vpack.c.b16 %v1688, %v1686
      %v1845 = vpack.c.b16 %v1689, %v1687
      %v1846 = vpack.c.b16 %v1692, %v1690
      %v1847 = vpack.c.b16 %v1693, %v1691
      %v1848 = vpack.c.b16 %v1696, %v1694
      %v1849 = vpack.c.b16 %v1697, %v1695
      %v1850 = vpack.c.b16 %v1700, %v1698
      %v1851 = vpack.c.b16 %v1701, %v1699
      %v1852 = vpack.c.b16 %v1704, %v1702
      %v1853 = vpack.c.b16 %v1705, %v1703
      %v1854 = vpack.c.b16 %v1708, %v1706
      %v1855 = vpack.c.b16 %v1709, %v1707
      %v1856 = vpack.c.b16 %v1712, %v1710
      %v1857 = vpack.c.b16 %v1713, %v1711
      %v1858 = vpack.c.b16 %v1716, %v1714
      %v1859 = vpack.c.b16 %v1717, %v1715
      %v1860 = vpack.c.b16 %v1720, %v1718
      %v1861 = vpack.c.b16 %v1721, %v1719
      %v1862 = vpack.c.b16 %v1724, %v1722
      %v1863 = vpack.c.b16 %v1725, %v1723
      %v1864 = vpack.c.b16 %v1728, %v1726
      %v1865 = vpack.c.b16 %v1729, %v1727
      %v1866 = vpack.c.b16 %v1732, %v1730
      %v1867 = vpack.c.b16 %v1733, %v1731
      %v1868 = vpack.c.b16 %v1736, %v1734
      %v1869 = vpack.c.b16 %v1737, %v1735
      %v1870 = vpack.c.b16 %v1740, %v1738
      %v1871 = vpack.c.b16 %v1741, %v1739
      %v1872 = vpack.c.b16 %v1744, %v1742
      %v1873 = vpack.c.b16 %v1745, %v1743
      %2002 = vmatprep.subr.bf16.mxu0 %v1747
      %2003 = vmatpush1.bf16.msra.mxu0 %v1746
      %2004 = vmatprep.subr.bf16.mxu0 %v1749
      %2005 = vmatpush1.bf16.msra.mxu0 %v1748
      %2006 = vmatprep.subr.bf16.mxu0 %v1751
      %2007 = vmatpush1.bf16.msra.mxu0 %v1750
      %2008 = vmatprep.subr.bf16.mxu0 %v1753
      %2009 = vmatpush1.bf16.msra.mxu0 %v1752
      %2010 = vmatprep.subr.bf16.mxu0 %v1755
      %2011 = vmatpush1.bf16.msra.mxu0 %v1754
      %2012 = vmatprep.subr.bf16.mxu0 %v1757
      %2013 = vmatpush1.bf16.msra.mxu0 %v1756
      %2014 = vmatprep.subr.bf16.mxu0 %v1759
      %2015 = vmatpush1.bf16.msra.mxu0 %v1758
      %2016 = vmatprep.subr.bf16.mxu0 %v1761
      %2017 = vmatpush1.bf16.msra.mxu0 %v1760
      %2018 = vmatprep.subr.bf16.mxu0 %v1763
      %2019 = vmatpush1.bf16.msra.mxu0 %v1762
      %2020 = vmatprep.subr.bf16.mxu0 %v1765
      %2021 = vmatpush1.bf16.msra.mxu0 %v1764
      %2022 = vmatprep.subr.bf16.mxu0 %v1767
      %2023 = vmatpush1.bf16.msra.mxu0 %v1766
      %2024 = vmatprep.subr.bf16.mxu0 %v1769
      %2025 = vmatpush1.bf16.msra.mxu0 %v1768
      %2026 = vmatprep.subr.bf16.mxu0 %v1771
      %2027 = vmatpush1.bf16.msra.mxu0 %v1770
      %2028 = vmatprep.subr.bf16.mxu0 %v1773
      %2029 = vmatpush1.bf16.msra.mxu0 %v1772
      %2030 = vmatprep.subr.bf16.mxu0 %v1775
      %2031 = vmatpush1.bf16.msra.mxu0 %v1774
      %2032 = vmatprep.subr.bf16.mxu0 %v1777
      %2033 = vmatpush1.bf16.msra.mxu0 %v1776
      %2034 = vmatprep.mubr.bf16.mxu0 %v1347
      %2035 = vmatmul.mubr.bf16.gmra.mrb[0].mxu0 %v1346
      %v2036 = vpop.f32.mrb[0].mxu0
      %v2037 = vadd.f32 %v1314, %v2036
      %v2038 = vpop.f32.mrb[0].mxu0
      %v2039 = vadd.f32 %v1316, %v2038
      %v2040 = vpop.f32.mrb[0].mxu0
      %v2041 = vadd.f32 %v1318, %v2040
      %v2042 = vpop.f32.mrb[0].mxu0
      %v2043 = vadd.f32 %v1320, %v2042
      %2044 = vdwg.mxu0
      %2045 = vmatprep.subr.bf16.mxu0 %v1779
      %2046 = vmatpush1.bf16.msra.mxu0 %v1778
      %2047 = vmatprep.subr.bf16.mxu0 %v1781
      %2048 = vmatpush1.bf16.msra.mxu0 %v1780
      %2049 = vmatprep.subr.bf16.mxu0 %v1783
      %2050 = vmatpush1.bf16.msra.mxu0 %v1782
      %2051 = vmatprep.subr.bf16.mxu0 %v1785
      %2052 = vmatpush1.bf16.msra.mxu0 %v1784
      %2053 = vmatprep.subr.bf16.mxu0 %v1787
      %2054 = vmatpush1.bf16.msra.mxu0 %v1786
      %2055 = vmatprep.subr.bf16.mxu0 %v1789
      %2056 = vmatpush1.bf16.msra.mxu0 %v1788
      %2057 = vmatprep.subr.bf16.mxu0 %v1791
      %2058 = vmatpush1.bf16.msra.mxu0 %v1790
      %2059 = vmatprep.subr.bf16.mxu0 %v1793
      %2060 = vmatpush1.bf16.msra.mxu0 %v1792
      %2061 = vmatprep.subr.bf16.mxu0 %v1795
      %2062 = vmatpush1.bf16.msra.mxu0 %v1794
      %2063 = vmatprep.subr.bf16.mxu0 %v1797
      %2064 = vmatpush1.bf16.msra.mxu0 %v1796
      %2065 = vmatprep.subr.bf16.mxu0 %v1799
      %2066 = vmatpush1.bf16.msra.mxu0 %v1798
      %2067 = vmatprep.subr.bf16.mxu0 %v1801
      %2068 = vmatpush1.bf16.msra.mxu0 %v1800
      %2069 = vmatprep.subr.bf16.mxu0 %v1803
      %2070 = vmatpush1.bf16.msra.mxu0 %v1802
      %2071 = vmatprep.subr.bf16.mxu0 %v1805
      %2072 = vmatpush1.bf16.msra.mxu0 %v1804
      %2073 = vmatprep.subr.bf16.mxu0 %v1807
      %2074 = vmatpush1.bf16.msra.mxu0 %v1806
      %2075 = vmatprep.subr.bf16.mxu0 %v1809
      %2076 = vmatpush1.bf16.msra.mxu0 %v1808
      %2077 = vmatprep.mubr.bf16.mxu0 %v1349
      %2078 = vmatmul.mubr.bf16.gmra.mrb[0].mxu0 %v1348
      %v2079 = vpop.f32.mrb[0].mxu0
      %v2080 = vadd.f32 %v2037, %v2079
      %v2081 = vpop.f32.mrb[0].mxu0
      %v2082 = vadd.f32 %v2039, %v2081
      %v2083 = vpop.f32.mrb[0].mxu0
      %v2084 = vadd.f32 %v2041, %v2083
      %v2085 = vpop.f32.mrb[0].mxu0
      %v2086 = vadd.f32 %v2043, %v2085
      %2087 = vdwg.mxu0
      %2088 = vmatprep.subr.bf16.mxu0 %v1811
      %2089 = vmatpush1.bf16.msra.mxu0 %v1810
      %2090 = vmatprep.subr.bf16.mxu0 %v1813
      %2091 = vmatpush1.bf16.msra.mxu0 %v1812
      %2092 = vmatprep.subr.bf16.mxu0 %v1815
      %2093 = vmatpush1.bf16.msra.mxu0 %v1814
      %2094 = vmatprep.subr.bf16.mxu0 %v1817
      %2095 = vmatpush1.bf16.msra.mxu0 %v1816
      %2096 = vmatprep.subr.bf16.mxu0 %v1819
      %2097 = vmatpush1.bf16.msra.mxu0 %v1818
      %2098 = vmatprep.subr.bf16.mxu0 %v1821
      %2099 = vmatpush1.bf16.msra.mxu0 %v1820
      %2100 = vmatprep.subr.bf16.mxu0 %v1823
      %2101 = vmatpush1.bf16.msra.mxu0 %v1822
      %2102 = vmatprep.subr.bf16.mxu0 %v1825
      %2103 = vmatpush1.bf16.msra.mxu0 %v1824
      %2104 = vmatprep.subr.bf16.mxu0 %v1827
      %2105 = vmatpush1.bf16.msra.mxu0 %v1826
      %2106 = vmatprep.subr.bf16.mxu0 %v1829
      %2107 = vmatpush1.bf16.msra.mxu0 %v1828
      %2108 = vmatprep.subr.bf16.mxu0 %v1831
      %2109 = vmatpush1.bf16.msra.mxu0 %v1830
      %2110 = vmatprep.subr.bf16.mxu0 %v1833
      %2111 = vmatpush1.bf16.msra.mxu0 %v1832
      %2112 = vmatprep.subr.bf16.mxu0 %v1835
      %2113 = vmatpush1.bf16.msra.mxu0 %v1834
      %2114 = vmatprep.subr.bf16.mxu0 %v1837
      %2115 = vmatpush1.bf16.msra.mxu0 %v1836
      %2116 = vmatprep.subr.bf16.mxu0 %v1839
      %2117 = vmatpush1.bf16.msra.mxu0 %v1838
      %2118 = vmatprep.subr.bf16.mxu0 %v1841
      %2119 = vmatpush1.bf16.msra.mxu0 %v1840
      %2120 = vmatprep.mubr.bf16.mxu0 %v1351
      %2121 = vmatmul.mubr.bf16.gmra.mrb[0].mxu0 %v1350
      %v2122 = vpop.f32.mrb[0].mxu0
      %v2123 = vadd.f32 %v2080, %v2122
      %v2124 = vpop.f32.mrb[0].mxu0
      %v2125 = vadd.f32 %v2082, %v2124
      %v2126 = vpop.f32.mrb[0].mxu0
      %v2127 = vadd.f32 %v2084, %v2126
      %v2128 = vpop.f32.mrb[0].mxu0
      %v2129 = vadd.f32 %v2086, %v2128
      %2130 = vdwg.mxu0
      %2131 = vmatprep.subr.bf16.mxu0 %v1843
      %2132 = vmatpush1.bf16.msra.mxu0 %v1842
      %2133 = vmatprep.subr.bf16.mxu0 %v1845
      %2134 = vmatpush1.bf16.msra.mxu0 %v1844
      %2135 = vmatprep.subr.bf16.mxu0 %v1847
      %2136 = vmatpush1.bf16.msra.mxu0 %v1846
      %2137 = vmatprep.subr.bf16.mxu0 %v1849
      %2138 = vmatpush1.bf16.msra.mxu0 %v1848
      %2139 = vmatprep.subr.bf16.mxu0 %v1851
      %2140 = vmatpush1.bf16.msra.mxu0 %v1850
      %2141 = vmatprep.subr.bf16.mxu0 %v1853
      %2142 = vmatpush1.bf16.msra.mxu0 %v1852
      %2143 = vmatprep.subr.bf16.mxu0 %v1855
      %2144 = vmatpush1.bf16.msra.mxu0 %v1854
      %2145 = vmatprep.subr.bf16.mxu0 %v1857
      %2146 = vmatpush1.bf16.msra.mxu0 %v1856
      %2147 = vmatprep.subr.bf16.mxu0 %v1859
      %2148 = vmatpush1.bf16.msra.mxu0 %v1858
      %2149 = vmatprep.subr.bf16.mxu0 %v1861
      %2150 = vmatpush1.bf16.msra.mxu0 %v1860
      %2151 = vmatprep.subr.bf16.mxu0 %v1863
      %2152 = vmatpush1.bf16.msra.mxu0 %v1862
      %2153 = vmatprep.subr.bf16.mxu0 %v1865
      %2154 = vmatpush1.bf16.msra.mxu0 %v1864
      %2155 = vmatprep.subr.bf16.mxu0 %v1867
      %2156 = vmatpush1.bf16.msra.mxu0 %v1866
      %2157 = vmatprep.subr.bf16.mxu0 %v1869
      %2158 = vmatpush1.bf16.msra.mxu0 %v1868
      %2159 = vmatprep.subr.bf16.mxu0 %v1871
      %2160 = vmatpush1.bf16.msra.mxu0 %v1870
      %2161 = vmatprep.subr.bf16.mxu0 %v1873
      %2162 = vmatpush1.bf16.msra.mxu0 %v1872
      %2163 = vmatprep.mubr.bf16.mxu0 %v1353
      %2164 = vmatmul.mubr.bf16.gmra.mrb[0].mxu0 %v1352
      %v2165 = vpop.f32.mrb[0].mxu0
      %v2166 = vadd.f32 %v2123, %v2165
      %v2167 = vpop.f32.mrb[0].mxu0
      %v2168 = vadd.f32 %v2125, %v2167
      %v2169 = vpop.f32.mrb[0].mxu0
      %v2170 = vadd.f32 %v2127, %v2169
      %v2171 = vpop.f32.mrb[0].mxu0
      %v2172 = vadd.f32 %v2129, %v2171
      %2173 = vdwg.mxu0
      %v2174 = vld [vmem:[%s184] sm:$0xcc]
      %v2175 = vld [vmem:[%s184 + $0x8] sm:$0xcc]
      %v2176 = vld [vmem:[%s184 + $0x10] sm:$0xcc]
      %v2177 = vld [vmem:[%s184 + $0x18] sm:$0xcc]
      %v2178 = vld [vmem:[%s184 + $0x20] sm:$0xff]
      %v2179 = vld [vmem:[%s184 + $0x28] sm:$0xff]
      %v2180 = vld [vmem:[%s184 + $0x30] sm:$0xff]
      %v2181 = vld [vmem:[%s184 + $0x38] sm:$0xff]
      %v2182 = vld [vmem:[%s184 + $0x40] sm:$0x33]
      %v2183 = vld [vmem:[%s184 + $0x48] sm:$0x33]
      %v2184 = vld [vmem:[%s184 + $0x50] sm:$0x33]
      %v2185 = vld [vmem:[%s184 + $0x58] sm:$0x33]
      %s2186 = scalar_lea.vmem %s1, 2048
      %v2187 = vld [vmem:[%s2186] sm:$0xff]
      %v2188 = vld [vmem:[%s2186 + $0x8] sm:$0xff]
      %v2189 = vld [vmem:[%s2186 + $0x10] sm:$0xff]
      %v2190 = vld [vmem:[%s2186 + $0x18] sm:$0xff]
      %v2191 = vld [vmem:[%s2186 + $0x20] sm:$0xff]
      %v2192 = vld [vmem:[%s2186 + $0x28] sm:$0xff]
      %v2193 = vld [vmem:[%s2186 + $0x30] sm:$0xff]
      %v2194 = vld [vmem:[%s2186 + $0x38] sm:$0xff]
      %v2195 = vld [vmem:[%s2186 + $0x40] sm:$0xff]
      %v2196 = vld [vmem:[%s2186 + $0x48] sm:$0xff]
      %v2197 = vld [vmem:[%s2186 + $0x50] sm:$0xff]
      %v2198 = vld [vmem:[%s2186 + $0x58] sm:$0xff]
      %v2199 = vld [vmem:[%s2186 + $0x60] sm:$0xff]
      %v2200 = vld [vmem:[%s2186 + $0x68] sm:$0xff]
      %v2201 = vld [vmem:[%s2186 + $0x70] sm:$0xff]
      %v2202 = vld [vmem:[%s2186 + $0x78] sm:$0xff]
      %v2203 = vld [vmem:[%s2186 + $0x80] sm:$0xff]
      %v2204 = vld [vmem:[%s2186 + $0x88] sm:$0xff]
      %v2205 = vld [vmem:[%s2186 + $0x90] sm:$0xff]
      %v2206 = vld [vmem:[%s2186 + $0x98] sm:$0xff]
      %v2207 = vld [vmem:[%s2186 + $0xa0] sm:$0xff]
      %v2208 = vld [vmem:[%s2186 + $0xa8] sm:$0xff]
      %v2209 = vld [vmem:[%s2186 + $0xb0] sm:$0xff]
      %v2210 = vld [vmem:[%s2186 + $0xb8] sm:$0xff]
      %v2211 = vld [vmem:[%s2186 + $0xc0] sm:$0xff]
      %v2212 = vld [vmem:[%s2186 + $0xc8] sm:$0xff]
      %v2213 = vld [vmem:[%s2186 + $0xd0] sm:$0xff]
      %v2214 = vld [vmem:[%s2186 + $0xd8] sm:$0xff]
      %v2215 = vld [vmem:[%s2186 + $0xe0] sm:$0xff]
      %v2216 = vld [vmem:[%s2186 + $0xe8] sm:$0xff]
      %v2217 = vld [vmem:[%s2186 + $0xf0] sm:$0xff]
      %v2218 = vld [vmem:[%s2186 + $0xf8] sm:$0xff]
      %v2219 = vld [vmem:[%s2186 + $0x100] sm:$0xff]
      %v2220 = vld [vmem:[%s2186 + $0x108] sm:$0xff]
      %v2221 = vld [vmem:[%s2186 + $0x110] sm:$0xff]
      %v2222 = vld [vmem:[%s2186 + $0x118] sm:$0xff]
      %v2223 = vld [vmem:[%s2186 + $0x120] sm:$0xff]
      %v2224 = vld [vmem:[%s2186 + $0x128] sm:$0xff]
      %v2225 = vld [vmem:[%s2186 + $0x130] sm:$0xff]
      %v2226 = vld [vmem:[%s2186 + $0x138] sm:$0xff]
      %v2227 = vld [vmem:[%s2186 + $0x140] sm:$0xff]
      %v2228 = vld [vmem:[%s2186 + $0x148] sm:$0xff]
      %v2229 = vld [vmem:[%s2186 + $0x150] sm:$0xff]
      %v2230 = vld [vmem:[%s2186 + $0x158] sm:$0xff]
      %v2231 = vld [vmem:[%s2186 + $0x160] sm:$0xff]
      %v2232 = vld [vmem:[%s2186 + $0x168] sm:$0xff]
      %v2233 = vld [vmem:[%s2186 + $0x170] sm:$0xff]
      %v2234 = vld [vmem:[%s2186 + $0x178] sm:$0xff]
      %v2235 = vld [vmem:[%s2186 + $0x180] sm:$0xff]
      %v2236 = vld [vmem:[%s2186 + $0x188] sm:$0xff]
      %v2237 = vld [vmem:[%s2186 + $0x190] sm:$0xff]
      %v2238 = vld [vmem:[%s2186 + $0x198] sm:$0xff]
      %v2239 = vld [vmem:[%s2186 + $0x1a0] sm:$0xff]
      %v2240 = vld [vmem:[%s2186 + $0x1a8] sm:$0xff]
      %v2241 = vld [vmem:[%s2186 + $0x1b0] sm:$0xff]
      %v2242 = vld [vmem:[%s2186 + $0x1b8] sm:$0xff]
      %v2243 = vld [vmem:[%s2186 + $0x1c0] sm:$0xff]
      %v2244 = vld [vmem:[%s2186 + $0x1c8] sm:$0xff]
      %v2245 = vld [vmem:[%s2186 + $0x1d0] sm:$0xff]
      %v2246 = vld [vmem:[%s2186 + $0x1d8] sm:$0xff]
      %v2247 = vld [vmem:[%s2186 + $0x1e0] sm:$0xff]
      %v2248 = vld [vmem:[%s2186 + $0x1e8] sm:$0xff]
      %v2249 = vld [vmem:[%s2186 + $0x1f0] sm:$0xff]
      %v2250 = vld [vmem:[%s2186 + $0x1f8] sm:$0xff]
      %v2251 = vld [vmem:[%s2186 + $0x200] sm:$0xff]
      %v2252 = vld [vmem:[%s2186 + $0x208] sm:$0xff]
      %v2253 = vld [vmem:[%s2186 + $0x210] sm:$0xff]
      %v2254 = vld [vmem:[%s2186 + $0x218] sm:$0xff]
      %v2255 = vld [vmem:[%s2186 + $0x220] sm:$0xff]
      %v2256 = vld [vmem:[%s2186 + $0x228] sm:$0xff]
      %v2257 = vld [vmem:[%s2186 + $0x230] sm:$0xff]
      %v2258 = vld [vmem:[%s2186 + $0x238] sm:$0xff]
      %v2259 = vld [vmem:[%s2186 + $0x240] sm:$0xff]
      %v2260 = vld [vmem:[%s2186 + $0x248] sm:$0xff]
      %v2261 = vld [vmem:[%s2186 + $0x250] sm:$0xff]
      %v2262 = vld [vmem:[%s2186 + $0x258] sm:$0xff]
      %v2263 = vld [vmem:[%s2186 + $0x260] sm:$0xff]
      %v2264 = vld [vmem:[%s2186 + $0x268] sm:$0xff]
      %v2265 = vld [vmem:[%s2186 + $0x270] sm:$0xff]
      %v2266 = vld [vmem:[%s2186 + $0x278] sm:$0xff]
      %v2267 = vld [vmem:[%s2186 + $0x280] sm:$0xff]
      %v2268 = vld [vmem:[%s2186 + $0x288] sm:$0xff]
      %v2269 = vld [vmem:[%s2186 + $0x290] sm:$0xff]
      %v2270 = vld [vmem:[%s2186 + $0x298] sm:$0xff]
      %v2271 = vld [vmem:[%s2186 + $0x2a0] sm:$0xff]
      %v2272 = vld [vmem:[%s2186 + $0x2a8] sm:$0xff]
      %v2273 = vld [vmem:[%s2186 + $0x2b0] sm:$0xff]
      %v2274 = vld [vmem:[%s2186 + $0x2b8] sm:$0xff]
      %v2275 = vld [vmem:[%s2186 + $0x2c0] sm:$0xff]
      %v2276 = vld [vmem:[%s2186 + $0x2c8] sm:$0xff]
      %v2277 = vld [vmem:[%s2186 + $0x2d0] sm:$0xff]
      %v2278 = vld [vmem:[%s2186 + $0x2d8] sm:$0xff]
      %v2279 = vld [vmem:[%s2186 + $0x2e0] sm:$0xff]
      %v2280 = vld [vmem:[%s2186 + $0x2e8] sm:$0xff]
      %v2281 = vld [vmem:[%s2186 + $0x2f0] sm:$0xff]
      %v2282 = vld [vmem:[%s2186 + $0x2f8] sm:$0xff]
      %v2283 = vld [vmem:[%s2186 + $0x300] sm:$0xff]
      %v2284 = vld [vmem:[%s2186 + $0x308] sm:$0xff]
      %v2285 = vld [vmem:[%s2186 + $0x310] sm:$0xff]
      %v2286 = vld [vmem:[%s2186 + $0x318] sm:$0xff]
      %v2287 = vld [vmem:[%s2186 + $0x320] sm:$0xff]
      %v2288 = vld [vmem:[%s2186 + $0x328] sm:$0xff]
      %v2289 = vld [vmem:[%s2186 + $0x330] sm:$0xff]
      %v2290 = vld [vmem:[%s2186 + $0x338] sm:$0xff]
      %v2291 = vld [vmem:[%s2186 + $0x340] sm:$0xff]
      %v2292 = vld [vmem:[%s2186 + $0x348] sm:$0xff]
      %v2293 = vld [vmem:[%s2186 + $0x350] sm:$0xff]
      %v2294 = vld [vmem:[%s2186 + $0x358] sm:$0xff]
      %v2295 = vld [vmem:[%s2186 + $0x360] sm:$0xff]
      %v2296 = vld [vmem:[%s2186 + $0x368] sm:$0xff]
      %v2297 = vld [vmem:[%s2186 + $0x370] sm:$0xff]
      %v2298 = vld [vmem:[%s2186 + $0x378] sm:$0xff]
      %v2299 = vld [vmem:[%s2186 + $0x380] sm:$0xff]
      %v2300 = vld [vmem:[%s2186 + $0x388] sm:$0xff]
      %v2301 = vld [vmem:[%s2186 + $0x390] sm:$0xff]
      %v2302 = vld [vmem:[%s2186 + $0x398] sm:$0xff]
      %v2303 = vld [vmem:[%s2186 + $0x3a0] sm:$0xff]
      %v2304 = vld [vmem:[%s2186 + $0x3a8] sm:$0xff]
      %v2305 = vld [vmem:[%s2186 + $0x3b0] sm:$0xff]
      %v2306 = vld [vmem:[%s2186 + $0x3b8] sm:$0xff]
      %v2307 = vld [vmem:[%s2186 + $0x3c0] sm:$0xff]
      %v2308 = vld [vmem:[%s2186 + $0x3c8] sm:$0xff]
      %v2309 = vld [vmem:[%s2186 + $0x3d0] sm:$0xff]
      %v2310 = vld [vmem:[%s2186 + $0x3d8] sm:$0xff]
      %v2311 = vld [vmem:[%s2186 + $0x3e0] sm:$0xff]
      %v2312 = vld [vmem:[%s2186 + $0x3e8] sm:$0xff]
      %v2313 = vld [vmem:[%s2186 + $0x3f0] sm:$0xff]
      %v2314 = vld [vmem:[%s2186 + $0x3f8] sm:$0xff]
      %v2327 = vunpack.c.l.b16 %v2174
      %v2328 = vunpack.c.h.b16 %v2174
      %v2329 = vunpack.c.l.b16 %v2175
      %v2330 = vunpack.c.h.b16 %v2175
      %v2331 = vunpack.c.l.b16 %v2176
      %v2332 = vunpack.c.h.b16 %v2176
      %v2333 = vunpack.c.l.b16 %v2177
      %v2334 = vunpack.c.h.b16 %v2177
      %v2335 = vunpack.c.l.b16 %v2178
      %v2336 = vunpack.c.h.b16 %v2178
      %v2337 = vunpack.c.l.b16 %v2179
      %v2338 = vunpack.c.h.b16 %v2179
      %v2339 = vunpack.c.l.b16 %v2180
      %v2340 = vunpack.c.h.b16 %v2180
      %v2341 = vunpack.c.l.b16 %v2181
      %v2342 = vunpack.c.h.b16 %v2181
      %v2343 = vunpack.c.l.b16 %v2182
      %v2344 = vunpack.c.h.b16 %v2182
      %v2345 = vunpack.c.l.b16 %v2183
      %v2346 = vunpack.c.h.b16 %v2183
      %v2347 = vunpack.c.l.b16 %v2184
      %v2348 = vunpack.c.h.b16 %v2184
      %v2349 = vunpack.c.l.b16 %v2185
      %v2350 = vunpack.c.h.b16 %v2185
      %v2351 = vpack.c.b16 %v2335, %v2327
      %v2352 = vpack.c.b16 %v2336, %v2328
      %v2353 = vpack.c.b16 %v2337, %v2329
      %v2354 = vpack.c.b16 %v2338, %v2330
      %v2355 = vpack.c.b16 %v2339, %v2331
      %v2356 = vpack.c.b16 %v2340, %v2332
      %v2357 = vpack.c.b16 %v2341, %v2333
      %v2358 = vpack.c.b16 %v2342, %v2334
      %v2359 = vpack.c.b16 %v2343, %v2343
      %v2360 = vpack.c.b16 %v2344, %v2344
      %v2361 = vpack.c.b16 %v2345, %v2345
      %v2362 = vpack.c.b16 %v2346, %v2346
      %v2363 = vpack.c.b16 %v2347, %v2347
      %v2364 = vpack.c.b16 %v2348, %v2348
      %v2365 = vpack.c.b16 %v2349, %v2349
      %v2366 = vpack.c.b16 %v2350, %v2350
      %vm2367 = vcmask 1045504
      %v2368 = vrot.slane %v2351, 2
      %v2369 = vrot.slane %v2359, 2
      %v2370 = vsel %vm2367, %v2368, %v2369
      %v2371 = vrot.slane %v2352, 2
      %v2372 = vrot.slane %v2360, 2
      %v2373 = vsel %vm2367, %v2371, %v2372
      %v2374 = vrot.slane %v2353, 2
      %v2375 = vrot.slane %v2361, 2
      %v2376 = vsel %vm2367, %v2374, %v2375
      %v2377 = vrot.slane %v2354, 2
      %v2378 = vrot.slane %v2362, 2
      %v2379 = vsel %vm2367, %v2377, %v2378
      %v2380 = vrot.slane %v2355, 2
      %v2381 = vrot.slane %v2363, 2
      %v2382 = vsel %vm2367, %v2380, %v2381
      %v2383 = vrot.slane %v2356, 2
      %v2384 = vrot.slane %v2364, 2
      %v2385 = vsel %vm2367, %v2383, %v2384
      %v2386 = vrot.slane %v2357, 2
      %v2387 = vrot.slane %v2365, 2
      %v2388 = vsel %vm2367, %v2386, %v2387
      %v2389 = vrot.slane %v2358, 2
      %v2390 = vrot.slane %v2366, 2
      %v2391 = vsel %vm2367, %v2389, %v2390
      %v2528 = vunpack.c.l.b16 %v2187
      %v2529 = vunpack.c.h.b16 %v2187
      %v2530 = vunpack.c.l.b16 %v2188
      %v2531 = vunpack.c.h.b16 %v2188
      %v2532 = vunpack.c.l.b16 %v2189
      %v2533 = vunpack.c.h.b16 %v2189
      %v2534 = vunpack.c.l.b16 %v2190
      %v2535 = vunpack.c.h.b16 %v2190
      %v2536 = vunpack.c.l.b16 %v2191
      %v2537 = vunpack.c.h.b16 %v2191
      %v2538 = vunpack.c.l.b16 %v2192
      %v2539 = vunpack.c.h.b16 %v2192
      %v2540 = vunpack.c.l.b16 %v2193
      %v2541 = vunpack.c.h.b16 %v2193
      %v2542 = vunpack.c.l.b16 %v2194
      %v2543 = vunpack.c.h.b16 %v2194
      %v2544 = vunpack.c.l.b16 %v2195
      %v2545 = vunpack.c.h.b16 %v2195
      %v2546 = vunpack.c.l.b16 %v2196
      %v2547 = vunpack.c.h.b16 %v2196
      %v2548 = vunpack.c.l.b16 %v2197
      %v2549 = vunpack.c.h.b16 %v2197
      %v2550 = vunpack.c.l.b16 %v2198
      %v2551 = vunpack.c.h.b16 %v2198
      %v2552 = vunpack.c.l.b16 %v2199
      %v2553 = vunpack.c.h.b16 %v2199
      %v2554 = vunpack.c.l.b16 %v2200
      %v2555 = vunpack.c.h.b16 %v2200
      %v2556 = vunpack.c.l.b16 %v2201
      %v2557 = vunpack.c.h.b16 %v2201
      %v2558 = vunpack.c.l.b16 %v2202
      %v2559 = vunpack.c.h.b16 %v2202
      %v2560 = vunpack.c.l.b16 %v2203
      %v2561 = vunpack.c.h.b16 %v2203
      %v2562 = vunpack.c.l.b16 %v2204
      %v2563 = vunpack.c.h.b16 %v2204
      %v2564 = vunpack.c.l.b16 %v2205
      %v2565 = vunpack.c.h.b16 %v2205
      %v2566 = vunpack.c.l.b16 %v2206
      %v2567 = vunpack.c.h.b16 %v2206
      %v2568 = vunpack.c.l.b16 %v2207
      %v2569 = vunpack.c.h.b16 %v2207
      %v2570 = vunpack.c.l.b16 %v2208
      %v2571 = vunpack.c.h.b16 %v2208
      %v2572 = vunpack.c.l.b16 %v2209
      %v2573 = vunpack.c.h.b16 %v2209
      %v2574 = vunpack.c.l.b16 %v2210
      %v2575 = vunpack.c.h.b16 %v2210
      %v2576 = vunpack.c.l.b16 %v2211
      %v2577 = vunpack.c.h.b16 %v2211
      %v2578 = vunpack.c.l.b16 %v2212
      %v2579 = vunpack.c.h.b16 %v2212
      %v2580 = vunpack.c.l.b16 %v2213
      %v2581 = vunpack.c.h.b16 %v2213
      %v2582 = vunpack.c.l.b16 %v2214
      %v2583 = vunpack.c.h.b16 %v2214
      %v2584 = vunpack.c.l.b16 %v2215
      %v2585 = vunpack.c.h.b16 %v2215
      %v2586 = vunpack.c.l.b16 %v2216
      %v2587 = vunpack.c.h.b16 %v2216
      %v2588 = vunpack.c.l.b16 %v2217
      %v2589 = vunpack.c.h.b16 %v2217
      %v2590 = vunpack.c.l.b16 %v2218
      %v2591 = vunpack.c.h.b16 %v2218
      %v2592 = vunpack.c.l.b16 %v2219
      %v2593 = vunpack.c.h.b16 %v2219
      %v2594 = vunpack.c.l.b16 %v2220
      %v2595 = vunpack.c.h.b16 %v2220
      %v2596 = vunpack.c.l.b16 %v2221
      %v2597 = vunpack.c.h.b16 %v2221
      %v2598 = vunpack.c.l.b16 %v2222
      %v2599 = vunpack.c.h.b16 %v2222
      %v2600 = vunpack.c.l.b16 %v2223
      %v2601 = vunpack.c.h.b16 %v2223
      %v2602 = vunpack.c.l.b16 %v2224
      %v2603 = vunpack.c.h.b16 %v2224
      %v2604 = vunpack.c.l.b16 %v2225
      %v2605 = vunpack.c.h.b16 %v2225
      %v2606 = vunpack.c.l.b16 %v2226
      %v2607 = vunpack.c.h.b16 %v2226
      %v2608 = vunpack.c.l.b16 %v2227
      %v2609 = vunpack.c.h.b16 %v2227
      %v2610 = vunpack.c.l.b16 %v2228
      %v2611 = vunpack.c.h.b16 %v2228
      %v2612 = vunpack.c.l.b16 %v2229
      %v2613 = vunpack.c.h.b16 %v2229
      %v2614 = vunpack.c.l.b16 %v2230
      %v2615 = vunpack.c.h.b16 %v2230
      %v2616 = vunpack.c.l.b16 %v2231
      %v2617 = vunpack.c.h.b16 %v2231
      %v2618 = vunpack.c.l.b16 %v2232
      %v2619 = vunpack.c.h.b16 %v2232
      %v2620 = vunpack.c.l.b16 %v2233
      %v2621 = vunpack.c.h.b16 %v2233
      %v2622 = vunpack.c.l.b16 %v2234
      %v2623 = vunpack.c.h.b16 %v2234
      %v2624 = vunpack.c.l.b16 %v2235
      %v2625 = vunpack.c.h.b16 %v2235
      %v2626 = vunpack.c.l.b16 %v2236
      %v2627 = vunpack.c.h.b16 %v2236
      %v2628 = vunpack.c.l.b16 %v2237
      %v2629 = vunpack.c.h.b16 %v2237
      %v2630 = vunpack.c.l.b16 %v2238
      %v2631 = vunpack.c.h.b16 %v2238
      %v2632 = vunpack.c.l.b16 %v2239
      %v2633 = vunpack.c.h.b16 %v2239
      %v2634 = vunpack.c.l.b16 %v2240
      %v2635 = vunpack.c.h.b16 %v2240
      %v2636 = vunpack.c.l.b16 %v2241
      %v2637 = vunpack.c.h.b16 %v2241
      %v2638 = vunpack.c.l.b16 %v2242
      %v2639 = vunpack.c.h.b16 %v2242
      %v2640 = vunpack.c.l.b16 %v2243
      %v2641 = vunpack.c.h.b16 %v2243
      %v2642 = vunpack.c.l.b16 %v2244
      %v2643 = vunpack.c.h.b16 %v2244
      %v2644 = vunpack.c.l.b16 %v2245
      %v2645 = vunpack.c.h.b16 %v2245
      %v2646 = vunpack.c.l.b16 %v2246
      %v2647 = vunpack.c.h.b16 %v2246
      %v2648 = vunpack.c.l.b16 %v2247
      %v2649 = vunpack.c.h.b16 %v2247
      %v2650 = vunpack.c.l.b16 %v2248
      %v2651 = vunpack.c.h.b16 %v2248
      %v2652 = vunpack.c.l.b16 %v2249
      %v2653 = vunpack.c.h.b16 %v2249
      %v2654 = vunpack.c.l.b16 %v2250
      %v2655 = vunpack.c.h.b16 %v2250
      %v2656 = vunpack.c.l.b16 %v2251
      %v2657 = vunpack.c.h.b16 %v2251
      %v2658 = vunpack.c.l.b16 %v2252
      %v2659 = vunpack.c.h.b16 %v2252
      %v2660 = vunpack.c.l.b16 %v2253
      %v2661 = vunpack.c.h.b16 %v2253
      %v2662 = vunpack.c.l.b16 %v2254
      %v2663 = vunpack.c.h.b16 %v2254
      %v2664 = vunpack.c.l.b16 %v2255
      %v2665 = vunpack.c.h.b16 %v2255
      %v2666 = vunpack.c.l.b16 %v2256
      %v2667 = vunpack.c.h.b16 %v2256
      %v2668 = vunpack.c.l.b16 %v2257
      %v2669 = vunpack.c.h.b16 %v2257
      %v2670 = vunpack.c.l.b16 %v2258
      %v2671 = vunpack.c.h.b16 %v2258
      %v2672 = vunpack.c.l.b16 %v2259
      %v2673 = vunpack.c.h.b16 %v2259
      %v2674 = vunpack.c.l.b16 %v2260
      %v2675 = vunpack.c.h.b16 %v2260
      %v2676 = vunpack.c.l.b16 %v2261
      %v2677 = vunpack.c.h.b16 %v2261
      %v2678 = vunpack.c.l.b16 %v2262
      %v2679 = vunpack.c.h.b16 %v2262
      %v2680 = vunpack.c.l.b16 %v2263
      %v2681 = vunpack.c.h.b16 %v2263
      %v2682 = vunpack.c.l.b16 %v2264
      %v2683 = vunpack.c.h.b16 %v2264
      %v2684 = vunpack.c.l.b16 %v2265
      %v2685 = vunpack.c.h.b16 %v2265
      %v2686 = vunpack.c.l.b16 %v2266
      %v2687 = vunpack.c.h.b16 %v2266
      %v2688 = vunpack.c.l.b16 %v2267
      %v2689 = vunpack.c.h.b16 %v2267
      %v2690 = vunpack.c.l.b16 %v2268
      %v2691 = vunpack.c.h.b16 %v2268
      %v2692 = vunpack.c.l.b16 %v2269
      %v2693 = vunpack.c.h.b16 %v2269
      %v2694 = vunpack.c.l.b16 %v2270
      %v2695 = vunpack.c.h.b16 %v2270
      %v2696 = vunpack.c.l.b16 %v2271
      %v2697 = vunpack.c.h.b16 %v2271
      %v2698 = vunpack.c.l.b16 %v2272
      %v2699 = vunpack.c.h.b16 %v2272
      %v2700 = vunpack.c.l.b16 %v2273
      %v2701 = vunpack.c.h.b16 %v2273
      %v2702 = vunpack.c.l.b16 %v2274
      %v2703 = vunpack.c.h.b16 %v2274
      %v2704 = vunpack.c.l.b16 %v2275
      %v2705 = vunpack.c.h.b16 %v2275
      %v2706 = vunpack.c.l.b16 %v2276
      %v2707 = vunpack.c.h.b16 %v2276
      %v2708 = vunpack.c.l.b16 %v2277
      %v2709 = vunpack.c.h.b16 %v2277
      %v2710 = vunpack.c.l.b16 %v2278
      %v2711 = vunpack.c.h.b16 %v2278
      %v2712 = vunpack.c.l.b16 %v2279
      %v2713 = vunpack.c.h.b16 %v2279
      %v2714 = vunpack.c.l.b16 %v2280
      %v2715 = vunpack.c.h.b16 %v2280
      %v2716 = vunpack.c.l.b16 %v2281
      %v2717 = vunpack.c.h.b16 %v2281
      %v2718 = vunpack.c.l.b16 %v2282
      %v2719 = vunpack.c.h.b16 %v2282
      %v2720 = vunpack.c.l.b16 %v2283
      %v2721 = vunpack.c.h.b16 %v2283
      %v2722 = vunpack.c.l.b16 %v2284
      %v2723 = vunpack.c.h.b16 %v2284
      %v2724 = vunpack.c.l.b16 %v2285
      %v2725 = vunpack.c.h.b16 %v2285
      %v2726 = vunpack.c.l.b16 %v2286
      %v2727 = vunpack.c.h.b16 %v2286
      %v2728 = vunpack.c.l.b16 %v2287
      %v2729 = vunpack.c.h.b16 %v2287
      %v2730 = vunpack.c.l.b16 %v2288
      %v2731 = vunpack.c.h.b16 %v2288
      %v2732 = vunpack.c.l.b16 %v2289
      %v2733 = vunpack.c.h.b16 %v2289
      %v2734 = vunpack.c.l.b16 %v2290
      %v2735 = vunpack.c.h.b16 %v2290
      %v2736 = vunpack.c.l.b16 %v2291
      %v2737 = vunpack.c.h.b16 %v2291
      %v2738 = vunpack.c.l.b16 %v2292
      %v2739 = vunpack.c.h.b16 %v2292
      %v2740 = vunpack.c.l.b16 %v2293
      %v2741 = vunpack.c.h.b16 %v2293
      %v2742 = vunpack.c.l.b16 %v2294
      %v2743 = vunpack.c.h.b16 %v2294
      %v2744 = vunpack.c.l.b16 %v2295
      %v2745 = vunpack.c.h.b16 %v2295
      %v2746 = vunpack.c.l.b16 %v2296
      %v2747 = vunpack.c.h.b16 %v2296
      %v2748 = vunpack.c.l.b16 %v2297
      %v2749 = vunpack.c.h.b16 %v2297
      %v2750 = vunpack.c.l.b16 %v2298
      %v2751 = vunpack.c.h.b16 %v2298
      %v2752 = vunpack.c.l.b16 %v2299
      %v2753 = vunpack.c.h.b16 %v2299
      %v2754 = vunpack.c.l.b16 %v2300
      %v2755 = vunpack.c.h.b16 %v2300
      %v2756 = vunpack.c.l.b16 %v2301
      %v2757 = vunpack.c.h.b16 %v2301
      %v2758 = vunpack.c.l.b16 %v2302
      %v2759 = vunpack.c.h.b16 %v2302
      %v2760 = vunpack.c.l.b16 %v2303
      %v2761 = vunpack.c.h.b16 %v2303
      %v2762 = vunpack.c.l.b16 %v2304
      %v2763 = vunpack.c.h.b16 %v2304
      %v2764 = vunpack.c.l.b16 %v2305
      %v2765 = vunpack.c.h.b16 %v2305
      %v2766 = vunpack.c.l.b16 %v2306
      %v2767 = vunpack.c.h.b16 %v2306
      %v2768 = vunpack.c.l.b16 %v2307
      %v2769 = vunpack.c.h.b16 %v2307
      %v2770 = vunpack.c.l.b16 %v2308
      %v2771 = vunpack.c.h.b16 %v2308
      %v2772 = vunpack.c.l.b16 %v2309
      %v2773 = vunpack.c.h.b16 %v2309
      %v2774 = vunpack.c.l.b16 %v2310
      %v2775 = vunpack.c.h.b16 %v2310
      %v2776 = vunpack.c.l.b16 %v2311
      %v2777 = vunpack.c.h.b16 %v2311
      %v2778 = vunpack.c.l.b16 %v2312
      %v2779 = vunpack.c.h.b16 %v2312
      %v2780 = vunpack.c.l.b16 %v2313
      %v2781 = vunpack.c.h.b16 %v2313
      %v2782 = vunpack.c.l.b16 %v2314
      %v2783 = vunpack.c.h.b16 %v2314
      %v2784 = vpack.c.b16 %v2530, %v2528
      %v2785 = vpack.c.b16 %v2531, %v2529
      %v2786 = vpack.c.b16 %v2534, %v2532
      %v2787 = vpack.c.b16 %v2535, %v2533
      %v2788 = vpack.c.b16 %v2538, %v2536
      %v2789 = vpack.c.b16 %v2539, %v2537
      %v2790 = vpack.c.b16 %v2542, %v2540
      %v2791 = vpack.c.b16 %v2543, %v2541
      %v2792 = vpack.c.b16 %v2546, %v2544
      %v2793 = vpack.c.b16 %v2547, %v2545
      %v2794 = vpack.c.b16 %v2550, %v2548
      %v2795 = vpack.c.b16 %v2551, %v2549
      %v2796 = vpack.c.b16 %v2554, %v2552
      %v2797 = vpack.c.b16 %v2555, %v2553
      %v2798 = vpack.c.b16 %v2558, %v2556
      %v2799 = vpack.c.b16 %v2559, %v2557
      %v2800 = vpack.c.b16 %v2562, %v2560
      %v2801 = vpack.c.b16 %v2563, %v2561
      %v2802 = vpack.c.b16 %v2566, %v2564
      %v2803 = vpack.c.b16 %v2567, %v2565
      %v2804 = vpack.c.b16 %v2570, %v2568
      %v2805 = vpack.c.b16 %v2571, %v2569
      %v2806 = vpack.c.b16 %v2574, %v2572
      %v2807 = vpack.c.b16 %v2575, %v2573
      %v2808 = vpack.c.b16 %v2578, %v2576
      %v2809 = vpack.c.b16 %v2579, %v2577
      %v2810 = vpack.c.b16 %v2582, %v2580
      %v2811 = vpack.c.b16 %v2583, %v2581
      %v2812 = vpack.c.b16 %v2586, %v2584
      %v2813 = vpack.c.b16 %v2587, %v2585
      %v2814 = vpack.c.b16 %v2590, %v2588
      %v2815 = vpack.c.b16 %v2591, %v2589
      %v2816 = vpack.c.b16 %v2594, %v2592
      %v2817 = vpack.c.b16 %v2595, %v2593
      %v2818 = vpack.c.b16 %v2598, %v2596
      %v2819 = vpack.c.b16 %v2599, %v2597
      %v2820 = vpack.c.b16 %v2602, %v2600
      %v2821 = vpack.c.b16 %v2603, %v2601
      %v2822 = vpack.c.b16 %v2606, %v2604
      %v2823 = vpack.c.b16 %v2607, %v2605
      %v2824 = vpack.c.b16 %v2610, %v2608
      %v2825 = vpack.c.b16 %v2611, %v2609
      %v2826 = vpack.c.b16 %v2614, %v2612
      %v2827 = vpack.c.b16 %v2615, %v2613
      %v2828 = vpack.c.b16 %v2618, %v2616
      %v2829 = vpack.c.b16 %v2619, %v2617
      %v2830 = vpack.c.b16 %v2622, %v2620
      %v2831 = vpack.c.b16 %v2623, %v2621
      %v2832 = vpack.c.b16 %v2626, %v2624
      %v2833 = vpack.c.b16 %v2627, %v2625
      %v2834 = vpack.c.b16 %v2630, %v2628
      %v2835 = vpack.c.b16 %v2631, %v2629
      %v2836 = vpack.c.b16 %v2634, %v2632
      %v2837 = vpack.c.b16 %v2635, %v2633
      %v2838 = vpack.c.b16 %v2638, %v2636
      %v2839 = vpack.c.b16 %v2639, %v2637
      %v2840 = vpack.c.b16 %v2642, %v2640
      %v2841 = vpack.c.b16 %v2643, %v2641
      %v2842 = vpack.c.b16 %v2646, %v2644
      %v2843 = vpack.c.b16 %v2647, %v2645
      %v2844 = vpack.c.b16 %v2650, %v2648
      %v2845 = vpack.c.b16 %v2651, %v2649
      %v2846 = vpack.c.b16 %v2654, %v2652
      %v2847 = vpack.c.b16 %v2655, %v2653
      %v2848 = vpack.c.b16 %v2658, %v2656
      %v2849 = vpack.c.b16 %v2659, %v2657
      %v2850 = vpack.c.b16 %v2662, %v2660
      %v2851 = vpack.c.b16 %v2663, %v2661
      %v2852 = vpack.c.b16 %v2666, %v2664
      %v2853 = vpack.c.b16 %v2667, %v2665
      %v2854 = vpack.c.b16 %v2670, %v2668
      %v2855 = vpack.c.b16 %v2671, %v2669
      %v2856 = vpack.c.b16 %v2674, %v2672
      %v2857 = vpack.c.b16 %v2675, %v2673
      %v2858 = vpack.c.b16 %v2678, %v2676
      %v2859 = vpack.c.b16 %v2679, %v2677
      %v2860 = vpack.c.b16 %v2682, %v2680
      %v2861 = vpack.c.b16 %v2683, %v2681
      %v2862 = vpack.c.b16 %v2686, %v2684
      %v2863 = vpack.c.b16 %v2687, %v2685
      %v2864 = vpack.c.b16 %v2690, %v2688
      %v2865 = vpack.c.b16 %v2691, %v2689
      %v2866 = vpack.c.b16 %v2694, %v2692
      %v2867 = vpack.c.b16 %v2695, %v2693
      %v2868 = vpack.c.b16 %v2698, %v2696
      %v2869 = vpack.c.b16 %v2699, %v2697
      %v2870 = vpack.c.b16 %v2702, %v2700
      %v2871 = vpack.c.b16 %v2703, %v2701
      %v2872 = vpack.c.b16 %v2706, %v2704
      %v2873 = vpack.c.b16 %v2707, %v2705
      %v2874 = vpack.c.b16 %v2710, %v2708
      %v2875 = vpack.c.b16 %v2711, %v2709
      %v2876 = vpack.c.b16 %v2714, %v2712
      %v2877 = vpack.c.b16 %v2715, %v2713
      %v2878 = vpack.c.b16 %v2718, %v2716
      %v2879 = vpack.c.b16 %v2719, %v2717
      %v2880 = vpack.c.b16 %v2722, %v2720
      %v2881 = vpack.c.b16 %v2723, %v2721
      %v2882 = vpack.c.b16 %v2726, %v2724
      %v2883 = vpack.c.b16 %v2727, %v2725
      %v2884 = vpack.c.b16 %v2730, %v2728
      %v2885 = vpack.c.b16 %v2731, %v2729
      %v2886 = vpack.c.b16 %v2734, %v2732
      %v2887 = vpack.c.b16 %v2735, %v2733
      %v2888 = vpack.c.b16 %v2738, %v2736
      %v2889 = vpack.c.b16 %v2739, %v2737
      %v2890 = vpack.c.b16 %v2742, %v2740
      %v2891 = vpack.c.b16 %v2743, %v2741
      %v2892 = vpack.c.b16 %v2746, %v2744
      %v2893 = vpack.c.b16 %v2747, %v2745
      %v2894 = vpack.c.b16 %v2750, %v2748
      %v2895 = vpack.c.b16 %v2751, %v2749
      %v2896 = vpack.c.b16 %v2754, %v2752
      %v2897 = vpack.c.b16 %v2755, %v2753
      %v2898 = vpack.c.b16 %v2758, %v2756
      %v2899 = vpack.c.b16 %v2759, %v2757
      %v2900 = vpack.c.b16 %v2762, %v2760
      %v2901 = vpack.c.b16 %v2763, %v2761
      %v2902 = vpack.c.b16 %v2766, %v2764
      %v2903 = vpack.c.b16 %v2767, %v2765
      %v2904 = vpack.c.b16 %v2770, %v2768
      %v2905 = vpack.c.b16 %v2771, %v2769
      %v2906 = vpack.c.b16 %v2774, %v2772
      %v2907 = vpack.c.b16 %v2775, %v2773
      %v2908 = vpack.c.b16 %v2778, %v2776
      %v2909 = vpack.c.b16 %v2779, %v2777
      %v2910 = vpack.c.b16 %v2782, %v2780
      %v2911 = vpack.c.b16 %v2783, %v2781
      %3040 = vmatprep.subr.bf16.mxu0 %v2785
      %3041 = vmatpush1.bf16.msra.mxu0 %v2784
      %3042 = vmatprep.subr.bf16.mxu0 %v2787
      %3043 = vmatpush1.bf16.msra.mxu0 %v2786
      %3044 = vmatprep.subr.bf16.mxu0 %v2789
      %3045 = vmatpush1.bf16.msra.mxu0 %v2788
      %3046 = vmatprep.subr.bf16.mxu0 %v2791
      %3047 = vmatpush1.bf16.msra.mxu0 %v2790
      %3048 = vmatprep.subr.bf16.mxu0 %v2793
      %3049 = vmatpush1.bf16.msra.mxu0 %v2792
      %3050 = vmatprep.subr.bf16.mxu0 %v2795
      %3051 = vmatpush1.bf16.msra.mxu0 %v2794
      %3052 = vmatprep.subr.bf16.mxu0 %v2797
      %3053 = vmatpush1.bf16.msra.mxu0 %v2796
      %3054 = vmatprep.subr.bf16.mxu0 %v2799
      %3055 = vmatpush1.bf16.msra.mxu0 %v2798
      %3056 = vmatprep.subr.bf16.mxu0 %v2801
      %3057 = vmatpush1.bf16.msra.mxu0 %v2800
      %3058 = vmatprep.subr.bf16.mxu0 %v2803
      %3059 = vmatpush1.bf16.msra.mxu0 %v2802
      %3060 = vmatprep.subr.bf16.mxu0 %v2805
      %3061 = vmatpush1.bf16.msra.mxu0 %v2804
      %3062 = vmatprep.subr.bf16.mxu0 %v2807
      %3063 = vmatpush1.bf16.msra.mxu0 %v2806
      %3064 = vmatprep.subr.bf16.mxu0 %v2809
      %3065 = vmatpush1.bf16.msra.mxu0 %v2808
      %3066 = vmatprep.subr.bf16.mxu0 %v2811
      %3067 = vmatpush1.bf16.msra.mxu0 %v2810
      %3068 = vmatprep.subr.bf16.mxu0 %v2813
      %3069 = vmatpush1.bf16.msra.mxu0 %v2812
      %3070 = vmatprep.subr.bf16.mxu0 %v2815
      %3071 = vmatpush1.bf16.msra.mxu0 %v2814
      %3072 = vmatprep.mubr.bf16.mxu0 %v2373
      %3073 = vmatmul.mubr.bf16.gmra.mrb[0].mxu0 %v2370
      %v3074 = vpop.f32.mrb[0].mxu0
      %v3075 = vadd.f32 0.0, %v3074
      %v3076 = vpop.f32.mrb[0].mxu0
      %v3077 = vadd.f32 0.0, %v3076
      %v3078 = vpop.f32.mrb[0].mxu0
      %v3079 = vadd.f32 0.0, %v3078
      %v3080 = vpop.f32.mrb[0].mxu0
      %v3081 = vadd.f32 0.0, %v3080
      %3082 = vdwg.mxu0
      %3083 = vmatprep.subr.bf16.mxu0 %v2817
      %3084 = vmatpush1.bf16.msra.mxu0 %v2816
      %3085 = vmatprep.subr.bf16.mxu0 %v2819
      %3086 = vmatpush1.bf16.msra.mxu0 %v2818
      %3087 = vmatprep.subr.bf16.mxu0 %v2821
      %3088 = vmatpush1.bf16.msra.mxu0 %v2820
      %3089 = vmatprep.subr.bf16.mxu0 %v2823
      %3090 = vmatpush1.bf16.msra.mxu0 %v2822
      %3091 = vmatprep.subr.bf16.mxu0 %v2825
      %3092 = vmatpush1.bf16.msra.mxu0 %v2824
      %3093 = vmatprep.subr.bf16.mxu0 %v2827
      %3094 = vmatpush1.bf16.msra.mxu0 %v2826
      %3095 = vmatprep.subr.bf16.mxu0 %v2829
      %3096 = vmatpush1.bf16.msra.mxu0 %v2828
      %3097 = vmatprep.subr.bf16.mxu0 %v2831
      %3098 = vmatpush1.bf16.msra.mxu0 %v2830
      %3099 = vmatprep.subr.bf16.mxu0 %v2833
      %3100 = vmatpush1.bf16.msra.mxu0 %v2832
      %3101 = vmatprep.subr.bf16.mxu0 %v2835
      %3102 = vmatpush1.bf16.msra.mxu0 %v2834
      %3103 = vmatprep.subr.bf16.mxu0 %v2837
      %3104 = vmatpush1.bf16.msra.mxu0 %v2836
      %3105 = vmatprep.subr.bf16.mxu0 %v2839
      %3106 = vmatpush1.bf16.msra.mxu0 %v2838
      %3107 = vmatprep.subr.bf16.mxu0 %v2841
      %3108 = vmatpush1.bf16.msra.mxu0 %v2840
      %3109 = vmatprep.subr.bf16.mxu0 %v2843
      %3110 = vmatpush1.bf16.msra.mxu0 %v2842
      %3111 = vmatprep.subr.bf16.mxu0 %v2845
      %3112 = vmatpush1.bf16.msra.mxu0 %v2844
      %3113 = vmatprep.subr.bf16.mxu0 %v2847
      %3114 = vmatpush1.bf16.msra.mxu0 %v2846
      %3115 = vmatprep.mubr.bf16.mxu0 %v2379
      %3116 = vmatmul.mubr.bf16.gmra.mrb[0].mxu0 %v2376
      %v3117 = vpop.f32.mrb[0].mxu0
      %v3118 = vadd.f32 %v3075, %v3117
      %v3119 = vpop.f32.mrb[0].mxu0
      %v3120 = vadd.f32 %v3077, %v3119
      %v3121 = vpop.f32.mrb[0].mxu0
      %v3122 = vadd.f32 %v3079, %v3121
      %v3123 = vpop.f32.mrb[0].mxu0
      %v3124 = vadd.f32 %v3081, %v3123
      %3125 = vdwg.mxu0
      %3126 = vmatprep.subr.bf16.mxu0 %v2849
      %3127 = vmatpush1.bf16.msra.mxu0 %v2848
      %3128 = vmatprep.subr.bf16.mxu0 %v2851
      %3129 = vmatpush1.bf16.msra.mxu0 %v2850
      %3130 = vmatprep.subr.bf16.mxu0 %v2853
      %3131 = vmatpush1.bf16.msra.mxu0 %v2852
      %3132 = vmatprep.subr.bf16.mxu0 %v2855
      %3133 = vmatpush1.bf16.msra.mxu0 %v2854
      %3134 = vmatprep.subr.bf16.mxu0 %v2857
      %3135 = vmatpush1.bf16.msra.mxu0 %v2856
      %3136 = vmatprep.subr.bf16.mxu0 %v2859
      %3137 = vmatpush1.bf16.msra.mxu0 %v2858
      %3138 = vmatprep.subr.bf16.mxu0 %v2861
      %3139 = vmatpush1.bf16.msra.mxu0 %v2860
      %3140 = vmatprep.subr.bf16.mxu0 %v2863
      %3141 = vmatpush1.bf16.msra.mxu0 %v2862
      %3142 = vmatprep.subr.bf16.mxu0 %v2865
      %3143 = vmatpush1.bf16.msra.mxu0 %v2864
      %3144 = vmatprep.subr.bf16.mxu0 %v2867
      %3145 = vmatpush1.bf16.msra.mxu0 %v2866
      %3146 = vmatprep.subr.bf16.mxu0 %v2869
      %3147 = vmatpush1.bf16.msra.mxu0 %v2868
      %3148 = vmatprep.subr.bf16.mxu0 %v2871
      %3149 = vmatpush1.bf16.msra.mxu0 %v2870
      %3150 = vmatprep.subr.bf16.mxu0 %v2873
      %3151 = vmatpush1.bf16.msra.mxu0 %v2872
      %3152 = vmatprep.subr.bf16.mxu0 %v2875
      %3153 = vmatpush1.bf16.msra.mxu0 %v2874
      %3154 = vmatprep.subr.bf16.mxu0 %v2877
      %3155 = vmatpush1.bf16.msra.mxu0 %v2876
      %3156 = vmatprep.subr.bf16.mxu0 %v2879
      %3157 = vmatpush1.bf16.msra.mxu0 %v2878
      %3158 = vmatprep.mubr.bf16.mxu0 %v2385
      %3159 = vmatmul.mubr.bf16.gmra.mrb[0].mxu0 %v2382
      %v3160 = vpop.f32.mrb[0].mxu0
      %v3161 = vadd.f32 %v3118, %v3160
      %v3162 = vpop.f32.mrb[0].mxu0
      %v3163 = vadd.f32 %v3120, %v3162
      %v3164 = vpop.f32.mrb[0].mxu0
      %v3165 = vadd.f32 %v3122, %v3164
      %v3166 = vpop.f32.mrb[0].mxu0
      %v3167 = vadd.f32 %v3124, %v3166
      %3168 = vdwg.mxu0
      %3169 = vmatprep.subr.bf16.mxu0 %v2881
      %3170 = vmatpush1.bf16.msra.mxu0 %v2880
      %3171 = vmatprep.subr.bf16.mxu0 %v2883
      %3172 = vmatpush1.bf16.msra.mxu0 %v2882
      %3173 = vmatprep.subr.bf16.mxu0 %v2885
      %3174 = vmatpush1.bf16.msra.mxu0 %v2884
      %3175 = vmatprep.subr.bf16.mxu0 %v2887
      %3176 = vmatpush1.bf16.msra.mxu0 %v2886
      %3177 = vmatprep.subr.bf16.mxu0 %v2889
      %3178 = vmatpush1.bf16.msra.mxu0 %v2888
      %3179 = vmatprep.subr.bf16.mxu0 %v2891
      %3180 = vmatpush1.bf16.msra.mxu0 %v2890
      %3181 = vmatprep.subr.bf16.mxu0 %v2893
      %3182 = vmatpush1.bf16.msra.mxu0 %v2892
      %3183 = vmatprep.subr.bf16.mxu0 %v2895
      %3184 = vmatpush1.bf16.msra.mxu0 %v2894
      %3185 = vmatprep.subr.bf16.mxu0 %v2897
      %3186 = vmatpush1.bf16.msra.mxu0 %v2896
      %3187 = vmatprep.subr.bf16.mxu0 %v2899
      %3188 = vmatpush1.bf16.msra.mxu0 %v2898
      %3189 = vmatprep.subr.bf16.mxu0 %v2901
      %3190 = vmatpush1.bf16.msra.mxu0 %v2900
      %3191 = vmatprep.subr.bf16.mxu0 %v2903
      %3192 = vmatpush1.bf16.msra.mxu0 %v2902
      %3193 = vmatprep.subr.bf16.mxu0 %v2905
      %3194 = vmatpush1.bf16.msra.mxu0 %v2904
      %3195 = vmatprep.subr.bf16.mxu0 %v2907
      %3196 = vmatpush1.bf16.msra.mxu0 %v2906
      %3197 = vmatprep.subr.bf16.mxu0 %v2909
      %3198 = vmatpush1.bf16.msra.mxu0 %v2908
      %3199 = vmatprep.subr.bf16.mxu0 %v2911
      %3200 = vmatpush1.bf16.msra.mxu0 %v2910
      %3201 = vmatprep.mubr.bf16.mxu0 %v2391
      %3202 = vmatmul.mubr.bf16.gmra.mrb[0].mxu0 %v2388
      %v3203 = vpop.f32.mrb[0].mxu0
      %v3204 = vadd.f32 %v3161, %v3203
      %v3205 = vpop.f32.mrb[0].mxu0
      %v3206 = vadd.f32 %v3163, %v3205
      %v3207 = vpop.f32.mrb[0].mxu0
      %v3208 = vadd.f32 %v3165, %v3207
      %v3209 = vpop.f32.mrb[0].mxu0
      %v3210 = vadd.f32 %v3167, %v3209
      %3211 = vdwg.mxu0
      %v3212 = vadd.f32 %v2166, %v3204
      %v3213 = vadd.f32 %v2168, %v3206
      %v3214 = vadd.f32 %v2170, %v3208
      %v3215 = vadd.f32 %v2172, %v3210
      %v3216 = vld [vmem:[%s332] sm:$0xcc]
      %v3217 = vld [vmem:[%s332 + $0x8] sm:$0xcc]
      %v3218 = vld [vmem:[%s332 + $0x10] sm:$0xcc]
      %v3219 = vld [vmem:[%s332 + $0x18] sm:$0xcc]
      %v3220 = vld [vmem:[%s332 + $0x20] sm:$0xff]
      %v3221 = vld [vmem:[%s332 + $0x28] sm:$0xff]
      %v3222 = vld [vmem:[%s332 + $0x30] sm:$0xff]
      %v3223 = vld [vmem:[%s332 + $0x38] sm:$0xff]
      %v3224 = vld [vmem:[%s332 + $0x40] sm:$0x33]
      %v3225 = vld [vmem:[%s332 + $0x48] sm:$0x33]
      %v3226 = vld [vmem:[%s332 + $0x50] sm:$0x33]
      %v3227 = vld [vmem:[%s332 + $0x58] sm:$0x33]
      %s3228 = scalar_lea.vmem %s1, 3072
      %v3229 = vld [vmem:[%s3228] sm:$0xff]
      %v3230 = vld [vmem:[%s3228 + $0x8] sm:$0xff]
      %v3231 = vld [vmem:[%s3228 + $0x10] sm:$0xff]
      %v3232 = vld [vmem:[%s3228 + $0x18] sm:$0xff]
      %v3233 = vld [vmem:[%s3228 + $0x20] sm:$0xff]
      %v3234 = vld [vmem:[%s3228 + $0x28] sm:$0xff]
      %v3235 = vld [vmem:[%s3228 + $0x30] sm:$0xff]
      %v3236 = vld [vmem:[%s3228 + $0x38] sm:$0xff]
      %v3237 = vld [vmem:[%s3228 + $0x40] sm:$0xff]
      %v3238 = vld [vmem:[%s3228 + $0x48] sm:$0xff]
      %v3239 = vld [vmem:[%s3228 + $0x50] sm:$0xff]
      %v3240 = vld [vmem:[%s3228 + $0x58] sm:$0xff]
      %v3241 = vld [vmem:[%s3228 + $0x60] sm:$0xff]
      %v3242 = vld [vmem:[%s3228 + $0x68] sm:$0xff]
      %v3243 = vld [vmem:[%s3228 + $0x70] sm:$0xff]
      %v3244 = vld [vmem:[%s3228 + $0x78] sm:$0xff]
      %v3245 = vld [vmem:[%s3228 + $0x80] sm:$0xff]
      %v3246 = vld [vmem:[%s3228 + $0x88] sm:$0xff]
      %v3247 = vld [vmem:[%s3228 + $0x90] sm:$0xff]
      %v3248 = vld [vmem:[%s3228 + $0x98] sm:$0xff]
      %v3249 = vld [vmem:[%s3228 + $0xa0] sm:$0xff]
      %v3250 = vld [vmem:[%s3228 + $0xa8] sm:$0xff]
      %v3251 = vld [vmem:[%s3228 + $0xb0] sm:$0xff]
      %v3252 = vld [vmem:[%s3228 + $0xb8] sm:$0xff]
      %v3253 = vld [vmem:[%s3228 + $0xc0] sm:$0xff]
      %v3254 = vld [vmem:[%s3228 + $0xc8] sm:$0xff]
      %v3255 = vld [vmem:[%s3228 + $0xd0] sm:$0xff]
      %v3256 = vld [vmem:[%s3228 + $0xd8] sm:$0xff]
      %v3257 = vld [vmem:[%s3228 + $0xe0] sm:$0xff]
      %v3258 = vld [vmem:[%s3228 + $0xe8] sm:$0xff]
      %v3259 = vld [vmem:[%s3228 + $0xf0] sm:$0xff]
      %v3260 = vld [vmem:[%s3228 + $0xf8] sm:$0xff]
      %v3261 = vld [vmem:[%s3228 + $0x100] sm:$0xff]
      %v3262 = vld [vmem:[%s3228 + $0x108] sm:$0xff]
      %v3263 = vld [vmem:[%s3228 + $0x110] sm:$0xff]
      %v3264 = vld [vmem:[%s3228 + $0x118] sm:$0xff]
      %v3265 = vld [vmem:[%s3228 + $0x120] sm:$0xff]
      %v3266 = vld [vmem:[%s3228 + $0x128] sm:$0xff]
      %v3267 = vld [vmem:[%s3228 + $0x130] sm:$0xff]
      %v3268 = vld [vmem:[%s3228 + $0x138] sm:$0xff]
      %v3269 = vld [vmem:[%s3228 + $0x140] sm:$0xff]
      %v3270 = vld [vmem:[%s3228 + $0x148] sm:$0xff]
      %v3271 = vld [vmem:[%s3228 + $0x150] sm:$0xff]
      %v3272 = vld [vmem:[%s3228 + $0x158] sm:$0xff]
      %v3273 = vld [vmem:[%s3228 + $0x160] sm:$0xff]
      %v3274 = vld [vmem:[%s3228 + $0x168] sm:$0xff]
      %v3275 = vld [vmem:[%s3228 + $0x170] sm:$0xff]
      %v3276 = vld [vmem:[%s3228 + $0x178] sm:$0xff]
      %v3277 = vld [vmem:[%s3228 + $0x180] sm:$0xff]
      %v3278 = vld [vmem:[%s3228 + $0x188] sm:$0xff]
      %v3279 = vld [vmem:[%s3228 + $0x190] sm:$0xff]
      %v3280 = vld [vmem:[%s3228 + $0x198] sm:$0xff]
      %v3281 = vld [vmem:[%s3228 + $0x1a0] sm:$0xff]
      %v3282 = vld [vmem:[%s3228 + $0x1a8] sm:$0xff]
      %v3283 = vld [vmem:[%s3228 + $0x1b0] sm:$0xff]
      %v3284 = vld [vmem:[%s3228 + $0x1b8] sm:$0xff]
      %v3285 = vld [vmem:[%s3228 + $0x1c0] sm:$0xff]
      %v3286 = vld [vmem:[%s3228 + $0x1c8] sm:$0xff]
      %v3287 = vld [vmem:[%s3228 + $0x1d0] sm:$0xff]
      %v3288 = vld [vmem:[%s3228 + $0x1d8] sm:$0xff]
      %v3289 = vld [vmem:[%s3228 + $0x1e0] sm:$0xff]
      %v3290 = vld [vmem:[%s3228 + $0x1e8] sm:$0xff]
      %v3291 = vld [vmem:[%s3228 + $0x1f0] sm:$0xff]
      %v3292 = vld [vmem:[%s3228 + $0x1f8] sm:$0xff]
      %v3293 = vld [vmem:[%s3228 + $0x200] sm:$0xff]
      %v3294 = vld [vmem:[%s3228 + $0x208] sm:$0xff]
      %v3295 = vld [vmem:[%s3228 + $0x210] sm:$0xff]
      %v3296 = vld [vmem:[%s3228 + $0x218] sm:$0xff]
      %v3297 = vld [vmem:[%s3228 + $0x220] sm:$0xff]
      %v3298 = vld [vmem:[%s3228 + $0x228] sm:$0xff]
      %v3299 = vld [vmem:[%s3228 + $0x230] sm:$0xff]
      %v3300 = vld [vmem:[%s3228 + $0x238] sm:$0xff]
      %v3301 = vld [vmem:[%s3228 + $0x240] sm:$0xff]
      %v3302 = vld [vmem:[%s3228 + $0x248] sm:$0xff]
      %v3303 = vld [vmem:[%s3228 + $0x250] sm:$0xff]
      %v3304 = vld [vmem:[%s3228 + $0x258] sm:$0xff]
      %v3305 = vld [vmem:[%s3228 + $0x260] sm:$0xff]
      %v3306 = vld [vmem:[%s3228 + $0x268] sm:$0xff]
      %v3307 = vld [vmem:[%s3228 + $0x270] sm:$0xff]
      %v3308 = vld [vmem:[%s3228 + $0x278] sm:$0xff]
      %v3309 = vld [vmem:[%s3228 + $0x280] sm:$0xff]
      %v3310 = vld [vmem:[%s3228 + $0x288] sm:$0xff]
      %v3311 = vld [vmem:[%s3228 + $0x290] sm:$0xff]
      %v3312 = vld [vmem:[%s3228 + $0x298] sm:$0xff]
      %v3313 = vld [vmem:[%s3228 + $0x2a0] sm:$0xff]
      %v3314 = vld [vmem:[%s3228 + $0x2a8] sm:$0xff]
      %v3315 = vld [vmem:[%s3228 + $0x2b0] sm:$0xff]
      %v3316 = vld [vmem:[%s3228 + $0x2b8] sm:$0xff]
      %v3317 = vld [vmem:[%s3228 + $0x2c0] sm:$0xff]
      %v3318 = vld [vmem:[%s3228 + $0x2c8] sm:$0xff]
      %v3319 = vld [vmem:[%s3228 + $0x2d0] sm:$0xff]
      %v3320 = vld [vmem:[%s3228 + $0x2d8] sm:$0xff]
      %v3321 = vld [vmem:[%s3228 + $0x2e0] sm:$0xff]
      %v3322 = vld [vmem:[%s3228 + $0x2e8] sm:$0xff]
      %v3323 = vld [vmem:[%s3228 + $0x2f0] sm:$0xff]
      %v3324 = vld [vmem:[%s3228 + $0x2f8] sm:$0xff]
      %v3325 = vld [vmem:[%s3228 + $0x300] sm:$0xff]
      %v3326 = vld [vmem:[%s3228 + $0x308] sm:$0xff]
      %v3327 = vld [vmem:[%s3228 + $0x310] sm:$0xff]
      %v3328 = vld [vmem:[%s3228 + $0x318] sm:$0xff]
      %v3329 = vld [vmem:[%s3228 + $0x320] sm:$0xff]
      %v3330 = vld [vmem:[%s3228 + $0x328] sm:$0xff]
      %v3331 = vld [vmem:[%s3228 + $0x330] sm:$0xff]
      %v3332 = vld [vmem:[%s3228 + $0x338] sm:$0xff]
      %v3333 = vld [vmem:[%s3228 + $0x340] sm:$0xff]
      %v3334 = vld [vmem:[%s3228 + $0x348] sm:$0xff]
      %v3335 = vld [vmem:[%s3228 + $0x350] sm:$0xff]
      %v3336 = vld [vmem:[%s3228 + $0x358] sm:$0xff]
      %v3337 = vld [vmem:[%s3228 + $0x360] sm:$0xff]
      %v3338 = vld [vmem:[%s3228 + $0x368] sm:$0xff]
      %v3339 = vld [vmem:[%s3228 + $0x370] sm:$0xff]
      %v3340 = vld [vmem:[%s3228 + $0x378] sm:$0xff]
      %v3341 = vld [vmem:[%s3228 + $0x380] sm:$0xff]
      %v3342 = vld [vmem:[%s3228 + $0x388] sm:$0xff]
      %v3343 = vld [vmem:[%s3228 + $0x390] sm:$0xff]
      %v3344 = vld [vmem:[%s3228 + $0x398] sm:$0xff]
      %v3345 = vld [vmem:[%s3228 + $0x3a0] sm:$0xff]
      %v3346 = vld [vmem:[%s3228 + $0x3a8] sm:$0xff]
      %v3347 = vld [vmem:[%s3228 + $0x3b0] sm:$0xff]
      %v3348 = vld [vmem:[%s3228 + $0x3b8] sm:$0xff]
      %v3349 = vld [vmem:[%s3228 + $0x3c0] sm:$0xff]
      %v3350 = vld [vmem:[%s3228 + $0x3c8] sm:$0xff]
      %v3351 = vld [vmem:[%s3228 + $0x3d0] sm:$0xff]
      %v3352 = vld [vmem:[%s3228 + $0x3d8] sm:$0xff]
      %v3353 = vld [vmem:[%s3228 + $0x3e0] sm:$0xff]
      %v3354 = vld [vmem:[%s3228 + $0x3e8] sm:$0xff]
      %v3355 = vld [vmem:[%s3228 + $0x3f0] sm:$0xff]
      %v3356 = vld [vmem:[%s3228 + $0x3f8] sm:$0xff]
      %v3369 = vunpack.c.l.b16 %v3216
      %v3370 = vunpack.c.h.b16 %v3216
      %v3371 = vunpack.c.l.b16 %v3217
      %v3372 = vunpack.c.h.b16 %v3217
      %v3373 = vunpack.c.l.b16 %v3218
      %v3374 = vunpack.c.h.b16 %v3218
      %v3375 = vunpack.c.l.b16 %v3219
      %v3376 = vunpack.c.h.b16 %v3219
      %v3377 = vunpack.c.l.b16 %v3220
      %v3378 = vunpack.c.h.b16 %v3220
      %v3379 = vunpack.c.l.b16 %v3221
      %v3380 = vunpack.c.h.b16 %v3221
      %v3381 = vunpack.c.l.b16 %v3222
      %v3382 = vunpack.c.h.b16 %v3222
      %v3383 = vunpack.c.l.b16 %v3223
      %v3384 = vunpack.c.h.b16 %v3223
      %v3385 = vunpack.c.l.b16 %v3224
      %v3386 = vunpack.c.h.b16 %v3224
      %v3387 = vunpack.c.l.b16 %v3225
      %v3388 = vunpack.c.h.b16 %v3225
      %v3389 = vunpack.c.l.b16 %v3226
      %v3390 = vunpack.c.h.b16 %v3226
      %v3391 = vunpack.c.l.b16 %v3227
      %v3392 = vunpack.c.h.b16 %v3227
      %v3393 = vpack.c.b16 %v3377, %v3369
      %v3394 = vpack.c.b16 %v3378, %v3370
      %v3395 = vpack.c.b16 %v3379, %v3371
      %v3396 = vpack.c.b16 %v3380, %v3372
      %v3397 = vpack.c.b16 %v3381, %v3373
      %v3398 = vpack.c.b16 %v3382, %v3374
      %v3399 = vpack.c.b16 %v3383, %v3375
      %v3400 = vpack.c.b16 %v3384, %v3376
      %v3401 = vpack.c.b16 %v3385, %v3385
      %v3402 = vpack.c.b16 %v3386, %v3386
      %v3403 = vpack.c.b16 %v3387, %v3387
      %v3404 = vpack.c.b16 %v3388, %v3388
      %v3405 = vpack.c.b16 %v3389, %v3389
      %v3406 = vpack.c.b16 %v3390, %v3390
      %v3407 = vpack.c.b16 %v3391, %v3391
      %v3408 = vpack.c.b16 %v3392, %v3392
      %v3409 = vrot.slane %v3393, 2
      %v3410 = vrot.slane %v3401, 2
      %v3411 = vsel %vm2367, %v3409, %v3410
      %v3412 = vrot.slane %v3394, 2
      %v3413 = vrot.slane %v3402, 2
      %v3414 = vsel %vm2367, %v3412, %v3413
      %v3415 = vrot.slane %v3395, 2
      %v3416 = vrot.slane %v3403, 2
      %v3417 = vsel %vm2367, %v3415, %v3416
      %v3418 = vrot.slane %v3396, 2
      %v3419 = vrot.slane %v3404, 2
      %v3420 = vsel %vm2367, %v3418, %v3419
      %v3421 = vrot.slane %v3397, 2
      %v3422 = vrot.slane %v3405, 2
      %v3423 = vsel %vm2367, %v3421, %v3422
      %v3424 = vrot.slane %v3398, 2
      %v3425 = vrot.slane %v3406, 2
      %v3426 = vsel %vm2367, %v3424, %v3425
      %v3427 = vrot.slane %v3399, 2
      %v3428 = vrot.slane %v3407, 2
      %v3429 = vsel %vm2367, %v3427, %v3428
      %v3430 = vrot.slane %v3400, 2
      %v3431 = vrot.slane %v3408, 2
      %v3432 = vsel %vm2367, %v3430, %v3431
      %v3569 = vunpack.c.l.b16 %v3229
      %v3570 = vunpack.c.h.b16 %v3229
      %v3571 = vunpack.c.l.b16 %v3230
      %v3572 = vunpack.c.h.b16 %v3230
      %v3573 = vunpack.c.l.b16 %v3231
      %v3574 = vunpack.c.h.b16 %v3231
      %v3575 = vunpack.c.l.b16 %v3232
      %v3576 = vunpack.c.h.b16 %v3232
      %v3577 = vunpack.c.l.b16 %v3233
      %v3578 = vunpack.c.h.b16 %v3233
      %v3579 = vunpack.c.l.b16 %v3234
      %v3580 = vunpack.c.h.b16 %v3234
      %v3581 = vunpack.c.l.b16 %v3235
      %v3582 = vunpack.c.h.b16 %v3235
      %v3583 = vunpack.c.l.b16 %v3236
      %v3584 = vunpack.c.h.b16 %v3236
      %v3585 = vunpack.c.l.b16 %v3237
      %v3586 = vunpack.c.h.b16 %v3237
      %v3587 = vunpack.c.l.b16 %v3238
      %v3588 = vunpack.c.h.b16 %v3238
      %v3589 = vunpack.c.l.b16 %v3239
      %v3590 = vunpack.c.h.b16 %v3239
      %v3591 = vunpack.c.l.b16 %v3240
      %v3592 = vunpack.c.h.b16 %v3240
      %v3593 = vunpack.c.l.b16 %v3241
      %v3594 = vunpack.c.h.b16 %v3241
      %v3595 = vunpack.c.l.b16 %v3242
      %v3596 = vunpack.c.h.b16 %v3242
      %v3597 = vunpack.c.l.b16 %v3243
      %v3598 = vunpack.c.h.b16 %v3243
      %v3599 = vunpack.c.l.b16 %v3244
      %v3600 = vunpack.c.h.b16 %v3244
      %v3601 = vunpack.c.l.b16 %v3245
      %v3602 = vunpack.c.h.b16 %v3245
      %v3603 = vunpack.c.l.b16 %v3246
      %v3604 = vunpack.c.h.b16 %v3246
      %v3605 = vunpack.c.l.b16 %v3247
      %v3606 = vunpack.c.h.b16 %v3247
      %v3607 = vunpack.c.l.b16 %v3248
      %v3608 = vunpack.c.h.b16 %v3248
      %v3609 = vunpack.c.l.b16 %v3249
      %v3610 = vunpack.c.h.b16 %v3249
      %v3611 = vunpack.c.l.b16 %v3250
      %v3612 = vunpack.c.h.b16 %v3250
      %v3613 = vunpack.c.l.b16 %v3251
      %v3614 = vunpack.c.h.b16 %v3251
      %v3615 = vunpack.c.l.b16 %v3252
      %v3616 = vunpack.c.h.b16 %v3252
      %v3617 = vunpack.c.l.b16 %v3253
      %v3618 = vunpack.c.h.b16 %v3253
      %v3619 = vunpack.c.l.b16 %v3254
      %v3620 = vunpack.c.h.b16 %v3254
      %v3621 = vunpack.c.l.b16 %v3255
      %v3622 = vunpack.c.h.b16 %v3255
      %v3623 = vunpack.c.l.b16 %v3256
      %v3624 = vunpack.c.h.b16 %v3256
      %v3625 = vunpack.c.l.b16 %v3257
      %v3626 = vunpack.c.h.b16 %v3257
      %v3627 = vunpack.c.l.b16 %v3258
      %v3628 = vunpack.c.h.b16 %v3258
      %v3629 = vunpack.c.l.b16 %v3259
      %v3630 = vunpack.c.h.b16 %v3259
      %v3631 = vunpack.c.l.b16 %v3260
      %v3632 = vunpack.c.h.b16 %v3260
      %v3633 = vunpack.c.l.b16 %v3261
      %v3634 = vunpack.c.h.b16 %v3261
      %v3635 = vunpack.c.l.b16 %v3262
      %v3636 = vunpack.c.h.b16 %v3262
      %v3637 = vunpack.c.l.b16 %v3263
      %v3638 = vunpack.c.h.b16 %v3263
      %v3639 = vunpack.c.l.b16 %v3264
      %v3640 = vunpack.c.h.b16 %v3264
      %v3641 = vunpack.c.l.b16 %v3265
      %v3642 = vunpack.c.h.b16 %v3265
      %v3643 = vunpack.c.l.b16 %v3266
      %v3644 = vunpack.c.h.b16 %v3266
      %v3645 = vunpack.c.l.b16 %v3267
      %v3646 = vunpack.c.h.b16 %v3267
      %v3647 = vunpack.c.l.b16 %v3268
      %v3648 = vunpack.c.h.b16 %v3268
      %v3649 = vunpack.c.l.b16 %v3269
      %v3650 = vunpack.c.h.b16 %v3269
      %v3651 = vunpack.c.l.b16 %v3270
      %v3652 = vunpack.c.h.b16 %v3270
      %v3653 = vunpack.c.l.b16 %v3271
      %v3654 = vunpack.c.h.b16 %v3271
      %v3655 = vunpack.c.l.b16 %v3272
      %v3656 = vunpack.c.h.b16 %v3272
      %v3657 = vunpack.c.l.b16 %v3273
      %v3658 = vunpack.c.h.b16 %v3273
      %v3659 = vunpack.c.l.b16 %v3274
      %v3660 = vunpack.c.h.b16 %v3274
      %v3661 = vunpack.c.l.b16 %v3275
      %v3662 = vunpack.c.h.b16 %v3275
      %v3663 = vunpack.c.l.b16 %v3276
      %v3664 = vunpack.c.h.b16 %v3276
      %v3665 = vunpack.c.l.b16 %v3277
      %v3666 = vunpack.c.h.b16 %v3277
      %v3667 = vunpack.c.l.b16 %v3278
      %v3668 = vunpack.c.h.b16 %v3278
      %v3669 = vunpack.c.l.b16 %v3279
      %v3670 = vunpack.c.h.b16 %v3279
      %v3671 = vunpack.c.l.b16 %v3280
      %v3672 = vunpack.c.h.b16 %v3280
      %v3673 = vunpack.c.l.b16 %v3281
      %v3674 = vunpack.c.h.b16 %v3281
      %v3675 = vunpack.c.l.b16 %v3282
      %v3676 = vunpack.c.h.b16 %v3282
      %v3677 = vunpack.c.l.b16 %v3283
      %v3678 = vunpack.c.h.b16 %v3283
      %v3679 = vunpack.c.l.b16 %v3284
      %v3680 = vunpack.c.h.b16 %v3284
      %v3681 = vunpack.c.l.b16 %v3285
      %v3682 = vunpack.c.h.b16 %v3285
      %v3683 = vunpack.c.l.b16 %v3286
      %v3684 = vunpack.c.h.b16 %v3286
      %v3685 = vunpack.c.l.b16 %v3287
      %v3686 = vunpack.c.h.b16 %v3287
      %v3687 = vunpack.c.l.b16 %v3288
      %v3688 = vunpack.c.h.b16 %v3288
      %v3689 = vunpack.c.l.b16 %v3289
      %v3690 = vunpack.c.h.b16 %v3289
      %v3691 = vunpack.c.l.b16 %v3290
      %v3692 = vunpack.c.h.b16 %v3290
      %v3693 = vunpack.c.l.b16 %v3291
      %v3694 = vunpack.c.h.b16 %v3291
      %v3695 = vunpack.c.l.b16 %v3292
      %v3696 = vunpack.c.h.b16 %v3292
      %v3697 = vunpack.c.l.b16 %v3293
      %v3698 = vunpack.c.h.b16 %v3293
      %v3699 = vunpack.c.l.b16 %v3294
      %v3700 = vunpack.c.h.b16 %v3294
      %v3701 = vunpack.c.l.b16 %v3295
      %v3702 = vunpack.c.h.b16 %v3295
      %v3703 = vunpack.c.l.b16 %v3296
      %v3704 = vunpack.c.h.b16 %v3296
      %v3705 = vunpack.c.l.b16 %v3297
      %v3706 = vunpack.c.h.b16 %v3297
      %v3707 = vunpack.c.l.b16 %v3298
      %v3708 = vunpack.c.h.b16 %v3298
      %v3709 = vunpack.c.l.b16 %v3299
      %v3710 = vunpack.c.h.b16 %v3299
      %v3711 = vunpack.c.l.b16 %v3300
      %v3712 = vunpack.c.h.b16 %v3300
      %v3713 = vunpack.c.l.b16 %v3301
      %v3714 = vunpack.c.h.b16 %v3301
      %v3715 = vunpack.c.l.b16 %v3302
      %v3716 = vunpack.c.h.b16 %v3302
      %v3717 = vunpack.c.l.b16 %v3303
      %v3718 = vunpack.c.h.b16 %v3303
      %v3719 = vunpack.c.l.b16 %v3304
      %v3720 = vunpack.c.h.b16 %v3304
      %v3721 = vunpack.c.l.b16 %v3305
      %v3722 = vunpack.c.h.b16 %v3305
      %v3723 = vunpack.c.l.b16 %v3306
      %v3724 = vunpack.c.h.b16 %v3306
      %v3725 = vunpack.c.l.b16 %v3307
      %v3726 = vunpack.c.h.b16 %v3307
      %v3727 = vunpack.c.l.b16 %v3308
      %v3728 = vunpack.c.h.b16 %v3308
      %v3729 = vunpack.c.l.b16 %v3309
      %v3730 = vunpack.c.h.b16 %v3309
      %v3731 = vunpack.c.l.b16 %v3310
      %v3732 = vunpack.c.h.b16 %v3310
      %v3733 = vunpack.c.l.b16 %v3311
      %v3734 = vunpack.c.h.b16 %v3311
      %v3735 = vunpack.c.l.b16 %v3312
      %v3736 = vunpack.c.h.b16 %v3312
      %v3737 = vunpack.c.l.b16 %v3313
      %v3738 = vunpack.c.h.b16 %v3313
      %v3739 = vunpack.c.l.b16 %v3314
      %v3740 = vunpack.c.h.b16 %v3314
      %v3741 = vunpack.c.l.b16 %v3315
      %v3742 = vunpack.c.h.b16 %v3315
      %v3743 = vunpack.c.l.b16 %v3316
      %v3744 = vunpack.c.h.b16 %v3316
      %v3745 = vunpack.c.l.b16 %v3317
      %v3746 = vunpack.c.h.b16 %v3317
      %v3747 = vunpack.c.l.b16 %v3318
      %v3748 = vunpack.c.h.b16 %v3318
      %v3749 = vunpack.c.l.b16 %v3319
      %v3750 = vunpack.c.h.b16 %v3319
      %v3751 = vunpack.c.l.b16 %v3320
      %v3752 = vunpack.c.h.b16 %v3320
      %v3753 = vunpack.c.l.b16 %v3321
      %v3754 = vunpack.c.h.b16 %v3321
      %v3755 = vunpack.c.l.b16 %v3322
      %v3756 = vunpack.c.h.b16 %v3322
      %v3757 = vunpack.c.l.b16 %v3323
      %v3758 = vunpack.c.h.b16 %v3323
      %v3759 = vunpack.c.l.b16 %v3324
      %v3760 = vunpack.c.h.b16 %v3324
      %v3761 = vunpack.c.l.b16 %v3325
      %v3762 = vunpack.c.h.b16 %v3325
      %v3763 = vunpack.c.l.b16 %v3326
      %v3764 = vunpack.c.h.b16 %v3326
      %v3765 = vunpack.c.l.b16 %v3327
      %v3766 = vunpack.c.h.b16 %v3327
      %v3767 = vunpack.c.l.b16 %v3328
      %v3768 = vunpack.c.h.b16 %v3328
      %v3769 = vunpack.c.l.b16 %v3329
      %v3770 = vunpack.c.h.b16 %v3329
      %v3771 = vunpack.c.l.b16 %v3330
      %v3772 = vunpack.c.h.b16 %v3330
      %v3773 = vunpack.c.l.b16 %v3331
      %v3774 = vunpack.c.h.b16 %v3331
      %v3775 = vunpack.c.l.b16 %v3332
      %v3776 = vunpack.c.h.b16 %v3332
      %v3777 = vunpack.c.l.b16 %v3333
      %v3778 = vunpack.c.h.b16 %v3333
      %v3779 = vunpack.c.l.b16 %v3334
      %v3780 = vunpack.c.h.b16 %v3334
      %v3781 = vunpack.c.l.b16 %v3335
      %v3782 = vunpack.c.h.b16 %v3335
      %v3783 = vunpack.c.l.b16 %v3336
      %v3784 = vunpack.c.h.b16 %v3336
      %v3785 = vunpack.c.l.b16 %v3337
      %v3786 = vunpack.c.h.b16 %v3337
      %v3787 = vunpack.c.l.b16 %v3338
      %v3788 = vunpack.c.h.b16 %v3338
      %v3789 = vunpack.c.l.b16 %v3339
      %v3790 = vunpack.c.h.b16 %v3339
      %v3791 = vunpack.c.l.b16 %v3340
      %v3792 = vunpack.c.h.b16 %v3340
      %v3793 = vunpack.c.l.b16 %v3341
      %v3794 = vunpack.c.h.b16 %v3341
      %v3795 = vunpack.c.l.b16 %v3342
      %v3796 = vunpack.c.h.b16 %v3342
      %v3797 = vunpack.c.l.b16 %v3343
      %v3798 = vunpack.c.h.b16 %v3343
      %v3799 = vunpack.c.l.b16 %v3344
      %v3800 = vunpack.c.h.b16 %v3344
      %v3801 = vunpack.c.l.b16 %v3345
      %v3802 = vunpack.c.h.b16 %v3345
      %v3803 = vunpack.c.l.b16 %v3346
      %v3804 = vunpack.c.h.b16 %v3346
      %v3805 = vunpack.c.l.b16 %v3347
      %v3806 = vunpack.c.h.b16 %v3347
      %v3807 = vunpack.c.l.b16 %v3348
      %v3808 = vunpack.c.h.b16 %v3348
      %v3809 = vunpack.c.l.b16 %v3349
      %v3810 = vunpack.c.h.b16 %v3349
      %v3811 = vunpack.c.l.b16 %v3350
      %v3812 = vunpack.c.h.b16 %v3350
      %v3813 = vunpack.c.l.b16 %v3351
      %v3814 = vunpack.c.h.b16 %v3351
      %v3815 = vunpack.c.l.b16 %v3352
      %v3816 = vunpack.c.h.b16 %v3352
      %v3817 = vunpack.c.l.b16 %v3353
      %v3818 = vunpack.c.h.b16 %v3353
      %v3819 = vunpack.c.l.b16 %v3354
      %v3820 = vunpack.c.h.b16 %v3354
      %v3821 = vunpack.c.l.b16 %v3355
      %v3822 = vunpack.c.h.b16 %v3355
      %v3823 = vunpack.c.l.b16 %v3356
      %v3824 = vunpack.c.h.b16 %v3356
      %v3825 = vpack.c.b16 %v3571, %v3569
      %v3826 = vpack.c.b16 %v3572, %v3570
      %v3827 = vpack.c.b16 %v3575, %v3573
      %v3828 = vpack.c.b16 %v3576, %v3574
      %v3829 = vpack.c.b16 %v3579, %v3577
      %v3830 = vpack.c.b16 %v3580, %v3578
      %v3831 = vpack.c.b16 %v3583, %v3581
      %v3832 = vpack.c.b16 %v3584, %v3582
      %v3833 = vpack.c.b16 %v3587, %v3585
      %v3834 = vpack.c.b16 %v3588, %v3586
      %v3835 = vpack.c.b16 %v3591, %v3589
      %v3836 = vpack.c.b16 %v3592, %v3590
      %v3837 = vpack.c.b16 %v3595, %v3593
      %v3838 = vpack.c.b16 %v3596, %v3594
      %v3839 = vpack.c.b16 %v3599, %v3597
      %v3840 = vpack.c.b16 %v3600, %v3598
      %v3841 = vpack.c.b16 %v3603, %v3601
      %v3842 = vpack.c.b16 %v3604, %v3602
      %v3843 = vpack.c.b16 %v3607, %v3605
      %v3844 = vpack.c.b16 %v3608, %v3606
      %v3845 = vpack.c.b16 %v3611, %v3609
      %v3846 = vpack.c.b16 %v3612, %v3610
      %v3847 = vpack.c.b16 %v3615, %v3613
      %v3848 = vpack.c.b16 %v3616, %v3614
      %v3849 = vpack.c.b16 %v3619, %v3617
      %v3850 = vpack.c.b16 %v3620, %v3618
      %v3851 = vpack.c.b16 %v3623, %v3621
      %v3852 = vpack.c.b16 %v3624, %v3622
      %v3853 = vpack.c.b16 %v3627, %v3625
      %v3854 = vpack.c.b16 %v3628, %v3626
      %v3855 = vpack.c.b16 %v3631, %v3629
      %v3856 = vpack.c.b16 %v3632, %v3630
      %v3857 = vpack.c.b16 %v3635, %v3633
      %v3858 = vpack.c.b16 %v3636, %v3634
      %v3859 = vpack.c.b16 %v3639, %v3637
      %v3860 = vpack.c.b16 %v3640, %v3638
      %v3861 = vpack.c.b16 %v3643, %v3641
      %v3862 = vpack.c.b16 %v3644, %v3642
      %v3863 = vpack.c.b16 %v3647, %v3645
      %v3864 = vpack.c.b16 %v3648, %v3646
      %v3865 = vpack.c.b16 %v3651, %v3649
      %v3866 = vpack.c.b16 %v3652, %v3650
      %v3867 = vpack.c.b16 %v3655, %v3653
      %v3868 = vpack.c.b16 %v3656, %v3654
      %v3869 = vpack.c.b16 %v3659, %v3657
      %v3870 = vpack.c.b16 %v3660, %v3658
      %v3871 = vpack.c.b16 %v3663, %v3661
      %v3872 = vpack.c.b16 %v3664, %v3662
      %v3873 = vpack.c.b16 %v3667, %v3665
      %v3874 = vpack.c.b16 %v3668, %v3666
      %v3875 = vpack.c.b16 %v3671, %v3669
      %v3876 = vpack.c.b16 %v3672, %v3670
      %v3877 = vpack.c.b16 %v3675, %v3673
      %v3878 = vpack.c.b16 %v3676, %v3674
      %v3879 = vpack.c.b16 %v3679, %v3677
      %v3880 = vpack.c.b16 %v3680, %v3678
      %v3881 = vpack.c.b16 %v3683, %v3681
      %v3882 = vpack.c.b16 %v3684, %v3682
      %v3883 = vpack.c.b16 %v3687, %v3685
      %v3884 = vpack.c.b16 %v3688, %v3686
      %v3885 = vpack.c.b16 %v3691, %v3689
      %v3886 = vpack.c.b16 %v3692, %v3690
      %v3887 = vpack.c.b16 %v3695, %v3693
      %v3888 = vpack.c.b16 %v3696, %v3694
      %v3889 = vpack.c.b16 %v3699, %v3697
      %v3890 = vpack.c.b16 %v3700, %v3698
      %v3891 = vpack.c.b16 %v3703, %v3701
      %v3892 = vpack.c.b16 %v3704, %v3702
      %v3893 = vpack.c.b16 %v3707, %v3705
      %v3894 = vpack.c.b16 %v3708, %v3706
      %v3895 = vpack.c.b16 %v3711, %v3709
      %v3896 = vpack.c.b16 %v3712, %v3710
      %v3897 = vpack.c.b16 %v3715, %v3713
      %v3898 = vpack.c.b16 %v3716, %v3714
      %v3899 = vpack.c.b16 %v3719, %v3717
      %v3900 = vpack.c.b16 %v3720, %v3718
      %v3901 = vpack.c.b16 %v3723, %v3721
      %v3902 = vpack.c.b16 %v3724, %v3722
      %v3903 = vpack.c.b16 %v3727, %v3725
      %v3904 = vpack.c.b16 %v3728, %v3726
      %v3905 = vpack.c.b16 %v3731, %v3729
      %v3906 = vpack.c.b16 %v3732, %v3730
      %v3907 = vpack.c.b16 %v3735, %v3733
      %v3908 = vpack.c.b16 %v3736, %v3734
      %v3909 = vpack.c.b16 %v3739, %v3737
      %v3910 = vpack.c.b16 %v3740, %v3738
      %v3911 = vpack.c.b16 %v3743, %v3741
      %v3912 = vpack.c.b16 %v3744, %v3742
      %v3913 = vpack.c.b16 %v3747, %v3745
      %v3914 = vpack.c.b16 %v3748, %v3746
      %v3915 = vpack.c.b16 %v3751, %v3749
      %v3916 = vpack.c.b16 %v3752, %v3750
      %v3917 = vpack.c.b16 %v3755, %v3753
      %v3918 = vpack.c.b16 %v3756, %v3754
      %v3919 = vpack.c.b16 %v3759, %v3757
      %v3920 = vpack.c.b16 %v3760, %v3758
      %v3921 = vpack.c.b16 %v3763, %v3761
      %v3922 = vpack.c.b16 %v3764, %v3762
      %v3923 = vpack.c.b16 %v3767, %v3765
      %v3924 = vpack.c.b16 %v3768, %v3766
      %v3925 = vpack.c.b16 %v3771, %v3769
      %v3926 = vpack.c.b16 %v3772, %v3770
      %v3927 = vpack.c.b16 %v3775, %v3773
      %v3928 = vpack.c.b16 %v3776, %v3774
      %v3929 = vpack.c.b16 %v3779, %v3777
      %v3930 = vpack.c.b16 %v3780, %v3778
      %v3931 = vpack.c.b16 %v3783, %v3781
      %v3932 = vpack.c.b16 %v3784, %v3782
      %v3933 = vpack.c.b16 %v3787, %v3785
      %v3934 = vpack.c.b16 %v3788, %v3786
      %v3935 = vpack.c.b16 %v3791, %v3789
      %v3936 = vpack.c.b16 %v3792, %v3790
      %v3937 = vpack.c.b16 %v3795, %v3793
      %v3938 = vpack.c.b16 %v3796, %v3794
      %v3939 = vpack.c.b16 %v3799, %v3797
      %v3940 = vpack.c.b16 %v3800, %v3798
      %v3941 = vpack.c.b16 %v3803, %v3801
      %v3942 = vpack.c.b16 %v3804, %v3802
      %v3943 = vpack.c.b16 %v3807, %v3805
      %v3944 = vpack.c.b16 %v3808, %v3806
      %v3945 = vpack.c.b16 %v3811, %v3809
      %v3946 = vpack.c.b16 %v3812, %v3810
      %v3947 = vpack.c.b16 %v3815, %v3813
      %v3948 = vpack.c.b16 %v3816, %v3814
      %v3949 = vpack.c.b16 %v3819, %v3817
      %v3950 = vpack.c.b16 %v3820, %v3818
      %v3951 = vpack.c.b16 %v3823, %v3821
      %v3952 = vpack.c.b16 %v3824, %v3822
      %4081 = vmatprep.subr.bf16.mxu0 %v3826
      %4082 = vmatpush1.bf16.msra.mxu0 %v3825
      %4083 = vmatprep.subr.bf16.mxu0 %v3828
      %4084 = vmatpush1.bf16.msra.mxu0 %v3827
      %4085 = vmatprep.subr.bf16.mxu0 %v3830
      %4086 = vmatpush1.bf16.msra.mxu0 %v3829
      %4087 = vmatprep.subr.bf16.mxu0 %v3832
      %4088 = vmatpush1.bf16.msra.mxu0 %v3831
      %4089 = vmatprep.subr.bf16.mxu0 %v3834
      %4090 = vmatpush1.bf16.msra.mxu0 %v3833
      %4091 = vmatprep.subr.bf16.mxu0 %v3836
      %4092 = vmatpush1.bf16.msra.mxu0 %v3835
      %4093 = vmatprep.subr.bf16.mxu0 %v3838
      %4094 = vmatpush1.bf16.msra.mxu0 %v3837
      %4095 = vmatprep.subr.bf16.mxu0 %v3840
      %4096 = vmatpush1.bf16.msra.mxu0 %v3839
      %4097 = vmatprep.subr.bf16.mxu0 %v3842
      %4098 = vmatpush1.bf16.msra.mxu0 %v3841
      %4099 = vmatprep.subr.bf16.mxu0 %v3844
      %4100 = vmatpush1.bf16.msra.mxu0 %v3843
      %4101 = vmatprep.subr.bf16.mxu0 %v3846
      %4102 = vmatpush1.bf16.msra.mxu0 %v3845
      %4103 = vmatprep.subr.bf16.mxu0 %v3848
      %4104 = vmatpush1.bf16.msra.mxu0 %v3847
      %4105 = vmatprep.subr.bf16.mxu0 %v3850
      %4106 = vmatpush1.bf16.msra.mxu0 %v3849
      %4107 = vmatprep.subr.bf16.mxu0 %v3852
      %4108 = vmatpush1.bf16.msra.mxu0 %v3851
      %4109 = vmatprep.subr.bf16.mxu0 %v3854
      %4110 = vmatpush1.bf16.msra.mxu0 %v3853
      %4111 = vmatprep.subr.bf16.mxu0 %v3856
      %4112 = vmatpush1.bf16.msra.mxu0 %v3855
      %4113 = vmatprep.mubr.bf16.mxu0 %v3414
      %4114 = vmatmul.mubr.bf16.gmra.mrb[0].mxu0 %v3411
      %v4115 = vpop.f32.mrb[0].mxu0
      %v4116 = vadd.f32 0.0, %v4115
      %v4117 = vpop.f32.mrb[0].mxu0
      %v4118 = vadd.f32 0.0, %v4117
      %v4119 = vpop.f32.mrb[0].mxu0
      %v4120 = vadd.f32 0.0, %v4119
      %v4121 = vpop.f32.mrb[0].mxu0
      %v4122 = vadd.f32 0.0, %v4121
      %4123 = vdwg.mxu0
      %4124 = vmatprep.subr.bf16.mxu0 %v3858
      %4125 = vmatpush1.bf16.msra.mxu0 %v3857
      %4126 = vmatprep.subr.bf16.mxu0 %v3860
      %4127 = vmatpush1.bf16.msra.mxu0 %v3859
      %4128 = vmatprep.subr.bf16.mxu0 %v3862
      %4129 = vmatpush1.bf16.msra.mxu0 %v3861
      %4130 = vmatprep.subr.bf16.mxu0 %v3864
      %4131 = vmatpush1.bf16.msra.mxu0 %v3863
      %4132 = vmatprep.subr.bf16.mxu0 %v3866
      %4133 = vmatpush1.bf16.msra.mxu0 %v3865
      %4134 = vmatprep.subr.bf16.mxu0 %v3868
      %4135 = vmatpush1.bf16.msra.mxu0 %v3867
      %4136 = vmatprep.subr.bf16.mxu0 %v3870
      %4137 = vmatpush1.bf16.msra.mxu0 %v3869
      %4138 = vmatprep.subr.bf16.mxu0 %v3872
      %4139 = vmatpush1.bf16.msra.mxu0 %v3871
      %4140 = vmatprep.subr.bf16.mxu0 %v3874
      %4141 = vmatpush1.bf16.msra.mxu0 %v3873
      %4142 = vmatprep.subr.bf16.mxu0 %v3876
      %4143 = vmatpush1.bf16.msra.mxu0 %v3875
      %4144 = vmatprep.subr.bf16.mxu0 %v3878
      %4145 = vmatpush1.bf16.msra.mxu0 %v3877
      %4146 = vmatprep.subr.bf16.mxu0 %v3880
      %4147 = vmatpush1.bf16.msra.mxu0 %v3879
      %4148 = vmatprep.subr.bf16.mxu0 %v3882
      %4149 = vmatpush1.bf16.msra.mxu0 %v3881
      %4150 = vmatprep.subr.bf16.mxu0 %v3884
      %4151 = vmatpush1.bf16.msra.mxu0 %v3883
      %4152 = vmatprep.subr.bf16.mxu0 %v3886
      %4153 = vmatpush1.bf16.msra.mxu0 %v3885
      %4154 = vmatprep.subr.bf16.mxu0 %v3888
      %4155 = vmatpush1.bf16.msra.mxu0 %v3887
      %4156 = vmatprep.mubr.bf16.mxu0 %v3420
      %4157 = vmatmul.mubr.bf16.gmra.mrb[0].mxu0 %v3417
      %v4158 = vpop.f32.mrb[0].mxu0
      %v4159 = vadd.f32 %v4116, %v4158
      %v4160 = vpop.f32.mrb[0].mxu0
      %v4161 = vadd.f32 %v4118, %v4160
      %v4162 = vpop.f32.mrb[0].mxu0
      %v4163 = vadd.f32 %v4120, %v4162
      %v4164 = vpop.f32.mrb[0].mxu0
      %v4165 = vadd.f32 %v4122, %v4164
      %4166 = vdwg.mxu0
      %4167 = vmatprep.subr.bf16.mxu0 %v3890
      %4168 = vmatpush1.bf16.msra.mxu0 %v3889
      %4169 = vmatprep.subr.bf16.mxu0 %v3892
      %4170 = vmatpush1.bf16.msra.mxu0 %v3891
      %4171 = vmatprep.subr.bf16.mxu0 %v3894
      %4172 = vmatpush1.bf16.msra.mxu0 %v3893
      %4173 = vmatprep.subr.bf16.mxu0 %v3896
      %4174 = vmatpush1.bf16.msra.mxu0 %v3895
      %4175 = vmatprep.subr.bf16.mxu0 %v3898
      %4176 = vmatpush1.bf16.msra.mxu0 %v3897
      %4177 = vmatprep.subr.bf16.mxu0 %v3900
      %4178 = vmatpush1.bf16.msra.mxu0 %v3899
      %4179 = vmatprep.subr.bf16.mxu0 %v3902
      %4180 = vmatpush1.bf16.msra.mxu0 %v3901
      %4181 = vmatprep.subr.bf16.mxu0 %v3904
      %4182 = vmatpush1.bf16.msra.mxu0 %v3903
      %4183 = vmatprep.subr.bf16.mxu0 %v3906
      %4184 = vmatpush1.bf16.msra.mxu0 %v3905
      %4185 = vmatprep.subr.bf16.mxu0 %v3908
      %4186 = vmatpush1.bf16.msra.mxu0 %v3907
      %4187 = vmatprep.subr.bf16.mxu0 %v3910
      %4188 = vmatpush1.bf16.msra.mxu0 %v3909
      %4189 = vmatprep.subr.bf16.mxu0 %v3912
      %4190 = vmatpush1.bf16.msra.mxu0 %v3911
      %4191 = vmatprep.subr.bf16.mxu0 %v3914
      %4192 = vmatpush1.bf16.msra.mxu0 %v3913
      %4193 = vmatprep.subr.bf16.mxu0 %v3916
      %4194 = vmatpush1.bf16.msra.mxu0 %v3915
      %4195 = vmatprep.subr.bf16.mxu0 %v3918
      %4196 = vmatpush1.bf16.msra.mxu0 %v3917
      %4197 = vmatprep.subr.bf16.mxu0 %v3920
      %4198 = vmatpush1.bf16.msra.mxu0 %v3919
      %4199 = vmatprep.mubr.bf16.mxu0 %v3426
      %4200 = vmatmul.mubr.bf16.gmra.mrb[0].mxu0 %v3423
      %v4201 = vpop.f32.mrb[0].mxu0
      %v4202 = vadd.f32 %v4159, %v4201
      %v4203 = vpop.f32.mrb[0].mxu0
      %v4204 = vadd.f32 %v4161, %v4203
      %v4205 = vpop.f32.mrb[0].mxu0
      %v4206 = vadd.f32 %v4163, %v4205
      %v4207 = vpop.f32.mrb[0].mxu0
      %v4208 = vadd.f32 %v4165, %v4207
      %4209 = vdwg.mxu0
      %4210 = vmatprep.subr.bf16.mxu0 %v3922
      %4211 = vmatpush1.bf16.msra.mxu0 %v3921
      %4212 = vmatprep.subr.bf16.mxu0 %v3924
      %4213 = vmatpush1.bf16.msra.mxu0 %v3923
      %4214 = vmatprep.subr.bf16.mxu0 %v3926
      %4215 = vmatpush1.bf16.msra.mxu0 %v3925
      %4216 = vmatprep.subr.bf16.mxu0 %v3928
      %4217 = vmatpush1.bf16.msra.mxu0 %v3927
      %4218 = vmatprep.subr.bf16.mxu0 %v3930
      %4219 = vmatpush1.bf16.msra.mxu0 %v3929
      %4220 = vmatprep.subr.bf16.mxu0 %v3932
      %4221 = vmatpush1.bf16.msra.mxu0 %v3931
      %4222 = vmatprep.subr.bf16.mxu0 %v3934
      %4223 = vmatpush1.bf16.msra.mxu0 %v3933
      %4224 = vmatprep.subr.bf16.mxu0 %v3936
      %4225 = vmatpush1.bf16.msra.mxu0 %v3935
      %4226 = vmatprep.subr.bf16.mxu0 %v3938
      %4227 = vmatpush1.bf16.msra.mxu0 %v3937
      %4228 = vmatprep.subr.bf16.mxu0 %v3940
      %4229 = vmatpush1.bf16.msra.mxu0 %v3939
      %4230 = vmatprep.subr.bf16.mxu0 %v3942
      %4231 = vmatpush1.bf16.msra.mxu0 %v3941
      %4232 = vmatprep.subr.bf16.mxu0 %v3944
      %4233 = vmatpush1.bf16.msra.mxu0 %v3943
      %4234 = vmatprep.subr.bf16.mxu0 %v3946
      %4235 = vmatpush1.bf16.msra.mxu0 %v3945
      %4236 = vmatprep.subr.bf16.mxu0 %v3948
      %4237 = vmatpush1.bf16.msra.mxu0 %v3947
      %4238 = vmatprep.subr.bf16.mxu0 %v3950
      %4239 = vmatpush1.bf16.msra.mxu0 %v3949
      %4240 = vmatprep.subr.bf16.mxu0 %v3952
      %4241 = vmatpush1.bf16.msra.mxu0 %v3951
      %4242 = vmatprep.mubr.bf16.mxu0 %v3432
      %4243 = vmatmul.mubr.bf16.gmra.mrb[0].mxu0 %v3429
      %v4244 = vpop.f32.mrb[0].mxu0
      %v4245 = vadd.f32 %v4202, %v4244
      %v4246 = vpop.f32.mrb[0].mxu0
      %v4247 = vadd.f32 %v4204, %v4246
      %v4248 = vpop.f32.mrb[0].mxu0
      %v4249 = vadd.f32 %v4206, %v4248
      %v4250 = vpop.f32.mrb[0].mxu0
      %v4251 = vadd.f32 %v4208, %v4250
      %4252 = vdwg.mxu0
      %v4253 = vadd.f32 %v3212, %v4245
      %v4254 = vadd.f32 %v3213, %v4247
      %v4255 = vadd.f32 %v3214, %v4249
      %v4256 = vadd.f32 %v3215, %v4251
      %v4257 = vld [vmem:[%s2] sm:$0x3]
      %v4259 = vlaneseq
      %v4260 = vshrl.u32 %v4259, 7
      %v4261 = vsub.s32 0, %v4260
      %v4262 = vrot.slane %v4257, %v4261
      %v4263 = vlaneseq
      %v4264 = vshrl.u32 %v4263, 7
      %v4265 = vsub.s32 1, %v4264
      %v4266 = vrot.slane %v4257, %v4265
      %v4269 = vadd.f32 %v4253, %v4262
      %v4270 = vadd.f32 %v4254, %v4266
      %v4271 = vadd.f32 %v4255, %v4262
      %v4272 = vadd.f32 %v4256, %v4266
      %v4273 = vadd.f32 %v4269, %v4271
      %v4274 = vrot.slane %v4273, 4
      %v4275 = vadd.f32 %v4273, %v4274
      %v4276 = vrot.slane %v4275, 2
      %v4277 = vadd.f32 %v4275, %v4276
      %v4278 = vrot.slane %v4277, 1
      %v4279 = vadd.f32 %v4277, %v4278
      %v4280 = vadd.f32 %v4270, %v4272
      %v4281 = vrot.slane %v4280, 4
      %v4282 = vadd.f32 %v4280, %v4281
      %v4283 = vrot.slane %v4282, 2
      %v4284 = vadd.f32 %v4282, %v4283
      %v4285 = vrot.slane %v4284, 1
      %v4286 = vadd.f32 %v4284, %v4285
      %v4287 = vrcp.pop 16.0
      %v4288 = vmul.f32 %v4279, %v4287
      %v4289 = vmul.f32 %v4286, %v4287
      %v4290 = vsub.f32 %v4269, %v4288
      %v4291 = vsub.f32 %v4270, %v4289
      %v4292 = vsub.f32 %v4271, %v4288
      %v4293 = vsub.f32 %v4272, %v4289
      %v4294 = vmul.f32 %v4290, %v4290
      %v4295 = vmul.f32 %v4291, %v4291
      %v4296 = vmul.f32 %v4292, %v4292
      %v4297 = vmul.f32 %v4293, %v4293
      %v4298 = vadd.f32 %v4294, %v4296
      %v4299 = vrot.slane %v4298, 4
      %v4300 = vadd.f32 %v4298, %v4299
      %v4301 = vrot.slane %v4300, 2
      %v4302 = vadd.f32 %v4300, %v4301
      %v4303 = vrot.slane %v4302, 1
      %v4304 = vadd.f32 %v4302, %v4303
      %v4305 = vadd.f32 %v4295, %v4297
      %v4306 = vrot.slane %v4305, 4
      %v4307 = vadd.f32 %v4305, %v4306
      %v4308 = vrot.slane %v4307, 2
      %v4309 = vadd.f32 %v4307, %v4308
      %v4310 = vrot.slane %v4309, 1
      %v4311 = vadd.f32 %v4309, %v4310
      %v4312 = vmul.f32 %v4304, %v4287
      %v4313 = vmul.f32 %v4311, %v4287
      %v4314 = vadd.f32 %v4312, 1e-05
      %v4315 = vadd.f32 %v4313, 1e-05
      %v4316 = vrsqrt.pop %v4314
      %v4317 = vrsqrt.pop %v4315
      %v4318 = vmul.f32 %v4290, %v4316
      %v4319 = vmul.f32 %v4291, %v4317
      %v4320 = vmul.f32 %v4292, %v4316
      %v4321 = vmul.f32 %v4293, %v4317
      %vm4322 = vcmp.gt.f32.partialorder %v4318, 0.0
      %vm4323 = vcmp.gt.f32.partialorder %v4319, 0.0
      %vm4324 = vcmp.gt.f32.partialorder %v4320, 0.0
      %vm4325 = vcmp.gt.f32.partialorder %v4321, 0.0
      %v4326 = vmul.f32 %v4318, 0.2
      %v4327 = vmul.f32 %v4319, 0.2
      %v4328 = vmul.f32 %v4320, 0.2
      %v4329 = vmul.f32 %v4321, 0.2
      %v4330 = vsel %vm4322, %v4318, %v4326
      %v4331 = vsel %vm4323, %v4319, %v4327
      %v4332 = vsel %vm4324, %v4320, %v4328
      %v4333 = vsel %vm4325, %v4321, %v4329
      %4334 = vst [vmem:[%s194] sm:$0xff] %v4330
      %4335 = vst [vmem:[%s194 + $0x8] sm:$0xff] %v4331
      %4336 = vst [vmem:[%s194 + $0x10] sm:$0xff] %v4332
      %4337 = vst [vmem:[%s194 + $0x18] sm:$0xff] %v4333
      %s4338 = smul.u32 2, %s19
      %p4339 = scmp.lt.s32.totalorder %s18, 1
      %s4340 = scalar_select %p4339, %s18, 1
      %p4341 = scmp.lt.s32.totalorder %s4338, 1
      %s4342 = scalar_select %p4341, %s4338, 1
      %s4343 = smul.addr %s4342, 2
      %s4344 = smul.addr %s4340, 4
      %s4345 = sadd.s32 %s4343, %s4344
      %s4346 = smul.addr %s4345, 8
      %s4347 = scalar_lea.vmem %s3, %s4346
      // Predicated region
      $region33: #{discriminator_forward.8} parent=31 // pred_check
        %p4348 = pneg %p114
      $region34: #{discriminator_forward.8} parent=31 // pred_check_branch
        %4350 = sbr.rel (%p4348) target = $region36
      $region35: #{discriminator_forward.8} parent=31 // pred_region
        %s4351 = smul.u32 2, %s19
      $region36: #{discriminator_forward.8} parent=31 // pred_fallthru
        _
    $region32: #{discriminator_forward.8} parent=5 // pred_fallthru
      _
    %p4352 = scmp.le.s32.totalorder 2, %s9
    // Predicated region
    $region37: #{discriminator_forward.8} parent=5 // pred_check
      %p4353 = pneg %p4352
    $region38: #{discriminator_forward.8} parent=5 // pred_check_branch
      %4355 = sbr.rel (%p4353) target = $region40
    $region39: #{discriminator_forward.8} parent=5 // pred_region
      %s4356 = ssub.s32 %s9, 2
      // Predicated region
      $region41: #{discriminator_forward.8} parent=39 // pred_check
        %p4357 = pneg %p120
      $region42: #{discriminator_forward.8} parent=39 // pred_check_branch
        %4359 = sbr.rel (%p4357) target = $region44
      $region43: #{discriminator_forward.8} parent=39 // pred_region
        %s4360 = smul.u32 2, %s21
        %p4361 = scmp.lt.s32.totalorder %s20, 1
        %s4362 = scalar_select %p4361, %s20, 1
        %p4363 = scmp.lt.s32.totalorder %s4360, 1
        %s4364 = scalar_select %p4363, %s4360, 1
        %s4365 = smul.addr %s4364, 2
        %s4366 = smul.addr %s4362, 4
        %s4367 = sadd.s32 %s4365, %s4366
        %s4368 = smul.addr %s4367, 8
        %s4369 = scalar_lea.vmem %s3, %s4368
      $region44: #{discriminator_forward.8} parent=39 // pred_fallthru
        _
    $region40: #{discriminator_forward.8} parent=5 // pred_fallthru
      _
  $region6: #{discriminator_forward.8} parent=0 // loop_footer
    %s13 = sadd.s32 1, %s9
  $region7: #{discriminator_forward.8} parent=0 // loop_footer_branch
    %8 = sbr.rel target = $region3
  $region8: #{discriminator_forward.8} parent=0 // loop_exit
    _

</llo_original>
